<compile_context>
chip_gen: v6e
topology: v6e:2x2x1
jax: 0.10.0
libtpu: 0.0.40
codegen_flags: <defaults>
</compile_context>

<pallas_src>
import functools

import jax
import jax.numpy as jnp
from jax.experimental import pallas as pl
from jax.experimental.pallas import tpu as pltpu

_LANE = 128
_BN_EPS = 1e-5


def _round_up(x, m):
    return (x + m - 1) // m * m


def _pick_row_tile(h, w):
    """Row-tile height: divisor of h (even preferred), targeting M = th*w >= 256."""
    divs = [d for d in range(1, h + 1) if h % d == 0]
    even = [d for d in divs if d % 2 == 0]
    cands = even if even else divs
    target = [d for d in cands if 256 <= d * w <= 1024]
    if target:
        th = min(target)
    else:
        under = [d for d in cands if d * w < 256]
        th = max(under) if under else min(cands)
    if h // th >= 2 and h < th + 2:      # the (th+2)-row halo window must fit in H
        th = h
    return th


# --------------------------- Pallas kernels ---------------------------------

def _conv3x3_kernel(x_hbm, a_ref, c_ref, w_ref, y_ref, stats_ref,
                    xbuf, xpad, sem, *, th, h, w, n_tiles, apply_affine):
    """3x3 conv on one (batch, row-tile) block.

    x_hbm  : HBM ref (N, H, W, Cin_p) bf16  (un-padded activation / input)
    a_ref  : VMEM (1, 1, Cin_p) f32   BN scale of the *previous* layer (fused input path)
    c_ref  : VMEM (1, 1, Cin_p) f32   BN shift of the previous layer
    w_ref  : VMEM (9, Cin_p, Cout_p) bf16
    y_ref  : out block (1, th, W, Cout_p) bf16   (raw conv output, pre-BN)
    stats_ref : out block (1, 1, 2, Cout_p) f32  (per-tile sum / sumsq)
    xbuf   : VMEM (nbuf, rows, W, Cin_p) bf16    manual halo DMA landing buffer(s)
    xpad   : VMEM (th+2, W+2, Cin_p) bf16        zero-padded working tile
    sem    : DMA semaphores, shape (nbuf,)
    """
    b = pl.program_id(0)
    i = pl.program_id(1)
    cin_p = xpad.shape[-1]
    cout_p = w_ref.shape[-1]

    def affine_relu(v):
        # Fused BN(prev layer) affine + ReLU + bf16 cast of the conv input.
        if not apply_affine:
            return v
        z = jnp.maximum(v.astype(jnp.float32) * a_ref[...] + c_ref[...], 0.0)
        return z.astype(jnp.bfloat16)

    if n_tiles == 1:
        # Whole image in a single tile: one DMA, no row halo to stitch.
        cp_in = pltpu.make_async_copy(x_hbm.at[b], xbuf.at[0], sem.at[0])
        cp_in.start()
        xpad[...] = jnp.zeros_like(xpad)       # zero border = conv zero padding
        cp_in.wait()
        xpad[1:h + 1, 1:w + 1, :] = affine_relu(xbuf[0])
    else:
        hi = h - th - 2                        # max legal DMA start row (>= 0 here)

        def start_fetch(row_tile, slot_):
            s0 = jnp.clip(row_tile * th - 1, 0, hi)
            pltpu.make_async_copy(x_hbm.at[b, pl.ds(s0, th + 2)],
                                  xbuf.at[slot_], sem.at[slot_]).start()

        @pl.when(i == 0)                       # prime the pipeline for this image
        def _():
            start_fetch(0, 0)

        slot = i % 2

        @pl.when(i + 1 < n_tiles)              # prefetch next row tile into other slot
        def _():
            start_fetch(i + 1, 1 - slot)

        xpad[...] = jnp.zeros_like(xpad)       # overlapped with the in-flight DMA

        pltpu.make_async_copy(x_hbm.at[b, pl.ds(0, th + 2)],
                              xbuf.at[slot], sem.at[slot]).wait()
        z = affine_relu(xbuf[slot])            # (th+2, W, Cin_p) bf16

        first = i == 0
        last = i == n_tiles - 1

        # Clamped DMA start => row alignment differs only at the image boundaries.
        @pl.when(jnp.logical_and(i > 0, i < n_tiles - 1))
        def _():
            xpad[:, 1:w + 1, :] = z

        @pl.when(first)
        def _():
            xpad[1:th + 2, 1:w + 1, :] = z[0:th + 1]

        @pl.when(last)
        def _():
            xpad[0:th + 1, 1:w + 1, :] = z[1:th + 2]

    # ---- 3x3 conv as 9 shifted bf16 MXU dots, f32 accumulation --------------
    # NOTE: conv bias is intentionally omitted; it cancels exactly through the
    # training-mode BatchNorm that always follows this conv in the module.
    acc = jnp.zeros((th * w, cout_p), jnp.float32)
    for dx in range(3):
        xs = xpad[:, dx:dx + w, :]                         # one W-shift per dx
        for dy in range(3):
            patch = xs[dy:dy + th].reshape(th * w, cin_p)  # contiguous sub-view
            acc = acc + jnp.dot(patch, w_ref[dy * 3 + dx],
                                preferred_element_type=jnp.float32)

    y_ref[0] = acc.reshape(th, w, cout_p).astype(y_ref.dtype)   # bf16 writeback

    s = jnp.sum(acc, axis=0, keepdims=True)                     # (1, Cout_p)
    q = jnp.sum(acc * acc, axis=0, keepdims=True)               # (1, Cout_p)
    stats_ref[0, 0] = jnp.concatenate([s, q], axis=0)


def _bn_relu_pool_kernel(y_ref, a_ref, c_ref, copy_ref, pool_ref, *, th, w):
    """Fused BN affine + ReLU (-> out_copy) and 2x2/stride-2 max pool (-> out_pool)."""
    z = jnp.maximum(y_ref[0].astype(jnp.float32) * a_ref[...] + c_ref[...], 0.0)
    copy_ref[0] = z.astype(copy_ref.dtype)

    cp = z.shape[-1]
    wo = w // 2
    zw = z.reshape(th, wo, 2, cp).max(axis=2)          # pair along W
    zp = zw.reshape(th // 2, 2, wo, cp).max(axis=1)    # pair along H
    pool_ref[0] = zp.astype(pool_ref.dtype)


# --------------------------- pallas_call wrappers ---------------------------

def _conv3x3_bn_stats(x, a, c, w9, h, w, th, apply_affine):
    """Tiled 3x3 conv (input-affine optionally fused); returns bf16 conv out + BN mean/var."""
    n = x.shape[0]
    cin_p = x.shape[-1]
    cout_p = w9.shape[-1]
    n_tiles = h // th
    nbuf = 1 if n_tiles == 1 else 2
    rows = h if n_tiles == 1 else th + 2

    kern = functools.partial(_conv3x3_kernel, th=th, h=h, w=w,
                             n_tiles=n_tiles, apply_affine=apply_affine)
    y, stats = pl.pallas_call(
        kern,
        grid=(n, n_tiles),
        in_specs=[
            pl.BlockSpec(memory_space=pl.ANY),                        # activation (HBM)
            pl.BlockSpec((1, 1, cin_p), lambda b, i: (0, 0, 0)),      # fused BN scale
            pl.BlockSpec((1, 1, cin_p), lambda b, i: (0, 0, 0)),      # fused BN shift
            pl.BlockSpec((9, cin_p, cout_p), lambda b, i: (0, 0, 0)), # weights
        ],
        out_specs=[
            pl.BlockSpec((1, th, w, cout_p), lambda b, i: (b, i, 0, 0)),
            pl.BlockSpec((1, 1, 2, cout_p), lambda b, i: (b, i, 0, 0)),
        ],
        out_shape=[
            jax.ShapeDtypeStruct((n, h, w, cout_p), jnp.bfloat16),
            jax.ShapeDtypeStruct((n, n_tiles, 2, cout_p), jnp.float32),
        ],
        scratch_shapes=[
            pltpu.VMEM((nbuf, rows, w, cin_p), jnp.bfloat16),
            pltpu.VMEM((th + 2, w + 2, cin_p), jnp.bfloat16),
            pltpu.SemaphoreType.DMA((nbuf,)),
        ],
        compiler_params=pltpu.CompilerParams(
            dimension_semantics=("parallel", "arbitrary")),
    )(x, a, c, w9)

    tot = jnp.sum(stats, axis=(0, 1))              # (2, Cout_p)
    count = float(n * h * w)
    mean = tot[0] / count
    var = jnp.maximum(tot[1] / count - mean * mean, 0.0)   # biased variance (training BN)
    return y, mean, var


def _bn_relu_maxpool(y, a, c, th):
    """Tiled fused BN affine + ReLU and 2x2 maxpool (even H/W/th fast path)."""
    n, h, w, cp = y.shape
    n_tiles = h // th

    kern = functools.partial(_bn_relu_pool_kernel, th=th, w=w)
    copy, pool = pl.pallas_call(
        kern,
        grid=(n, n_tiles),
        in_specs=[
            pl.BlockSpec((1, th, w, cp), lambda b, i: (b, i, 0, 0)),
            pl.BlockSpec((1, 1, cp), lambda b, i: (0, 0, 0)),
            pl.BlockSpec((1, 1, cp), lambda b, i: (0, 0, 0)),
        ],
        out_specs=[
            pl.BlockSpec((1, th, w, cp), lambda b, i: (b, i, 0, 0)),
            pl.BlockSpec((1, th // 2, w // 2, cp), lambda b, i: (b, i, 0, 0)),
        ],
        out_shape=[
            jax.ShapeDtypeStruct((n, h, w, cp), jnp.float32),
            jax.ShapeDtypeStruct((n, h // 2, w // 2, cp), jnp.float32),
        ],
        compiler_params=pltpu.CompilerParams(
            dimension_semantics=("parallel", "parallel")),
    )(y, a, c)
    return copy, pool


# ------------------------------ encoder forward ------------------------------

def encoder_forward(params, x_nchw):
    n, cin, h, w = x_nchw.shape
    cout = params["c1_b"].shape[0]
    cin_p = _round_up(cin, _LANE)
    cout_p = _round_up(cout, _LANE)
    th = _pick_row_tile(h, w)

    # NCHW -> NHWC, channels padded to lane width; spatial halos handled in-kernel.
    x = jnp.transpose(x_nchw, (0, 2, 3, 1)).astype(jnp.float32)
    x = jnp.pad(x, ((0, 0), (0, 0), (0, 0), (0, cin_p - cin))).astype(jnp.bfloat16)

    def prep_w(wt, ci, ci_p):
        wt = jnp.transpose(wt, (2, 3, 1, 0))                       # (3,3,I,O)
        wt = jnp.pad(wt, ((0, 0), (0, 0), (0, ci_p - ci), (0, cout_p - cout)))
        return wt.reshape(9, ci_p, cout_p).astype(jnp.bfloat16)

    w1 = prep_w(params["c1_w"], cin, cin_p)
    w2 = prep_w(params["c2_w"], cout, cout_p)
    g1 = jnp.pad(params["bn1_g"], (0, cout_p - cout))
    be1 = jnp.pad(params["bn1_b"], (0, cout_p - cout))
    g2 = jnp.pad(params["bn2_g"], (0, cout_p - cout))
    be2 = jnp.pad(params["bn2_b"], (0, cout_p - cout))
    # Conv biases dropped on purpose: with training-mode BN right after each conv they
    # are absorbed into the batch mean and cancel exactly in the module outputs.

    dummy = jnp.zeros((1, 1, cin_p), jnp.float32)
    y1, m1, v1 = _conv3x3_bn_stats(x, dummy, dummy, w1, h, w, th, apply_affine=False)
    a1 = g1 * jax.lax.rsqrt(v1 + _BN_EPS)
    c1 = be1 - m1 * a1

    # BN1 affine + ReLU + bf16 cast are fused into conv2's input path (no z1p HBM hop).
    y2, m2, v2 = _conv3x3_bn_stats(y1, a1.reshape(1, 1, cout_p),
                                   c1.reshape(1, 1, cout_p), w2, h, w, th,
                                   apply_affine=True)
    a2 = g2 * jax.lax.rsqrt(v2 + _BN_EPS)
    c2 = be2 - m2 * a2

    if th % 2 == 0 and h % 2 == 0 and w % 2 == 0:
        copy, pool = _bn_relu_maxpool(y2, a2.reshape(1, 1, cout_p),
                                      c2.reshape(1, 1, cout_p), th)
    else:
        # Fallback for odd spatial sizes: elementwise BN+ReLU + ceil-mode pool in XLA.
        copy = jnp.maximum(y2.astype(jnp.float32) * a2 + c2, 0.0)
        ho, wo = -(-h // 2), -(-w // 2)
        zp = jnp.pad(copy, ((0, 0), (0, 2 * ho - h), (0, 2 * wo - w), (0, 0)))
        pool = zp.reshape(n, ho, 2, wo, 2, cout_p).max(axis=(2, 4))

    out_copy = jnp.transpose(copy[..., :cout], (0, 3, 1, 2))
    out_pool = jnp.transpose(pool[..., :cout], (0, 3, 1, 2))
    return out_copy, out_pool
    # TODO(synk): BatchNorm running_mean/var are not updated (training-time side effect
    # that does not affect the forward outputs of this module).


# ------------------------------ reference (jnp) ------------------------------

def _reference(params, x):
    """Pure-jnp reference matching the kernel's bf16-matmul / f32-accumulate policy."""
    def conv_bn_relu(inp, wt, b, g, beta):
        z = jax.lax.conv_general_dilated(
            inp.astype(jnp.bfloat16), wt.astype(jnp.bfloat16),
            window_strides=(1, 1), padding=((1, 1), (1, 1)),
            dimension_numbers=("NCHW", "OIHW", "NCHW"),
            preferred_element_type=jnp.float32)
        z = z + b[None, :, None, None]
        mean = jnp.mean(z, axis=(0, 2, 3), keepdims=True)
        var = jnp.mean((z - mean) ** 2, axis=(0, 2, 3), keepdims=True)
        zn = (z - mean) * jax.lax.rsqrt(var + _BN_EPS)
        zn = zn * g[None, :, None, None] + beta[None, :, None, None]
        return jnp.maximum(zn, 0.0)

    h1 = conv_bn_relu(x, params["c1_w"], params["c1_b"], params["bn1_g"], params["bn1_b"])
    h2 = conv_bn_relu(h1, params["c2_w"], params["c2_b"], params["bn2_g"], params["bn2_b"])
    nb, c, hh, ww = h2.shape
    ho, wo = -(-hh // 2), -(-ww // 2)
    hp = jnp.pad(h2, ((0, 0), (0, 0), (0, 2 * ho - hh), (0, 2 * wo - ww)))  # relu>=0, 0-pad ok
    pool = hp.reshape(nb, c, ho, 2, wo, 2).max(axis=(3, 5))
    return h2, pool


def init_params(key, in_channels, out_channels):
    ks = jax.random.split(key, 8)
    return {
        "c1_w": 0.1 * jax.random.normal(ks[0], (out_channels, in_channels, 3, 3), jnp.float32),
        "c1_b": 0.05 * jax.random.normal(ks[1], (out_channels,), jnp.float32),
        "bn1_g": 1.0 + 0.1 * jax.random.normal(ks[2], (out_channels,), jnp.float32),
        "bn1_b": 0.1 * jax.random.normal(ks[3], (out_channels,), jnp.float32),
        "c2_w": 0.1 * jax.random.normal(ks[4], (out_channels, out_channels, 3, 3), jnp.float32),
        "c2_b": 0.05 * jax.random.normal(ks[5], (out_channels,), jnp.float32),
        "bn2_g": 1.0 + 0.1 * jax.random.normal(ks[6], (out_channels,), jnp.float32),
        "bn2_b": 0.1 * jax.random.normal(ks[7], (out_channels,), jnp.float32),
    }


if __name__ == "__main__":
    key = jax.random.PRNGKey(0)
    k_x, k_p = jax.random.split(key)

    in_channels, out_channels = 4, 8
    x = jax.random.normal(k_x, (2, in_channels, 16, 16), jnp.float32)
    params = init_params(k_p, in_channels, out_channels)

    fwd = jax.jit(encoder_forward)
    out_copy, out_pool = jax.block_until_ready(fwd(params, x))

    assert out_copy.shape == (2, out_channels, 16, 16), out_copy.shape
    assert out_pool.shape == (2, out_channels, 8, 8), out_pool.shape
    assert bool(jnp.all(jnp.isfinite(out_copy))) and bool(jnp.all(jnp.isfinite(out_pool)))

    ref_copy, ref_pool = _reference(params, x)
    assert bool(jnp.allclose(out_copy, ref_copy, atol=5e-2, rtol=5e-2))
    assert bool(jnp.allclose(out_pool, ref_pool, atol=5e-2, rtol=5e-2))

    print("KERNEL_OK")
</pallas_src>

<mosaic_0001>
module attributes {stable_mosaic.version = 11 : i64} {
  func.func @_conv3x3_kernel(%arg0: i32, %arg1: i32, %arg2: memref<2x16x16x128xbf16, #tpu.memory_space<any>>, %arg3: memref<1x1x128xf32, #tpu.memory_space<vmem>>, %arg4: memref<1x1x128xf32, #tpu.memory_space<vmem>>, %arg5: memref<9x128x128xbf16, #tpu.memory_space<vmem>>, %arg6: memref<1x16x16x128xbf16, #tpu.memory_space<vmem>>, %arg7: memref<1x1x2x128xf32, #tpu.memory_space<vmem>>, %arg8: memref<1x16x16x128xbf16, #tpu.memory_space<vmem>>, %arg9: memref<18x18x128xbf16, #tpu.memory_space<vmem>>, %arg10: memref<1x!tpu.dma_semaphore, #tpu.memory_space<semaphore_mem>>) attributes {dimension_semantics = [#tpu.dimension_semantics<parallel>, #tpu.dimension_semantics<arbitrary>], iteration_bounds = array<i64: 2, 1>, scalar_prefetch = 0 : i64, scratch_operands = 3 : i64, tpu.core_type = #tpu.core_type<tc>, window_params = [{}, {pipeline_mode = #tpu.pipeline_mode<synchronous>, transform_indices = @transform_1, window_bounds = array<i64: 1, 1, 128>}, {pipeline_mode = #tpu.pipeline_mode<synchronous>, transform_indices = @transform_2, window_bounds = array<i64: 1, 1, 128>}, {pipeline_mode = #tpu.pipeline_mode<synchronous>, transform_indices = @transform_3, window_bounds = array<i64: 9, 128, 128>}, {transform_indices = @transform_4, window_bounds = array<i64: 1, 16, 16, 128>}, {transform_indices = @transform_5, window_bounds = array<i64: 1, 1, 2, 128>}]} {
    %c0_i32 = arith.constant 0 : i32
    %c0_i32_0 = arith.constant 0 : i32
    %c0_i32_1 = arith.constant 0 : i32
    %c0_i32_2 = arith.constant 0 : i32
    %c0_i32_3 = arith.constant 0 : i32
    %0 = tpu.memref_slice %arg2[%arg0, %c0_i32_1, %c0_i32_2, %c0_i32_3] : memref<2x16x16x128xbf16, #tpu.memory_space<any>> -> memref<1x16x16x128xbf16, #tpu.memory_space<any>>
    %1 = tpu.memref_squeeze %0 : memref<1x16x16x128xbf16, #tpu.memory_space<any>> -> memref<16x16x128xbf16, #tpu.memory_space<any>>
    %c0_i32_4 = arith.constant 0 : i32
    %c0_i32_5 = arith.constant 0 : i32
    %c0_i32_6 = arith.constant 0 : i32
    %2 = tpu.memref_slice %arg8[%c0_i32, %c0_i32_4, %c0_i32_5, %c0_i32_6] : memref<1x16x16x128xbf16, #tpu.memory_space<vmem>> -> memref<1x16x16x128xbf16, #tpu.memory_space<vmem>>
    %3 = tpu.memref_squeeze %2 : memref<1x16x16x128xbf16, #tpu.memory_space<vmem>> -> memref<16x16x128xbf16, #tpu.memory_space<vmem>>
    %4 = tpu.memref_slice %arg10[%c0_i32_0] : memref<1x!tpu.dma_semaphore, #tpu.memory_space<semaphore_mem>> -> memref<1x!tpu.dma_semaphore, #tpu.memory_space<semaphore_mem>>
    %5 = tpu.memref_squeeze %4 : memref<1x!tpu.dma_semaphore, #tpu.memory_space<semaphore_mem>> -> memref<!tpu.dma_semaphore, #tpu.memory_space<semaphore_mem>>
    tpu.enqueue_dma source(%1 : memref<16x16x128xbf16, #tpu.memory_space<any>>) target(%3 : memref<16x16x128xbf16, #tpu.memory_space<vmem>>) target_semaphore(%5 : memref<!tpu.dma_semaphore, #tpu.memory_space<semaphore_mem>>)
    %cst = arith.constant 0.000000e+00 : bf16
    %6 = vector.broadcast %cst : bf16 to vector<18x18x128xbf16>
    %c0 = arith.constant 0 : index
    %c0_7 = arith.constant 0 : index
    %c0_8 = arith.constant 0 : index
    %7 = vector.load %arg9[%c0, %c0_7, %c0_8] : memref<18x18x128xbf16, #tpu.memory_space<vmem>>, vector<18x18x128xbf16>
    tpu.vector_store %arg9[%c0, %c0_7, %c0_8], %6 {strides = array<i32>} : memref<18x18x128xbf16, #tpu.memory_space<vmem>>, vector<18x18x128xbf16>,
    %c0_i32_9 = arith.constant 0 : i32
    %c0_i32_10 = arith.constant 0 : i32
    %c0_i32_11 = arith.constant 0 : i32
    %c0_i32_12 = arith.constant 0 : i32
    %c0_i32_13 = arith.constant 0 : i32
    %8 = tpu.memref_slice %arg2[%arg0, %c0_i32_11, %c0_i32_12, %c0_i32_13] : memref<2x16x16x128xbf16, #tpu.memory_space<any>> -> memref<1x16x16x128xbf16, #tpu.memory_space<any>>
    %9 = tpu.memref_squeeze %8 : memref<1x16x16x128xbf16, #tpu.memory_space<any>> -> memref<16x16x128xbf16, #tpu.memory_space<any>>
    %c0_i32_14 = arith.constant 0 : i32
    %c0_i32_15 = arith.constant 0 : i32
    %c0_i32_16 = arith.constant 0 : i32
    %10 = tpu.memref_slice %arg8[%c0_i32_9, %c0_i32_14, %c0_i32_15, %c0_i32_16] : memref<1x16x16x128xbf16, #tpu.memory_space<vmem>> -> memref<1x16x16x128xbf16, #tpu.memory_space<vmem>>
    %11 = tpu.memref_squeeze %10 : memref<1x16x16x128xbf16, #tpu.memory_space<vmem>> -> memref<16x16x128xbf16, #tpu.memory_space<vmem>>
    %12 = tpu.memref_slice %arg10[%c0_i32_10] : memref<1x!tpu.dma_semaphore, #tpu.memory_space<semaphore_mem>> -> memref<1x!tpu.dma_semaphore, #tpu.memory_space<semaphore_mem>>
    %13 = tpu.memref_squeeze %12 : memref<1x!tpu.dma_semaphore, #tpu.memory_space<semaphore_mem>> -> memref<!tpu.dma_semaphore, #tpu.memory_space<semaphore_mem>>
    tpu.wait_dma2 semaphore(%13 : memref<!tpu.dma_semaphore, #tpu.memory_space<semaphore_mem>>) src(%9 : memref<16x16x128xbf16, #tpu.memory_space<any>>) dst(%11 : memref<16x16x128xbf16, #tpu.memory_space<vmem>>)
    %c0_17 = arith.constant 0 : index
    %c0_18 = arith.constant 0 : index
    %c0_19 = arith.constant 0 : index
    %c0_20 = arith.constant 0 : index
    %14 = vector.load %arg8[%c0_17, %c0_18, %c0_19, %c0_20] : memref<1x16x16x128xbf16, #tpu.memory_space<vmem>>, vector<1x16x16x128xbf16>
    %15 = vector.shape_cast %14 : vector<1x16x16x128xbf16> to vector<16x16x128xbf16>
    %c1 = arith.constant 1 : index
    %c1_21 = arith.constant 1 : index
    %c0_22 = arith.constant 0 : index
    %16 = vector.load %arg9[%c1, %c1_21, %c0_22] : memref<18x18x128xbf16, #tpu.memory_space<vmem>>, vector<16x16x128xbf16>
    tpu.vector_store %arg9[%c1, %c1_21, %c0_22], %15 {strides = array<i32>} : memref<18x18x128xbf16, #tpu.memory_space<vmem>>, vector<16x16x128xbf16>,
    %cst_23 = arith.constant 0.000000e+00 : f32
    %17 = vector.broadcast %cst_23 : f32 to vector<256x128xf32>
    %c0_24 = arith.constant 0 : index
    %c0_25 = arith.constant 0 : index
    %c0_26 = arith.constant 0 : index
    %18 = vector.load %arg9[%c0_24, %c0_25, %c0_26] : memref<18x18x128xbf16, #tpu.memory_space<vmem>>, vector<18x16x128xbf16>
    %19 = vector.extract_strided_slice %18 {offsets = [0, 0, 0], sizes = [16, 16, 128], strides = [1, 1, 1]} : vector<18x16x128xbf16> to vector<16x16x128xbf16>
    %20 = vector.shape_cast %19 : vector<16x16x128xbf16> to vector<256x128xbf16>
    %c0_27 = arith.constant 0 : index
    %c0_28 = arith.constant 0 : index
    %c0_29 = arith.constant 0 : index
    %21 = vector.load %arg5[%c0_27, %c0_28, %c0_29] : memref<9x128x128xbf16, #tpu.memory_space<vmem>>, vector<1x128x128xbf16>
    %22 = vector.shape_cast %21 : vector<1x128x128xbf16> to vector<128x128xbf16>
    %cst_30 = arith.constant dense<0.000000e+00> : vector<256x128xf32>
    %23 = tpu.matmul %20, %22, %cst_30 {dimension_numbers = #tpu.dot_dimension_numbers<[1], [0], [0], [1], [0, 0, 1, 1], [], []>} : vector<256x128xbf16>, vector<128x128xbf16>, vector<256x128xf32> -> vector<256x128xf32>
    %24 = arith.addf %17, %23 : vector<256x128xf32>
    %25 = vector.extract_strided_slice %18 {offsets = [1, 0, 0], sizes = [16, 16, 128], strides = [1, 1, 1]} : vector<18x16x128xbf16> to vector<16x16x128xbf16>
    %26 = vector.shape_cast %25 : vector<16x16x128xbf16> to vector<256x128xbf16>
    %c3 = arith.constant 3 : index
    %c0_31 = arith.constant 0 : index
    %c0_32 = arith.constant 0 : index
    %27 = vector.load %arg5[%c3, %c0_31, %c0_32] : memref<9x128x128xbf16, #tpu.memory_space<vmem>>, vector<1x128x128xbf16>
    %28 = vector.shape_cast %27 : vector<1x128x128xbf16> to vector<128x128xbf16>
    %cst_33 = arith.constant dense<0.000000e+00> : vector<256x128xf32>
    %29 = tpu.matmul %26, %28, %cst_33 {dimension_numbers = #tpu.dot_dimension_numbers<[1], [0], [0], [1], [0, 0, 1, 1], [], []>} : vector<256x128xbf16>, vector<128x128xbf16>, vector<256x128xf32> -> vector<256x128xf32>
    %30 = arith.addf %24, %29 : vector<256x128xf32>
    %31 = vector.extract_strided_slice %18 {offsets = [2, 0, 0], sizes = [16, 16, 128], strides = [1, 1, 1]} : vector<18x16x128xbf16> to vector<16x16x128xbf16>
    %32 = vector.shape_cast %31 : vector<16x16x128xbf16> to vector<256x128xbf16>
    %c6 = arith.constant 6 : index
    %c0_34 = arith.constant 0 : index
    %c0_35 = arith.constant 0 : index
    %33 = vector.load %arg5[%c6, %c0_34, %c0_35] : memref<9x128x128xbf16, #tpu.memory_space<vmem>>, vector<1x128x128xbf16>
    %34 = vector.shape_cast %33 : vector<1x128x128xbf16> to vector<128x128xbf16>
    %cst_36 = arith.constant dense<0.000000e+00> : vector<256x128xf32>
    %35 = tpu.matmul %32, %34, %cst_36 {dimension_numbers = #tpu.dot_dimension_numbers<[1], [0], [0], [1], [0, 0, 1, 1], [], []>} : vector<256x128xbf16>, vector<128x128xbf16>, vector<256x128xf32> -> vector<256x128xf32>
    %36 = arith.addf %30, %35 : vector<256x128xf32>
    %c0_37 = arith.constant 0 : index
    %c1_38 = arith.constant 1 : index
    %c0_39 = arith.constant 0 : index
    %37 = vector.load %arg9[%c0_37, %c1_38, %c0_39] : memref<18x18x128xbf16, #tpu.memory_space<vmem>>, vector<18x16x128xbf16>
    %38 = vector.extract_strided_slice %37 {offsets = [0, 0, 0], sizes = [16, 16, 128], strides = [1, 1, 1]} : vector<18x16x128xbf16> to vector<16x16x128xbf16>
    %39 = vector.shape_cast %38 : vector<16x16x128xbf16> to vector<256x128xbf16>
    %c1_40 = arith.constant 1 : index
    %c0_41 = arith.constant 0 : index
    %c0_42 = arith.constant 0 : index
    %40 = vector.load %arg5[%c1_40, %c0_41, %c0_42] : memref<9x128x128xbf16, #tpu.memory_space<vmem>>, vector<1x128x128xbf16>
    %41 = vector.shape_cast %40 : vector<1x128x128xbf16> to vector<128x128xbf16>
    %cst_43 = arith.constant dense<0.000000e+00> : vector<256x128xf32>
    %42 = tpu.matmul %39, %41, %cst_43 {dimension_numbers = #tpu.dot_dimension_numbers<[1], [0], [0], [1], [0, 0, 1, 1], [], []>} : vector<256x128xbf16>, vector<128x128xbf16>, vector<256x128xf32> -> vector<256x128xf32>
    %43 = arith.addf %36, %42 : vector<256x128xf32>
    %44 = vector.extract_strided_slice %37 {offsets = [1, 0, 0], sizes = [16, 16, 128], strides = [1, 1, 1]} : vector<18x16x128xbf16> to vector<16x16x128xbf16>
    %45 = vector.shape_cast %44 : vector<16x16x128xbf16> to vector<256x128xbf16>
    %c4 = arith.constant 4 : index
    %c0_44 = arith.constant 0 : index
    %c0_45 = arith.constant 0 : index
    %46 = vector.load %arg5[%c4, %c0_44, %c0_45] : memref<9x128x128xbf16, #tpu.memory_space<vmem>>, vector<1x128x128xbf16>
    %47 = vector.shape_cast %46 : vector<1x128x128xbf16> to vector<128x128xbf16>
    %cst_46 = arith.constant dense<0.000000e+00> : vector<256x128xf32>
    %48 = tpu.matmul %45, %47, %cst_46 {dimension_numbers = #tpu.dot_dimension_numbers<[1], [0], [0], [1], [0, 0, 1, 1], [], []>} : vector<256x128xbf16>, vector<128x128xbf16>, vector<256x128xf32> -> vector<256x128xf32>
    %49 = arith.addf %43, %48 : vector<256x128xf32>
    %50 = vector.extract_strided_slice %37 {offsets = [2, 0, 0], sizes = [16, 16, 128], strides = [1, 1, 1]} : vector<18x16x128xbf16> to vector<16x16x128xbf16>
    %51 = vector.shape_cast %50 : vector<16x16x128xbf16> to vector<256x128xbf16>
    %c7 = arith.constant 7 : index
    %c0_47 = arith.constant 0 : index
    %c0_48 = arith.constant 0 : index
    %52 = vector.load %arg5[%c7, %c0_47, %c0_48] : memref<9x128x128xbf16, #tpu.memory_space<vmem>>, vector<1x128x128xbf16>
    %53 = vector.shape_cast %52 : vector<1x128x128xbf16> to vector<128x128xbf16>
    %cst_49 = arith.constant dense<0.000000e+00> : vector<256x128xf32>
    %54 = tpu.matmul %51, %53, %cst_49 {dimension_numbers = #tpu.dot_dimension_numbers<[1], [0], [0], [1], [0, 0, 1, 1], [], []>} : vector<256x128xbf16>, vector<128x128xbf16>, vector<256x128xf32> -> vector<256x128xf32>
    %55 = arith.addf %49, %54 : vector<256x128xf32>
    %c0_50 = arith.constant 0 : index
    %c2 = arith.constant 2 : index
    %c0_51 = arith.constant 0 : index
    %56 = vector.load %arg9[%c0_50, %c2, %c0_51] : memref<18x18x128xbf16, #tpu.memory_space<vmem>>, vector<18x16x128xbf16>
    %57 = vector.extract_strided_slice %56 {offsets = [0, 0, 0], sizes = [16, 16, 128], strides = [1, 1, 1]} : vector<18x16x128xbf16> to vector<16x16x128xbf16>
    %58 = vector.shape_cast %57 : vector<16x16x128xbf16> to vector<256x128xbf16>
    %c2_52 = arith.constant 2 : index
    %c0_53 = arith.constant 0 : index
    %c0_54 = arith.constant 0 : index
    %59 = vector.load %arg5[%c2_52, %c0_53, %c0_54] : memref<9x128x128xbf16, #tpu.memory_space<vmem>>, vector<1x128x128xbf16>
    %60 = vector.shape_cast %59 : vector<1x128x128xbf16> to vector<128x128xbf16>
    %cst_55 = arith.constant dense<0.000000e+00> : vector<256x128xf32>
    %61 = tpu.matmul %58, %60, %cst_55 {dimension_numbers = #tpu.dot_dimension_numbers<[1], [0], [0], [1], [0, 0, 1, 1], [], []>} : vector<256x128xbf16>, vector<128x128xbf16>, vector<256x128xf32> -> vector<256x128xf32>
    %62 = arith.addf %55, %61 : vector<256x128xf32>
    %63 = vector.extract_strided_slice %56 {offsets = [1, 0, 0], sizes = [16, 16, 128], strides = [1, 1, 1]} : vector<18x16x128xbf16> to vector<16x16x128xbf16>
    %64 = vector.shape_cast %63 : vector<16x16x128xbf16> to vector<256x128xbf16>
    %c5 = arith.constant 5 : index
    %c0_56 = arith.constant 0 : index
    %c0_57 = arith.constant 0 : index
    %65 = vector.load %arg5[%c5, %c0_56, %c0_57] : memref<9x128x128xbf16, #tpu.memory_space<vmem>>, vector<1x128x128xbf16>
    %66 = vector.shape_cast %65 : vector<1x128x128xbf16> to vector<128x128xbf16>
    %cst_58 = arith.constant dense<0.000000e+00> : vector<256x128xf32>
    %67 = tpu.matmul %64, %66, %cst_58 {dimension_numbers = #tpu.dot_dimension_numbers<[1], [0], [0], [1], [0, 0, 1, 1], [], []>} : vector<256x128xbf16>, vector<128x128xbf16>, vector<256x128xf32> -> vector<256x128xf32>
    %68 = arith.addf %62, %67 : vector<256x128xf32>
    %69 = vector.extract_strided_slice %56 {offsets = [2, 0, 0], sizes = [16, 16, 128], strides = [1, 1, 1]} : vector<18x16x128xbf16> to vector<16x16x128xbf16>
    %70 = vector.shape_cast %69 : vector<16x16x128xbf16> to vector<256x128xbf16>
    %c8 = arith.constant 8 : index
    %c0_59 = arith.constant 0 : index
    %c0_60 = arith.constant 0 : index
    %71 = vector.load %arg5[%c8, %c0_59, %c0_60] : memref<9x128x128xbf16, #tpu.memory_space<vmem>>, vector<1x128x128xbf16>
    %72 = vector.shape_cast %71 : vector<1x128x128xbf16> to vector<128x128xbf16>
    %cst_61 = arith.constant dense<0.000000e+00> : vector<256x128xf32>
    %73 = tpu.matmul %70, %72, %cst_61 {dimension_numbers = #tpu.dot_dimension_numbers<[1], [0], [0], [1], [0, 0, 1, 1], [], []>} : vector<256x128xbf16>, vector<128x128xbf16>, vector<256x128xf32> -> vector<256x128xf32>
    %74 = arith.addf %68, %73 : vector<256x128xf32>
    %75 = vector.shape_cast %74 : vector<256x128xf32> to vector<16x16x128xf32>
    %76 = arith.truncf %75 : vector<16x16x128xf32> to vector<16x16x128xbf16>
    %c0_62 = arith.constant 0 : index
    %c0_63 = arith.constant 0 : index
    %c0_64 = arith.constant 0 : index
    %c0_65 = arith.constant 0 : index
    %77 = vector.load %arg6[%c0_62, %c0_63, %c0_64, %c0_65] : memref<1x16x16x128xbf16, #tpu.memory_space<vmem>>, vector<1x16x16x128xbf16>
    %78 = vector.shape_cast %77 : vector<1x16x16x128xbf16> to vector<16x16x128xbf16>
    %79 = vector.shape_cast %76 : vector<16x16x128xbf16> to vector<1x16x16x128xbf16>
    tpu.vector_store %arg6[%c0_62, %c0_63, %c0_64, %c0_65], %79 {strides = array<i32>} : memref<1x16x16x128xbf16, #tpu.memory_space<vmem>>, vector<1x16x16x128xbf16>,
    %cst_66 = arith.constant dense<0.000000e+00> : vector<128xf32>
    %80 = vector.multi_reduction <add>, %74, %cst_66 [0] : vector<256x128xf32> to vector<128xf32>
    %81 = vector.shape_cast %80 : vector<128xf32> to vector<1x128xf32>
    %82 = arith.mulf %74, %74 : vector<256x128xf32>
    %cst_67 = arith.constant dense<0.000000e+00> : vector<128xf32>
    %83 = vector.multi_reduction <add>, %82, %cst_67 [0] : vector<256x128xf32> to vector<128xf32>
    %84 = vector.shape_cast %83 : vector<128xf32> to vector<1x128xf32>
    %85 = tpu.concatenate %81, %84 in 0 : vector<1x128xf32>, vector<1x128xf32> -> vector<2x128xf32>
    %c0_68 = arith.constant 0 : index
    %c0_69 = arith.constant 0 : index
    %c0_70 = arith.constant 0 : index
    %c0_71 = arith.constant 0 : index
    %86 = vector.load %arg7[%c0_68, %c0_69, %c0_70, %c0_71] : memref<1x1x2x128xf32, #tpu.memory_space<vmem>>, vector<1x1x2x128xf32>
    %87 = vector.shape_cast %86 : vector<1x1x2x128xf32> to vector<2x128xf32>
    %88 = vector.shape_cast %85 : vector<2x128xf32> to vector<1x1x2x128xf32>
    tpu.vector_store %arg7[%c0_68, %c0_69, %c0_70, %c0_71], %88 {strides = array<i32>} : memref<1x1x2x128xf32, #tpu.memory_space<vmem>>, vector<1x1x2x128xf32>,
    return
  }
  func.func @transform_1(%arg0: i32, %arg1: i32) -> (i32, i32, i32) {
    %c0_i32 = arith.constant 0 : i32
    %c0_i32_0 = arith.constant 0 : i32
    %c0_i32_1 = arith.constant 0 : i32
    %c0_i32_2 = arith.constant 0 : i32
    return %c0_i32, %c0_i32_0, %c0_i32_1 : i32, i32, i32
  }
  func.func @transform_2(%arg0: i32, %arg1: i32) -> (i32, i32, i32) {
    %c0_i32 = arith.constant 0 : i32
    %c0_i32_0 = arith.constant 0 : i32
    %c0_i32_1 = arith.constant 0 : i32
    %c0_i32_2 = arith.constant 0 : i32
    return %c0_i32, %c0_i32_0, %c0_i32_1 : i32, i32, i32
  }
  func.func @transform_3(%arg0: i32, %arg1: i32) -> (i32, i32, i32) {
    %c0_i32 = arith.constant 0 : i32
    %c0_i32_0 = arith.constant 0 : i32
    %c0_i32_1 = arith.constant 0 : i32
    %c0_i32_2 = arith.constant 0 : i32
    return %c0_i32, %c0_i32_0, %c0_i32_1 : i32, i32, i32
  }
  func.func @transform_4(%arg0: i32, %arg1: i32) -> (i32, i32, i32, i32) {
    %c0_i32 = arith.constant 0 : i32
    %c0_i32_0 = arith.constant 0 : i32
    %c0_i32_1 = arith.constant 0 : i32
    return %arg0, %arg1, %c0_i32, %c0_i32_0 : i32, i32, i32, i32
  }
  func.func @transform_5(%arg0: i32, %arg1: i32) -> (i32, i32, i32, i32) {
    %c0_i32 = arith.constant 0 : i32
    %c0_i32_0 = arith.constant 0 : i32
    %c0_i32_1 = arith.constant 0 : i32
    return %arg0, %arg1, %c0_i32, %c0_i32_0 : i32, i32, i32, i32
  }
}

module attributes {stable_mosaic.version = 11 : i64} {
  func.func @_bn_relu_pool_kernel(%arg0: i32, %arg1: i32, %arg2: memref<1x16x16x128xbf16, #tpu.memory_space<vmem>>, %arg3: memref<1x1x128xf32, #tpu.memory_space<vmem>>, %arg4: memref<1x1x128xf32, #tpu.memory_space<vmem>>, %arg5: memref<1x16x16x128xf32, #tpu.memory_space<vmem>>, %arg6: memref<1x8x8x128xf32, #tpu.memory_space<vmem>>) attributes {dimension_semantics = [#tpu.dimension_semantics<parallel>, #tpu.dimension_semantics<parallel>], iteration_bounds = array<i64: 2, 1>, scalar_prefetch = 0 : i64, scratch_operands = 0 : i64, tpu.core_type = #tpu.core_type<tc>, window_params = [{transform_indices = @transform_0, window_bounds = array<i64: 1, 16, 16, 128>}, {pipeline_mode = #tpu.pipeline_mode<synchronous>, transform_indices = @transform_1, window_bounds = array<i64: 1, 1, 128>}, {pipeline_mode = #tpu.pipeline_mode<synchronous>, transform_indices = @transform_2, window_bounds = array<i64: 1, 1, 128>}, {transform_indices = @transform_3, window_bounds = array<i64: 1, 16, 16, 128>}, {transform_indices = @transform_4, window_bounds = array<i64: 1, 8, 8, 128>}]} {
    %c0 = arith.constant 0 : index
    %c0_0 = arith.constant 0 : index
    %c0_1 = arith.constant 0 : index
    %c0_2 = arith.constant 0 : index
    %0 = vector.load %arg2[%c0, %c0_0, %c0_1, %c0_2] : memref<1x16x16x128xbf16, #tpu.memory_space<vmem>>, vector<1x16x16x128xbf16>
    %1 = vector.shape_cast %0 : vector<1x16x16x128xbf16> to vector<16x16x128xbf16>
    %2 = arith.extf %1 : vector<16x16x128xbf16> to vector<16x16x128xf32>
    %c0_3 = arith.constant 0 : index
    %c0_4 = arith.constant 0 : index
    %c0_5 = arith.constant 0 : index
    %3 = vector.load %arg3[%c0_3, %c0_4, %c0_5] : memref<1x1x128xf32, #tpu.memory_space<vmem>>, vector<1x1x128xf32>
    %4 = vector.broadcast %3 : vector<1x1x128xf32> to vector<16x16x128xf32>
    %5 = arith.mulf %2, %4 : vector<16x16x128xf32>
    %c0_6 = arith.constant 0 : index
    %c0_7 = arith.constant 0 : index
    %c0_8 = arith.constant 0 : index
    %6 = vector.load %arg4[%c0_6, %c0_7, %c0_8] : memref<1x1x128xf32, #tpu.memory_space<vmem>>, vector<1x1x128xf32>
    %7 = vector.broadcast %6 : vector<1x1x128xf32> to vector<16x16x128xf32>
    %8 = arith.addf %5, %7 : vector<16x16x128xf32>
    %cst = arith.constant 0.000000e+00 : f32
    %9 = vector.broadcast %cst : f32 to vector<16x16x128xf32>
    %10 = arith.maximumf %8, %9 : vector<16x16x128xf32>
    %c0_9 = arith.constant 0 : index
    %c0_10 = arith.constant 0 : index
    %c0_11 = arith.constant 0 : index
    %c0_12 = arith.constant 0 : index
    %11 = vector.load %arg5[%c0_9, %c0_10, %c0_11, %c0_12] : memref<1x16x16x128xf32, #tpu.memory_space<vmem>>, vector<1x16x16x128xf32>
    %12 = vector.shape_cast %11 : vector<1x16x16x128xf32> to vector<16x16x128xf32>
    %13 = vector.shape_cast %10 : vector<16x16x128xf32> to vector<1x16x16x128xf32>
    tpu.vector_store %arg5[%c0_9, %c0_10, %c0_11, %c0_12], %13 {strides = array<i32>} : memref<1x16x16x128xf32, #tpu.memory_space<vmem>>, vector<1x16x16x128xf32>,
    %14 = vector.shape_cast %10 : vector<16x16x128xf32> to vector<16x8x2x128xf32>
    %cst_13 = arith.constant dense<0xFF800000> : vector<16x8x128xf32>
    %15 = vector.multi_reduction <maximumf>, %14, %cst_13 [2] : vector<16x8x2x128xf32> to vector<16x8x128xf32>
    %16 = vector.shape_cast %15 : vector<16x8x128xf32> to vector<8x2x8x128xf32>
    %cst_14 = arith.constant dense<0xFF800000> : vector<8x8x128xf32>
    %17 = vector.multi_reduction <maximumf>, %16, %cst_14 [1] : vector<8x2x8x128xf32> to vector<8x8x128xf32>
    %c0_15 = arith.constant 0 : index
    %c0_16 = arith.constant 0 : index
    %c0_17 = arith.constant 0 : index
    %c0_18 = arith.constant 0 : index
    %18 = vector.load %arg6[%c0_15, %c0_16, %c0_17, %c0_18] : memref<1x8x8x128xf32, #tpu.memory_space<vmem>>, vector<1x8x8x128xf32>
    %19 = vector.shape_cast %18 : vector<1x8x8x128xf32> to vector<8x8x128xf32>
    %20 = vector.shape_cast %17 : vector<8x8x128xf32> to vector<1x8x8x128xf32>
    tpu.vector_store %arg6[%c0_15, %c0_16, %c0_17, %c0_18], %20 {strides = array<i32>} : memref<1x8x8x128xf32, #tpu.memory_space<vmem>>, vector<1x8x8x128xf32>,
    return
  }
  func.func @transform_0(%arg0: i32, %arg1: i32) -> (i32, i32, i32, i32) {
    %c0_i32 = arith.constant 0 : i32
    %c0_i32_0 = arith.constant 0 : i32
    %c0_i32_1 = arith.constant 0 : i32
    return %arg0, %arg1, %c0_i32, %c0_i32_0 : i32, i32, i32, i32
  }
  func.func @transform_1(%arg0: i32, %arg1: i32) -> (i32, i32, i32) {
    %c0_i32 = arith.constant 0 : i32
    %c0_i32_0 = arith.constant 0 : i32
    %c0_i32_1 = arith.constant 0 : i32
    %c0_i32_2 = arith.constant 0 : i32
    return %c0_i32, %c0_i32_0, %c0_i32_1 : i32, i32, i32
  }
  func.func @transform_2(%arg0: i32, %arg1: i32) -> (i32, i32, i32) {
    %c0_i32 = arith.constant 0 : i32
    %c0_i32_0 = arith.constant 0 : i32
    %c0_i32_1 = arith.constant 0 : i32
    %c0_i32_2 = arith.constant 0 : i32
    return %c0_i32, %c0_i32_0, %c0_i32_1 : i32, i32, i32
  }
  func.func @transform_3(%arg0: i32, %arg1: i32) -> (i32, i32, i32, i32) {
    %c0_i32 = arith.constant 0 : i32
    %c0_i32_0 = arith.constant 0 : i32
    %c0_i32_1 = arith.constant 0 : i32
    return %arg0, %arg1, %c0_i32, %c0_i32_0 : i32, i32, i32, i32
  }
  func.func @transform_4(%arg0: i32, %arg1: i32) -> (i32, i32, i32, i32) {
    %c0_i32 = arith.constant 0 : i32
    %c0_i32_0 = arith.constant 0 : i32
    %c0_i32_1 = arith.constant 0 : i32
    return %arg0, %arg1, %c0_i32, %c0_i32_0 : i32, i32, i32, i32
  }
}

module attributes {stable_mosaic.version = 11 : i64} {
  func.func @_conv3x3_kernel(%arg0: i32, %arg1: i32, %arg2: memref<2x16x16x128xbf16, #tpu.memory_space<any>>, %arg3: memref<1x1x128xf32, #tpu.memory_space<vmem>>, %arg4: memref<1x1x128xf32, #tpu.memory_space<vmem>>, %arg5: memref<9x128x128xbf16, #tpu.memory_space<vmem>>, %arg6: memref<1x16x16x128xbf16, #tpu.memory_space<vmem>>, %arg7: memref<1x1x2x128xf32, #tpu.memory_space<vmem>>, %arg8: memref<1x16x16x128xbf16, #tpu.memory_space<vmem>>, %arg9: memref<18x18x128xbf16, #tpu.memory_space<vmem>>, %arg10: memref<1x!tpu.dma_semaphore, #tpu.memory_space<semaphore_mem>>) attributes {dimension_semantics = [#tpu.dimension_semantics<parallel>, #tpu.dimension_semantics<arbitrary>], iteration_bounds = array<i64: 2, 1>, scalar_prefetch = 0 : i64, scratch_operands = 3 : i64, tpu.core_type = #tpu.core_type<tc>, window_params = [{}, {pipeline_mode = #tpu.pipeline_mode<synchronous>, transform_indices = @transform_1, window_bounds = array<i64: 1, 1, 128>}, {pipeline_mode = #tpu.pipeline_mode<synchronous>, transform_indices = @transform_2, window_bounds = array<i64: 1, 1, 128>}, {pipeline_mode = #tpu.pipeline_mode<synchronous>, transform_indices = @transform_3, window_bounds = array<i64: 9, 128, 128>}, {transform_indices = @transform_4, window_bounds = array<i64: 1, 16, 16, 128>}, {transform_indices = @transform_5, window_bounds = array<i64: 1, 1, 2, 128>}]} {
    %c0_i32 = arith.constant 0 : i32
    %c0_i32_0 = arith.constant 0 : i32
    %c0_i32_1 = arith.constant 0 : i32
    %c0_i32_2 = arith.constant 0 : i32
    %c0_i32_3 = arith.constant 0 : i32
    %0 = tpu.memref_slice %arg2[%arg0, %c0_i32_1, %c0_i32_2, %c0_i32_3] : memref<2x16x16x128xbf16, #tpu.memory_space<any>> -> memref<1x16x16x128xbf16, #tpu.memory_space<any>>
    %1 = tpu.memref_squeeze %0 : memref<1x16x16x128xbf16, #tpu.memory_space<any>> -> memref<16x16x128xbf16, #tpu.memory_space<any>>
    %c0_i32_4 = arith.constant 0 : i32
    %c0_i32_5 = arith.constant 0 : i32
    %c0_i32_6 = arith.constant 0 : i32
    %2 = tpu.memref_slice %arg8[%c0_i32, %c0_i32_4, %c0_i32_5, %c0_i32_6] : memref<1x16x16x128xbf16, #tpu.memory_space<vmem>> -> memref<1x16x16x128xbf16, #tpu.memory_space<vmem>>
    %3 = tpu.memref_squeeze %2 : memref<1x16x16x128xbf16, #tpu.memory_space<vmem>> -> memref<16x16x128xbf16, #tpu.memory_space<vmem>>
    %4 = tpu.memref_slice %arg10[%c0_i32_0] : memref<1x!tpu.dma_semaphore, #tpu.memory_space<semaphore_mem>> -> memref<1x!tpu.dma_semaphore, #tpu.memory_space<semaphore_mem>>
    %5 = tpu.memref_squeeze %4 : memref<1x!tpu.dma_semaphore, #tpu.memory_space<semaphore_mem>> -> memref<!tpu.dma_semaphore, #tpu.memory_space<semaphore_mem>>
    tpu.enqueue_dma source(%1 : memref<16x16x128xbf16, #tpu.memory_space<any>>) target(%3 : memref<16x16x128xbf16, #tpu.memory_space<vmem>>) target_semaphore(%5 : memref<!tpu.dma_semaphore, #tpu.memory_space<semaphore_mem>>)
    %cst = arith.constant 0.000000e+00 : bf16
    %6 = vector.broadcast %cst : bf16 to vector<18x18x128xbf16>
    %c0 = arith.constant 0 : index
    %c0_7 = arith.constant 0 : index
    %c0_8 = arith.constant 0 : index
    %7 = vector.load %arg9[%c0, %c0_7, %c0_8] : memref<18x18x128xbf16, #tpu.memory_space<vmem>>, vector<18x18x128xbf16>
    tpu.vector_store %arg9[%c0, %c0_7, %c0_8], %6 {strides = array<i32>} : memref<18x18x128xbf16, #tpu.memory_space<vmem>>, vector<18x18x128xbf16>,
    %c0_i32_9 = arith.constant 0 : i32
    %c0_i32_10 = arith.constant 0 : i32
    %c0_i32_11 = arith.constant 0 : i32
    %c0_i32_12 = arith.constant 0 : i32
    %c0_i32_13 = arith.constant 0 : i32
    %8 = tpu.memref_slice %arg2[%arg0, %c0_i32_11, %c0_i32_12, %c0_i32_13] : memref<2x16x16x128xbf16, #tpu.memory_space<any>> -> memref<1x16x16x128xbf16, #tpu.memory_space<any>>
    %9 = tpu.memref_squeeze %8 : memref<1x16x16x128xbf16, #tpu.memory_space<any>> -> memref<16x16x128xbf16, #tpu.memory_space<any>>
    %c0_i32_14 = arith.constant 0 : i32
    %c0_i32_15 = arith.constant 0 : i32
    %c0_i32_16 = arith.constant 0 : i32
    %10 = tpu.memref_slice %arg8[%c0_i32_9, %c0_i32_14, %c0_i32_15, %c0_i32_16] : memref<1x16x16x128xbf16, #tpu.memory_space<vmem>> -> memref<1x16x16x128xbf16, #tpu.memory_space<vmem>>
    %11 = tpu.memref_squeeze %10 : memref<1x16x16x128xbf16, #tpu.memory_space<vmem>> -> memref<16x16x128xbf16, #tpu.memory_space<vmem>>
    %12 = tpu.memref_slice %arg10[%c0_i32_10] : memref<1x!tpu.dma_semaphore, #tpu.memory_space<semaphore_mem>> -> memref<1x!tpu.dma_semaphore, #tpu.memory_space<semaphore_mem>>
    %13 = tpu.memref_squeeze %12 : memref<1x!tpu.dma_semaphore, #tpu.memory_space<semaphore_mem>> -> memref<!tpu.dma_semaphore, #tpu.memory_space<semaphore_mem>>
    tpu.wait_dma2 semaphore(%13 : memref<!tpu.dma_semaphore, #tpu.memory_space<semaphore_mem>>) src(%9 : memref<16x16x128xbf16, #tpu.memory_space<any>>) dst(%11 : memref<16x16x128xbf16, #tpu.memory_space<vmem>>)
    %c0_17 = arith.constant 0 : index
    %c0_18 = arith.constant 0 : index
    %c0_19 = arith.constant 0 : index
    %c0_20 = arith.constant 0 : index
    %14 = vector.load %arg8[%c0_17, %c0_18, %c0_19, %c0_20] : memref<1x16x16x128xbf16, #tpu.memory_space<vmem>>, vector<1x16x16x128xbf16>
    %15 = vector.shape_cast %14 : vector<1x16x16x128xbf16> to vector<16x16x128xbf16>
    %16 = arith.extf %15 : vector<16x16x128xbf16> to vector<16x16x128xf32>
    %c0_21 = arith.constant 0 : index
    %c0_22 = arith.constant 0 : index
    %c0_23 = arith.constant 0 : index
    %17 = vector.load %arg3[%c0_21, %c0_22, %c0_23] : memref<1x1x128xf32, #tpu.memory_space<vmem>>, vector<1x1x128xf32>
    %18 = vector.broadcast %17 : vector<1x1x128xf32> to vector<16x16x128xf32>
    %19 = arith.mulf %16, %18 : vector<16x16x128xf32>
    %c0_24 = arith.constant 0 : index
    %c0_25 = arith.constant 0 : index
    %c0_26 = arith.constant 0 : index
    %20 = vector.load %arg4[%c0_24, %c0_25, %c0_26] : memref<1x1x128xf32, #tpu.memory_space<vmem>>, vector<1x1x128xf32>
    %21 = vector.broadcast %20 : vector<1x1x128xf32> to vector<16x16x128xf32>
    %22 = arith.addf %19, %21 : vector<16x16x128xf32>
    %cst_27 = arith.constant 0.000000e+00 : f32
    %23 = vector.broadcast %cst_27 : f32 to vector<16x16x128xf32>
    %24 = arith.maximumf %22, %23 : vector<16x16x128xf32>
    %25 = arith.truncf %24 : vector<16x16x128xf32> to vector<16x16x128xbf16>
    %c1 = arith.constant 1 : index
    %c1_28 = arith.constant 1 : index
    %c0_29 = arith.constant 0 : index
    %26 = vector.load %arg9[%c1, %c1_28, %c0_29] : memref<18x18x128xbf16, #tpu.memory_space<vmem>>, vector<16x16x128xbf16>
    tpu.vector_store %arg9[%c1, %c1_28, %c0_29], %25 {strides = array<i32>} : memref<18x18x128xbf16, #tpu.memory_space<vmem>>, vector<16x16x128xbf16>,
    %cst_30 = arith.constant 0.000000e+00 : f32
    %27 = vector.broadcast %cst_30 : f32 to vector<256x128xf32>
    %c0_31 = arith.constant 0 : index
    %c0_32 = arith.constant 0 : index
    %c0_33 = arith.constant 0 : index
    %28 = vector.load %arg9[%c0_31, %c0_32, %c0_33] : memref<18x18x128xbf16, #tpu.memory_space<vmem>>, vector<18x16x128xbf16>
    %29 = vector.extract_strided_slice %28 {offsets = [0, 0, 0], sizes = [16, 16, 128], strides = [1, 1, 1]} : vector<18x16x128xbf16> to vector<16x16x128xbf16>
    %30 = vector.shape_cast %29 : vector<16x16x128xbf16> to vector<256x128xbf16>
    %c0_34 = arith.constant 0 : index
    %c0_35 = arith.constant 0 : index
    %c0_36 = arith.constant 0 : index
    %31 = vector.load %arg5[%c0_34, %c0_35, %c0_36] : memref<9x128x128xbf16, #tpu.memory_space<vmem>>, vector<1x128x128xbf16>
    %32 = vector.shape_cast %31 : vector<1x128x128xbf16> to vector<128x128xbf16>
    %cst_37 = arith.constant dense<0.000000e+00> : vector<256x128xf32>
    %33 = tpu.matmul %30, %32, %cst_37 {dimension_numbers = #tpu.dot_dimension_numbers<[1], [0], [0], [1], [0, 0, 1, 1], [], []>} : vector<256x128xbf16>, vector<128x128xbf16>, vector<256x128xf32> -> vector<256x128xf32>
    %34 = arith.addf %27, %33 : vector<256x128xf32>
    %35 = vector.extract_strided_slice %28 {offsets = [1, 0, 0], sizes = [16, 16, 128], strides = [1, 1, 1]} : vector<18x16x128xbf16> to vector<16x16x128xbf16>
    %36 = vector.shape_cast %35 : vector<16x16x128xbf16> to vector<256x128xbf16>
    %c3 = arith.constant 3 : index
    %c0_38 = arith.constant 0 : index
    %c0_39 = arith.constant 0 : index
    %37 = vector.load %arg5[%c3, %c0_38, %c0_39] : memref<9x128x128xbf16, #tpu.memory_space<vmem>>, vector<1x128x128xbf16>
    %38 = vector.shape_cast %37 : vector<1x128x128xbf16> to vector<128x128xbf16>
    %cst_40 = arith.constant dense<0.000000e+00> : vector<256x128xf32>
    %39 = tpu.matmul %36, %38, %cst_40 {dimension_numbers = #tpu.dot_dimension_numbers<[1], [0], [0], [1], [0, 0, 1, 1], [], []>} : vector<256x128xbf16>, vector<128x128xbf16>, vector<256x128xf32> -> vector<256x128xf32>
    %40 = arith.addf %34, %39 : vector<256x128xf32>
    %41 = vector.extract_strided_slice %28 {offsets = [2, 0, 0], sizes = [16, 16, 128], strides = [1, 1, 1]} : vector<18x16x128xbf16> to vector<16x16x128xbf16>
    %42 = vector.shape_cast %41 : vector<16x16x128xbf16> to vector<256x128xbf16>
    %c6 = arith.constant 6 : index
    %c0_41 = arith.constant 0 : index
    %c0_42 = arith.constant 0 : index
    %43 = vector.load %arg5[%c6, %c0_41, %c0_42] : memref<9x128x128xbf16, #tpu.memory_space<vmem>>, vector<1x128x128xbf16>
    %44 = vector.shape_cast %43 : vector<1x128x128xbf16> to vector<128x128xbf16>
    %cst_43 = arith.constant dense<0.000000e+00> : vector<256x128xf32>
    %45 = tpu.matmul %42, %44, %cst_43 {dimension_numbers = #tpu.dot_dimension_numbers<[1], [0], [0], [1], [0, 0, 1, 1], [], []>} : vector<256x128xbf16>, vector<128x128xbf16>, vector<256x128xf32> -> vector<256x128xf32>
    %46 = arith.addf %40, %45 : vector<256x128xf32>
    %c0_44 = arith.constant 0 : index
    %c1_45 = arith.constant 1 : index
    %c0_46 = arith.constant 0 : index
    %47 = vector.load %arg9[%c0_44, %c1_45, %c0_46] : memref<18x18x128xbf16, #tpu.memory_space<vmem>>, vector<18x16x128xbf16>
    %48 = vector.extract_strided_slice %47 {offsets = [0, 0, 0], sizes = [16, 16, 128], strides = [1, 1, 1]} : vector<18x16x128xbf16> to vector<16x16x128xbf16>
    %49 = vector.shape_cast %48 : vector<16x16x128xbf16> to vector<256x128xbf16>
    %c1_47 = arith.constant 1 : index
    %c0_48 = arith.constant 0 : index
    %c0_49 = arith.constant 0 : index
    %50 = vector.load %arg5[%c1_47, %c0_48, %c0_49] : memref<9x128x128xbf16, #tpu.memory_space<vmem>>, vector<1x128x128xbf16>
    %51 = vector.shape_cast %50 : vector<1x128x128xbf16> to vector<128x128xbf16>
    %cst_50 = arith.constant dense<0.000000e+00> : vector<256x128xf32>
    %52 = tpu.matmul %49, %51, %cst_50 {dimension_numbers = #tpu.dot_dimension_numbers<[1], [0], [0], [1], [0, 0, 1, 1], [], []>} : vector<256x128xbf16>, vector<128x128xbf16>, vector<256x128xf32> -> vector<256x128xf32>
    %53 = arith.addf %46, %52 : vector<256x128xf32>
    %54 = vector.extract_strided_slice %47 {offsets = [1, 0, 0], sizes = [16, 16, 128], strides = [1, 1, 1]} : vector<18x16x128xbf16> to vector<16x16x128xbf16>
    %55 = vector.shape_cast %54 : vector<16x16x128xbf16> to vector<256x128xbf16>
    %c4 = arith.constant 4 : index
    %c0_51 = arith.constant 0 : index
    %c0_52 = arith.constant 0 : index
    %56 = vector.load %arg5[%c4, %c0_51, %c0_52] : memref<9x128x128xbf16, #tpu.memory_space<vmem>>, vector<1x128x128xbf16>
    %57 = vector.shape_cast %56 : vector<1x128x128xbf16> to vector<128x128xbf16>
    %cst_53 = arith.constant dense<0.000000e+00> : vector<256x128xf32>
    %58 = tpu.matmul %55, %57, %cst_53 {dimension_numbers = #tpu.dot_dimension_numbers<[1], [0], [0], [1], [0, 0, 1, 1], [], []>} : vector<256x128xbf16>, vector<128x128xbf16>, vector<256x128xf32> -> vector<256x128xf32>
    %59 = arith.addf %53, %58 : vector<256x128xf32>
    %60 = vector.extract_strided_slice %47 {offsets = [2, 0, 0], sizes = [16, 16, 128], strides = [1, 1, 1]} : vector<18x16x128xbf16> to vector<16x16x128xbf16>
    %61 = vector.shape_cast %60 : vector<16x16x128xbf16> to vector<256x128xbf16>
    %c7 = arith.constant 7 : index
    %c0_54 = arith.constant 0 : index
    %c0_55 = arith.constant 0 : index
    %62 = vector.load %arg5[%c7, %c0_54, %c0_55] : memref<9x128x128xbf16, #tpu.memory_space<vmem>>, vector<1x128x128xbf16>
    %63 = vector.shape_cast %62 : vector<1x128x128xbf16> to vector<128x128xbf16>
    %cst_56 = arith.constant dense<0.000000e+00> : vector<256x128xf32>
    %64 = tpu.matmul %61, %63, %cst_56 {dimension_numbers = #tpu.dot_dimension_numbers<[1], [0], [0], [1], [0, 0, 1, 1], [], []>} : vector<256x128xbf16>, vector<128x128xbf16>, vector<256x128xf32> -> vector<256x128xf32>
    %65 = arith.addf %59, %64 : vector<256x128xf32>
    %c0_57 = arith.constant 0 : index
    %c2 = arith.constant 2 : index
    %c0_58 = arith.constant 0 : index
    %66 = vector.load %arg9[%c0_57, %c2, %c0_58] : memref<18x18x128xbf16, #tpu.memory_space<vmem>>, vector<18x16x128xbf16>
    %67 = vector.extract_strided_slice %66 {offsets = [0, 0, 0], sizes = [16, 16, 128], strides = [1, 1, 1]} : vector<18x16x128xbf16> to vector<16x16x128xbf16>
    %68 = vector.shape_cast %67 : vector<16x16x128xbf16> to vector<256x128xbf16>
    %c2_59 = arith.constant 2 : index
    %c0_60 = arith.constant 0 : index
    %c0_61 = arith.constant 0 : index
    %69 = vector.load %arg5[%c2_59, %c0_60, %c0_61] : memref<9x128x128xbf16, #tpu.memory_space<vmem>>, vector<1x128x128xbf16>
    %70 = vector.shape_cast %69 : vector<1x128x128xbf16> to vector<128x128xbf16>
    %cst_62 = arith.constant dense<0.000000e+00> : vector<256x128xf32>
    %71 = tpu.matmul %68, %70, %cst_62 {dimension_numbers = #tpu.dot_dimension_numbers<[1], [0], [0], [1], [0, 0, 1, 1], [], []>} : vector<256x128xbf16>, vector<128x128xbf16>, vector<256x128xf32> -> vector<256x128xf32>
    %72 = arith.addf %65, %71 : vector<256x128xf32>
    %73 = vector.extract_strided_slice %66 {offsets = [1, 0, 0], sizes = [16, 16, 128], strides = [1, 1, 1]} : vector<18x16x128xbf16> to vector<16x16x128xbf16>
    %74 = vector.shape_cast %73 : vector<16x16x128xbf16> to vector<256x128xbf16>
    %c5 = arith.constant 5 : index
    %c0_63 = arith.constant 0 : index
    %c0_64 = arith.constant 0 : index
    %75 = vector.load %arg5[%c5, %c0_63, %c0_64] : memref<9x128x128xbf16, #tpu.memory_space<vmem>>, vector<1x128x128xbf16>
    %76 = vector.shape_cast %75 : vector<1x128x128xbf16> to vector<128x128xbf16>
    %cst_65 = arith.constant dense<0.000000e+00> : vector<256x128xf32>
    %77 = tpu.matmul %74, %76, %cst_65 {dimension_numbers = #tpu.dot_dimension_numbers<[1], [0], [0], [1], [0, 0, 1, 1], [], []>} : vector<256x128xbf16>, vector<128x128xbf16>, vector<256x128xf32> -> vector<256x128xf32>
    %78 = arith.addf %72, %77 : vector<256x128xf32>
    %79 = vector.extract_strided_slice %66 {offsets = [2, 0, 0], sizes = [16, 16, 128], strides = [1, 1, 1]} : vector<18x16x128xbf16> to vector<16x16x128xbf16>
    %80 = vector.shape_cast %79 : vector<16x16x128xbf16> to vector<256x128xbf16>
    %c8 = arith.constant 8 : index
    %c0_66 = arith.constant 0 : index
    %c0_67 = arith.constant 0 : index
    %81 = vector.load %arg5[%c8, %c0_66, %c0_67] : memref<9x128x128xbf16, #tpu.memory_space<vmem>>, vector<1x128x128xbf16>
    %82 = vector.shape_cast %81 : vector<1x128x128xbf16> to vector<128x128xbf16>
    %cst_68 = arith.constant dense<0.000000e+00> : vector<256x128xf32>
    %83 = tpu.matmul %80, %82, %cst_68 {dimension_numbers = #tpu.dot_dimension_numbers<[1], [0], [0], [1], [0, 0, 1, 1], [], []>} : vector<256x128xbf16>, vector<128x128xbf16>, vector<256x128xf32> -> vector<256x128xf32>
    %84 = arith.addf %78, %83 : vector<256x128xf32>
    %85 = vector.shape_cast %84 : vector<256x128xf32> to vector<16x16x128xf32>
    %86 = arith.truncf %85 : vector<16x16x128xf32> to vector<16x16x128xbf16>
    %c0_69 = arith.constant 0 : index
    %c0_70 = arith.constant 0 : index
    %c0_71 = arith.constant 0 : index
    %c0_72 = arith.constant 0 : index
    %87 = vector.load %arg6[%c0_69, %c0_70, %c0_71, %c0_72] : memref<1x16x16x128xbf16, #tpu.memory_space<vmem>>, vector<1x16x16x128xbf16>
    %88 = vector.shape_cast %87 : vector<1x16x16x128xbf16> to vector<16x16x128xbf16>
    %89 = vector.shape_cast %86 : vector<16x16x128xbf16> to vector<1x16x16x128xbf16>
    tpu.vector_store %arg6[%c0_69, %c0_70, %c0_71, %c0_72], %89 {strides = array<i32>} : memref<1x16x16x128xbf16, #tpu.memory_space<vmem>>, vector<1x16x16x128xbf16>,
    %cst_73 = arith.constant dense<0.000000e+00> : vector<128xf32>
    %90 = vector.multi_reduction <add>, %84, %cst_73 [0] : vector<256x128xf32> to vector<128xf32>
    %91 = vector.shape_cast %90 : vector<128xf32> to vector<1x128xf32>
    %92 = arith.mulf %84, %84 : vector<256x128xf32>
    %cst_74 = arith.constant dense<0.000000e+00> : vector<128xf32>
    %93 = vector.multi_reduction <add>, %92, %cst_74 [0] : vector<256x128xf32> to vector<128xf32>
    %94 = vector.shape_cast %93 : vector<128xf32> to vector<1x128xf32>
    %95 = tpu.concatenate %91, %94 in 0 : vector<1x128xf32>, vector<1x128xf32> -> vector<2x128xf32>
    %c0_75 = arith.constant 0 : index
    %c0_76 = arith.constant 0 : index
    %c0_77 = arith.constant 0 : index
    %c0_78 = arith.constant 0 : index
    %96 = vector.load %arg7[%c0_75, %c0_76, %c0_77, %c0_78] : memref<1x1x2x128xf32, #tpu.memory_space<vmem>>, vector<1x1x2x128xf32>
    %97 = vector.shape_cast %96 : vector<1x1x2x128xf32> to vector<2x128xf32>
    %98 = vector.shape_cast %95 : vector<2x128xf32> to vector<1x1x2x128xf32>
    tpu.vector_store %arg7[%c0_75, %c0_76, %c0_77, %c0_78], %98 {strides = array<i32>} : memref<1x1x2x128xf32, #tpu.memory_space<vmem>>, vector<1x1x2x128xf32>,
    return
  }
  func.func @transform_1(%arg0: i32, %arg1: i32) -> (i32, i32, i32) {
    %c0_i32 = arith.constant 0 : i32
    %c0_i32_0 = arith.constant 0 : i32
    %c0_i32_1 = arith.constant 0 : i32
    %c0_i32_2 = arith.constant 0 : i32
    return %c0_i32, %c0_i32_0, %c0_i32_1 : i32, i32, i32
  }
  func.func @transform_2(%arg0: i32, %arg1: i32) -> (i32, i32, i32) {
    %c0_i32 = arith.constant 0 : i32
    %c0_i32_0 = arith.constant 0 : i32
    %c0_i32_1 = arith.constant 0 : i32
    %c0_i32_2 = arith.constant 0 : i32
    return %c0_i32, %c0_i32_0, %c0_i32_1 : i32, i32, i32
  }
  func.func @transform_3(%arg0: i32, %arg1: i32) -> (i32, i32, i32) {
    %c0_i32 = arith.constant 0 : i32
    %c0_i32_0 = arith.constant 0 : i32
    %c0_i32_1 = arith.constant 0 : i32
    %c0_i32_2 = arith.constant 0 : i32
    return %c0_i32, %c0_i32_0, %c0_i32_1 : i32, i32, i32
  }
  func.func @transform_4(%arg0: i32, %arg1: i32) -> (i32, i32, i32, i32) {
    %c0_i32 = arith.constant 0 : i32
    %c0_i32_0 = arith.constant 0 : i32
    %c0_i32_1 = arith.constant 0 : i32
    return %arg0, %arg1, %c0_i32, %c0_i32_0 : i32, i32, i32, i32
  }
  func.func @transform_5(%arg0: i32, %arg1: i32) -> (i32, i32, i32, i32) {
    %c0_i32 = arith.constant 0 : i32
    %c0_i32_0 = arith.constant 0 : i32
    %c0_i32_1 = arith.constant 0 : i32
    return %arg0, %arg1, %c0_i32, %c0_i32_0 : i32, i32, i32, i32
  }
}

</mosaic_0001>

<llo_original>
// kernel: encoder_forward.5
$region0: #{encoder_forward.5}
  #allocation0 [shape = 'u32[]', space=smem, size = 0x4, offset = 0x4, fixed_abs, tag = 'smem constant byte address 0x4 - core index']
  #allocation1 [shape = 'u32[144,128]{1,0:T(1,128)}', space=vmem, size = 0x12000, scoped, tag = 'internal scratch']
  %s0 = inlined_call_operand.vmem [shape: bf16[2,16,16,128], index: 0, kind: input, shape index: {}]
  %s1 = inlined_call_operand.vmem [shape: f32[1,1,128], index: 1, kind: input, shape index: {}]
  %s2 = inlined_call_operand.vmem [shape: f32[1,1,128], index: 2, kind: input, shape index: {}]
  %s3 = inlined_call_operand.vmem [shape: f32[2,16,16,128], index: 3, kind: output, shape index: {0}]
  %s4 = inlined_call_operand.vmem [shape: f32[2,8,8,128], index: 4, kind: output, shape index: {1}]
  %5 = xla_tuple %s3, %s4
  %s6 = sld [smem:[#allocation0]]
  $region53: #{encoder_forward.5} parent=0
    _
  %s8 = ssub.s32 1, %s6
  %s9 = scalar_select 0, %s8, %s6
  loop: start=0, step=1, limit=4
  $region2: #{encoder_forward.5} parent=0 // loop_pre_header
    _
  $region3: #{encoder_forward.5} parent=0 // loop_header
    %s11 = sphi 0, %s15
    %p12 = scmp.ge.s32.totalorder %s11, 4
    %s18 = sphi 0, %s30
    %s19 = sphi 0, %s26
    %s20 = sphi 0, %s18
    %s21 = sphi 0, %s19
    %s22 = sphi 0, %s20
    %s23 = sphi 0, %s21
    %s35 = sphi 0, %s37
    %s38 = sphi 0, %s35
    %s39 = sphi 0, %s38
    %s55 = sphi 0, %s39
    %s59 = sphi 0, %s59
    %s61 = sphi 0, %s59
    %s62 = sphi 0, %s61
    %s76 = sphi 0, %s62
    %s80 = sphi 0, %s80
    %s82 = sphi 0, %s80
    %s83 = sphi 0, %s82
    %s97 = sphi 0, %s83
    %s105 = sphi 0, %s107
    %s108 = sphi 0, %s105
    %s109 = sphi 0, %s108
    %s125 = sphi 0, %s109
    %s133 = sphi 0, %s135
    %s136 = sphi 0, %s133
    %s137 = sphi 0, %s136
    %s153 = sphi 0, %s137
  $region4: #{encoder_forward.5} parent=0 // loop_header_branch
    %14 = sbr.rel (%p12) target = $region8
  $region5: #{encoder_forward.5} parent=0 // loop_body
    %s16 = ssub.s32 %s11, 1
    %s17 = ssub.s32 %s11, 2
    %s24 = sadd.s32 1, %s19
    %p25 = scmp.ge.s32.totalorder %s24, 1
    %s26 = scalar_select %p25, 0, %s24
    %s27 = sadd.s32 1, %s18
    %s28 = scalar_select %p25, %s27, %s18
    %p29 = scmp.ge.s32.totalorder %s28, 2
    %s30 = scalar_select %p29, 0, %s28
    %s31 = ssub.s32 %s18, %s30
    %s32 = ssub.s32 %s19, %s26
    %s33 = sor.u32 %s31, %s32
    %p34 = scmp.eq.s32.totalorder %s33, 0
    %s36 = sadd.s32 %s35, 1
    %s37 = scalar_select %p34, %s35, %s36
    %p40 = pneg %p34
    %p41 = scmp.eq.s32.totalorder %s11, 1
    %p42 = por %p40, %p41
    %p43 = scmp.ne.s32.totalorder %s35, %s38
    %p44 = scmp.eq.s32.totalorder %s11, 0
    %p45 = por %p43, %p44
    %p46 = scmp.ne.s32.totalorder %s35, %s38
    %p47 = scmp.eq.s32.totalorder %s16, 1
    %p48 = por %p46, %p47
    %p49 = scmp.ne.s32.totalorder %s38, %s39
    %p50 = scmp.eq.s32.totalorder %s16, 0
    %p51 = por %p49, %p50
    %p52 = scmp.ne.s32.totalorder %s38, %s39
    %p53 = scmp.eq.s32.totalorder %s17, 1
    %p54 = por %p52, %p53
    %p56 = scmp.ne.s32.totalorder %s39, %s55
    %p57 = scmp.eq.s32.totalorder %s17, 0
    %p58 = por %p56, %p57
    %s60 = sadd.s32 %s59, 1
    %p63 = scmp.eq.s32.totalorder %s11, 1
    %p64 = scmp.ne.s32.totalorder %s59, %s61
    %p65 = scmp.eq.s32.totalorder %s11, 0
    %p66 = por %p64, %p65
    %p67 = scmp.ne.s32.totalorder %s59, %s61
    %p68 = scmp.eq.s32.totalorder %s16, 1
    %p69 = por %p67, %p68
    %p70 = scmp.ne.s32.totalorder %s61, %s62
    %p71 = scmp.eq.s32.totalorder %s16, 0
    %p72 = por %p70, %p71
    %p73 = scmp.ne.s32.totalorder %s61, %s62
    %p74 = scmp.eq.s32.totalorder %s17, 1
    %p75 = por %p73, %p74
    %p77 = scmp.ne.s32.totalorder %s62, %s76
    %p78 = scmp.eq.s32.totalorder %s17, 0
    %p79 = por %p77, %p78
    %s81 = sadd.s32 %s80, 1
    %p84 = scmp.eq.s32.totalorder %s11, 1
    %p85 = scmp.ne.s32.totalorder %s80, %s82
    %p86 = scmp.eq.s32.totalorder %s11, 0
    %p87 = por %p85, %p86
    %p88 = scmp.ne.s32.totalorder %s80, %s82
    %p89 = scmp.eq.s32.totalorder %s16, 1
    %p90 = por %p88, %p89
    %p91 = scmp.ne.s32.totalorder %s82, %s83
    %p92 = scmp.eq.s32.totalorder %s16, 0
    %p93 = por %p91, %p92
    %p94 = scmp.ne.s32.totalorder %s82, %s83
    %p95 = scmp.eq.s32.totalorder %s17, 1
    %p96 = por %p94, %p95
    %p98 = scmp.ne.s32.totalorder %s83, %s97
    %p99 = scmp.eq.s32.totalorder %s17, 0
    %p100 = por %p98, %p99
    %s101 = ssub.s32 %s18, %s30
    %s102 = ssub.s32 %s19, %s26
    %s103 = sor.u32 %s101, %s102
    %p104 = scmp.eq.s32.totalorder %s103, 0
    %s106 = sadd.s32 %s105, 1
    %s107 = scalar_select %p104, %s105, %s106
    %p110 = pneg %p104
    %p111 = scmp.eq.s32.totalorder %s11, 1
    %p112 = por %p110, %p111
    %p113 = scmp.ne.s32.totalorder %s105, %s108
    %p114 = scmp.eq.s32.totalorder %s11, 0
    %p115 = por %p113, %p114
    %p116 = scmp.ne.s32.totalorder %s105, %s108
    %p117 = scmp.eq.s32.totalorder %s16, 1
    %p118 = por %p116, %p117
    %p119 = scmp.ne.s32.totalorder %s108, %s109
    %p120 = scmp.eq.s32.totalorder %s16, 0
    %p121 = por %p119, %p120
    %p122 = scmp.ne.s32.totalorder %s108, %s109
    %p123 = scmp.eq.s32.totalorder %s17, 1
    %p124 = por %p122, %p123
    %p126 = scmp.ne.s32.totalorder %s109, %s125
    %p127 = scmp.eq.s32.totalorder %s17, 0
    %p128 = por %p126, %p127
    %s129 = ssub.s32 %s18, %s30
    %s130 = ssub.s32 %s19, %s26
    %s131 = sor.u32 %s129, %s130
    %p132 = scmp.eq.s32.totalorder %s131, 0
    %s134 = sadd.s32 %s133, 1
    %s135 = scalar_select %p132, %s133, %s134
    %p138 = pneg %p132
    %p139 = scmp.eq.s32.totalorder %s11, 1
    %p140 = por %p138, %p139
    %p141 = scmp.ne.s32.totalorder %s133, %s136
    %p142 = scmp.eq.s32.totalorder %s11, 0
    %p143 = por %p141, %p142
    %p144 = scmp.ne.s32.totalorder %s133, %s136
    %p145 = scmp.eq.s32.totalorder %s16, 1
    %p146 = por %p144, %p145
    %p147 = scmp.ne.s32.totalorder %s136, %s137
    %p148 = scmp.eq.s32.totalorder %s16, 0
    %p149 = por %p147, %p148
    %p150 = scmp.ne.s32.totalorder %s136, %s137
    %p151 = scmp.eq.s32.totalorder %s17, 1
    %p152 = por %p150, %p151
    %p154 = scmp.ne.s32.totalorder %s137, %s153
    %p155 = scmp.eq.s32.totalorder %s17, 0
    %p156 = por %p154, %p155
    %p157 = scmp.le.s32.totalorder 1, %s11
    %p158 = scmp.lt.s32.totalorder %s11, 3
    %p159 = pnand %p157, %p158
    %p160 = pneg %p159
    // Predicated region
    $region9: #{encoder_forward.5} parent=5 // pred_check
      _
    $region10: #{encoder_forward.5} parent=5 // pred_check_branch
      %162 = sbr.rel (%p159) target = $region12
    $region11: #{encoder_forward.5} parent=5 // pred_region
      %s163 = ssub.s32 %s11, 1
      // Predicated region
      $region13: #{encoder_forward.5} parent=11 // pred_check
        %p164 = pneg %p72
      $region14: #{encoder_forward.5} parent=11 // pred_check_branch
        %166 = sbr.rel (%p164) target = $region16
      $region15: #{encoder_forward.5} parent=11 // pred_region
        _
      $region16: #{encoder_forward.5} parent=11 // pred_fallthru
        _
      // Predicated region
      $region17: #{encoder_forward.5} parent=11 // pred_check
        %p167 = pneg %p93
      $region18: #{encoder_forward.5} parent=11 // pred_check_branch
        %169 = sbr.rel (%p167) target = $region20
      $region19: #{encoder_forward.5} parent=11 // pred_region
        _
      $region20: #{encoder_forward.5} parent=11 // pred_fallthru
        _
    $region12: #{encoder_forward.5} parent=5 // pred_fallthru
      _
    %p170 = scmp.lt.s32.totalorder %s11, 2
    // Predicated region
    $region21: #{encoder_forward.5} parent=5 // pred_check
      %p171 = pneg %p170
    $region22: #{encoder_forward.5} parent=5 // pred_check_branch
      %173 = sbr.rel (%p171) target = $region24
    $region23: #{encoder_forward.5} parent=5 // pred_region
      // Predicated region
      $region25: #{encoder_forward.5} parent=23 // pred_check
        %p174 = pneg %p45
      $region26: #{encoder_forward.5} parent=23 // pred_check_branch
        %176 = sbr.rel (%p174) target = $region28
      $region27: #{encoder_forward.5} parent=23 // pred_region
        %s177 = smul.u32 16, %s19
        %p178 = scmp.lt.s32.totalorder %s18, 1
        %s179 = scalar_select %p178, %s18, 1
        %p180 = scmp.lt.s32.totalorder %s177, 15
        %s181 = scalar_select %p180, %s177, 15
        %s182 = smul.addr %s181, 2
        %s183 = smul.addr %s179, 32
        %s184 = sadd.s32 %s182, %s183
        %s185 = smul.addr %s184, 4
        %s186 = scalar_lea.vmem %s0, %s185
        %s187 = smul.u32 16, %s19
      $region28: #{encoder_forward.5} parent=23 // pred_fallthru
        _
    $region24: #{encoder_forward.5} parent=5 // pred_fallthru
      _
    %p188 = scmp.le.s32.totalorder 1, %s11
    %p189 = scmp.lt.s32.totalorder %s11, 3
    %p190 = pnand %p188, %p189
    %p191 = pneg %p190
    // Predicated region
    $region29: #{encoder_forward.5} parent=5 // pred_check
      _
    $region30: #{encoder_forward.5} parent=5 // pred_check_branch
      %193 = sbr.rel (%p190) target = $region32
    $region31: #{encoder_forward.5} parent=5 // pred_region
      %s194 = ssub.s32 %s11, 1
      %s195 = smul.u32 16, %s21
      %p196 = scmp.lt.s32.totalorder %s20, 1
      %s197 = scalar_select %p196, %s20, 1
      %p198 = scmp.lt.s32.totalorder %s195, 15
      %s199 = scalar_select %p198, %s195, 15
      %s200 = smul.addr %s199, 2
      %s201 = smul.addr %s197, 32
      %s202 = sadd.s32 %s200, %s201
      %s203 = smul.addr %s202, 4
      %s204 = scalar_lea.vmem %s0, %s203
      %p205 = pneg %p51
      %p206 = pneg %p48
      %p207 = pneg %p72
      %p208 = pneg %p69
      %p209 = pneg %p93
      %p210 = pneg %p90
      %p211 = pneg %p121
      %p212 = pneg %p118
      %s213 = smul.u32 16, %s21
      %p214 = scmp.lt.s32.totalorder %s20, 1
      %s215 = scalar_select %p214, %s20, 1
      %p216 = scmp.lt.s32.totalorder %s213, 15
      %s217 = scalar_select %p216, %s213, 15
      %s218 = smul.addr %s217, 2
      %s219 = smul.addr %s215, 32
      %s220 = sadd.s32 %s218, %s219
      %s221 = smul.addr %s220, 8
      %s222 = scalar_lea.vmem %s3, %s221
      %p223 = pneg %p149
      %p224 = pneg %p146
      %s225 = smul.u32 8, %s21
      %p226 = scmp.lt.s32.totalorder %s20, 1
      %s227 = scalar_select %p226, %s20, 1
      %p228 = scmp.lt.s32.totalorder %s225, 7
      %s229 = scalar_select %p228, %s225, 7
      %s230 = smul.addr %s227, 8
      %s231 = sadd.s32 %s229, %s230
      %s232 = smul.addr %s231, 8
      %s233 = scalar_lea.vmem %s4, %s232
      %s234 = smul.u32 16, %s21
      %p235 = scmp.lt.s32.totalorder %s20, 1
      %s236 = scalar_select %p235, %s20, 1
      %p237 = scmp.lt.s32.totalorder %s234, 15
      %s238 = scalar_select %p237, %s234, 15
      %s239 = smul.addr %s238, 2
      %s240 = smul.addr %s236, 32
      %s241 = sadd.s32 %s239, %s240
      %s242 = smul.addr %s241, 4
      %s243 = scalar_lea.vmem %s0, %s242
      %s244 = smul.u32 16, %s21
      %s245 = smul.u32 16, %s21
      %p246 = scmp.lt.s32.totalorder %s20, 1
      %s247 = scalar_select %p246, %s20, 1
      %p248 = scmp.lt.s32.totalorder %s245, 15
      %s249 = scalar_select %p248, %s245, 15
      %s250 = smul.addr %s249, 2
      %s251 = smul.addr %s247, 32
      %s252 = sadd.s32 %s250, %s251
      %s253 = smul.addr %s252, 8
      %s254 = scalar_lea.vmem %s3, %s253
      %s255 = smul.u32 16, %s21
      %s256 = smul.u32 8, %s21
      %p257 = scmp.lt.s32.totalorder %s20, 1
      %s258 = scalar_select %p257, %s20, 1
      %p259 = scmp.lt.s32.totalorder %s256, 7
      %s260 = scalar_select %p259, %s256, 7
      %s261 = smul.addr %s258, 8
      %s262 = sadd.s32 %s260, %s261
      %s263 = smul.addr %s262, 8
      %s264 = scalar_lea.vmem %s4, %s263
      %s265 = smul.u32 8, %s21
      %v266 = vld [vmem:[%s243] sm:$0xf]
      %v267 = vld [vmem:[%s243 + $0x4] sm:$0xf]
      %v268 = vld [vmem:[%s243 + $0x8] sm:$0xf]
      %v269 = vld [vmem:[%s243 + $0xc] sm:$0xf]
      %v270 = vld [vmem:[%s243 + $0x10] sm:$0xf]
      %v271 = vld [vmem:[%s243 + $0x14] sm:$0xf]
      %v272 = vld [vmem:[%s243 + $0x18] sm:$0xf]
      %v273 = vld [vmem:[%s243 + $0x1c] sm:$0xf]
      %v274 = vld [vmem:[%s243 + $0x20] sm:$0xf]
      %v275 = vld [vmem:[%s243 + $0x24] sm:$0xf]
      %v276 = vld [vmem:[%s243 + $0x28] sm:$0xf]
      %v277 = vld [vmem:[%s243 + $0x2c] sm:$0xf]
      %v278 = vld [vmem:[%s243 + $0x30] sm:$0xf]
      %v279 = vld [vmem:[%s243 + $0x34] sm:$0xf]
      %v280 = vld [vmem:[%s243 + $0x38] sm:$0xf]
      %v281 = vld [vmem:[%s243 + $0x3c] sm:$0xf]
      %v282 = vld [vmem:[%s243 + $0x40] sm:$0xf]
      %v283 = vld [vmem:[%s243 + $0x44] sm:$0xf]
      %v284 = vld [vmem:[%s243 + $0x48] sm:$0xf]
      %v285 = vld [vmem:[%s243 + $0x4c] sm:$0xf]
      %v286 = vld [vmem:[%s243 + $0x50] sm:$0xf]
      %v287 = vld [vmem:[%s243 + $0x54] sm:$0xf]
      %v288 = vld [vmem:[%s243 + $0x58] sm:$0xf]
      %v289 = vld [vmem:[%s243 + $0x5c] sm:$0xf]
      %v290 = vld [vmem:[%s243 + $0x60] sm:$0xf]
      %v291 = vld [vmem:[%s243 + $0x64] sm:$0xf]
      %v292 = vld [vmem:[%s243 + $0x68] sm:$0xf]
      %v293 = vld [vmem:[%s243 + $0x6c] sm:$0xf]
      %v294 = vld [vmem:[%s243 + $0x70] sm:$0xf]
      %v295 = vld [vmem:[%s243 + $0x74] sm:$0xf]
      %v296 = vld [vmem:[%s243 + $0x78] sm:$0xf]
      %v297 = vld [vmem:[%s243 + $0x7c] sm:$0xf]
      %v298 = vunpack.c.l.bf16 %v266
      %v299 = vunpack.c.l.bf16 %v267
      %v300 = vunpack.c.l.bf16 %v268
      %v301 = vunpack.c.l.bf16 %v269
      %v302 = vunpack.c.l.bf16 %v270
      %v303 = vunpack.c.l.bf16 %v271
      %v304 = vunpack.c.l.bf16 %v272
      %v305 = vunpack.c.l.bf16 %v273
      %v306 = vunpack.c.l.bf16 %v274
      %v307 = vunpack.c.l.bf16 %v275
      %v308 = vunpack.c.l.bf16 %v276
      %v309 = vunpack.c.l.bf16 %v277
      %v310 = vunpack.c.l.bf16 %v278
      %v311 = vunpack.c.l.bf16 %v279
      %v312 = vunpack.c.l.bf16 %v280
      %v313 = vunpack.c.l.bf16 %v281
      %v314 = vunpack.c.l.bf16 %v282
      %v315 = vunpack.c.l.bf16 %v283
      %v316 = vunpack.c.l.bf16 %v284
      %v317 = vunpack.c.l.bf16 %v285
      %v318 = vunpack.c.l.bf16 %v286
      %v319 = vunpack.c.l.bf16 %v287
      %v320 = vunpack.c.l.bf16 %v288
      %v321 = vunpack.c.l.bf16 %v289
      %v322 = vunpack.c.l.bf16 %v290
      %v323 = vunpack.c.l.bf16 %v291
      %v324 = vunpack.c.l.bf16 %v292
      %v325 = vunpack.c.l.bf16 %v293
      %v326 = vunpack.c.l.bf16 %v294
      %v327 = vunpack.c.l.bf16 %v295
      %v328 = vunpack.c.l.bf16 %v296
      %v329 = vunpack.c.l.bf16 %v297
      %v330 = vld [vmem:[%s1] sm:$0x1]
      %v332 = vlaneseq
      %v333 = vshrl.u32 %v332, 7
      %v334 = vsub.s32 0, %v333
      %v335 = vrot.slane %v330, %v334
      %v337 = vmul.f32 %v298, %v335
      %v338 = vmul.f32 %v299, %v335
      %v339 = vmul.f32 %v300, %v335
      %v340 = vmul.f32 %v301, %v335
      %v341 = vmul.f32 %v302, %v335
      %v342 = vmul.f32 %v303, %v335
      %v343 = vmul.f32 %v304, %v335
      %v344 = vmul.f32 %v305, %v335
      %v345 = vmul.f32 %v306, %v335
      %v346 = vmul.f32 %v307, %v335
      %v347 = vmul.f32 %v308, %v335
      %v348 = vmul.f32 %v309, %v335
      %v349 = vmul.f32 %v310, %v335
      %v350 = vmul.f32 %v311, %v335
      %v351 = vmul.f32 %v312, %v335
      %v352 = vmul.f32 %v313, %v335
      %v353 = vmul.f32 %v314, %v335
      %v354 = vmul.f32 %v315, %v335
      %v355 = vmul.f32 %v316, %v335
      %v356 = vmul.f32 %v317, %v335
      %v357 = vmul.f32 %v318, %v335
      %v358 = vmul.f32 %v319, %v335
      %v359 = vmul.f32 %v320, %v335
      %v360 = vmul.f32 %v321, %v335
      %v361 = vmul.f32 %v322, %v335
      %v362 = vmul.f32 %v323, %v335
      %v363 = vmul.f32 %v324, %v335
      %v364 = vmul.f32 %v325, %v335
      %v365 = vmul.f32 %v326, %v335
      %v366 = vmul.f32 %v327, %v335
      %v367 = vmul.f32 %v328, %v335
      %v368 = vmul.f32 %v329, %v335
      %v369 = vld [vmem:[%s2] sm:$0x1]
      %v371 = vlaneseq
      %v372 = vshrl.u32 %v371, 7
      %v373 = vsub.s32 0, %v372
      %v374 = vrot.slane %v369, %v373
      %v376 = vadd.f32 %v337, %v374
      %v377 = vadd.f32 %v338, %v374
      %v378 = vadd.f32 %v339, %v374
      %v379 = vadd.f32 %v340, %v374
      %v380 = vadd.f32 %v341, %v374
      %v381 = vadd.f32 %v342, %v374
      %v382 = vadd.f32 %v343, %v374
      %v383 = vadd.f32 %v344, %v374
      %v384 = vadd.f32 %v345, %v374
      %v385 = vadd.f32 %v346, %v374
      %v386 = vadd.f32 %v347, %v374
      %v387 = vadd.f32 %v348, %v374
      %v388 = vadd.f32 %v349, %v374
      %v389 = vadd.f32 %v350, %v374
      %v390 = vadd.f32 %v351, %v374
      %v391 = vadd.f32 %v352, %v374
      %v392 = vadd.f32 %v353, %v374
      %v393 = vadd.f32 %v354, %v374
      %v394 = vadd.f32 %v355, %v374
      %v395 = vadd.f32 %v356, %v374
      %v396 = vadd.f32 %v357, %v374
      %v397 = vadd.f32 %v358, %v374
      %v398 = vadd.f32 %v359, %v374
      %v399 = vadd.f32 %v360, %v374
      %v400 = vadd.f32 %v361, %v374
      %v401 = vadd.f32 %v362, %v374
      %v402 = vadd.f32 %v363, %v374
      %v403 = vadd.f32 %v364, %v374
      %v404 = vadd.f32 %v365, %v374
      %v405 = vadd.f32 %v366, %v374
      %v406 = vadd.f32 %v367, %v374
      %v407 = vadd.f32 %v368, %v374
      %v408 = vmax.f32 %v376, 0.0
      %v409 = vmax.f32 %v377, 0.0
      %v410 = vmax.f32 %v378, 0.0
      %v411 = vmax.f32 %v379, 0.0
      %v412 = vmax.f32 %v380, 0.0
      %v413 = vmax.f32 %v381, 0.0
      %v414 = vmax.f32 %v382, 0.0
      %v415 = vmax.f32 %v383, 0.0
      %v416 = vmax.f32 %v384, 0.0
      %v417 = vmax.f32 %v385, 0.0
      %v418 = vmax.f32 %v386, 0.0
      %v419 = vmax.f32 %v387, 0.0
      %v420 = vmax.f32 %v388, 0.0
      %v421 = vmax.f32 %v389, 0.0
      %v422 = vmax.f32 %v390, 0.0
      %v423 = vmax.f32 %v391, 0.0
      %v424 = vmax.f32 %v392, 0.0
      %v425 = vmax.f32 %v393, 0.0
      %v426 = vmax.f32 %v394, 0.0
      %v427 = vmax.f32 %v395, 0.0
      %v428 = vmax.f32 %v396, 0.0
      %v429 = vmax.f32 %v397, 0.0
      %v430 = vmax.f32 %v398, 0.0
      %v431 = vmax.f32 %v399, 0.0
      %v432 = vmax.f32 %v400, 0.0
      %v433 = vmax.f32 %v401, 0.0
      %v434 = vmax.f32 %v402, 0.0
      %v435 = vmax.f32 %v403, 0.0
      %v436 = vmax.f32 %v404, 0.0
      %v437 = vmax.f32 %v405, 0.0
      %v438 = vmax.f32 %v406, 0.0
      %v439 = vmax.f32 %v407, 0.0
      %440 = vst [vmem:[%s254] sm:$0xff] %v408
      %441 = vst [vmem:[%s254 + $0x8] sm:$0xff] %v409
      %442 = vst [vmem:[%s254 + $0x10] sm:$0xff] %v410
      %443 = vst [vmem:[%s254 + $0x18] sm:$0xff] %v411
      %444 = vst [vmem:[%s254 + $0x20] sm:$0xff] %v412
      %445 = vst [vmem:[%s254 + $0x28] sm:$0xff] %v413
      %446 = vst [vmem:[%s254 + $0x30] sm:$0xff] %v414
      %447 = vst [vmem:[%s254 + $0x38] sm:$0xff] %v415
      %448 = vst [vmem:[%s254 + $0x40] sm:$0xff] %v416
      %449 = vst [vmem:[%s254 + $0x48] sm:$0xff] %v417
      %450 = vst [vmem:[%s254 + $0x50] sm:$0xff] %v418
      %451 = vst [vmem:[%s254 + $0x58] sm:$0xff] %v419
      %452 = vst [vmem:[%s254 + $0x60] sm:$0xff] %v420
      %453 = vst [vmem:[%s254 + $0x68] sm:$0xff] %v421
      %454 = vst [vmem:[%s254 + $0x70] sm:$0xff] %v422
      %455 = vst [vmem:[%s254 + $0x78] sm:$0xff] %v423
      %456 = vst [vmem:[%s254 + $0x80] sm:$0xff] %v424
      %457 = vst [vmem:[%s254 + $0x88] sm:$0xff] %v425
      %458 = vst [vmem:[%s254 + $0x90] sm:$0xff] %v426
      %459 = vst [vmem:[%s254 + $0x98] sm:$0xff] %v427
      %460 = vst [vmem:[%s254 + $0xa0] sm:$0xff] %v428
      %461 = vst [vmem:[%s254 + $0xa8] sm:$0xff] %v429
      %462 = vst [vmem:[%s254 + $0xb0] sm:$0xff] %v430
      %463 = vst [vmem:[%s254 + $0xb8] sm:$0xff] %v431
      %464 = vst [vmem:[%s254 + $0xc0] sm:$0xff] %v432
      %465 = vst [vmem:[%s254 + $0xc8] sm:$0xff] %v433
      %466 = vst [vmem:[%s254 + $0xd0] sm:$0xff] %v434
      %467 = vst [vmem:[%s254 + $0xd8] sm:$0xff] %v435
      %468 = vst [vmem:[%s254 + $0xe0] sm:$0xff] %v436
      %469 = vst [vmem:[%s254 + $0xe8] sm:$0xff] %v437
      %470 = vst [vmem:[%s254 + $0xf0] sm:$0xff] %v438
      %471 = vst [vmem:[%s254 + $0xf8] sm:$0xff] %v439
      %v504 = vcombine.high %v408, %v408
      %v506 = vunpack.c.l.s4 1983009808
      %v507 = vunpack.c.0.s8 %v506
      %v508 = vlaneseq
      %v509 = vshrl.u32 %v508, 7
      %v510 = vsub.s32 %v507, %v509
      %v511 = vrot.slane %v408, %v510
      %v513 = vunpack.c.l.s4 1983009808
      %v514 = vunpack.c.0.s8 %v513
      %v515 = vlaneseq
      %v516 = vshrl.u32 %v515, 7
      %v517 = vsub.s32 %v514, %v516
      %v518 = vrot.slane %v504, %v517
      %v519 = vcombine.high %v511, %v511
      %v520 = vcombine.high %v518, %v518
      %v521 = vcombine.high %v409, %v409
      %v523 = vunpack.c.l.s4 1983009808
      %v524 = vunpack.c.0.s8 %v523
      %v525 = vlaneseq
      %v526 = vshrl.u32 %v525, 7
      %v527 = vsub.s32 %v524, %v526
      %v528 = vrot.slane %v409, %v527
      %v530 = vunpack.c.l.s4 1983009808
      %v531 = vunpack.c.0.s8 %v530
      %v532 = vlaneseq
      %v533 = vshrl.u32 %v532, 7
      %v534 = vsub.s32 %v531, %v533
      %v535 = vrot.slane %v521, %v534
      %v536 = vcombine.high %v528, %v528
      %v537 = vcombine.high %v535, %v535
      %v538 = vcombine.high %v410, %v410
      %v540 = vunpack.c.l.s4 1983009808
      %v541 = vunpack.c.0.s8 %v540
      %v542 = vlaneseq
      %v543 = vshrl.u32 %v542, 7
      %v544 = vsub.s32 %v541, %v543
      %v545 = vrot.slane %v410, %v544
      %v547 = vunpack.c.l.s4 1983009808
      %v548 = vunpack.c.0.s8 %v547
      %v549 = vlaneseq
      %v550 = vshrl.u32 %v549, 7
      %v551 = vsub.s32 %v548, %v550
      %v552 = vrot.slane %v538, %v551
      %v553 = vcombine.high %v545, %v545
      %v554 = vcombine.high %v552, %v552
      %v555 = vcombine.high %v411, %v411
      %v557 = vunpack.c.l.s4 1983009808
      %v558 = vunpack.c.0.s8 %v557
      %v559 = vlaneseq
      %v560 = vshrl.u32 %v559, 7
      %v561 = vsub.s32 %v558, %v560
      %v562 = vrot.slane %v411, %v561
      %v564 = vunpack.c.l.s4 1983009808
      %v565 = vunpack.c.0.s8 %v564
      %v566 = vlaneseq
      %v567 = vshrl.u32 %v566, 7
      %v568 = vsub.s32 %v565, %v567
      %v569 = vrot.slane %v555, %v568
      %v570 = vcombine.high %v562, %v562
      %v571 = vcombine.high %v569, %v569
      %v572 = vcombine.high %v412, %v412
      %v574 = vunpack.c.l.s4 1983009808
      %v575 = vunpack.c.0.s8 %v574
      %v576 = vlaneseq
      %v577 = vshrl.u32 %v576, 7
      %v578 = vsub.s32 %v575, %v577
      %v579 = vrot.slane %v412, %v578
      %v581 = vunpack.c.l.s4 1983009808
      %v582 = vunpack.c.0.s8 %v581
      %v583 = vlaneseq
      %v584 = vshrl.u32 %v583, 7
      %v585 = vsub.s32 %v582, %v584
      %v586 = vrot.slane %v572, %v585
      %v587 = vcombine.high %v579, %v579
      %v588 = vcombine.high %v586, %v586
      %v589 = vcombine.high %v413, %v413
      %v591 = vunpack.c.l.s4 1983009808
      %v592 = vunpack.c.0.s8 %v591
      %v593 = vlaneseq
      %v594 = vshrl.u32 %v593, 7
      %v595 = vsub.s32 %v592, %v594
      %v596 = vrot.slane %v413, %v595
      %v598 = vunpack.c.l.s4 1983009808
      %v599 = vunpack.c.0.s8 %v598
      %v600 = vlaneseq
      %v601 = vshrl.u32 %v600, 7
      %v602 = vsub.s32 %v599, %v601
      %v603 = vrot.slane %v589, %v602
      %v604 = vcombine.high %v596, %v596
      %v605 = vcombine.high %v603, %v603
      %v606 = vcombine.high %v414, %v414
      %v608 = vunpack.c.l.s4 1983009808
      %v609 = vunpack.c.0.s8 %v608
      %v610 = vlaneseq
      %v611 = vshrl.u32 %v610, 7
      %v612 = vsub.s32 %v609, %v611
      %v613 = vrot.slane %v414, %v612
      %v615 = vunpack.c.l.s4 1983009808
      %v616 = vunpack.c.0.s8 %v615
      %v617 = vlaneseq
      %v618 = vshrl.u32 %v617, 7
      %v619 = vsub.s32 %v616, %v618
      %v620 = vrot.slane %v606, %v619
      %v621 = vcombine.high %v613, %v613
      %v622 = vcombine.high %v620, %v620
      %v623 = vcombine.high %v415, %v415
      %v625 = vunpack.c.l.s4 1983009808
      %v626 = vunpack.c.0.s8 %v625
      %v627 = vlaneseq
      %v628 = vshrl.u32 %v627, 7
      %v629 = vsub.s32 %v626, %v628
      %v630 = vrot.slane %v415, %v629
      %v632 = vunpack.c.l.s4 1983009808
      %v633 = vunpack.c.0.s8 %v632
      %v634 = vlaneseq
      %v635 = vshrl.u32 %v634, 7
      %v636 = vsub.s32 %v633, %v635
      %v637 = vrot.slane %v623, %v636
      %v638 = vcombine.high %v630, %v630
      %v639 = vcombine.high %v637, %v637
      %v640 = vcombine.high %v416, %v416
      %v642 = vunpack.c.l.s4 1983009808
      %v643 = vunpack.c.0.s8 %v642
      %v644 = vlaneseq
      %v645 = vshrl.u32 %v644, 7
      %v646 = vsub.s32 %v643, %v645
      %v647 = vrot.slane %v416, %v646
      %v649 = vunpack.c.l.s4 1983009808
      %v650 = vunpack.c.0.s8 %v649
      %v651 = vlaneseq
      %v652 = vshrl.u32 %v651, 7
      %v653 = vsub.s32 %v650, %v652
      %v654 = vrot.slane %v640, %v653
      %v655 = vcombine.high %v647, %v647
      %v656 = vcombine.high %v654, %v654
      %v657 = vcombine.high %v417, %v417
      %v659 = vunpack.c.l.s4 1983009808
      %v660 = vunpack.c.0.s8 %v659
      %v661 = vlaneseq
      %v662 = vshrl.u32 %v661, 7
      %v663 = vsub.s32 %v660, %v662
      %v664 = vrot.slane %v417, %v663
      %v666 = vunpack.c.l.s4 1983009808
      %v667 = vunpack.c.0.s8 %v666
      %v668 = vlaneseq
      %v669 = vshrl.u32 %v668, 7
      %v670 = vsub.s32 %v667, %v669
      %v671 = vrot.slane %v657, %v670
      %v672 = vcombine.high %v664, %v664
      %v673 = vcombine.high %v671, %v671
      %v674 = vcombine.high %v418, %v418
      %v676 = vunpack.c.l.s4 1983009808
      %v677 = vunpack.c.0.s8 %v676
      %v678 = vlaneseq
      %v679 = vshrl.u32 %v678, 7
      %v680 = vsub.s32 %v677, %v679
      %v681 = vrot.slane %v418, %v680
      %v683 = vunpack.c.l.s4 1983009808
      %v684 = vunpack.c.0.s8 %v683
      %v685 = vlaneseq
      %v686 = vshrl.u32 %v685, 7
      %v687 = vsub.s32 %v684, %v686
      %v688 = vrot.slane %v674, %v687
      %v689 = vcombine.high %v681, %v681
      %v690 = vcombine.high %v688, %v688
      %v691 = vcombine.high %v419, %v419
      %v693 = vunpack.c.l.s4 1983009808
      %v694 = vunpack.c.0.s8 %v693
      %v695 = vlaneseq
      %v696 = vshrl.u32 %v695, 7
      %v697 = vsub.s32 %v694, %v696
      %v698 = vrot.slane %v419, %v697
      %v700 = vunpack.c.l.s4 1983009808
      %v701 = vunpack.c.0.s8 %v700
      %v702 = vlaneseq
      %v703 = vshrl.u32 %v702, 7
      %v704 = vsub.s32 %v701, %v703
      %v705 = vrot.slane %v691, %v704
      %v706 = vcombine.high %v698, %v698
      %v707 = vcombine.high %v705, %v705
      %v708 = vcombine.high %v420, %v420
      %v710 = vunpack.c.l.s4 1983009808
      %v711 = vunpack.c.0.s8 %v710
      %v712 = vlaneseq
      %v713 = vshrl.u32 %v712, 7
      %v714 = vsub.s32 %v711, %v713
      %v715 = vrot.slane %v420, %v714
      %v717 = vunpack.c.l.s4 1983009808
      %v718 = vunpack.c.0.s8 %v717
      %v719 = vlaneseq
      %v720 = vshrl.u32 %v719, 7
      %v721 = vsub.s32 %v718, %v720
      %v722 = vrot.slane %v708, %v721
      %v723 = vcombine.high %v715, %v715
      %v724 = vcombine.high %v722, %v722
      %v725 = vcombine.high %v421, %v421
      %v727 = vunpack.c.l.s4 1983009808
      %v728 = vunpack.c.0.s8 %v727
      %v729 = vlaneseq
      %v730 = vshrl.u32 %v729, 7
      %v731 = vsub.s32 %v728, %v730
      %v732 = vrot.slane %v421, %v731
      %v734 = vunpack.c.l.s4 1983009808
      %v735 = vunpack.c.0.s8 %v734
      %v736 = vlaneseq
      %v737 = vshrl.u32 %v736, 7
      %v738 = vsub.s32 %v735, %v737
      %v739 = vrot.slane %v725, %v738
      %v740 = vcombine.high %v732, %v732
      %v741 = vcombine.high %v739, %v739
      %v742 = vcombine.high %v422, %v422
      %v744 = vunpack.c.l.s4 1983009808
      %v745 = vunpack.c.0.s8 %v744
      %v746 = vlaneseq
      %v747 = vshrl.u32 %v746, 7
      %v748 = vsub.s32 %v745, %v747
      %v749 = vrot.slane %v422, %v748
      %v751 = vunpack.c.l.s4 1983009808
      %v752 = vunpack.c.0.s8 %v751
      %v753 = vlaneseq
      %v754 = vshrl.u32 %v753, 7
      %v755 = vsub.s32 %v752, %v754
      %v756 = vrot.slane %v742, %v755
      %v757 = vcombine.high %v749, %v749
      %v758 = vcombine.high %v756, %v756
      %v759 = vcombine.high %v423, %v423
      %v761 = vunpack.c.l.s4 1983009808
      %v762 = vunpack.c.0.s8 %v761
      %v763 = vlaneseq
      %v764 = vshrl.u32 %v763, 7
      %v765 = vsub.s32 %v762, %v764
      %v766 = vrot.slane %v423, %v765
      %v768 = vunpack.c.l.s4 1983009808
      %v769 = vunpack.c.0.s8 %v768
      %v770 = vlaneseq
      %v771 = vshrl.u32 %v770, 7
      %v772 = vsub.s32 %v769, %v771
      %v773 = vrot.slane %v759, %v772
      %v774 = vcombine.high %v766, %v766
      %v775 = vcombine.high %v773, %v773
      %v776 = vcombine.high %v424, %v424
      %v778 = vunpack.c.l.s4 1983009808
      %v779 = vunpack.c.0.s8 %v778
      %v780 = vlaneseq
      %v781 = vshrl.u32 %v780, 7
      %v782 = vsub.s32 %v779, %v781
      %v783 = vrot.slane %v424, %v782
      %v785 = vunpack.c.l.s4 1983009808
      %v786 = vunpack.c.0.s8 %v785
      %v787 = vlaneseq
      %v788 = vshrl.u32 %v787, 7
      %v789 = vsub.s32 %v786, %v788
      %v790 = vrot.slane %v776, %v789
      %v791 = vcombine.high %v783, %v783
      %v792 = vcombine.high %v790, %v790
      %v793 = vcombine.high %v425, %v425
      %v795 = vunpack.c.l.s4 1983009808
      %v796 = vunpack.c.0.s8 %v795
      %v797 = vlaneseq
      %v798 = vshrl.u32 %v797, 7
      %v799 = vsub.s32 %v796, %v798
      %v800 = vrot.slane %v425, %v799
      %v802 = vunpack.c.l.s4 1983009808
      %v803 = vunpack.c.0.s8 %v802
      %v804 = vlaneseq
      %v805 = vshrl.u32 %v804, 7
      %v806 = vsub.s32 %v803, %v805
      %v807 = vrot.slane %v793, %v806
      %v808 = vcombine.high %v800, %v800
      %v809 = vcombine.high %v807, %v807
      %v810 = vcombine.high %v426, %v426
      %v812 = vunpack.c.l.s4 1983009808
      %v813 = vunpack.c.0.s8 %v812
      %v814 = vlaneseq
      %v815 = vshrl.u32 %v814, 7
      %v816 = vsub.s32 %v813, %v815
      %v817 = vrot.slane %v426, %v816
      %v819 = vunpack.c.l.s4 1983009808
      %v820 = vunpack.c.0.s8 %v819
      %v821 = vlaneseq
      %v822 = vshrl.u32 %v821, 7
      %v823 = vsub.s32 %v820, %v822
      %v824 = vrot.slane %v810, %v823
      %v825 = vcombine.high %v817, %v817
      %v826 = vcombine.high %v824, %v824
      %v827 = vcombine.high %v427, %v427
      %v829 = vunpack.c.l.s4 1983009808
      %v830 = vunpack.c.0.s8 %v829
      %v831 = vlaneseq
      %v832 = vshrl.u32 %v831, 7
      %v833 = vsub.s32 %v830, %v832
      %v834 = vrot.slane %v427, %v833
      %v836 = vunpack.c.l.s4 1983009808
      %v837 = vunpack.c.0.s8 %v836
      %v838 = vlaneseq
      %v839 = vshrl.u32 %v838, 7
      %v840 = vsub.s32 %v837, %v839
      %v841 = vrot.slane %v827, %v840
      %v842 = vcombine.high %v834, %v834
      %v843 = vcombine.high %v841, %v841
      %v844 = vcombine.high %v428, %v428
      %v846 = vunpack.c.l.s4 1983009808
      %v847 = vunpack.c.0.s8 %v846
      %v848 = vlaneseq
      %v849 = vshrl.u32 %v848, 7
      %v850 = vsub.s32 %v847, %v849
      %v851 = vrot.slane %v428, %v850
      %v853 = vunpack.c.l.s4 1983009808
      %v854 = vunpack.c.0.s8 %v853
      %v855 = vlaneseq
      %v856 = vshrl.u32 %v855, 7
      %v857 = vsub.s32 %v854, %v856
      %v858 = vrot.slane %v844, %v857
      %v859 = vcombine.high %v851, %v851
      %v860 = vcombine.high %v858, %v858
      %v861 = vcombine.high %v429, %v429
      %v863 = vunpack.c.l.s4 1983009808
      %v864 = vunpack.c.0.s8 %v863
      %v865 = vlaneseq
      %v866 = vshrl.u32 %v865, 7
      %v867 = vsub.s32 %v864, %v866
      %v868 = vrot.slane %v429, %v867
      %v870 = vunpack.c.l.s4 1983009808
      %v871 = vunpack.c.0.s8 %v870
      %v872 = vlaneseq
      %v873 = vshrl.u32 %v872, 7
      %v874 = vsub.s32 %v871, %v873
      %v875 = vrot.slane %v861, %v874
      %v876 = vcombine.high %v868, %v868
      %v877 = vcombine.high %v875, %v875
      %v878 = vcombine.high %v430, %v430
      %v880 = vunpack.c.l.s4 1983009808
      %v881 = vunpack.c.0.s8 %v880
      %v882 = vlaneseq
      %v883 = vshrl.u32 %v882, 7
      %v884 = vsub.s32 %v881, %v883
      %v885 = vrot.slane %v430, %v884
      %v887 = vunpack.c.l.s4 1983009808
      %v888 = vunpack.c.0.s8 %v887
      %v889 = vlaneseq
      %v890 = vshrl.u32 %v889, 7
      %v891 = vsub.s32 %v888, %v890
      %v892 = vrot.slane %v878, %v891
      %v893 = vcombine.high %v885, %v885
      %v894 = vcombine.high %v892, %v892
      %v895 = vcombine.high %v431, %v431
      %v897 = vunpack.c.l.s4 1983009808
      %v898 = vunpack.c.0.s8 %v897
      %v899 = vlaneseq
      %v900 = vshrl.u32 %v899, 7
      %v901 = vsub.s32 %v898, %v900
      %v902 = vrot.slane %v431, %v901
      %v904 = vunpack.c.l.s4 1983009808
      %v905 = vunpack.c.0.s8 %v904
      %v906 = vlaneseq
      %v907 = vshrl.u32 %v906, 7
      %v908 = vsub.s32 %v905, %v907
      %v909 = vrot.slane %v895, %v908
      %v910 = vcombine.high %v902, %v902
      %v911 = vcombine.high %v909, %v909
      %v912 = vcombine.high %v432, %v432
      %v914 = vunpack.c.l.s4 1983009808
      %v915 = vunpack.c.0.s8 %v914
      %v916 = vlaneseq
      %v917 = vshrl.u32 %v916, 7
      %v918 = vsub.s32 %v915, %v917
      %v919 = vrot.slane %v432, %v918
      %v921 = vunpack.c.l.s4 1983009808
      %v922 = vunpack.c.0.s8 %v921
      %v923 = vlaneseq
      %v924 = vshrl.u32 %v923, 7
      %v925 = vsub.s32 %v922, %v924
      %v926 = vrot.slane %v912, %v925
      %v927 = vcombine.high %v919, %v919
      %v928 = vcombine.high %v926, %v926
      %v929 = vcombine.high %v433, %v433
      %v931 = vunpack.c.l.s4 1983009808
      %v932 = vunpack.c.0.s8 %v931
      %v933 = vlaneseq
      %v934 = vshrl.u32 %v933, 7
      %v935 = vsub.s32 %v932, %v934
      %v936 = vrot.slane %v433, %v935
      %v938 = vunpack.c.l.s4 1983009808
      %v939 = vunpack.c.0.s8 %v938
      %v940 = vlaneseq
      %v941 = vshrl.u32 %v940, 7
      %v942 = vsub.s32 %v939, %v941
      %v943 = vrot.slane %v929, %v942
      %v944 = vcombine.high %v936, %v936
      %v945 = vcombine.high %v943, %v943
      %v946 = vcombine.high %v434, %v434
      %v948 = vunpack.c.l.s4 1983009808
      %v949 = vunpack.c.0.s8 %v948
      %v950 = vlaneseq
      %v951 = vshrl.u32 %v950, 7
      %v952 = vsub.s32 %v949, %v951
      %v953 = vrot.slane %v434, %v952
      %v955 = vunpack.c.l.s4 1983009808
      %v956 = vunpack.c.0.s8 %v955
      %v957 = vlaneseq
      %v958 = vshrl.u32 %v957, 7
      %v959 = vsub.s32 %v956, %v958
      %v960 = vrot.slane %v946, %v959
      %v961 = vcombine.high %v953, %v953
      %v962 = vcombine.high %v960, %v960
      %v963 = vcombine.high %v435, %v435
      %v965 = vunpack.c.l.s4 1983009808
      %v966 = vunpack.c.0.s8 %v965
      %v967 = vlaneseq
      %v968 = vshrl.u32 %v967, 7
      %v969 = vsub.s32 %v966, %v968
      %v970 = vrot.slane %v435, %v969
      %v972 = vunpack.c.l.s4 1983009808
      %v973 = vunpack.c.0.s8 %v972
      %v974 = vlaneseq
      %v975 = vshrl.u32 %v974, 7
      %v976 = vsub.s32 %v973, %v975
      %v977 = vrot.slane %v963, %v976
      %v978 = vcombine.high %v970, %v970
      %v979 = vcombine.high %v977, %v977
      %v980 = vcombine.high %v436, %v436
      %v982 = vunpack.c.l.s4 1983009808
      %v983 = vunpack.c.0.s8 %v982
      %v984 = vlaneseq
      %v985 = vshrl.u32 %v984, 7
      %v986 = vsub.s32 %v983, %v985
      %v987 = vrot.slane %v436, %v986
      %v989 = vunpack.c.l.s4 1983009808
      %v990 = vunpack.c.0.s8 %v989
      %v991 = vlaneseq
      %v992 = vshrl.u32 %v991, 7
      %v993 = vsub.s32 %v990, %v992
      %v994 = vrot.slane %v980, %v993
      %v995 = vcombine.high %v987, %v987
      %v996 = vcombine.high %v994, %v994
      %v997 = vcombine.high %v437, %v437
      %v999 = vunpack.c.l.s4 1983009808
      %v1000 = vunpack.c.0.s8 %v999
      %v1001 = vlaneseq
      %v1002 = vshrl.u32 %v1001, 7
      %v1003 = vsub.s32 %v1000, %v1002
      %v1004 = vrot.slane %v437, %v1003
      %v1006 = vunpack.c.l.s4 1983009808
      %v1007 = vunpack.c.0.s8 %v1006
      %v1008 = vlaneseq
      %v1009 = vshrl.u32 %v1008, 7
      %v1010 = vsub.s32 %v1007, %v1009
      %v1011 = vrot.slane %v997, %v1010
      %v1012 = vcombine.high %v1004, %v1004
      %v1013 = vcombine.high %v1011, %v1011
      %v1014 = vcombine.high %v438, %v438
      %v1016 = vunpack.c.l.s4 1983009808
      %v1017 = vunpack.c.0.s8 %v1016
      %v1018 = vlaneseq
      %v1019 = vshrl.u32 %v1018, 7
      %v1020 = vsub.s32 %v1017, %v1019
      %v1021 = vrot.slane %v438, %v1020
      %v1023 = vunpack.c.l.s4 1983009808
      %v1024 = vunpack.c.0.s8 %v1023
      %v1025 = vlaneseq
      %v1026 = vshrl.u32 %v1025, 7
      %v1027 = vsub.s32 %v1024, %v1026
      %v1028 = vrot.slane %v1014, %v1027
      %v1029 = vcombine.high %v1021, %v1021
      %v1030 = vcombine.high %v1028, %v1028
      %v1031 = vcombine.high %v439, %v439
      %v1033 = vunpack.c.l.s4 1983009808
      %v1034 = vunpack.c.0.s8 %v1033
      %v1035 = vlaneseq
      %v1036 = vshrl.u32 %v1035, 7
      %v1037 = vsub.s32 %v1034, %v1036
      %v1038 = vrot.slane %v439, %v1037
      %v1040 = vunpack.c.l.s4 1983009808
      %v1041 = vunpack.c.0.s8 %v1040
      %v1042 = vlaneseq
      %v1043 = vshrl.u32 %v1042, 7
      %v1044 = vsub.s32 %v1041, %v1043
      %v1045 = vrot.slane %v1031, %v1044
      %v1046 = vcombine.high %v1038, %v1038
      %v1047 = vcombine.high %v1045, %v1045
      %vm1176 = vcmask 1041408
      %v1177 = vsel %vm1176, %v511, -inf
      %v1178 = vrot.slane %v1177, 4
      %v1179 = vmax.f32 %v1177, %v1178
      %v1180 = vrot.slane %v1179, 2
      %v1181 = vmax.f32 %v1179, %v1180
      %v1182 = vrot.slane %v1181, 1
      %v1183 = vmax.f32 %v1181, %v1182
      %v1184 = vsel %vm1176, %v519, -inf
      %v1185 = vrot.slane %v1184, 4
      %v1186 = vmax.f32 %v1184, %v1185
      %v1187 = vrot.slane %v1186, 2
      %v1188 = vmax.f32 %v1186, %v1187
      %v1189 = vrot.slane %v1188, 1
      %v1190 = vmax.f32 %v1188, %v1189
      %v1191 = vsel %vm1176, %v518, -inf
      %v1192 = vrot.slane %v1191, 4
      %v1193 = vmax.f32 %v1191, %v1192
      %v1194 = vrot.slane %v1193, 2
      %v1195 = vmax.f32 %v1193, %v1194
      %v1196 = vrot.slane %v1195, 1
      %v1197 = vmax.f32 %v1195, %v1196
      %v1198 = vsel %vm1176, %v520, -inf
      %v1199 = vrot.slane %v1198, 4
      %v1200 = vmax.f32 %v1198, %v1199
      %v1201 = vrot.slane %v1200, 2
      %v1202 = vmax.f32 %v1200, %v1201
      %v1203 = vrot.slane %v1202, 1
      %v1204 = vmax.f32 %v1202, %v1203
      %v1205 = vsel %vm1176, %v528, -inf
      %v1206 = vrot.slane %v1205, 4
      %v1207 = vmax.f32 %v1205, %v1206
      %v1208 = vrot.slane %v1207, 2
      %v1209 = vmax.f32 %v1207, %v1208
      %v1210 = vrot.slane %v1209, 1
      %v1211 = vmax.f32 %v1209, %v1210
      %v1212 = vsel %vm1176, %v536, -inf
      %v1213 = vrot.slane %v1212, 4
      %v1214 = vmax.f32 %v1212, %v1213
      %v1215 = vrot.slane %v1214, 2
      %v1216 = vmax.f32 %v1214, %v1215
      %v1217 = vrot.slane %v1216, 1
      %v1218 = vmax.f32 %v1216, %v1217
      %v1219 = vsel %vm1176, %v535, -inf
      %v1220 = vrot.slane %v1219, 4
      %v1221 = vmax.f32 %v1219, %v1220
      %v1222 = vrot.slane %v1221, 2
      %v1223 = vmax.f32 %v1221, %v1222
      %v1224 = vrot.slane %v1223, 1
      %v1225 = vmax.f32 %v1223, %v1224
      %v1226 = vsel %vm1176, %v537, -inf
      %v1227 = vrot.slane %v1226, 4
      %v1228 = vmax.f32 %v1226, %v1227
      %v1229 = vrot.slane %v1228, 2
      %v1230 = vmax.f32 %v1228, %v1229
      %v1231 = vrot.slane %v1230, 1
      %v1232 = vmax.f32 %v1230, %v1231
      %v1233 = vsel %vm1176, %v545, -inf
      %v1234 = vrot.slane %v1233, 4
      %v1235 = vmax.f32 %v1233, %v1234
      %v1236 = vrot.slane %v1235, 2
      %v1237 = vmax.f32 %v1235, %v1236
      %v1238 = vrot.slane %v1237, 1
      %v1239 = vmax.f32 %v1237, %v1238
      %v1240 = vsel %vm1176, %v553, -inf
      %v1241 = vrot.slane %v1240, 4
      %v1242 = vmax.f32 %v1240, %v1241
      %v1243 = vrot.slane %v1242, 2
      %v1244 = vmax.f32 %v1242, %v1243
      %v1245 = vrot.slane %v1244, 1
      %v1246 = vmax.f32 %v1244, %v1245
      %v1247 = vsel %vm1176, %v552, -inf
      %v1248 = vrot.slane %v1247, 4
      %v1249 = vmax.f32 %v1247, %v1248
      %v1250 = vrot.slane %v1249, 2
      %v1251 = vmax.f32 %v1249, %v1250
      %v1252 = vrot.slane %v1251, 1
      %v1253 = vmax.f32 %v1251, %v1252
      %v1254 = vsel %vm1176, %v554, -inf
      %v1255 = vrot.slane %v1254, 4
      %v1256 = vmax.f32 %v1254, %v1255
      %v1257 = vrot.slane %v1256, 2
      %v1258 = vmax.f32 %v1256, %v1257
      %v1259 = vrot.slane %v1258, 1
      %v1260 = vmax.f32 %v1258, %v1259
      %v1261 = vsel %vm1176, %v562, -inf
      %v1262 = vrot.slane %v1261, 4
      %v1263 = vmax.f32 %v1261, %v1262
      %v1264 = vrot.slane %v1263, 2
      %v1265 = vmax.f32 %v1263, %v1264
      %v1266 = vrot.slane %v1265, 1
      %v1267 = vmax.f32 %v1265, %v1266
      %v1268 = vsel %vm1176, %v570, -inf
      %v1269 = vrot.slane %v1268, 4
      %v1270 = vmax.f32 %v1268, %v1269
      %v1271 = vrot.slane %v1270, 2
      %v1272 = vmax.f32 %v1270, %v1271
      %v1273 = vrot.slane %v1272, 1
      %v1274 = vmax.f32 %v1272, %v1273
      %v1275 = vsel %vm1176, %v569, -inf
      %v1276 = vrot.slane %v1275, 4
      %v1277 = vmax.f32 %v1275, %v1276
      %v1278 = vrot.slane %v1277, 2
      %v1279 = vmax.f32 %v1277, %v1278
      %v1280 = vrot.slane %v1279, 1
      %v1281 = vmax.f32 %v1279, %v1280
      %v1282 = vsel %vm1176, %v571, -inf
      %v1283 = vrot.slane %v1282, 4
      %v1284 = vmax.f32 %v1282, %v1283
      %v1285 = vrot.slane %v1284, 2
      %v1286 = vmax.f32 %v1284, %v1285
      %v1287 = vrot.slane %v1286, 1
      %v1288 = vmax.f32 %v1286, %v1287
      %v1289 = vsel %vm1176, %v579, -inf
      %v1290 = vrot.slane %v1289, 4
      %v1291 = vmax.f32 %v1289, %v1290
      %v1292 = vrot.slane %v1291, 2
      %v1293 = vmax.f32 %v1291, %v1292
      %v1294 = vrot.slane %v1293, 1
      %v1295 = vmax.f32 %v1293, %v1294
      %v1296 = vsel %vm1176, %v587, -inf
      %v1297 = vrot.slane %v1296, 4
      %v1298 = vmax.f32 %v1296, %v1297
      %v1299 = vrot.slane %v1298, 2
      %v1300 = vmax.f32 %v1298, %v1299
      %v1301 = vrot.slane %v1300, 1
      %v1302 = vmax.f32 %v1300, %v1301
      %v1303 = vsel %vm1176, %v586, -inf
      %v1304 = vrot.slane %v1303, 4
      %v1305 = vmax.f32 %v1303, %v1304
      %v1306 = vrot.slane %v1305, 2
      %v1307 = vmax.f32 %v1305, %v1306
      %v1308 = vrot.slane %v1307, 1
      %v1309 = vmax.f32 %v1307, %v1308
      %v1310 = vsel %vm1176, %v588, -inf
      %v1311 = vrot.slane %v1310, 4
      %v1312 = vmax.f32 %v1310, %v1311
      %v1313 = vrot.slane %v1312, 2
      %v1314 = vmax.f32 %v1312, %v1313
      %v1315 = vrot.slane %v1314, 1
      %v1316 = vmax.f32 %v1314, %v1315
      %v1317 = vsel %vm1176, %v596, -inf
      %v1318 = vrot.slane %v1317, 4
      %v1319 = vmax.f32 %v1317, %v1318
      %v1320 = vrot.slane %v1319, 2
      %v1321 = vmax.f32 %v1319, %v1320
      %v1322 = vrot.slane %v1321, 1
      %v1323 = vmax.f32 %v1321, %v1322
      %v1324 = vsel %vm1176, %v604, -inf
      %v1325 = vrot.slane %v1324, 4
      %v1326 = vmax.f32 %v1324, %v1325
      %v1327 = vrot.slane %v1326, 2
      %v1328 = vmax.f32 %v1326, %v1327
      %v1329 = vrot.slane %v1328, 1
      %v1330 = vmax.f32 %v1328, %v1329
      %v1331 = vsel %vm1176, %v603, -inf
      %v1332 = vrot.slane %v1331, 4
      %v1333 = vmax.f32 %v1331, %v1332
      %v1334 = vrot.slane %v1333, 2
      %v1335 = vmax.f32 %v1333, %v1334
      %v1336 = vrot.slane %v1335, 1
      %v1337 = vmax.f32 %v1335, %v1336
      %v1338 = vsel %vm1176, %v605, -inf
      %v1339 = vrot.slane %v1338, 4
      %v1340 = vmax.f32 %v1338, %v1339
      %v1341 = vrot.slane %v1340, 2
      %v1342 = vmax.f32 %v1340, %v1341
      %v1343 = vrot.slane %v1342, 1
      %v1344 = vmax.f32 %v1342, %v1343
      %v1345 = vsel %vm1176, %v613, -inf
      %v1346 = vrot.slane %v1345, 4
      %v1347 = vmax.f32 %v1345, %v1346
      %v1348 = vrot.slane %v1347, 2
      %v1349 = vmax.f32 %v1347, %v1348
      %v1350 = vrot.slane %v1349, 1
      %v1351 = vmax.f32 %v1349, %v1350
      %v1352 = vsel %vm1176, %v621, -inf
      %v1353 = vrot.slane %v1352, 4
      %v1354 = vmax.f32 %v1352, %v1353
      %v1355 = vrot.slane %v1354, 2
      %v1356 = vmax.f32 %v1354, %v1355
      %v1357 = vrot.slane %v1356, 1
      %v1358 = vmax.f32 %v1356, %v1357
      %v1359 = vsel %vm1176, %v620, -inf
      %v1360 = vrot.slane %v1359, 4
      %v1361 = vmax.f32 %v1359, %v1360
      %v1362 = vrot.slane %v1361, 2
      %v1363 = vmax.f32 %v1361, %v1362
      %v1364 = vrot.slane %v1363, 1
      %v1365 = vmax.f32 %v1363, %v1364
      %v1366 = vsel %vm1176, %v622, -inf
      %v1367 = vrot.slane %v1366, 4
      %v1368 = vmax.f32 %v1366, %v1367
      %v1369 = vrot.slane %v1368, 2
      %v1370 = vmax.f32 %v1368, %v1369
      %v1371 = vrot.slane %v1370, 1
      %v1372 = vmax.f32 %v1370, %v1371
      %v1373 = vsel %vm1176, %v630, -inf
      %v1374 = vrot.slane %v1373, 4
      %v1375 = vmax.f32 %v1373, %v1374
      %v1376 = vrot.slane %v1375, 2
      %v1377 = vmax.f32 %v1375, %v1376
      %v1378 = vrot.slane %v1377, 1
      %v1379 = vmax.f32 %v1377, %v1378
      %v1380 = vsel %vm1176, %v638, -inf
      %v1381 = vrot.slane %v1380, 4
      %v1382 = vmax.f32 %v1380, %v1381
      %v1383 = vrot.slane %v1382, 2
      %v1384 = vmax.f32 %v1382, %v1383
      %v1385 = vrot.slane %v1384, 1
      %v1386 = vmax.f32 %v1384, %v1385
      %v1387 = vsel %vm1176, %v637, -inf
      %v1388 = vrot.slane %v1387, 4
      %v1389 = vmax.f32 %v1387, %v1388
      %v1390 = vrot.slane %v1389, 2
      %v1391 = vmax.f32 %v1389, %v1390
      %v1392 = vrot.slane %v1391, 1
      %v1393 = vmax.f32 %v1391, %v1392
      %v1394 = vsel %vm1176, %v639, -inf
      %v1395 = vrot.slane %v1394, 4
      %v1396 = vmax.f32 %v1394, %v1395
      %v1397 = vrot.slane %v1396, 2
      %v1398 = vmax.f32 %v1396, %v1397
      %v1399 = vrot.slane %v1398, 1
      %v1400 = vmax.f32 %v1398, %v1399
      %v1401 = vsel %vm1176, %v647, -inf
      %v1402 = vrot.slane %v1401, 4
      %v1403 = vmax.f32 %v1401, %v1402
      %v1404 = vrot.slane %v1403, 2
      %v1405 = vmax.f32 %v1403, %v1404
      %v1406 = vrot.slane %v1405, 1
      %v1407 = vmax.f32 %v1405, %v1406
      %v1408 = vsel %vm1176, %v655, -inf
      %v1409 = vrot.slane %v1408, 4
      %v1410 = vmax.f32 %v1408, %v1409
      %v1411 = vrot.slane %v1410, 2
      %v1412 = vmax.f32 %v1410, %v1411
      %v1413 = vrot.slane %v1412, 1
      %v1414 = vmax.f32 %v1412, %v1413
      %v1415 = vsel %vm1176, %v654, -inf
      %v1416 = vrot.slane %v1415, 4
      %v1417 = vmax.f32 %v1415, %v1416
      %v1418 = vrot.slane %v1417, 2
      %v1419 = vmax.f32 %v1417, %v1418
      %v1420 = vrot.slane %v1419, 1
      %v1421 = vmax.f32 %v1419, %v1420
      %v1422 = vsel %vm1176, %v656, -inf
      %v1423 = vrot.slane %v1422, 4
      %v1424 = vmax.f32 %v1422, %v1423
      %v1425 = vrot.slane %v1424, 2
      %v1426 = vmax.f32 %v1424, %v1425
      %v1427 = vrot.slane %v1426, 1
      %v1428 = vmax.f32 %v1426, %v1427
      %v1429 = vsel %vm1176, %v664, -inf
      %v1430 = vrot.slane %v1429, 4
      %v1431 = vmax.f32 %v1429, %v1430
      %v1432 = vrot.slane %v1431, 2
      %v1433 = vmax.f32 %v1431, %v1432
      %v1434 = vrot.slane %v1433, 1
      %v1435 = vmax.f32 %v1433, %v1434
      %v1436 = vsel %vm1176, %v672, -inf
      %v1437 = vrot.slane %v1436, 4
      %v1438 = vmax.f32 %v1436, %v1437
      %v1439 = vrot.slane %v1438, 2
      %v1440 = vmax.f32 %v1438, %v1439
      %v1441 = vrot.slane %v1440, 1
      %v1442 = vmax.f32 %v1440, %v1441
      %v1443 = vsel %vm1176, %v671, -inf
      %v1444 = vrot.slane %v1443, 4
      %v1445 = vmax.f32 %v1443, %v1444
      %v1446 = vrot.slane %v1445, 2
      %v1447 = vmax.f32 %v1445, %v1446
      %v1448 = vrot.slane %v1447, 1
      %v1449 = vmax.f32 %v1447, %v1448
      %v1450 = vsel %vm1176, %v673, -inf
      %v1451 = vrot.slane %v1450, 4
      %v1452 = vmax.f32 %v1450, %v1451
      %v1453 = vrot.slane %v1452, 2
      %v1454 = vmax.f32 %v1452, %v1453
      %v1455 = vrot.slane %v1454, 1
      %v1456 = vmax.f32 %v1454, %v1455
      %v1457 = vsel %vm1176, %v681, -inf
      %v1458 = vrot.slane %v1457, 4
      %v1459 = vmax.f32 %v1457, %v1458
      %v1460 = vrot.slane %v1459, 2
      %v1461 = vmax.f32 %v1459, %v1460
      %v1462 = vrot.slane %v1461, 1
      %v1463 = vmax.f32 %v1461, %v1462
      %v1464 = vsel %vm1176, %v689, -inf
      %v1465 = vrot.slane %v1464, 4
      %v1466 = vmax.f32 %v1464, %v1465
      %v1467 = vrot.slane %v1466, 2
      %v1468 = vmax.f32 %v1466, %v1467
      %v1469 = vrot.slane %v1468, 1
      %v1470 = vmax.f32 %v1468, %v1469
      %v1471 = vsel %vm1176, %v688, -inf
      %v1472 = vrot.slane %v1471, 4
      %v1473 = vmax.f32 %v1471, %v1472
      %v1474 = vrot.slane %v1473, 2
      %v1475 = vmax.f32 %v1473, %v1474
      %v1476 = vrot.slane %v1475, 1
      %v1477 = vmax.f32 %v1475, %v1476
      %v1478 = vsel %vm1176, %v690, -inf
      %v1479 = vrot.slane %v1478, 4
      %v1480 = vmax.f32 %v1478, %v1479
      %v1481 = vrot.slane %v1480, 2
      %v1482 = vmax.f32 %v1480, %v1481
      %v1483 = vrot.slane %v1482, 1
      %v1484 = vmax.f32 %v1482, %v1483
      %v1485 = vsel %vm1176, %v698, -inf
      %v1486 = vrot.slane %v1485, 4
      %v1487 = vmax.f32 %v1485, %v1486
      %v1488 = vrot.slane %v1487, 2
      %v1489 = vmax.f32 %v1487, %v1488
      %v1490 = vrot.slane %v1489, 1
      %v1491 = vmax.f32 %v1489, %v1490
      %v1492 = vsel %vm1176, %v706, -inf
      %v1493 = vrot.slane %v1492, 4
      %v1494 = vmax.f32 %v1492, %v1493
      %v1495 = vrot.slane %v1494, 2
      %v1496 = vmax.f32 %v1494, %v1495
      %v1497 = vrot.slane %v1496, 1
      %v1498 = vmax.f32 %v1496, %v1497
      %v1499 = vsel %vm1176, %v705, -inf
      %v1500 = vrot.slane %v1499, 4
      %v1501 = vmax.f32 %v1499, %v1500
      %v1502 = vrot.slane %v1501, 2
      %v1503 = vmax.f32 %v1501, %v1502
      %v1504 = vrot.slane %v1503, 1
      %v1505 = vmax.f32 %v1503, %v1504
      %v1506 = vsel %vm1176, %v707, -inf
      %v1507 = vrot.slane %v1506, 4
      %v1508 = vmax.f32 %v1506, %v1507
      %v1509 = vrot.slane %v1508, 2
      %v1510 = vmax.f32 %v1508, %v1509
      %v1511 = vrot.slane %v1510, 1
      %v1512 = vmax.f32 %v1510, %v1511
      %v1513 = vsel %vm1176, %v715, -inf
      %v1514 = vrot.slane %v1513, 4
      %v1515 = vmax.f32 %v1513, %v1514
      %v1516 = vrot.slane %v1515, 2
      %v1517 = vmax.f32 %v1515, %v1516
      %v1518 = vrot.slane %v1517, 1
      %v1519 = vmax.f32 %v1517, %v1518
      %v1520 = vsel %vm1176, %v723, -inf
      %v1521 = vrot.slane %v1520, 4
      %v1522 = vmax.f32 %v1520, %v1521
      %v1523 = vrot.slane %v1522, 2
      %v1524 = vmax.f32 %v1522, %v1523
      %v1525 = vrot.slane %v1524, 1
      %v1526 = vmax.f32 %v1524, %v1525
      %v1527 = vsel %vm1176, %v722, -inf
      %v1528 = vrot.slane %v1527, 4
      %v1529 = vmax.f32 %v1527, %v1528
      %v1530 = vrot.slane %v1529, 2
      %v1531 = vmax.f32 %v1529, %v1530
      %v1532 = vrot.slane %v1531, 1
      %v1533 = vmax.f32 %v1531, %v1532
      %v1534 = vsel %vm1176, %v724, -inf
      %v1535 = vrot.slane %v1534, 4
      %v1536 = vmax.f32 %v1534, %v1535
      %v1537 = vrot.slane %v1536, 2
      %v1538 = vmax.f32 %v1536, %v1537
      %v1539 = vrot.slane %v1538, 1
      %v1540 = vmax.f32 %v1538, %v1539
      %v1541 = vsel %vm1176, %v732, -inf
      %v1542 = vrot.slane %v1541, 4
      %v1543 = vmax.f32 %v1541, %v1542
      %v1544 = vrot.slane %v1543, 2
      %v1545 = vmax.f32 %v1543, %v1544
      %v1546 = vrot.slane %v1545, 1
      %v1547 = vmax.f32 %v1545, %v1546
      %v1548 = vsel %vm1176, %v740, -inf
      %v1549 = vrot.slane %v1548, 4
      %v1550 = vmax.f32 %v1548, %v1549
      %v1551 = vrot.slane %v1550, 2
      %v1552 = vmax.f32 %v1550, %v1551
      %v1553 = vrot.slane %v1552, 1
      %v1554 = vmax.f32 %v1552, %v1553
      %v1555 = vsel %vm1176, %v739, -inf
      %v1556 = vrot.slane %v1555, 4
      %v1557 = vmax.f32 %v1555, %v1556
      %v1558 = vrot.slane %v1557, 2
      %v1559 = vmax.f32 %v1557, %v1558
      %v1560 = vrot.slane %v1559, 1
      %v1561 = vmax.f32 %v1559, %v1560
      %v1562 = vsel %vm1176, %v741, -inf
      %v1563 = vrot.slane %v1562, 4
      %v1564 = vmax.f32 %v1562, %v1563
      %v1565 = vrot.slane %v1564, 2
      %v1566 = vmax.f32 %v1564, %v1565
      %v1567 = vrot.slane %v1566, 1
      %v1568 = vmax.f32 %v1566, %v1567
      %v1569 = vsel %vm1176, %v749, -inf
      %v1570 = vrot.slane %v1569, 4
      %v1571 = vmax.f32 %v1569, %v1570
      %v1572 = vrot.slane %v1571, 2
      %v1573 = vmax.f32 %v1571, %v1572
      %v1574 = vrot.slane %v1573, 1
      %v1575 = vmax.f32 %v1573, %v1574
      %v1576 = vsel %vm1176, %v757, -inf
      %v1577 = vrot.slane %v1576, 4
      %v1578 = vmax.f32 %v1576, %v1577
      %v1579 = vrot.slane %v1578, 2
      %v1580 = vmax.f32 %v1578, %v1579
      %v1581 = vrot.slane %v1580, 1
      %v1582 = vmax.f32 %v1580, %v1581
      %v1583 = vsel %vm1176, %v756, -inf
      %v1584 = vrot.slane %v1583, 4
      %v1585 = vmax.f32 %v1583, %v1584
      %v1586 = vrot.slane %v1585, 2
      %v1587 = vmax.f32 %v1585, %v1586
      %v1588 = vrot.slane %v1587, 1
      %v1589 = vmax.f32 %v1587, %v1588
      %v1590 = vsel %vm1176, %v758, -inf
      %v1591 = vrot.slane %v1590, 4
      %v1592 = vmax.f32 %v1590, %v1591
      %v1593 = vrot.slane %v1592, 2
      %v1594 = vmax.f32 %v1592, %v1593
      %v1595 = vrot.slane %v1594, 1
      %v1596 = vmax.f32 %v1594, %v1595
      %v1597 = vsel %vm1176, %v766, -inf
      %v1598 = vrot.slane %v1597, 4
      %v1599 = vmax.f32 %v1597, %v1598
      %v1600 = vrot.slane %v1599, 2
      %v1601 = vmax.f32 %v1599, %v1600
      %v1602 = vrot.slane %v1601, 1
      %v1603 = vmax.f32 %v1601, %v1602
      %v1604 = vsel %vm1176, %v774, -inf
      %v1605 = vrot.slane %v1604, 4
      %v1606 = vmax.f32 %v1604, %v1605
      %v1607 = vrot.slane %v1606, 2
      %v1608 = vmax.f32 %v1606, %v1607
      %v1609 = vrot.slane %v1608, 1
      %v1610 = vmax.f32 %v1608, %v1609
      %v1611 = vsel %vm1176, %v773, -inf
      %v1612 = vrot.slane %v1611, 4
      %v1613 = vmax.f32 %v1611, %v1612
      %v1614 = vrot.slane %v1613, 2
      %v1615 = vmax.f32 %v1613, %v1614
      %v1616 = vrot.slane %v1615, 1
      %v1617 = vmax.f32 %v1615, %v1616
      %v1618 = vsel %vm1176, %v775, -inf
      %v1619 = vrot.slane %v1618, 4
      %v1620 = vmax.f32 %v1618, %v1619
      %v1621 = vrot.slane %v1620, 2
      %v1622 = vmax.f32 %v1620, %v1621
      %v1623 = vrot.slane %v1622, 1
      %v1624 = vmax.f32 %v1622, %v1623
      %v1625 = vsel %vm1176, %v783, -inf
      %v1626 = vrot.slane %v1625, 4
      %v1627 = vmax.f32 %v1625, %v1626
      %v1628 = vrot.slane %v1627, 2
      %v1629 = vmax.f32 %v1627, %v1628
      %v1630 = vrot.slane %v1629, 1
      %v1631 = vmax.f32 %v1629, %v1630
      %v1632 = vsel %vm1176, %v791, -inf
      %v1633 = vrot.slane %v1632, 4
      %v1634 = vmax.f32 %v1632, %v1633
      %v1635 = vrot.slane %v1634, 2
      %v1636 = vmax.f32 %v1634, %v1635
      %v1637 = vrot.slane %v1636, 1
      %v1638 = vmax.f32 %v1636, %v1637
      %v1639 = vsel %vm1176, %v790, -inf
      %v1640 = vrot.slane %v1639, 4
      %v1641 = vmax.f32 %v1639, %v1640
      %v1642 = vrot.slane %v1641, 2
      %v1643 = vmax.f32 %v1641, %v1642
      %v1644 = vrot.slane %v1643, 1
      %v1645 = vmax.f32 %v1643, %v1644
      %v1646 = vsel %vm1176, %v792, -inf
      %v1647 = vrot.slane %v1646, 4
      %v1648 = vmax.f32 %v1646, %v1647
      %v1649 = vrot.slane %v1648, 2
      %v1650 = vmax.f32 %v1648, %v1649
      %v1651 = vrot.slane %v1650, 1
      %v1652 = vmax.f32 %v1650, %v1651
      %v1653 = vsel %vm1176, %v800, -inf
      %v1654 = vrot.slane %v1653, 4
      %v1655 = vmax.f32 %v1653, %v1654
      %v1656 = vrot.slane %v1655, 2
      %v1657 = vmax.f32 %v1655, %v1656
      %v1658 = vrot.slane %v1657, 1
      %v1659 = vmax.f32 %v1657, %v1658
      %v1660 = vsel %vm1176, %v808, -inf
      %v1661 = vrot.slane %v1660, 4
      %v1662 = vmax.f32 %v1660, %v1661
      %v1663 = vrot.slane %v1662, 2
      %v1664 = vmax.f32 %v1662, %v1663
      %v1665 = vrot.slane %v1664, 1
      %v1666 = vmax.f32 %v1664, %v1665
      %v1667 = vsel %vm1176, %v807, -inf
      %v1668 = vrot.slane %v1667, 4
      %v1669 = vmax.f32 %v1667, %v1668
      %v1670 = vrot.slane %v1669, 2
      %v1671 = vmax.f32 %v1669, %v1670
      %v1672 = vrot.slane %v1671, 1
      %v1673 = vmax.f32 %v1671, %v1672
      %v1674 = vsel %vm1176, %v809, -inf
      %v1675 = vrot.slane %v1674, 4
      %v1676 = vmax.f32 %v1674, %v1675
      %v1677 = vrot.slane %v1676, 2
      %v1678 = vmax.f32 %v1676, %v1677
      %v1679 = vrot.slane %v1678, 1
      %v1680 = vmax.f32 %v1678, %v1679
      %v1681 = vsel %vm1176, %v817, -inf
      %v1682 = vrot.slane %v1681, 4
      %v1683 = vmax.f32 %v1681, %v1682
      %v1684 = vrot.slane %v1683, 2
      %v1685 = vmax.f32 %v1683, %v1684
      %v1686 = vrot.slane %v1685, 1
      %v1687 = vmax.f32 %v1685, %v1686
      %v1688 = vsel %vm1176, %v825, -inf
      %v1689 = vrot.slane %v1688, 4
      %v1690 = vmax.f32 %v1688, %v1689
      %v1691 = vrot.slane %v1690, 2
      %v1692 = vmax.f32 %v1690, %v1691
      %v1693 = vrot.slane %v1692, 1
      %v1694 = vmax.f32 %v1692, %v1693
      %v1695 = vsel %vm1176, %v824, -inf
      %v1696 = vrot.slane %v1695, 4
      %v1697 = vmax.f32 %v1695, %v1696
      %v1698 = vrot.slane %v1697, 2
      %v1699 = vmax.f32 %v1697, %v1698
      %v1700 = vrot.slane %v1699, 1
      %v1701 = vmax.f32 %v1699, %v1700
      %v1702 = vsel %vm1176, %v826, -inf
      %v1703 = vrot.slane %v1702, 4
      %v1704 = vmax.f32 %v1702, %v1703
      %v1705 = vrot.slane %v1704, 2
      %v1706 = vmax.f32 %v1704, %v1705
      %v1707 = vrot.slane %v1706, 1
      %v1708 = vmax.f32 %v1706, %v1707
      %v1709 = vsel %vm1176, %v834, -inf
      %v1710 = vrot.slane %v1709, 4
      %v1711 = vmax.f32 %v1709, %v1710
      %v1712 = vrot.slane %v1711, 2
      %v1713 = vmax.f32 %v1711, %v1712
      %v1714 = vrot.slane %v1713, 1
      %v1715 = vmax.f32 %v1713, %v1714
      %v1716 = vsel %vm1176, %v842, -inf
      %v1717 = vrot.slane %v1716, 4
      %v1718 = vmax.f32 %v1716, %v1717
      %v1719 = vrot.slane %v1718, 2
      %v1720 = vmax.f32 %v1718, %v1719
      %v1721 = vrot.slane %v1720, 1
      %v1722 = vmax.f32 %v1720, %v1721
      %v1723 = vsel %vm1176, %v841, -inf
      %v1724 = vrot.slane %v1723, 4
      %v1725 = vmax.f32 %v1723, %v1724
      %v1726 = vrot.slane %v1725, 2
      %v1727 = vmax.f32 %v1725, %v1726
      %v1728 = vrot.slane %v1727, 1
      %v1729 = vmax.f32 %v1727, %v1728
      %v1730 = vsel %vm1176, %v843, -inf
      %v1731 = vrot.slane %v1730, 4
      %v1732 = vmax.f32 %v1730, %v1731
      %v1733 = vrot.slane %v1732, 2
      %v1734 = vmax.f32 %v1732, %v1733
      %v1735 = vrot.slane %v1734, 1
      %v1736 = vmax.f32 %v1734, %v1735
      %v1737 = vsel %vm1176, %v851, -inf
      %v1738 = vrot.slane %v1737, 4
      %v1739 = vmax.f32 %v1737, %v1738
      %v1740 = vrot.slane %v1739, 2
      %v1741 = vmax.f32 %v1739, %v1740
      %v1742 = vrot.slane %v1741, 1
      %v1743 = vmax.f32 %v1741, %v1742
      %v1744 = vsel %vm1176, %v859, -inf
      %v1745 = vrot.slane %v1744, 4
      %v1746 = vmax.f32 %v1744, %v1745
      %v1747 = vrot.slane %v1746, 2
      %v1748 = vmax.f32 %v1746, %v1747
      %v1749 = vrot.slane %v1748, 1
      %v1750 = vmax.f32 %v1748, %v1749
      %v1751 = vsel %vm1176, %v858, -inf
      %v1752 = vrot.slane %v1751, 4
      %v1753 = vmax.f32 %v1751, %v1752
      %v1754 = vrot.slane %v1753, 2
      %v1755 = vmax.f32 %v1753, %v1754
      %v1756 = vrot.slane %v1755, 1
      %v1757 = vmax.f32 %v1755, %v1756
      %v1758 = vsel %vm1176, %v860, -inf
      %v1759 = vrot.slane %v1758, 4
      %v1760 = vmax.f32 %v1758, %v1759
      %v1761 = vrot.slane %v1760, 2
      %v1762 = vmax.f32 %v1760, %v1761
      %v1763 = vrot.slane %v1762, 1
      %v1764 = vmax.f32 %v1762, %v1763
      %v1765 = vsel %vm1176, %v868, -inf
      %v1766 = vrot.slane %v1765, 4
      %v1767 = vmax.f32 %v1765, %v1766
      %v1768 = vrot.slane %v1767, 2
      %v1769 = vmax.f32 %v1767, %v1768
      %v1770 = vrot.slane %v1769, 1
      %v1771 = vmax.f32 %v1769, %v1770
      %v1772 = vsel %vm1176, %v876, -inf
      %v1773 = vrot.slane %v1772, 4
      %v1774 = vmax.f32 %v1772, %v1773
      %v1775 = vrot.slane %v1774, 2
      %v1776 = vmax.f32 %v1774, %v1775
      %v1777 = vrot.slane %v1776, 1
      %v1778 = vmax.f32 %v1776, %v1777
      %v1779 = vsel %vm1176, %v875, -inf
      %v1780 = vrot.slane %v1779, 4
      %v1781 = vmax.f32 %v1779, %v1780
      %v1782 = vrot.slane %v1781, 2
      %v1783 = vmax.f32 %v1781, %v1782
      %v1784 = vrot.slane %v1783, 1
      %v1785 = vmax.f32 %v1783, %v1784
      %v1786 = vsel %vm1176, %v877, -inf
      %v1787 = vrot.slane %v1786, 4
      %v1788 = vmax.f32 %v1786, %v1787
      %v1789 = vrot.slane %v1788, 2
      %v1790 = vmax.f32 %v1788, %v1789
      %v1791 = vrot.slane %v1790, 1
      %v1792 = vmax.f32 %v1790, %v1791
      %v1793 = vsel %vm1176, %v885, -inf
      %v1794 = vrot.slane %v1793, 4
      %v1795 = vmax.f32 %v1793, %v1794
      %v1796 = vrot.slane %v1795, 2
      %v1797 = vmax.f32 %v1795, %v1796
      %v1798 = vrot.slane %v1797, 1
      %v1799 = vmax.f32 %v1797, %v1798
      %v1800 = vsel %vm1176, %v893, -inf
      %v1801 = vrot.slane %v1800, 4
      %v1802 = vmax.f32 %v1800, %v1801
      %v1803 = vrot.slane %v1802, 2
      %v1804 = vmax.f32 %v1802, %v1803
      %v1805 = vrot.slane %v1804, 1
      %v1806 = vmax.f32 %v1804, %v1805
      %v1807 = vsel %vm1176, %v892, -inf
      %v1808 = vrot.slane %v1807, 4
      %v1809 = vmax.f32 %v1807, %v1808
      %v1810 = vrot.slane %v1809, 2
      %v1811 = vmax.f32 %v1809, %v1810
      %v1812 = vrot.slane %v1811, 1
      %v1813 = vmax.f32 %v1811, %v1812
      %v1814 = vsel %vm1176, %v894, -inf
      %v1815 = vrot.slane %v1814, 4
      %v1816 = vmax.f32 %v1814, %v1815
      %v1817 = vrot.slane %v1816, 2
      %v1818 = vmax.f32 %v1816, %v1817
      %v1819 = vrot.slane %v1818, 1
      %v1820 = vmax.f32 %v1818, %v1819
      %v1821 = vsel %vm1176, %v902, -inf
      %v1822 = vrot.slane %v1821, 4
      %v1823 = vmax.f32 %v1821, %v1822
      %v1824 = vrot.slane %v1823, 2
      %v1825 = vmax.f32 %v1823, %v1824
      %v1826 = vrot.slane %v1825, 1
      %v1827 = vmax.f32 %v1825, %v1826
      %v1828 = vsel %vm1176, %v910, -inf
      %v1829 = vrot.slane %v1828, 4
      %v1830 = vmax.f32 %v1828, %v1829
      %v1831 = vrot.slane %v1830, 2
      %v1832 = vmax.f32 %v1830, %v1831
      %v1833 = vrot.slane %v1832, 1
      %v1834 = vmax.f32 %v1832, %v1833
      %v1835 = vsel %vm1176, %v909, -inf
      %v1836 = vrot.slane %v1835, 4
      %v1837 = vmax.f32 %v1835, %v1836
      %v1838 = vrot.slane %v1837, 2
      %v1839 = vmax.f32 %v1837, %v1838
      %v1840 = vrot.slane %v1839, 1
      %v1841 = vmax.f32 %v1839, %v1840
      %v1842 = vsel %vm1176, %v911, -inf
      %v1843 = vrot.slane %v1842, 4
      %v1844 = vmax.f32 %v1842, %v1843
      %v1845 = vrot.slane %v1844, 2
      %v1846 = vmax.f32 %v1844, %v1845
      %v1847 = vrot.slane %v1846, 1
      %v1848 = vmax.f32 %v1846, %v1847
      %v1849 = vsel %vm1176, %v919, -inf
      %v1850 = vrot.slane %v1849, 4
      %v1851 = vmax.f32 %v1849, %v1850
      %v1852 = vrot.slane %v1851, 2
      %v1853 = vmax.f32 %v1851, %v1852
      %v1854 = vrot.slane %v1853, 1
      %v1855 = vmax.f32 %v1853, %v1854
      %v1856 = vsel %vm1176, %v927, -inf
      %v1857 = vrot.slane %v1856, 4
      %v1858 = vmax.f32 %v1856, %v1857
      %v1859 = vrot.slane %v1858, 2
      %v1860 = vmax.f32 %v1858, %v1859
      %v1861 = vrot.slane %v1860, 1
      %v1862 = vmax.f32 %v1860, %v1861
      %v1863 = vsel %vm1176, %v926, -inf
      %v1864 = vrot.slane %v1863, 4
      %v1865 = vmax.f32 %v1863, %v1864
      %v1866 = vrot.slane %v1865, 2
      %v1867 = vmax.f32 %v1865, %v1866
      %v1868 = vrot.slane %v1867, 1
      %v1869 = vmax.f32 %v1867, %v1868
      %v1870 = vsel %vm1176, %v928, -inf
      %v1871 = vrot.slane %v1870, 4
      %v1872 = vmax.f32 %v1870, %v1871
      %v1873 = vrot.slane %v1872, 2
      %v1874 = vmax.f32 %v1872, %v1873
      %v1875 = vrot.slane %v1874, 1
      %v1876 = vmax.f32 %v1874, %v1875
      %v1877 = vsel %vm1176, %v936, -inf
      %v1878 = vrot.slane %v1877, 4
      %v1879 = vmax.f32 %v1877, %v1878
      %v1880 = vrot.slane %v1879, 2
      %v1881 = vmax.f32 %v1879, %v1880
      %v1882 = vrot.slane %v1881, 1
      %v1883 = vmax.f32 %v1881, %v1882
      %v1884 = vsel %vm1176, %v944, -inf
      %v1885 = vrot.slane %v1884, 4
      %v1886 = vmax.f32 %v1884, %v1885
      %v1887 = vrot.slane %v1886, 2
      %v1888 = vmax.f32 %v1886, %v1887
      %v1889 = vrot.slane %v1888, 1
      %v1890 = vmax.f32 %v1888, %v1889
      %v1891 = vsel %vm1176, %v943, -inf
      %v1892 = vrot.slane %v1891, 4
      %v1893 = vmax.f32 %v1891, %v1892
      %v1894 = vrot.slane %v1893, 2
      %v1895 = vmax.f32 %v1893, %v1894
      %v1896 = vrot.slane %v1895, 1
      %v1897 = vmax.f32 %v1895, %v1896
      %v1898 = vsel %vm1176, %v945, -inf
      %v1899 = vrot.slane %v1898, 4
      %v1900 = vmax.f32 %v1898, %v1899
      %v1901 = vrot.slane %v1900, 2
      %v1902 = vmax.f32 %v1900, %v1901
      %v1903 = vrot.slane %v1902, 1
      %v1904 = vmax.f32 %v1902, %v1903
      %v1905 = vsel %vm1176, %v953, -inf
      %v1906 = vrot.slane %v1905, 4
      %v1907 = vmax.f32 %v1905, %v1906
      %v1908 = vrot.slane %v1907, 2
      %v1909 = vmax.f32 %v1907, %v1908
      %v1910 = vrot.slane %v1909, 1
      %v1911 = vmax.f32 %v1909, %v1910
      %v1912 = vsel %vm1176, %v961, -inf
      %v1913 = vrot.slane %v1912, 4
      %v1914 = vmax.f32 %v1912, %v1913
      %v1915 = vrot.slane %v1914, 2
      %v1916 = vmax.f32 %v1914, %v1915
      %v1917 = vrot.slane %v1916, 1
      %v1918 = vmax.f32 %v1916, %v1917
      %v1919 = vsel %vm1176, %v960, -inf
      %v1920 = vrot.slane %v1919, 4
      %v1921 = vmax.f32 %v1919, %v1920
      %v1922 = vrot.slane %v1921, 2
      %v1923 = vmax.f32 %v1921, %v1922
      %v1924 = vrot.slane %v1923, 1
      %v1925 = vmax.f32 %v1923, %v1924
      %v1926 = vsel %vm1176, %v962, -inf
      %v1927 = vrot.slane %v1926, 4
      %v1928 = vmax.f32 %v1926, %v1927
      %v1929 = vrot.slane %v1928, 2
      %v1930 = vmax.f32 %v1928, %v1929
      %v1931 = vrot.slane %v1930, 1
      %v1932 = vmax.f32 %v1930, %v1931
      %v1933 = vsel %vm1176, %v970, -inf
      %v1934 = vrot.slane %v1933, 4
      %v1935 = vmax.f32 %v1933, %v1934
      %v1936 = vrot.slane %v1935, 2
      %v1937 = vmax.f32 %v1935, %v1936
      %v1938 = vrot.slane %v1937, 1
      %v1939 = vmax.f32 %v1937, %v1938
      %v1940 = vsel %vm1176, %v978, -inf
      %v1941 = vrot.slane %v1940, 4
      %v1942 = vmax.f32 %v1940, %v1941
      %v1943 = vrot.slane %v1942, 2
      %v1944 = vmax.f32 %v1942, %v1943
      %v1945 = vrot.slane %v1944, 1
      %v1946 = vmax.f32 %v1944, %v1945
      %v1947 = vsel %vm1176, %v977, -inf
      %v1948 = vrot.slane %v1947, 4
      %v1949 = vmax.f32 %v1947, %v1948
      %v1950 = vrot.slane %v1949, 2
      %v1951 = vmax.f32 %v1949, %v1950
      %v1952 = vrot.slane %v1951, 1
      %v1953 = vmax.f32 %v1951, %v1952
      %v1954 = vsel %vm1176, %v979, -inf
      %v1955 = vrot.slane %v1954, 4
      %v1956 = vmax.f32 %v1954, %v1955
      %v1957 = vrot.slane %v1956, 2
      %v1958 = vmax.f32 %v1956, %v1957
      %v1959 = vrot.slane %v1958, 1
      %v1960 = vmax.f32 %v1958, %v1959
      %v1961 = vsel %vm1176, %v987, -inf
      %v1962 = vrot.slane %v1961, 4
      %v1963 = vmax.f32 %v1961, %v1962
      %v1964 = vrot.slane %v1963, 2
      %v1965 = vmax.f32 %v1963, %v1964
      %v1966 = vrot.slane %v1965, 1
      %v1967 = vmax.f32 %v1965, %v1966
      %v1968 = vsel %vm1176, %v995, -inf
      %v1969 = vrot.slane %v1968, 4
      %v1970 = vmax.f32 %v1968, %v1969
      %v1971 = vrot.slane %v1970, 2
      %v1972 = vmax.f32 %v1970, %v1971
      %v1973 = vrot.slane %v1972, 1
      %v1974 = vmax.f32 %v1972, %v1973
      %v1975 = vsel %vm1176, %v994, -inf
      %v1976 = vrot.slane %v1975, 4
      %v1977 = vmax.f32 %v1975, %v1976
      %v1978 = vrot.slane %v1977, 2
      %v1979 = vmax.f32 %v1977, %v1978
      %v1980 = vrot.slane %v1979, 1
      %v1981 = vmax.f32 %v1979, %v1980
      %v1982 = vsel %vm1176, %v996, -inf
      %v1983 = vrot.slane %v1982, 4
      %v1984 = vmax.f32 %v1982, %v1983
      %v1985 = vrot.slane %v1984, 2
      %v1986 = vmax.f32 %v1984, %v1985
      %v1987 = vrot.slane %v1986, 1
      %v1988 = vmax.f32 %v1986, %v1987
      %v1989 = vsel %vm1176, %v1004, -inf
      %v1990 = vrot.slane %v1989, 4
      %v1991 = vmax.f32 %v1989, %v1990
      %v1992 = vrot.slane %v1991, 2
      %v1993 = vmax.f32 %v1991, %v1992
      %v1994 = vrot.slane %v1993, 1
      %v1995 = vmax.f32 %v1993, %v1994
      %v1996 = vsel %vm1176, %v1012, -inf
      %v1997 = vrot.slane %v1996, 4
      %v1998 = vmax.f32 %v1996, %v1997
      %v1999 = vrot.slane %v1998, 2
      %v2000 = vmax.f32 %v1998, %v1999
      %v2001 = vrot.slane %v2000, 1
      %v2002 = vmax.f32 %v2000, %v2001
      %v2003 = vsel %vm1176, %v1011, -inf
      %v2004 = vrot.slane %v2003, 4
      %v2005 = vmax.f32 %v2003, %v2004
      %v2006 = vrot.slane %v2005, 2
      %v2007 = vmax.f32 %v2005, %v2006
      %v2008 = vrot.slane %v2007, 1
      %v2009 = vmax.f32 %v2007, %v2008
      %v2010 = vsel %vm1176, %v1013, -inf
      %v2011 = vrot.slane %v2010, 4
      %v2012 = vmax.f32 %v2010, %v2011
      %v2013 = vrot.slane %v2012, 2
      %v2014 = vmax.f32 %v2012, %v2013
      %v2015 = vrot.slane %v2014, 1
      %v2016 = vmax.f32 %v2014, %v2015
      %v2017 = vsel %vm1176, %v1021, -inf
      %v2018 = vrot.slane %v2017, 4
      %v2019 = vmax.f32 %v2017, %v2018
      %v2020 = vrot.slane %v2019, 2
      %v2021 = vmax.f32 %v2019, %v2020
      %v2022 = vrot.slane %v2021, 1
      %v2023 = vmax.f32 %v2021, %v2022
      %v2024 = vsel %vm1176, %v1029, -inf
      %v2025 = vrot.slane %v2024, 4
      %v2026 = vmax.f32 %v2024, %v2025
      %v2027 = vrot.slane %v2026, 2
      %v2028 = vmax.f32 %v2026, %v2027
      %v2029 = vrot.slane %v2028, 1
      %v2030 = vmax.f32 %v2028, %v2029
      %v2031 = vsel %vm1176, %v1028, -inf
      %v2032 = vrot.slane %v2031, 4
      %v2033 = vmax.f32 %v2031, %v2032
      %v2034 = vrot.slane %v2033, 2
      %v2035 = vmax.f32 %v2033, %v2034
      %v2036 = vrot.slane %v2035, 1
      %v2037 = vmax.f32 %v2035, %v2036
      %v2038 = vsel %vm1176, %v1030, -inf
      %v2039 = vrot.slane %v2038, 4
      %v2040 = vmax.f32 %v2038, %v2039
      %v2041 = vrot.slane %v2040, 2
      %v2042 = vmax.f32 %v2040, %v2041
      %v2043 = vrot.slane %v2042, 1
      %v2044 = vmax.f32 %v2042, %v2043
      %v2045 = vsel %vm1176, %v1038, -inf
      %v2046 = vrot.slane %v2045, 4
      %v2047 = vmax.f32 %v2045, %v2046
      %v2048 = vrot.slane %v2047, 2
      %v2049 = vmax.f32 %v2047, %v2048
      %v2050 = vrot.slane %v2049, 1
      %v2051 = vmax.f32 %v2049, %v2050
      %v2052 = vsel %vm1176, %v1046, -inf
      %v2053 = vrot.slane %v2052, 4
      %v2054 = vmax.f32 %v2052, %v2053
      %v2055 = vrot.slane %v2054, 2
      %v2056 = vmax.f32 %v2054, %v2055
      %v2057 = vrot.slane %v2056, 1
      %v2058 = vmax.f32 %v2056, %v2057
      %v2059 = vsel %vm1176, %v1045, -inf
      %v2060 = vrot.slane %v2059, 4
      %v2061 = vmax.f32 %v2059, %v2060
      %v2062 = vrot.slane %v2061, 2
      %v2063 = vmax.f32 %v2061, %v2062
      %v2064 = vrot.slane %v2063, 1
      %v2065 = vmax.f32 %v2063, %v2064
      %v2066 = vsel %vm1176, %v1047, -inf
      %v2067 = vrot.slane %v2066, 4
      %v2068 = vmax.f32 %v2066, %v2067
      %v2069 = vrot.slane %v2068, 2
      %v2070 = vmax.f32 %v2068, %v2069
      %v2071 = vrot.slane %v2070, 1
      %v2072 = vmax.f32 %v2070, %v2071
      %v2073 = vmax.f32 %v1183, %v1239
      %v2074 = vmax.f32 %v1190, %v1246
      %v2075 = vmax.f32 %v1197, %v1253
      %v2076 = vmax.f32 %v1204, %v1260
      %v2077 = vmax.f32 %v1211, %v1267
      %v2078 = vmax.f32 %v1218, %v1274
      %v2079 = vmax.f32 %v1225, %v1281
      %v2080 = vmax.f32 %v1232, %v1288
      %v2081 = vmax.f32 %v1295, %v1351
      %v2082 = vmax.f32 %v1302, %v1358
      %v2083 = vmax.f32 %v1309, %v1365
      %v2084 = vmax.f32 %v1316, %v1372
      %v2085 = vmax.f32 %v1323, %v1379
      %v2086 = vmax.f32 %v1330, %v1386
      %v2087 = vmax.f32 %v1337, %v1393
      %v2088 = vmax.f32 %v1344, %v1400
      %v2089 = vmax.f32 %v1407, %v1463
      %v2090 = vmax.f32 %v1414, %v1470
      %v2091 = vmax.f32 %v1421, %v1477
      %v2092 = vmax.f32 %v1428, %v1484
      %v2093 = vmax.f32 %v1435, %v1491
      %v2094 = vmax.f32 %v1442, %v1498
      %v2095 = vmax.f32 %v1449, %v1505
      %v2096 = vmax.f32 %v1456, %v1512
      %v2097 = vmax.f32 %v1519, %v1575
      %v2098 = vmax.f32 %v1526, %v1582
      %v2099 = vmax.f32 %v1533, %v1589
      %v2100 = vmax.f32 %v1540, %v1596
      %v2101 = vmax.f32 %v1547, %v1603
      %v2102 = vmax.f32 %v1554, %v1610
      %v2103 = vmax.f32 %v1561, %v1617
      %v2104 = vmax.f32 %v1568, %v1624
      %v2105 = vmax.f32 %v1631, %v1687
      %v2106 = vmax.f32 %v1638, %v1694
      %v2107 = vmax.f32 %v1645, %v1701
      %v2108 = vmax.f32 %v1652, %v1708
      %v2109 = vmax.f32 %v1659, %v1715
      %v2110 = vmax.f32 %v1666, %v1722
      %v2111 = vmax.f32 %v1673, %v1729
      %v2112 = vmax.f32 %v1680, %v1736
      %v2113 = vmax.f32 %v1743, %v1799
      %v2114 = vmax.f32 %v1750, %v1806
      %v2115 = vmax.f32 %v1757, %v1813
      %v2116 = vmax.f32 %v1764, %v1820
      %v2117 = vmax.f32 %v1771, %v1827
      %v2118 = vmax.f32 %v1778, %v1834
      %v2119 = vmax.f32 %v1785, %v1841
      %v2120 = vmax.f32 %v1792, %v1848
      %v2121 = vmax.f32 %v1855, %v1911
      %v2122 = vmax.f32 %v1862, %v1918
      %v2123 = vmax.f32 %v1869, %v1925
      %v2124 = vmax.f32 %v1876, %v1932
      %v2125 = vmax.f32 %v1883, %v1939
      %v2126 = vmax.f32 %v1890, %v1946
      %v2127 = vmax.f32 %v1897, %v1953
      %v2128 = vmax.f32 %v1904, %v1960
      %v2129 = vmax.f32 %v1967, %v2023
      %v2130 = vmax.f32 %v1974, %v2030
      %v2131 = vmax.f32 %v1981, %v2037
      %v2132 = vmax.f32 %v1988, %v2044
      %v2133 = vmax.f32 %v1995, %v2051
      %v2134 = vmax.f32 %v2002, %v2058
      %v2135 = vmax.f32 %v2009, %v2065
      %v2136 = vmax.f32 %v2016, %v2072
      %vm2201 = vcmask 1041409
      %v2202 = vsel %vm2201, %v2074, %v2073
      %vm2203 = vcmask 1042434
      %v2204 = vsel %vm2203, %v2075, %v2202
      %vm2205 = vcmask 1043459
      %v2206 = vsel %vm2205, %v2076, %v2204
      %vm2207 = vcmask 1044484
      %v2208 = vsel %vm2207, %v2077, %v2206
      %vm2209 = vcmask 1045509
      %v2210 = vsel %vm2209, %v2078, %v2208
      %vm2211 = vcmask 1046534
      %v2212 = vsel %vm2211, %v2079, %v2210
      %vm2213 = vcmask 1047559
      %v2214 = vsel %vm2213, %v2080, %v2212
      %v2215 = vsel %vm2201, %v2082, %v2081
      %v2216 = vsel %vm2203, %v2083, %v2215
      %v2217 = vsel %vm2205, %v2084, %v2216
      %v2218 = vsel %vm2207, %v2085, %v2217
      %v2219 = vsel %vm2209, %v2086, %v2218
      %v2220 = vsel %vm2211, %v2087, %v2219
      %v2221 = vsel %vm2213, %v2088, %v2220
      %v2222 = vsel %vm2201, %v2090, %v2089
      %v2223 = vsel %vm2203, %v2091, %v2222
      %v2224 = vsel %vm2205, %v2092, %v2223
      %v2225 = vsel %vm2207, %v2093, %v2224
      %v2226 = vsel %vm2209, %v2094, %v2225
      %v2227 = vsel %vm2211, %v2095, %v2226
      %v2228 = vsel %vm2213, %v2096, %v2227
      %v2229 = vsel %vm2201, %v2098, %v2097
      %v2230 = vsel %vm2203, %v2099, %v2229
      %v2231 = vsel %vm2205, %v2100, %v2230
      %v2232 = vsel %vm2207, %v2101, %v2231
      %v2233 = vsel %vm2209, %v2102, %v2232
      %v2234 = vsel %vm2211, %v2103, %v2233
      %v2235 = vsel %vm2213, %v2104, %v2234
      %v2236 = vsel %vm2201, %v2106, %v2105
      %v2237 = vsel %vm2203, %v2107, %v2236
      %v2238 = vsel %vm2205, %v2108, %v2237
      %v2239 = vsel %vm2207, %v2109, %v2238
      %v2240 = vsel %vm2209, %v2110, %v2239
      %v2241 = vsel %vm2211, %v2111, %v2240
      %v2242 = vsel %vm2213, %v2112, %v2241
      %v2243 = vsel %vm2201, %v2114, %v2113
      %v2244 = vsel %vm2203, %v2115, %v2243
      %v2245 = vsel %vm2205, %v2116, %v2244
      %v2246 = vsel %vm2207, %v2117, %v2245
      %v2247 = vsel %vm2209, %v2118, %v2246
      %v2248 = vsel %vm2211, %v2119, %v2247
      %v2249 = vsel %vm2213, %v2120, %v2248
      %v2250 = vsel %vm2201, %v2122, %v2121
      %v2251 = vsel %vm2203, %v2123, %v2250
      %v2252 = vsel %vm2205, %v2124, %v2251
      %v2253 = vsel %vm2207, %v2125, %v2252
      %v2254 = vsel %vm2209, %v2126, %v2253
      %v2255 = vsel %vm2211, %v2127, %v2254
      %v2256 = vsel %vm2213, %v2128, %v2255
      %v2257 = vsel %vm2201, %v2130, %v2129
      %v2258 = vsel %vm2203, %v2131, %v2257
      %v2259 = vsel %vm2205, %v2132, %v2258
      %v2260 = vsel %vm2207, %v2133, %v2259
      %v2261 = vsel %vm2209, %v2134, %v2260
      %v2262 = vsel %vm2211, %v2135, %v2261
      %v2263 = vsel %vm2213, %v2136, %v2262
      %2272 = vst [vmem:[%s264] sm:$0xff] %v2214
      %2273 = vst [vmem:[%s264 + $0x8] sm:$0xff] %v2221
      %2274 = vst [vmem:[%s264 + $0x10] sm:$0xff] %v2228
      %2275 = vst [vmem:[%s264 + $0x18] sm:$0xff] %v2235
      %2276 = vst [vmem:[%s264 + $0x20] sm:$0xff] %v2242
      %2277 = vst [vmem:[%s264 + $0x28] sm:$0xff] %v2249
      %2278 = vst [vmem:[%s264 + $0x30] sm:$0xff] %v2256
      %2279 = vst [vmem:[%s264 + $0x38] sm:$0xff] %v2263
      %s2280 = smul.u32 16, %s21
      %p2281 = scmp.lt.s32.totalorder %s20, 1
      %s2282 = scalar_select %p2281, %s20, 1
      %p2283 = scmp.lt.s32.totalorder %s2280, 15
      %s2284 = scalar_select %p2283, %s2280, 15
      %s2285 = smul.addr %s2284, 2
      %s2286 = smul.addr %s2282, 32
      %s2287 = sadd.s32 %s2285, %s2286
      %s2288 = smul.addr %s2287, 8
      %s2289 = scalar_lea.vmem %s3, %s2288
      %s2290 = smul.u32 8, %s21
      %p2291 = scmp.lt.s32.totalorder %s20, 1
      %s2292 = scalar_select %p2291, %s20, 1
      %p2293 = scmp.lt.s32.totalorder %s2290, 7
      %s2294 = scalar_select %p2293, %s2290, 7
      %s2295 = smul.addr %s2292, 8
      %s2296 = sadd.s32 %s2294, %s2295
      %s2297 = smul.addr %s2296, 8
      %s2298 = scalar_lea.vmem %s4, %s2297
      // Predicated region
      $region33: #{encoder_forward.5} parent=31 // pred_check
        %p2299 = pneg %p118
      $region34: #{encoder_forward.5} parent=31 // pred_check_branch
        %2301 = sbr.rel (%p2299) target = $region36
      $region35: #{encoder_forward.5} parent=31 // pred_region
        %s2302 = smul.u32 16, %s21
      $region36: #{encoder_forward.5} parent=31 // pred_fallthru
        _
      // Predicated region
      $region37: #{encoder_forward.5} parent=31 // pred_check
        %p2303 = pneg %p146
      $region38: #{encoder_forward.5} parent=31 // pred_check_branch
        %2305 = sbr.rel (%p2303) target = $region40
      $region39: #{encoder_forward.5} parent=31 // pred_region
        %s2306 = smul.u32 8, %s21
      $region40: #{encoder_forward.5} parent=31 // pred_fallthru
        _
    $region32: #{encoder_forward.5} parent=5 // pred_fallthru
      _
    %p2307 = scmp.le.s32.totalorder 2, %s11
    // Predicated region
    $region41: #{encoder_forward.5} parent=5 // pred_check
      %p2308 = pneg %p2307
    $region42: #{encoder_forward.5} parent=5 // pred_check_branch
      %2310 = sbr.rel (%p2308) target = $region44
    $region43: #{encoder_forward.5} parent=5 // pred_region
      %s2311 = ssub.s32 %s11, 2
      // Predicated region
      $region45: #{encoder_forward.5} parent=43 // pred_check
        %p2312 = pneg %p124
      $region46: #{encoder_forward.5} parent=43 // pred_check_branch
        %2314 = sbr.rel (%p2312) target = $region48
      $region47: #{encoder_forward.5} parent=43 // pred_region
        %s2315 = smul.u32 16, %s23
        %p2316 = scmp.lt.s32.totalorder %s22, 1
        %s2317 = scalar_select %p2316, %s22, 1
        %p2318 = scmp.lt.s32.totalorder %s2315, 15
        %s2319 = scalar_select %p2318, %s2315, 15
        %s2320 = smul.addr %s2319, 2
        %s2321 = smul.addr %s2317, 32
        %s2322 = sadd.s32 %s2320, %s2321
        %s2323 = smul.addr %s2322, 8
        %s2324 = scalar_lea.vmem %s3, %s2323
      $region48: #{encoder_forward.5} parent=43 // pred_fallthru
        _
      // Predicated region
      $region49: #{encoder_forward.5} parent=43 // pred_check
        %p2325 = pneg %p152
      $region50: #{encoder_forward.5} parent=43 // pred_check_branch
        %2327 = sbr.rel (%p2325) target = $region52
      $region51: #{encoder_forward.5} parent=43 // pred_region
        %s2328 = smul.u32 8, %s23
        %p2329 = scmp.lt.s32.totalorder %s22, 1
        %s2330 = scalar_select %p2329, %s22, 1
        %p2331 = scmp.lt.s32.totalorder %s2328, 7
        %s2332 = scalar_select %p2331, %s2328, 7
        %s2333 = smul.addr %s2330, 8
        %s2334 = sadd.s32 %s2332, %s2333
        %s2335 = smul.addr %s2334, 8
        %s2336 = scalar_lea.vmem %s4, %s2335
      $region52: #{encoder_forward.5} parent=43 // pred_fallthru
        _
    $region44: #{encoder_forward.5} parent=5 // pred_fallthru
      _
  $region6: #{encoder_forward.5} parent=0 // loop_footer
    %s15 = sadd.s32 1, %s11
  $region7: #{encoder_forward.5} parent=0 // loop_footer_branch
    %10 = sbr.rel target = $region3
  $region8: #{encoder_forward.5} parent=0 // loop_exit
    _

// kernel: encoder_forward.3
$region0: #{encoder_forward.3}
  #allocation0 [shape = 'u32[]', space=smem, size = 0x4, offset = 0x4, fixed_abs, tag = 'smem constant byte address 0x4 - core index']
  #allocation1 [shape = 'u32[144,128]{1,0:T(1,128)}', space=vmem, size = 0x12000, scoped, tag = 'internal scratch']
  #allocation2 [shape = 'bf16[1,16,16,128]{3,2,1,0:T(8,128)(2,1)}', space=vmem, size = 0x10000, scoped, tag = 'scratch operand']
  #allocation3 [shape = 'bf16[18,18,128]{2,1,0:T(8,128)(2,1)}', space=vmem, size = 0x1b000, scoped, tag = 'scratch operand']
  #allocation4 [shape = 's32[1]{0}', space=sflag, size = 0x4, scoped, tag = 'scratch operand']
  #allocation5 [shape = 's32[]', space=sflag, size = 0x4, offset = 0, fixed_abs, tag = 'sflag constant byte address 0x0 - dummy sync flag']
  %s0 = inlined_call_operand.vmem [shape: bf16[2,16,16,128], index: 0, kind: input, shape index: {}]
  %s1 = inlined_call_operand.vmem [shape: f32[1,1,128], index: 1, kind: input, shape index: {}, may-alias: {1,2}]
  %s2 = inlined_call_operand.vmem [shape: f32[1,1,128], index: 2, kind: input, shape index: {}, may-alias: {1,2}]
  %s3 = inlined_call_operand.vmem [shape: bf16[9,128,128], index: 3, kind: input, shape index: {}]
  %s4 = inlined_call_operand.vmem [shape: bf16[2,16,16,128], index: 4, kind: output, shape index: {0}]
  %s5 = inlined_call_operand.vmem [shape: f32[2,1,2,128], index: 5, kind: output, shape index: {1}]
  %6 = xla_tuple %s4, %s5
  %s7 = sld [smem:[#allocation0]]
  $region87: #{encoder_forward.3} parent=0
    _
  %s9 = ssub.s32 1, %s7
  %s10 = scalar_select 0, %s9, %s7
  loop: start=0, step=1, limit=4
  $region2: #{encoder_forward.3} parent=0 // loop_pre_header
    _
  $region3: #{encoder_forward.3} parent=0 // loop_header
    %s12 = sphi 0, %s16
    %p13 = scmp.ge.s32.totalorder %s12, 4
    %s19 = sphi 0, %s31
    %s20 = sphi 0, %s27
    %s21 = sphi 0, %s19
    %s22 = sphi 0, %s20
    %s23 = sphi 0, %s21
    %s24 = sphi 0, %s22
    %s32 = sphi 0, %s32
    %s34 = sphi 0, %s32
    %s35 = sphi 0, %s34
    %s49 = sphi 0, %s35
    %s53 = sphi 0, %s53
    %s55 = sphi 0, %s53
    %s56 = sphi 0, %s55
    %s70 = sphi 0, %s56
    %s74 = sphi 0, %s74
    %s76 = sphi 0, %s74
    %s77 = sphi 0, %s76
    %s91 = sphi 0, %s77
    %s99 = sphi 0, %s101
    %s102 = sphi 0, %s99
    %s103 = sphi 0, %s102
    %s119 = sphi 0, %s103
    %s127 = sphi 0, %s129
    %s130 = sphi 0, %s127
    %s131 = sphi 0, %s130
    %s147 = sphi 0, %s131
  $region4: #{encoder_forward.3} parent=0 // loop_header_branch
    %15 = sbr.rel (%p13) target = $region8
  $region5: #{encoder_forward.3} parent=0 // loop_body
    %s17 = ssub.s32 %s12, 1
    %s18 = ssub.s32 %s12, 2
    %s25 = sadd.s32 1, %s20
    %p26 = scmp.ge.s32.totalorder %s25, 1
    %s27 = scalar_select %p26, 0, %s25
    %s28 = sadd.s32 1, %s19
    %s29 = scalar_select %p26, %s28, %s19
    %p30 = scmp.ge.s32.totalorder %s29, 2
    %s31 = scalar_select %p30, 0, %s29
    %s33 = sadd.s32 %s32, 1
    %p36 = scmp.eq.s32.totalorder %s12, 1
    %p37 = scmp.ne.s32.totalorder %s32, %s34
    %p38 = scmp.eq.s32.totalorder %s12, 0
    %p39 = por %p37, %p38
    %p40 = scmp.ne.s32.totalorder %s32, %s34
    %p41 = scmp.eq.s32.totalorder %s17, 1
    %p42 = por %p40, %p41
    %p43 = scmp.ne.s32.totalorder %s34, %s35
    %p44 = scmp.eq.s32.totalorder %s17, 0
    %p45 = por %p43, %p44
    %p46 = scmp.ne.s32.totalorder %s34, %s35
    %p47 = scmp.eq.s32.totalorder %s18, 1
    %p48 = por %p46, %p47
    %p50 = scmp.ne.s32.totalorder %s35, %s49
    %p51 = scmp.eq.s32.totalorder %s18, 0
    %p52 = por %p50, %p51
    %s54 = sadd.s32 %s53, 1
    %p57 = scmp.eq.s32.totalorder %s12, 1
    %p58 = scmp.ne.s32.totalorder %s53, %s55
    %p59 = scmp.eq.s32.totalorder %s12, 0
    %p60 = por %p58, %p59
    %p61 = scmp.ne.s32.totalorder %s53, %s55
    %p62 = scmp.eq.s32.totalorder %s17, 1
    %p63 = por %p61, %p62
    %p64 = scmp.ne.s32.totalorder %s55, %s56
    %p65 = scmp.eq.s32.totalorder %s17, 0
    %p66 = por %p64, %p65
    %p67 = scmp.ne.s32.totalorder %s55, %s56
    %p68 = scmp.eq.s32.totalorder %s18, 1
    %p69 = por %p67, %p68
    %p71 = scmp.ne.s32.totalorder %s56, %s70
    %p72 = scmp.eq.s32.totalorder %s18, 0
    %p73 = por %p71, %p72
    %s75 = sadd.s32 %s74, 1
    %p78 = scmp.eq.s32.totalorder %s12, 1
    %p79 = scmp.ne.s32.totalorder %s74, %s76
    %p80 = scmp.eq.s32.totalorder %s12, 0
    %p81 = por %p79, %p80
    %p82 = scmp.ne.s32.totalorder %s74, %s76
    %p83 = scmp.eq.s32.totalorder %s17, 1
    %p84 = por %p82, %p83
    %p85 = scmp.ne.s32.totalorder %s76, %s77
    %p86 = scmp.eq.s32.totalorder %s17, 0
    %p87 = por %p85, %p86
    %p88 = scmp.ne.s32.totalorder %s76, %s77
    %p89 = scmp.eq.s32.totalorder %s18, 1
    %p90 = por %p88, %p89
    %p92 = scmp.ne.s32.totalorder %s77, %s91
    %p93 = scmp.eq.s32.totalorder %s18, 0
    %p94 = por %p92, %p93
    %s95 = ssub.s32 %s19, %s31
    %s96 = ssub.s32 %s20, %s27
    %s97 = sor.u32 %s95, %s96
    %p98 = scmp.eq.s32.totalorder %s97, 0
    %s100 = sadd.s32 %s99, 1
    %s101 = scalar_select %p98, %s99, %s100
    %p104 = pneg %p98
    %p105 = scmp.eq.s32.totalorder %s12, 1
    %p106 = por %p104, %p105
    %p107 = scmp.ne.s32.totalorder %s99, %s102
    %p108 = scmp.eq.s32.totalorder %s12, 0
    %p109 = por %p107, %p108
    %p110 = scmp.ne.s32.totalorder %s99, %s102
    %p111 = scmp.eq.s32.totalorder %s17, 1
    %p112 = por %p110, %p111
    %p113 = scmp.ne.s32.totalorder %s102, %s103
    %p114 = scmp.eq.s32.totalorder %s17, 0
    %p115 = por %p113, %p114
    %p116 = scmp.ne.s32.totalorder %s102, %s103
    %p117 = scmp.eq.s32.totalorder %s18, 1
    %p118 = por %p116, %p117
    %p120 = scmp.ne.s32.totalorder %s103, %s119
    %p121 = scmp.eq.s32.totalorder %s18, 0
    %p122 = por %p120, %p121
    %s123 = ssub.s32 %s19, %s31
    %s124 = ssub.s32 %s20, %s27
    %s125 = sor.u32 %s123, %s124
    %p126 = scmp.eq.s32.totalorder %s125, 0
    %s128 = sadd.s32 %s127, 1
    %s129 = scalar_select %p126, %s127, %s128
    %p132 = pneg %p126
    %p133 = scmp.eq.s32.totalorder %s12, 1
    %p134 = por %p132, %p133
    %p135 = scmp.ne.s32.totalorder %s127, %s130
    %p136 = scmp.eq.s32.totalorder %s12, 0
    %p137 = por %p135, %p136
    %p138 = scmp.ne.s32.totalorder %s127, %s130
    %p139 = scmp.eq.s32.totalorder %s17, 1
    %p140 = por %p138, %p139
    %p141 = scmp.ne.s32.totalorder %s130, %s131
    %p142 = scmp.eq.s32.totalorder %s17, 0
    %p143 = por %p141, %p142
    %p144 = scmp.ne.s32.totalorder %s130, %s131
    %p145 = scmp.eq.s32.totalorder %s18, 1
    %p146 = por %p144, %p145
    %p148 = scmp.ne.s32.totalorder %s131, %s147
    %p149 = scmp.eq.s32.totalorder %s18, 0
    %p150 = por %p148, %p149
    %p151 = scmp.le.s32.totalorder 1, %s12
    %p152 = scmp.lt.s32.totalorder %s12, 3
    %p153 = pnand %p151, %p152
    %p154 = pneg %p153
    // Predicated region
    $region9: #{encoder_forward.3} parent=5 // pred_check
      _
    $region10: #{encoder_forward.3} parent=5 // pred_check_branch
      %156 = sbr.rel (%p153) target = $region12
    $region11: #{encoder_forward.3} parent=5 // pred_region
      %s157 = ssub.s32 %s12, 1
      // Predicated region
      $region13: #{encoder_forward.3} parent=11 // pred_check
        %p158 = pneg %p45
      $region14: #{encoder_forward.3} parent=11 // pred_check_branch
        %160 = sbr.rel (%p158) target = $region16
      $region15: #{encoder_forward.3} parent=11 // pred_region
        _
      $region16: #{encoder_forward.3} parent=11 // pred_fallthru
        _
      // Predicated region
      $region17: #{encoder_forward.3} parent=11 // pred_check
        %p161 = pneg %p66
      $region18: #{encoder_forward.3} parent=11 // pred_check_branch
        %163 = sbr.rel (%p161) target = $region20
      $region19: #{encoder_forward.3} parent=11 // pred_region
        _
      $region20: #{encoder_forward.3} parent=11 // pred_fallthru
        _
      // Predicated region
      $region21: #{encoder_forward.3} parent=11 // pred_check
        %p164 = pneg %p87
      $region22: #{encoder_forward.3} parent=11 // pred_check_branch
        %166 = sbr.rel (%p164) target = $region24
      $region23: #{encoder_forward.3} parent=11 // pred_region
        _
      $region24: #{encoder_forward.3} parent=11 // pred_fallthru
        _
    $region12: #{encoder_forward.3} parent=5 // pred_fallthru
      _
    %p167 = scmp.lt.s32.totalorder %s12, 2
    // Predicated region
    $region25: #{encoder_forward.3} parent=5 // pred_check
      %p168 = pneg %p167
    $region26: #{encoder_forward.3} parent=5 // pred_check_branch
      %170 = sbr.rel (%p168) target = $region28
    $region27: #{encoder_forward.3} parent=5 // pred_region
      _
    $region28: #{encoder_forward.3} parent=5 // pred_fallthru
      _
    %p171 = scmp.le.s32.totalorder 1, %s12
    %p172 = scmp.lt.s32.totalorder %s12, 3
    %p173 = pnand %p171, %p172
    %p174 = pneg %p173
    // Predicated region
    $region29: #{encoder_forward.3} parent=5 // pred_check
      _
    $region30: #{encoder_forward.3} parent=5 // pred_check_branch
      %176 = sbr.rel (%p173) target = $region32
    $region31: #{encoder_forward.3} parent=5 // pred_region
      %s177 = ssub.s32 %s12, 1
      %p178 = pneg %p45
      %p179 = pneg %p42
      %p180 = pneg %p66
      %p181 = pneg %p63
      %p182 = pneg %p87
      %p183 = pneg %p84
      %p184 = pneg %p115
      %p185 = pneg %p112
      %s186 = smul.u32 16, %s22
      %p187 = scmp.lt.s32.totalorder %s21, 1
      %s188 = scalar_select %p187, %s21, 1
      %p189 = scmp.lt.s32.totalorder %s186, 15
      %s190 = scalar_select %p189, %s186, 15
      %s191 = smul.addr %s190, 2
      %s192 = smul.addr %s188, 32
      %s193 = sadd.s32 %s191, %s192
      %s194 = smul.addr %s193, 4
      %s195 = scalar_lea.vmem %s4, %s194
      %p196 = pneg %p143
      %p197 = pneg %p140
      %p198 = scmp.lt.s32.totalorder %s21, 1
      %s199 = scalar_select %p198, %s21, 1
      %p200 = scmp.lt.s32.totalorder %s22, 0
      %s201 = scalar_select %p200, %s22, 0
      %s202 = sadd.s32 %s201, %s199
      %s203 = smul.addr %s202, 2
      %s204 = scalar_lea.vmem %s5, %s203
      %s205 = smul.u32 16, %s22
      %p206 = scmp.lt.s32.totalorder %s21, 1
      %s207 = scalar_select %p206, %s21, 1
      %p208 = scmp.lt.s32.totalorder %s205, 15
      %s209 = scalar_select %p208, %s205, 15
      %s210 = smul.addr %s209, 2
      %s211 = smul.addr %s207, 32
      %s212 = sadd.s32 %s210, %s211
      %s213 = smul.addr %s212, 4
      %s214 = scalar_lea.vmem %s4, %s213
      %s215 = smul.u32 16, %s22
      %p216 = scmp.lt.s32.totalorder %s21, 1
      %s217 = scalar_select %p216, %s21, 1
      %p218 = scmp.lt.s32.totalorder %s22, 0
      %s219 = scalar_select %p218, %s22, 0
      %s220 = sadd.s32 %s219, %s217
      %s221 = smul.addr %s220, 2
      %s222 = scalar_lea.vmem %s5, %s221
      %s224 = smul.u32 %s21, 32
      %s225 = smul.addr %s224, 4
      %s226 = scalar_lea.vmem %s0, %s225
      %p228 = scmp.lt.u32.totalorder 128, 8
      %p229 = pneg %p228
      // Predicated region
      $region33: #{encoder_forward.3} parent=31 // pred_check
        _
      $region34: #{encoder_forward.3} parent=31 // pred_check_branch
        %231 = sbr.rel (%p228) target = $region36
      $region35: #{encoder_forward.3} parent=31 // pred_region
        %s247 = sand.u32 128, 7
        %p248 = scmp.eq.s32.totalorder %s247, 0
        // Predicated region
        $region48: #{encoder_forward.3} parent=35 // pred_check
          %p249 = pneg %p248
        $region49: #{encoder_forward.3} parent=35 // pred_check_branch
          %251 = sbr.rel (%p249) target = $region51
        $region50: #{encoder_forward.3} parent=35 // pred_region
          loop: start=0, step=1, limit=1
          $region52: #{encoder_forward.3} parent=50 // loop_pre_header
            _
          $region53: #{encoder_forward.3} parent=50 // loop_header
            %s253 = sphi 0, %s257
            %p254 = scmp.ge.s32.totalorder %s253, 1
            %s258 = sphi %s226, %s226
            %s259 = sphi [#allocation2], [#allocation2]
          $region54: #{encoder_forward.3} parent=50 // loop_header_branch
            %256 = sbr.rel (%p254) target = $region58
          $region55: #{encoder_forward.3} parent=50 // loop_body
            %v260 = vld [vmem:[%s258] sm:$0xff]
            %261 = vst [vmem:[%s259] sm:$0xff] %v260
            %v262 = vld [vmem:[%s258 + $0x8] sm:$0xff]
            %263 = vst [vmem:[%s259 + $0x8] sm:$0xff] %v262
            %v264 = vld [vmem:[%s258 + $0x10] sm:$0xff]
            %265 = vst [vmem:[%s259 + $0x10] sm:$0xff] %v264
            %v266 = vld [vmem:[%s258 + $0x18] sm:$0xff]
            %267 = vst [vmem:[%s259 + $0x18] sm:$0xff] %v266
            %v268 = vld [vmem:[%s258 + $0x20] sm:$0xff]
            %269 = vst [vmem:[%s259 + $0x20] sm:$0xff] %v268
            %v270 = vld [vmem:[%s258 + $0x28] sm:$0xff]
            %271 = vst [vmem:[%s259 + $0x28] sm:$0xff] %v270
            %v272 = vld [vmem:[%s258 + $0x30] sm:$0xff]
            %273 = vst [vmem:[%s259 + $0x30] sm:$0xff] %v272
            %v274 = vld [vmem:[%s258 + $0x38] sm:$0xff]
            %275 = vst [vmem:[%s259 + $0x38] sm:$0xff] %v274
            %v276 = vld [vmem:[%s258 + $0x40] sm:$0xff]
            %277 = vst [vmem:[%s259 + $0x40] sm:$0xff] %v276
            %v278 = vld [vmem:[%s258 + $0x48] sm:$0xff]
            %279 = vst [vmem:[%s259 + $0x48] sm:$0xff] %v278
            %v280 = vld [vmem:[%s258 + $0x50] sm:$0xff]
            %281 = vst [vmem:[%s259 + $0x50] sm:$0xff] %v280
            %v282 = vld [vmem:[%s258 + $0x58] sm:$0xff]
            %283 = vst [vmem:[%s259 + $0x58] sm:$0xff] %v282
            %v284 = vld [vmem:[%s258 + $0x60] sm:$0xff]
            %285 = vst [vmem:[%s259 + $0x60] sm:$0xff] %v284
            %v286 = vld [vmem:[%s258 + $0x68] sm:$0xff]
            %287 = vst [vmem:[%s259 + $0x68] sm:$0xff] %v286
            %v288 = vld [vmem:[%s258 + $0x70] sm:$0xff]
            %289 = vst [vmem:[%s259 + $0x70] sm:$0xff] %v288
            %v290 = vld [vmem:[%s258 + $0x78] sm:$0xff]
            %291 = vst [vmem:[%s259 + $0x78] sm:$0xff] %v290
          $region56: #{encoder_forward.3} parent=50 // loop_footer
            %s257 = sadd.s32 1, %s253
          $region57: #{encoder_forward.3} parent=50 // loop_footer_branch
            %252 = sbr.rel target = $region53
          $region58: #{encoder_forward.3} parent=50 // loop_exit
            _
        $region51: #{encoder_forward.3} parent=35 // pred_fallthru
          _
        %p292 = pneg %p248
        // Predicated region
        $region59: #{encoder_forward.3} parent=35 // pred_check
          _
        $region60: #{encoder_forward.3} parent=35 // pred_check_branch
          %294 = sbr.rel (%p248) target = $region62
        $region61: #{encoder_forward.3} parent=35 // pred_region
          %s295 = sand.u32 128, 7
        $region62: #{encoder_forward.3} parent=35 // pred_fallthru
          _
      $region36: #{encoder_forward.3} parent=31 // pred_fallthru
        _
      // Predicated region
      $region37: #{encoder_forward.3} parent=31 // pred_check
        %p232 = pneg %p228
      $region38: #{encoder_forward.3} parent=31 // pred_check_branch
        %234 = sbr.rel (%p232) target = $region40
      $region39: #{encoder_forward.3} parent=31 // pred_region
        %s235 = sshll.u32 1, 128
        %s236 = ssub.s32 %s235, 1
        loop: start=0, step=1, limit=1
        $region41: #{encoder_forward.3} parent=39 // loop_pre_header
          _
        $region42: #{encoder_forward.3} parent=39 // loop_header
          %s238 = sphi 0, %s242
          %p239 = scmp.ge.s32.totalorder %s238, 1
          %s243 = sphi %s226, %s226
          %s244 = sphi [#allocation2], [#allocation2]
        $region43: #{encoder_forward.3} parent=39 // loop_header_branch
          %241 = sbr.rel (%p239) target = $region47
        $region44: #{encoder_forward.3} parent=39 // loop_body
          %v245 = vld [vmem:[%s243] sm:%s236]
          %246 = vst [vmem:[%s244] sm:%s236] %v245
        $region45: #{encoder_forward.3} parent=39 // loop_footer
          %s242 = sadd.s32 1, %s238
        $region46: #{encoder_forward.3} parent=39 // loop_footer_branch
          %237 = sbr.rel target = $region42
        $region47: #{encoder_forward.3} parent=39 // loop_exit
          _
      $region40: #{encoder_forward.3} parent=31 // pred_fallthru
        _
      // Predicated region
      $region63: #{encoder_forward.3} parent=31 // pred_check
        _
      $region64: #{encoder_forward.3} parent=31 // pred_check_branch
        %298 = sbr.rel (0) target = $region66
      $region65: #{encoder_forward.3} parent=31 // pred_region
        %299 = vsyncadd [#allocation4], 2048
      $region66: #{encoder_forward.3} parent=31 // pred_fallthru
        _
      %300 = vst [vmem:[#allocation3] sm:$0xf] 0
      %301 = vst [vmem:[#allocation3 + $0x4] sm:$0xf] 0
      %302 = vst [vmem:[#allocation3 + $0x8] sm:$0x1] 0
      %303 = vst [vmem:[#allocation3 + $0xc] sm:$0xf] 0
      %304 = vst [vmem:[#allocation3 + $0x10] sm:$0xf] 0
      %305 = vst [vmem:[#allocation3 + $0x14] sm:$0x1] 0
      %306 = vst [vmem:[#allocation3 + $0x18] sm:$0xf] 0
      %307 = vst [vmem:[#allocation3 + $0x1c] sm:$0xf] 0
      %308 = vst [vmem:[#allocation3 + $0x20] sm:$0x1] 0
      %309 = vst [vmem:[#allocation3 + $0x24] sm:$0xf] 0
      %310 = vst [vmem:[#allocation3 + $0x28] sm:$0xf] 0
      %311 = vst [vmem:[#allocation3 + $0x2c] sm:$0x1] 0
      %312 = vst [vmem:[#allocation3 + $0x30] sm:$0xf] 0
      %313 = vst [vmem:[#allocation3 + $0x34] sm:$0xf] 0
      %314 = vst [vmem:[#allocation3 + $0x38] sm:$0x1] 0
      %315 = vst [vmem:[#allocation3 + $0x3c] sm:$0xf] 0
      %316 = vst [vmem:[#allocation3 + $0x40] sm:$0xf] 0
      %317 = vst [vmem:[#allocation3 + $0x44] sm:$0x1] 0
      %318 = vst [vmem:[#allocation3 + $0x48] sm:$0xf] 0
      %319 = vst [vmem:[#allocation3 + $0x4c] sm:$0xf] 0
      %320 = vst [vmem:[#allocation3 + $0x50] sm:$0x1] 0
      %321 = vst [vmem:[#allocation3 + $0x54] sm:$0xf] 0
      %322 = vst [vmem:[#allocation3 + $0x58] sm:$0xf] 0
      %323 = vst [vmem:[#allocation3 + $0x5c] sm:$0x1] 0
      %324 = vst [vmem:[#allocation3 + $0x60] sm:$0xf] 0
      %325 = vst [vmem:[#allocation3 + $0x64] sm:$0xf] 0
      %326 = vst [vmem:[#allocation3 + $0x68] sm:$0x1] 0
      %327 = vst [vmem:[#allocation3 + $0x6c] sm:$0xf] 0
      %328 = vst [vmem:[#allocation3 + $0x70] sm:$0xf] 0
      %329 = vst [vmem:[#allocation3 + $0x74] sm:$0x1] 0
      %330 = vst [vmem:[#allocation3 + $0x78] sm:$0xf] 0
      %331 = vst [vmem:[#allocation3 + $0x7c] sm:$0xf] 0
      %332 = vst [vmem:[#allocation3 + $0x80] sm:$0x1] 0
      %333 = vst [vmem:[#allocation3 + $0x84] sm:$0xf] 0
      %334 = vst [vmem:[#allocation3 + $0x88] sm:$0xf] 0
      %335 = vst [vmem:[#allocation3 + $0x8c] sm:$0x1] 0
      %336 = vst [vmem:[#allocation3 + $0x90] sm:$0xf] 0
      %337 = vst [vmem:[#allocation3 + $0x94] sm:$0xf] 0
      %338 = vst [vmem:[#allocation3 + $0x98] sm:$0x1] 0
      %339 = vst [vmem:[#allocation3 + $0x9c] sm:$0xf] 0
      %340 = vst [vmem:[#allocation3 + $0xa0] sm:$0xf] 0
      %341 = vst [vmem:[#allocation3 + $0xa4] sm:$0x1] 0
      %342 = vst [vmem:[#allocation3 + $0xa8] sm:$0xf] 0
      %343 = vst [vmem:[#allocation3 + $0xac] sm:$0xf] 0
      %344 = vst [vmem:[#allocation3 + $0xb0] sm:$0x1] 0
      %345 = vst [vmem:[#allocation3 + $0xb4] sm:$0xf] 0
      %346 = vst [vmem:[#allocation3 + $0xb8] sm:$0xf] 0
      %347 = vst [vmem:[#allocation3 + $0xbc] sm:$0x1] 0
      %348 = vst [vmem:[#allocation3 + $0xc0] sm:$0xf] 0
      %349 = vst [vmem:[#allocation3 + $0xc4] sm:$0xf] 0
      %350 = vst [vmem:[#allocation3 + $0xc8] sm:$0x1] 0
      %351 = vst [vmem:[#allocation3 + $0xcc] sm:$0xf] 0
      %352 = vst [vmem:[#allocation3 + $0xd0] sm:$0xf] 0
      %353 = vst [vmem:[#allocation3 + $0xd4] sm:$0x1] 0
      %s354 = smul.u32 4, 16
      %s355 = smul.u32 %s354, 2
      %s356 = smul.u32 %s355, 1
      %s357 = sshll.u32 %s356, 4
      %358 = dma.done [#allocation4], %s357
      %v359 = vld [vmem:[#allocation2] sm:$0xf]
      %v360 = vld [vmem:[#allocation2 + $0x4] sm:$0xf]
      %v361 = vld [vmem:[#allocation2 + $0x8] sm:$0xf]
      %v362 = vld [vmem:[#allocation2 + $0xc] sm:$0xf]
      %v363 = vld [vmem:[#allocation2 + $0x10] sm:$0xf]
      %v364 = vld [vmem:[#allocation2 + $0x14] sm:$0xf]
      %v365 = vld [vmem:[#allocation2 + $0x18] sm:$0xf]
      %v366 = vld [vmem:[#allocation2 + $0x1c] sm:$0xf]
      %v367 = vld [vmem:[#allocation2 + $0x20] sm:$0xf]
      %v368 = vld [vmem:[#allocation2 + $0x24] sm:$0xf]
      %v369 = vld [vmem:[#allocation2 + $0x28] sm:$0xf]
      %v370 = vld [vmem:[#allocation2 + $0x2c] sm:$0xf]
      %v371 = vld [vmem:[#allocation2 + $0x30] sm:$0xf]
      %v372 = vld [vmem:[#allocation2 + $0x34] sm:$0xf]
      %v373 = vld [vmem:[#allocation2 + $0x38] sm:$0xf]
      %v374 = vld [vmem:[#allocation2 + $0x3c] sm:$0xf]
      %v375 = vld [vmem:[#allocation2 + $0x40] sm:$0xf]
      %v376 = vld [vmem:[#allocation2 + $0x44] sm:$0xf]
      %v377 = vld [vmem:[#allocation2 + $0x48] sm:$0xf]
      %v378 = vld [vmem:[#allocation2 + $0x4c] sm:$0xf]
      %v379 = vld [vmem:[#allocation2 + $0x50] sm:$0xf]
      %v380 = vld [vmem:[#allocation2 + $0x54] sm:$0xf]
      %v381 = vld [vmem:[#allocation2 + $0x58] sm:$0xf]
      %v382 = vld [vmem:[#allocation2 + $0x5c] sm:$0xf]
      %v383 = vld [vmem:[#allocation2 + $0x60] sm:$0xf]
      %v384 = vld [vmem:[#allocation2 + $0x64] sm:$0xf]
      %v385 = vld [vmem:[#allocation2 + $0x68] sm:$0xf]
      %v386 = vld [vmem:[#allocation2 + $0x6c] sm:$0xf]
      %v387 = vld [vmem:[#allocation2 + $0x70] sm:$0xf]
      %v388 = vld [vmem:[#allocation2 + $0x74] sm:$0xf]
      %v389 = vld [vmem:[#allocation2 + $0x78] sm:$0xf]
      %v390 = vld [vmem:[#allocation2 + $0x7c] sm:$0xf]
      %vm391 = vsmask.f32 256
      %vm392 = vsmask.f32 4368
      %vm393 = vmor %vm391, %vm392
      %v395 = vshrl.u32 %v359, 16
      %v397 = vrot.slane %v395, 7
      %v398 = vshll.u32 %v359, 16
      %v400 = vor.u32 %v397, %v398
      %v401 = vrot.slane %v397, 4
      %v403 = vshrl.u32 %v360, 16
      %v405 = vrot.slane %v403, 7
      %v406 = vshll.u32 %v360, 16
      %v408 = vor.u32 %v405, %v406
      %v409 = vsel %vm393, %v401, %v408
      %v410 = vrot.slane %v405, 4
      %v412 = vshrl.u32 %v361, 16
      %v414 = vrot.slane %v412, 7
      %v415 = vshll.u32 %v361, 16
      %v417 = vor.u32 %v414, %v415
      %v418 = vrot.slane %v414, 4
      %v420 = vshrl.u32 %v362, 16
      %v422 = vrot.slane %v420, 7
      %v423 = vshll.u32 %v362, 16
      %v425 = vor.u32 %v422, %v423
      %v426 = vsel %vm393, %v418, %v425
      %v427 = vrot.slane %v422, 4
      %v429 = vshrl.u32 %v363, 16
      %v431 = vrot.slane %v429, 7
      %v432 = vshll.u32 %v363, 16
      %v434 = vor.u32 %v431, %v432
      %v435 = vrot.slane %v431, 4
      %v437 = vshrl.u32 %v364, 16
      %v439 = vrot.slane %v437, 7
      %v440 = vshll.u32 %v364, 16
      %v442 = vor.u32 %v439, %v440
      %v443 = vsel %vm393, %v435, %v442
      %v444 = vrot.slane %v439, 4
      %v446 = vshrl.u32 %v365, 16
      %v448 = vrot.slane %v446, 7
      %v449 = vshll.u32 %v365, 16
      %v451 = vor.u32 %v448, %v449
      %v452 = vrot.slane %v448, 4
      %v454 = vshrl.u32 %v366, 16
      %v456 = vrot.slane %v454, 7
      %v457 = vshll.u32 %v366, 16
      %v459 = vor.u32 %v456, %v457
      %v460 = vsel %vm393, %v452, %v459
      %v461 = vrot.slane %v456, 4
      %v463 = vshrl.u32 %v367, 16
      %v465 = vrot.slane %v463, 7
      %v466 = vshll.u32 %v367, 16
      %v468 = vor.u32 %v465, %v466
      %v469 = vrot.slane %v465, 4
      %v471 = vshrl.u32 %v368, 16
      %v473 = vrot.slane %v471, 7
      %v474 = vshll.u32 %v368, 16
      %v476 = vor.u32 %v473, %v474
      %v477 = vsel %vm393, %v469, %v476
      %v478 = vrot.slane %v473, 4
      %v480 = vshrl.u32 %v369, 16
      %v482 = vrot.slane %v480, 7
      %v483 = vshll.u32 %v369, 16
      %v485 = vor.u32 %v482, %v483
      %v486 = vrot.slane %v482, 4
      %v488 = vshrl.u32 %v370, 16
      %v490 = vrot.slane %v488, 7
      %v491 = vshll.u32 %v370, 16
      %v493 = vor.u32 %v490, %v491
      %v494 = vsel %vm393, %v486, %v493
      %v495 = vrot.slane %v490, 4
      %v497 = vshrl.u32 %v371, 16
      %v499 = vrot.slane %v497, 7
      %v500 = vshll.u32 %v371, 16
      %v502 = vor.u32 %v499, %v500
      %v503 = vrot.slane %v499, 4
      %v505 = vshrl.u32 %v372, 16
      %v507 = vrot.slane %v505, 7
      %v508 = vshll.u32 %v372, 16
      %v510 = vor.u32 %v507, %v508
      %v511 = vsel %vm393, %v503, %v510
      %v512 = vrot.slane %v507, 4
      %v514 = vshrl.u32 %v373, 16
      %v516 = vrot.slane %v514, 7
      %v517 = vshll.u32 %v373, 16
      %v519 = vor.u32 %v516, %v517
      %v520 = vrot.slane %v516, 4
      %v522 = vshrl.u32 %v374, 16
      %v524 = vrot.slane %v522, 7
      %v525 = vshll.u32 %v374, 16
      %v527 = vor.u32 %v524, %v525
      %v528 = vsel %vm393, %v520, %v527
      %v529 = vrot.slane %v524, 4
      %v531 = vshrl.u32 %v375, 16
      %v533 = vrot.slane %v531, 7
      %v534 = vshll.u32 %v375, 16
      %v536 = vor.u32 %v533, %v534
      %v537 = vrot.slane %v533, 4
      %v539 = vshrl.u32 %v376, 16
      %v541 = vrot.slane %v539, 7
      %v542 = vshll.u32 %v376, 16
      %v544 = vor.u32 %v541, %v542
      %v545 = vsel %vm393, %v537, %v544
      %v546 = vrot.slane %v541, 4
      %v548 = vshrl.u32 %v377, 16
      %v550 = vrot.slane %v548, 7
      %v551 = vshll.u32 %v377, 16
      %v553 = vor.u32 %v550, %v551
      %v554 = vrot.slane %v550, 4
      %v556 = vshrl.u32 %v378, 16
      %v558 = vrot.slane %v556, 7
      %v559 = vshll.u32 %v378, 16
      %v561 = vor.u32 %v558, %v559
      %v562 = vsel %vm393, %v554, %v561
      %v563 = vrot.slane %v558, 4
      %v565 = vshrl.u32 %v379, 16
      %v567 = vrot.slane %v565, 7
      %v568 = vshll.u32 %v379, 16
      %v570 = vor.u32 %v567, %v568
      %v571 = vrot.slane %v567, 4
      %v573 = vshrl.u32 %v380, 16
      %v575 = vrot.slane %v573, 7
      %v576 = vshll.u32 %v380, 16
      %v578 = vor.u32 %v575, %v576
      %v579 = vsel %vm393, %v571, %v578
      %v580 = vrot.slane %v575, 4
      %v582 = vshrl.u32 %v381, 16
      %v584 = vrot.slane %v582, 7
      %v585 = vshll.u32 %v381, 16
      %v587 = vor.u32 %v584, %v585
      %v588 = vrot.slane %v584, 4
      %v590 = vshrl.u32 %v382, 16
      %v592 = vrot.slane %v590, 7
      %v593 = vshll.u32 %v382, 16
      %v595 = vor.u32 %v592, %v593
      %v596 = vsel %vm393, %v588, %v595
      %v597 = vrot.slane %v592, 4
      %v599 = vshrl.u32 %v383, 16
      %v601 = vrot.slane %v599, 7
      %v602 = vshll.u32 %v383, 16
      %v604 = vor.u32 %v601, %v602
      %v605 = vrot.slane %v601, 4
      %v607 = vshrl.u32 %v384, 16
      %v609 = vrot.slane %v607, 7
      %v610 = vshll.u32 %v384, 16
      %v612 = vor.u32 %v609, %v610
      %v613 = vsel %vm393, %v605, %v612
      %v614 = vrot.slane %v609, 4
      %v616 = vshrl.u32 %v385, 16
      %v618 = vrot.slane %v616, 7
      %v619 = vshll.u32 %v385, 16
      %v621 = vor.u32 %v618, %v619
      %v622 = vrot.slane %v618, 4
      %v624 = vshrl.u32 %v386, 16
      %v626 = vrot.slane %v624, 7
      %v627 = vshll.u32 %v386, 16
      %v629 = vor.u32 %v626, %v627
      %v630 = vsel %vm393, %v622, %v629
      %v631 = vrot.slane %v626, 4
      %v633 = vshrl.u32 %v387, 16
      %v635 = vrot.slane %v633, 7
      %v636 = vshll.u32 %v387, 16
      %v638 = vor.u32 %v635, %v636
      %v639 = vrot.slane %v635, 4
      %v641 = vshrl.u32 %v388, 16
      %v643 = vrot.slane %v641, 7
      %v644 = vshll.u32 %v388, 16
      %v646 = vor.u32 %v643, %v644
      %v647 = vsel %vm393, %v639, %v646
      %v648 = vrot.slane %v643, 4
      %v650 = vshrl.u32 %v389, 16
      %v652 = vrot.slane %v650, 7
      %v653 = vshll.u32 %v389, 16
      %v655 = vor.u32 %v652, %v653
      %v656 = vrot.slane %v652, 4
      %v658 = vshrl.u32 %v390, 16
      %v660 = vrot.slane %v658, 7
      %v661 = vshll.u32 %v390, 16
      %v663 = vor.u32 %v660, %v661
      %v664 = vsel %vm393, %v656, %v663
      %v665 = vrot.slane %v660, 4
      %s714 = scalar_lea.vmem [#allocation3], 12
      %vm715 = vcmask 1043456
      %vm716 = vsmask.f32 7938
      %vm717 = vmand %vm715, %vm716
      %v718 = vld [vmem:[%s714] sm:$0xf]
      %v719 = vsel %vm717, %v400, %v718
      %720 = vst [vmem:[%s714] sm:$0xf] %v719
      %721 = vst [vmem:[%s714 + $0x4] sm:$0xf] %v409
      %vm722 = vcmask 1040384
      %vm723 = vmand %vm722, %vm391
      %v724 = vld [vmem:[%s714 + $0x8] sm:$0x1]
      %v725 = vsel %vm723, %v410, %v724
      %726 = vst [vmem:[%s714 + $0x8] sm:$0x1] %v725
      %v727 = vld [vmem:[%s714 + $0xc] sm:$0xf]
      %v728 = vsel %vm717, %v417, %v727
      %729 = vst [vmem:[%s714 + $0xc] sm:$0xf] %v728
      %730 = vst [vmem:[%s714 + $0x10] sm:$0xf] %v426
      %v731 = vld [vmem:[%s714 + $0x14] sm:$0x1]
      %v732 = vsel %vm723, %v427, %v731
      %733 = vst [vmem:[%s714 + $0x14] sm:$0x1] %v732
      %v734 = vld [vmem:[%s714 + $0x18] sm:$0xf]
      %v735 = vsel %vm717, %v434, %v734
      %736 = vst [vmem:[%s714 + $0x18] sm:$0xf] %v735
      %737 = vst [vmem:[%s714 + $0x1c] sm:$0xf] %v443
      %v738 = vld [vmem:[%s714 + $0x20] sm:$0x1]
      %v739 = vsel %vm723, %v444, %v738
      %740 = vst [vmem:[%s714 + $0x20] sm:$0x1] %v739
      %v741 = vld [vmem:[%s714 + $0x24] sm:$0xf]
      %v742 = vsel %vm717, %v451, %v741
      %743 = vst [vmem:[%s714 + $0x24] sm:$0xf] %v742
      %744 = vst [vmem:[%s714 + $0x28] sm:$0xf] %v460
      %v745 = vld [vmem:[%s714 + $0x2c] sm:$0x1]
      %v746 = vsel %vm723, %v461, %v745
      %747 = vst [vmem:[%s714 + $0x2c] sm:$0x1] %v746
      %v748 = vld [vmem:[%s714 + $0x30] sm:$0xf]
      %v749 = vsel %vm717, %v468, %v748
      %750 = vst [vmem:[%s714 + $0x30] sm:$0xf] %v749
      %751 = vst [vmem:[%s714 + $0x34] sm:$0xf] %v477
      %v752 = vld [vmem:[%s714 + $0x38] sm:$0x1]
      %v753 = vsel %vm723, %v478, %v752
      %754 = vst [vmem:[%s714 + $0x38] sm:$0x1] %v753
      %v755 = vld [vmem:[%s714 + $0x3c] sm:$0xf]
      %v756 = vsel %vm717, %v485, %v755
      %757 = vst [vmem:[%s714 + $0x3c] sm:$0xf] %v756
      %758 = vst [vmem:[%s714 + $0x40] sm:$0xf] %v494
      %v759 = vld [vmem:[%s714 + $0x44] sm:$0x1]
      %v760 = vsel %vm723, %v495, %v759
      %761 = vst [vmem:[%s714 + $0x44] sm:$0x1] %v760
      %v762 = vld [vmem:[%s714 + $0x48] sm:$0xf]
      %v763 = vsel %vm717, %v502, %v762
      %764 = vst [vmem:[%s714 + $0x48] sm:$0xf] %v763
      %765 = vst [vmem:[%s714 + $0x4c] sm:$0xf] %v511
      %v766 = vld [vmem:[%s714 + $0x50] sm:$0x1]
      %v767 = vsel %vm723, %v512, %v766
      %768 = vst [vmem:[%s714 + $0x50] sm:$0x1] %v767
      %v769 = vld [vmem:[%s714 + $0x54] sm:$0xf]
      %v770 = vsel %vm717, %v519, %v769
      %771 = vst [vmem:[%s714 + $0x54] sm:$0xf] %v770
      %772 = vst [vmem:[%s714 + $0x58] sm:$0xf] %v528
      %v773 = vld [vmem:[%s714 + $0x5c] sm:$0x1]
      %v774 = vsel %vm723, %v529, %v773
      %775 = vst [vmem:[%s714 + $0x5c] sm:$0x1] %v774
      %v776 = vld [vmem:[%s714 + $0x60] sm:$0xf]
      %v777 = vsel %vm717, %v536, %v776
      %778 = vst [vmem:[%s714 + $0x60] sm:$0xf] %v777
      %779 = vst [vmem:[%s714 + $0x64] sm:$0xf] %v545
      %v780 = vld [vmem:[%s714 + $0x68] sm:$0x1]
      %v781 = vsel %vm723, %v546, %v780
      %782 = vst [vmem:[%s714 + $0x68] sm:$0x1] %v781
      %v783 = vld [vmem:[%s714 + $0x6c] sm:$0xf]
      %v784 = vsel %vm717, %v553, %v783
      %785 = vst [vmem:[%s714 + $0x6c] sm:$0xf] %v784
      %786 = vst [vmem:[%s714 + $0x70] sm:$0xf] %v562
      %v787 = vld [vmem:[%s714 + $0x74] sm:$0x1]
      %v788 = vsel %vm723, %v563, %v787
      %789 = vst [vmem:[%s714 + $0x74] sm:$0x1] %v788
      %v790 = vld [vmem:[%s714 + $0x78] sm:$0xf]
      %v791 = vsel %vm717, %v570, %v790
      %792 = vst [vmem:[%s714 + $0x78] sm:$0xf] %v791
      %793 = vst [vmem:[%s714 + $0x7c] sm:$0xf] %v579
      %v794 = vld [vmem:[%s714 + $0x80] sm:$0x1]
      %v795 = vsel %vm723, %v580, %v794
      %796 = vst [vmem:[%s714 + $0x80] sm:$0x1] %v795
      %v797 = vld [vmem:[%s714 + $0x84] sm:$0xf]
      %v798 = vsel %vm717, %v587, %v797
      %799 = vst [vmem:[%s714 + $0x84] sm:$0xf] %v798
      %800 = vst [vmem:[%s714 + $0x88] sm:$0xf] %v596
      %v801 = vld [vmem:[%s714 + $0x8c] sm:$0x1]
      %v802 = vsel %vm723, %v597, %v801
      %803 = vst [vmem:[%s714 + $0x8c] sm:$0x1] %v802
      %v804 = vld [vmem:[%s714 + $0x90] sm:$0xf]
      %v805 = vsel %vm717, %v604, %v804
      %806 = vst [vmem:[%s714 + $0x90] sm:$0xf] %v805
      %807 = vst [vmem:[%s714 + $0x94] sm:$0xf] %v613
      %v808 = vld [vmem:[%s714 + $0x98] sm:$0x1]
      %v809 = vsel %vm723, %v614, %v808
      %810 = vst [vmem:[%s714 + $0x98] sm:$0x1] %v809
      %v811 = vld [vmem:[%s714 + $0x9c] sm:$0xf]
      %v812 = vsel %vm717, %v621, %v811
      %813 = vst [vmem:[%s714 + $0x9c] sm:$0xf] %v812
      %814 = vst [vmem:[%s714 + $0xa0] sm:$0xf] %v630
      %v815 = vld [vmem:[%s714 + $0xa4] sm:$0x1]
      %v816 = vsel %vm723, %v631, %v815
      %817 = vst [vmem:[%s714 + $0xa4] sm:$0x1] %v816
      %v818 = vld [vmem:[%s714 + $0xa8] sm:$0xf]
      %v819 = vsel %vm717, %v638, %v818
      %820 = vst [vmem:[%s714 + $0xa8] sm:$0xf] %v819
      %821 = vst [vmem:[%s714 + $0xac] sm:$0xf] %v647
      %v822 = vld [vmem:[%s714 + $0xb0] sm:$0x1]
      %v823 = vsel %vm723, %v648, %v822
      %824 = vst [vmem:[%s714 + $0xb0] sm:$0x1] %v823
      %v825 = vld [vmem:[%s714 + $0xb4] sm:$0xf]
      %v826 = vsel %vm717, %v655, %v825
      %827 = vst [vmem:[%s714 + $0xb4] sm:$0xf] %v826
      %828 = vst [vmem:[%s714 + $0xb8] sm:$0xf] %v664
      %v829 = vld [vmem:[%s714 + $0xbc] sm:$0x1]
      %v830 = vsel %vm723, %v665, %v829
      %831 = vst [vmem:[%s714 + $0xbc] sm:$0x1] %v830
      %v832 = vld [vmem:[#allocation3] sm:$0xf]
      %v833 = vld [vmem:[#allocation3 + $0x4] sm:$0xf]
      %v834 = vld [vmem:[#allocation3 + $0xc] sm:$0xf]
      %v835 = vld [vmem:[#allocation3 + $0x10] sm:$0xf]
      %v836 = vld [vmem:[#allocation3 + $0x18] sm:$0xf]
      %v837 = vld [vmem:[#allocation3 + $0x1c] sm:$0xf]
      %v838 = vld [vmem:[#allocation3 + $0x24] sm:$0xf]
      %v839 = vld [vmem:[#allocation3 + $0x28] sm:$0xf]
      %v840 = vld [vmem:[#allocation3 + $0x30] sm:$0xf]
      %v841 = vld [vmem:[#allocation3 + $0x34] sm:$0xf]
      %v842 = vld [vmem:[#allocation3 + $0x3c] sm:$0xf]
      %v843 = vld [vmem:[#allocation3 + $0x40] sm:$0xf]
      %v844 = vld [vmem:[#allocation3 + $0x48] sm:$0xf]
      %v845 = vld [vmem:[#allocation3 + $0x4c] sm:$0xf]
      %v846 = vld [vmem:[#allocation3 + $0x54] sm:$0xf]
      %v847 = vld [vmem:[#allocation3 + $0x58] sm:$0xf]
      %v848 = vld [vmem:[#allocation3 + $0x60] sm:$0xf]
      %v849 = vld [vmem:[#allocation3 + $0x64] sm:$0xf]
      %v850 = vld [vmem:[#allocation3 + $0x6c] sm:$0xf]
      %v851 = vld [vmem:[#allocation3 + $0x70] sm:$0xf]
      %v852 = vld [vmem:[#allocation3 + $0x78] sm:$0xf]
      %v853 = vld [vmem:[#allocation3 + $0x7c] sm:$0xf]
      %v854 = vld [vmem:[#allocation3 + $0x84] sm:$0xf]
      %v855 = vld [vmem:[#allocation3 + $0x88] sm:$0xf]
      %v856 = vld [vmem:[#allocation3 + $0x90] sm:$0xf]
      %v857 = vld [vmem:[#allocation3 + $0x94] sm:$0xf]
      %v858 = vld [vmem:[#allocation3 + $0x9c] sm:$0xf]
      %v859 = vld [vmem:[#allocation3 + $0xa0] sm:$0xf]
      %v860 = vld [vmem:[#allocation3 + $0xa8] sm:$0xf]
      %v861 = vld [vmem:[#allocation3 + $0xac] sm:$0xf]
      %v862 = vld [vmem:[#allocation3 + $0xb4] sm:$0xf]
      %v863 = vld [vmem:[#allocation3 + $0xb8] sm:$0xf]
      %v864 = vld [vmem:[#allocation3 + $0xc0] sm:$0xf]
      %v865 = vld [vmem:[#allocation3 + $0xc4] sm:$0xf]
      %v866 = vld [vmem:[#allocation3 + $0xcc] sm:$0xf]
      %v867 = vld [vmem:[#allocation3 + $0xd0] sm:$0xf]
      %v868 = vld [vmem:[%s3] sm:$0xf]
      %v869 = vld [vmem:[%s3 + $0x4] sm:$0xf]
      %v870 = vld [vmem:[%s3 + $0x8] sm:$0xf]
      %v871 = vld [vmem:[%s3 + $0xc] sm:$0xf]
      %v872 = vld [vmem:[%s3 + $0x10] sm:$0xf]
      %v873 = vld [vmem:[%s3 + $0x14] sm:$0xf]
      %v874 = vld [vmem:[%s3 + $0x18] sm:$0xf]
      %v875 = vld [vmem:[%s3 + $0x1c] sm:$0xf]
      %v876 = vld [vmem:[%s3 + $0x20] sm:$0xf]
      %v877 = vld [vmem:[%s3 + $0x24] sm:$0xf]
      %v878 = vld [vmem:[%s3 + $0x28] sm:$0xf]
      %v879 = vld [vmem:[%s3 + $0x2c] sm:$0xf]
      %v880 = vld [vmem:[%s3 + $0x30] sm:$0xf]
      %v881 = vld [vmem:[%s3 + $0x34] sm:$0xf]
      %v882 = vld [vmem:[%s3 + $0x38] sm:$0xf]
      %v883 = vld [vmem:[%s3 + $0x3c] sm:$0xf]
      %s884 = scalar_lea.vmem %s3, 192
      %v885 = vld [vmem:[%s884] sm:$0xf]
      %v886 = vld [vmem:[%s884 + $0x4] sm:$0xf]
      %v887 = vld [vmem:[%s884 + $0x8] sm:$0xf]
      %v888 = vld [vmem:[%s884 + $0xc] sm:$0xf]
      %v889 = vld [vmem:[%s884 + $0x10] sm:$0xf]
      %v890 = vld [vmem:[%s884 + $0x14] sm:$0xf]
      %v891 = vld [vmem:[%s884 + $0x18] sm:$0xf]
      %v892 = vld [vmem:[%s884 + $0x1c] sm:$0xf]
      %v893 = vld [vmem:[%s884 + $0x20] sm:$0xf]
      %v894 = vld [vmem:[%s884 + $0x24] sm:$0xf]
      %v895 = vld [vmem:[%s884 + $0x28] sm:$0xf]
      %v896 = vld [vmem:[%s884 + $0x2c] sm:$0xf]
      %v897 = vld [vmem:[%s884 + $0x30] sm:$0xf]
      %v898 = vld [vmem:[%s884 + $0x34] sm:$0xf]
      %v899 = vld [vmem:[%s884 + $0x38] sm:$0xf]
      %v900 = vld [vmem:[%s884 + $0x3c] sm:$0xf]
      %v933 = vunpack.c.l.b16 %v834
      %v934 = vunpack.c.l.b16 %v835
      %v935 = vunpack.c.l.b16 %v836
      %v936 = vunpack.c.l.b16 %v837
      %v937 = vunpack.c.l.b16 %v838
      %v938 = vunpack.c.l.b16 %v839
      %v939 = vunpack.c.l.b16 %v840
      %v940 = vunpack.c.l.b16 %v841
      %v941 = vunpack.c.l.b16 %v842
      %v942 = vunpack.c.l.b16 %v843
      %v943 = vunpack.c.l.b16 %v844
      %v944 = vunpack.c.l.b16 %v845
      %v945 = vunpack.c.l.b16 %v846
      %v946 = vunpack.c.l.b16 %v847
      %v947 = vunpack.c.l.b16 %v848
      %v948 = vunpack.c.l.b16 %v849
      %v949 = vunpack.c.l.b16 %v850
      %v950 = vunpack.c.l.b16 %v851
      %v951 = vunpack.c.l.b16 %v852
      %v952 = vunpack.c.l.b16 %v853
      %v953 = vunpack.c.l.b16 %v854
      %v954 = vunpack.c.l.b16 %v855
      %v955 = vunpack.c.l.b16 %v856
      %v956 = vunpack.c.l.b16 %v857
      %v957 = vunpack.c.l.b16 %v858
      %v958 = vunpack.c.l.b16 %v859
      %v959 = vunpack.c.l.b16 %v860
      %v960 = vunpack.c.l.b16 %v861
      %v961 = vunpack.c.l.b16 %v862
      %v962 = vunpack.c.l.b16 %v863
      %v963 = vunpack.c.l.b16 %v864
      %v964 = vunpack.c.l.b16 %v865
      %v965 = vpack.c.b16 %v934, %v933
      %v966 = vpack.c.b16 %v936, %v935
      %v967 = vpack.c.b16 %v938, %v937
      %v968 = vpack.c.b16 %v940, %v939
      %v969 = vpack.c.b16 %v942, %v941
      %v970 = vpack.c.b16 %v944, %v943
      %v971 = vpack.c.b16 %v946, %v945
      %v972 = vpack.c.b16 %v948, %v947
      %v973 = vpack.c.b16 %v950, %v949
      %v974 = vpack.c.b16 %v952, %v951
      %v975 = vpack.c.b16 %v954, %v953
      %v976 = vpack.c.b16 %v956, %v955
      %v977 = vpack.c.b16 %v958, %v957
      %v978 = vpack.c.b16 %v960, %v959
      %v979 = vpack.c.b16 %v962, %v961
      %v980 = vpack.c.b16 %v964, %v963
      %v1013 = vunpack.c.l.b16 %v885
      %v1014 = vunpack.c.l.b16 %v886
      %v1015 = vunpack.c.l.b16 %v887
      %v1016 = vunpack.c.l.b16 %v888
      %v1017 = vunpack.c.l.b16 %v889
      %v1018 = vunpack.c.l.b16 %v890
      %v1019 = vunpack.c.l.b16 %v891
      %v1020 = vunpack.c.l.b16 %v892
      %v1021 = vunpack.c.l.b16 %v893
      %v1022 = vunpack.c.l.b16 %v894
      %v1023 = vunpack.c.l.b16 %v895
      %v1024 = vunpack.c.l.b16 %v896
      %v1025 = vunpack.c.l.b16 %v897
      %v1026 = vunpack.c.l.b16 %v898
      %v1027 = vunpack.c.l.b16 %v899
      %v1028 = vunpack.c.l.b16 %v900
      %v1029 = vpack.c.b16 %v1014, %v1013
      %v1030 = vpack.c.b16 %v1016, %v1015
      %v1031 = vpack.c.b16 %v1018, %v1017
      %v1032 = vpack.c.b16 %v1020, %v1019
      %v1033 = vpack.c.b16 %v1022, %v1021
      %v1034 = vpack.c.b16 %v1024, %v1023
      %v1035 = vpack.c.b16 %v1026, %v1025
      %v1036 = vpack.c.b16 %v1028, %v1027
      %1045 = vmatprep.subr.bf16.mxu0 0
      %1046 = vmatpush1.bf16.msra.mxu0 %v1036
      %1047 = vmatprep.subr.bf16.mxu0 0
      %1048 = vmatpush1.bf16.msra.mxu0 %v1035
      %1049 = vmatprep.subr.bf16.mxu0 0
      %1050 = vmatpush1.bf16.msra.mxu0 %v1034
      %1051 = vmatprep.subr.bf16.mxu0 0
      %1052 = vmatpush1.bf16.msra.mxu0 %v1033
      %1053 = vmatprep.subr.bf16.mxu0 0
      %1054 = vmatpush1.bf16.msra.mxu0 %v1032
      %1055 = vmatprep.subr.bf16.mxu0 0
      %1056 = vmatpush1.bf16.msra.mxu0 %v1031
      %1057 = vmatprep.subr.bf16.mxu0 0
      %1058 = vmatpush1.bf16.msra.mxu0 %v1030
      %1059 = vmatprep.subr.bf16.mxu0 0
      %1060 = vmatpush1.bf16.msra.mxu0 %v1029
      %1061 = vmatprep.subr.bf16.mxu0 0
      %1062 = vmatpush2.bf16.msra.mxu0 0
      %1063 = vmatprep.subr.bf16.mxu0 0
      %1064 = vmatpush2.bf16.msra.mxu0 0
      %1065 = vmatprep.subr.bf16.mxu0 0
      %1066 = vmatpush2.bf16.msra.mxu0 0
      %1067 = vmatprep.subr.bf16.mxu0 0
      %1068 = vmatpush2.bf16.msra.mxu0 0
      %1069 = vmatprep.subr.bf16.mxu0 0
      %1070 = vmatpush2.bf16.msra.mxu0 0
      %1071 = vmatprep.subr.bf16.mxu0 0
      %1072 = vmatpush2.bf16.msra.mxu0 0
      %1073 = vmatprep.subr.bf16.mxu0 0
      %1074 = vmatpush2.bf16.msra.mxu0 0
      %1075 = vmatprep.subr.bf16.mxu0 0
      %1076 = vmatpush2.bf16.msra.mxu0 0
      %1077 = vmatprep.mubr.bf16.mxu0 0
      %1078 = vmatmul.mubr.bf16.gmra.mxu0 %v965
      %v1079 = vpop.f32.mrf.mxu0
      %v1080 = vadd.f32 0.0, %v1079
      %v1081 = vpop.f32.mrf.mxu0
      %v1082 = vpop.f32.mrf.mxu0
      %v1083 = vadd.f32 0.0, %v1082
      %v1084 = vpop.f32.mrf.mxu0
      %1085 = vmatprep.mubr.bf16.mxu0 0
      %1086 = vmatmul.mubr.bf16.gmra.mxu0 %v966
      %v1087 = vpop.f32.mrf.mxu0
      %v1088 = vadd.f32 0.0, %v1087
      %v1089 = vpop.f32.mrf.mxu0
      %v1090 = vpop.f32.mrf.mxu0
      %v1091 = vadd.f32 0.0, %v1090
      %v1092 = vpop.f32.mrf.mxu0
      %1093 = vmatprep.mubr.bf16.mxu0 0
      %1094 = vmatmul.mubr.bf16.gmra.mxu0 %v967
      %v1095 = vpop.f32.mrf.mxu0
      %v1096 = vadd.f32 0.0, %v1095
      %v1097 = vpop.f32.mrf.mxu0
      %v1098 = vpop.f32.mrf.mxu0
      %v1099 = vadd.f32 0.0, %v1098
      %v1100 = vpop.f32.mrf.mxu0
      %1101 = vmatprep.mubr.bf16.mxu0 0
      %1102 = vmatmul.mubr.bf16.gmra.mxu0 %v968
      %v1103 = vpop.f32.mrf.mxu0
      %v1104 = vadd.f32 0.0, %v1103
      %v1105 = vpop.f32.mrf.mxu0
      %v1106 = vpop.f32.mrf.mxu0
      %v1107 = vadd.f32 0.0, %v1106
      %v1108 = vpop.f32.mrf.mxu0
      %1109 = vmatprep.mubr.bf16.mxu0 0
      %1110 = vmatmul.mubr.bf16.gmra.mxu0 %v969
      %v1111 = vpop.f32.mrf.mxu0
      %v1112 = vadd.f32 0.0, %v1111
      %v1113 = vpop.f32.mrf.mxu0
      %v1114 = vpop.f32.mrf.mxu0
      %v1115 = vadd.f32 0.0, %v1114
      %v1116 = vpop.f32.mrf.mxu0
      %1117 = vmatprep.mubr.bf16.mxu0 0
      %1118 = vmatmul.mubr.bf16.gmra.mxu0 %v970
      %v1119 = vpop.f32.mrf.mxu0
      %v1120 = vadd.f32 0.0, %v1119
      %v1121 = vpop.f32.mrf.mxu0
      %v1122 = vpop.f32.mrf.mxu0
      %v1123 = vadd.f32 0.0, %v1122
      %v1124 = vpop.f32.mrf.mxu0
      %1125 = vmatprep.mubr.bf16.mxu0 0
      %1126 = vmatmul.mubr.bf16.gmra.mxu0 %v971
      %v1127 = vpop.f32.mrf.mxu0
      %v1128 = vadd.f32 0.0, %v1127
      %v1129 = vpop.f32.mrf.mxu0
      %v1130 = vpop.f32.mrf.mxu0
      %v1131 = vadd.f32 0.0, %v1130
      %v1132 = vpop.f32.mrf.mxu0
      %1133 = vmatprep.mubr.bf16.mxu0 0
      %1134 = vmatmul.mubr.bf16.gmra.mxu0 %v972
      %v1135 = vpop.f32.mrf.mxu0
      %v1136 = vadd.f32 0.0, %v1135
      %v1137 = vpop.f32.mrf.mxu0
      %v1138 = vpop.f32.mrf.mxu0
      %v1139 = vadd.f32 0.0, %v1138
      %v1140 = vpop.f32.mrf.mxu0
      %1141 = vmatprep.mubr.bf16.mxu0 0
      %1142 = vmatmul.mubr.bf16.gmra.mxu0 %v973
      %v1143 = vpop.f32.mrf.mxu0
      %v1144 = vadd.f32 0.0, %v1143
      %v1145 = vpop.f32.mrf.mxu0
      %v1146 = vpop.f32.mrf.mxu0
      %v1147 = vadd.f32 0.0, %v1146
      %v1148 = vpop.f32.mrf.mxu0
      %1149 = vmatprep.mubr.bf16.mxu0 0
      %1150 = vmatmul.mubr.bf16.gmra.mxu0 %v974
      %v1151 = vpop.f32.mrf.mxu0
      %v1152 = vadd.f32 0.0, %v1151
      %v1153 = vpop.f32.mrf.mxu0
      %v1154 = vpop.f32.mrf.mxu0
      %v1155 = vadd.f32 0.0, %v1154
      %v1156 = vpop.f32.mrf.mxu0
      %1157 = vmatprep.mubr.bf16.mxu0 0
      %1158 = vmatmul.mubr.bf16.gmra.mxu0 %v975
      %v1159 = vpop.f32.mrf.mxu0
      %v1160 = vadd.f32 0.0, %v1159
      %v1161 = vpop.f32.mrf.mxu0
      %v1162 = vpop.f32.mrf.mxu0
      %v1163 = vadd.f32 0.0, %v1162
      %v1164 = vpop.f32.mrf.mxu0
      %1165 = vmatprep.mubr.bf16.mxu0 0
      %1166 = vmatmul.mubr.bf16.gmra.mxu0 %v976
      %v1167 = vpop.f32.mrf.mxu0
      %v1168 = vadd.f32 0.0, %v1167
      %v1169 = vpop.f32.mrf.mxu0
      %v1170 = vpop.f32.mrf.mxu0
      %v1171 = vadd.f32 0.0, %v1170
      %v1172 = vpop.f32.mrf.mxu0
      %1173 = vmatprep.mubr.bf16.mxu0 0
      %1174 = vmatmul.mubr.bf16.gmra.mxu0 %v977
      %v1175 = vpop.f32.mrf.mxu0
      %v1176 = vadd.f32 0.0, %v1175
      %v1177 = vpop.f32.mrf.mxu0
      %v1178 = vpop.f32.mrf.mxu0
      %v1179 = vadd.f32 0.0, %v1178
      %v1180 = vpop.f32.mrf.mxu0
      %1181 = vmatprep.mubr.bf16.mxu0 0
      %1182 = vmatmul.mubr.bf16.gmra.mxu0 %v978
      %v1183 = vpop.f32.mrf.mxu0
      %v1184 = vadd.f32 0.0, %v1183
      %v1185 = vpop.f32.mrf.mxu0
      %v1186 = vpop.f32.mrf.mxu0
      %v1187 = vadd.f32 0.0, %v1186
      %v1188 = vpop.f32.mrf.mxu0
      %1189 = vmatprep.mubr.bf16.mxu0 0
      %1190 = vmatmul.mubr.bf16.gmra.mxu0 %v979
      %v1191 = vpop.f32.mrf.mxu0
      %v1192 = vadd.f32 0.0, %v1191
      %v1193 = vpop.f32.mrf.mxu0
      %v1194 = vpop.f32.mrf.mxu0
      %v1195 = vadd.f32 0.0, %v1194
      %v1196 = vpop.f32.mrf.mxu0
      %1197 = vmatprep.mubr.bf16.mxu0 0
      %1198 = vmatmul.mubr.bf16.gmra.mxu0 %v980
      %v1199 = vpop.f32.mrf.mxu0
      %v1200 = vadd.f32 0.0, %v1199
      %v1201 = vpop.f32.mrf.mxu0
      %v1202 = vpop.f32.mrf.mxu0
      %v1203 = vadd.f32 0.0, %v1202
      %v1204 = vpop.f32.mrf.mxu0
      %1205 = vdwg.mxu0
      %v1208 = vunpack.c.l.b16 %v832
      %v1209 = vunpack.c.l.b16 %v833
      %v1210 = vpack.c.b16 %v1209, %v1208
      %v1228 = vunpack.c.l.b16 %v868
      %v1229 = vunpack.c.l.b16 %v869
      %v1230 = vunpack.c.l.b16 %v870
      %v1231 = vunpack.c.l.b16 %v871
      %v1232 = vunpack.c.l.b16 %v872
      %v1233 = vunpack.c.l.b16 %v873
      %v1234 = vunpack.c.l.b16 %v874
      %v1235 = vunpack.c.l.b16 %v875
      %v1236 = vunpack.c.l.b16 %v876
      %v1237 = vunpack.c.l.b16 %v877
      %v1238 = vunpack.c.l.b16 %v878
      %v1239 = vunpack.c.l.b16 %v879
      %v1240 = vunpack.c.l.b16 %v880
      %v1241 = vunpack.c.l.b16 %v881
      %v1242 = vunpack.c.l.b16 %v882
      %v1243 = vunpack.c.l.b16 %v883
      %v1244 = vpack.c.b16 %v1229, %v1228
      %v1245 = vpack.c.b16 %v1231, %v1230
      %v1246 = vpack.c.b16 %v1233, %v1232
      %v1247 = vpack.c.b16 %v1235, %v1234
      %v1248 = vpack.c.b16 %v1237, %v1236
      %v1249 = vpack.c.b16 %v1239, %v1238
      %v1250 = vpack.c.b16 %v1241, %v1240
      %v1251 = vpack.c.b16 %v1243, %v1242
      %1260 = vmatprep.subr.bf16.mxu0 0
      %1261 = vmatpush1.bf16.msra.mxu0 %v1251
      %1262 = vmatprep.subr.bf16.mxu0 0
      %1263 = vmatpush1.bf16.msra.mxu0 %v1250
      %1264 = vmatprep.subr.bf16.mxu0 0
      %1265 = vmatpush1.bf16.msra.mxu0 %v1249
      %1266 = vmatprep.subr.bf16.mxu0 0
      %1267 = vmatpush1.bf16.msra.mxu0 %v1248
      %1268 = vmatprep.subr.bf16.mxu0 0
      %1269 = vmatpush1.bf16.msra.mxu0 %v1247
      %1270 = vmatprep.subr.bf16.mxu0 0
      %1271 = vmatpush1.bf16.msra.mxu0 %v1246
      %1272 = vmatprep.subr.bf16.mxu0 0
      %1273 = vmatpush1.bf16.msra.mxu0 %v1245
      %1274 = vmatprep.subr.bf16.mxu0 0
      %1275 = vmatpush1.bf16.msra.mxu0 %v1244
      %1276 = vmatprep.subr.bf16.mxu0 0
      %1277 = vmatpush2.bf16.msra.mxu0 0
      %1278 = vmatprep.subr.bf16.mxu0 0
      %1279 = vmatpush2.bf16.msra.mxu0 0
      %1280 = vmatprep.subr.bf16.mxu0 0
      %1281 = vmatpush2.bf16.msra.mxu0 0
      %1282 = vmatprep.subr.bf16.mxu0 0
      %1283 = vmatpush2.bf16.msra.mxu0 0
      %1284 = vmatprep.subr.bf16.mxu0 0
      %1285 = vmatpush2.bf16.msra.mxu0 0
      %1286 = vmatprep.subr.bf16.mxu0 0
      %1287 = vmatpush2.bf16.msra.mxu0 0
      %1288 = vmatprep.subr.bf16.mxu0 0
      %1289 = vmatpush2.bf16.msra.mxu0 0
      %1290 = vmatprep.subr.bf16.mxu0 0
      %1291 = vmatpush2.bf16.msra.mxu0 0
      %1292 = vmatprep.mubr.bf16.mxu0 0
      %1293 = vmatmul.mubr.bf16.gmra.mxu0 %v1210
      %v1294 = vpop.f32.mrf.mxu0
      %v1295 = vadd.f32 %v1080, %v1294
      %v1296 = vpop.f32.mrf.mxu0
      %v1297 = vpop.f32.mrf.mxu0
      %v1298 = vadd.f32 %v1083, %v1297
      %v1299 = vpop.f32.mrf.mxu0
      %1300 = vmatprep.mubr.bf16.mxu0 0
      %1301 = vmatmul.mubr.bf16.gmra.mxu0 %v965
      %v1302 = vpop.f32.mrf.mxu0
      %v1303 = vadd.f32 %v1088, %v1302
      %v1304 = vpop.f32.mrf.mxu0
      %v1305 = vpop.f32.mrf.mxu0
      %v1306 = vadd.f32 %v1091, %v1305
      %v1307 = vpop.f32.mrf.mxu0
      %1308 = vmatprep.mubr.bf16.mxu0 0
      %1309 = vmatmul.mubr.bf16.gmra.mxu0 %v966
      %v1310 = vpop.f32.mrf.mxu0
      %v1311 = vadd.f32 %v1096, %v1310
      %v1312 = vpop.f32.mrf.mxu0
      %v1313 = vpop.f32.mrf.mxu0
      %v1314 = vadd.f32 %v1099, %v1313
      %v1315 = vpop.f32.mrf.mxu0
      %1316 = vmatprep.mubr.bf16.mxu0 0
      %1317 = vmatmul.mubr.bf16.gmra.mxu0 %v967
      %v1318 = vpop.f32.mrf.mxu0
      %v1319 = vadd.f32 %v1104, %v1318
      %v1320 = vpop.f32.mrf.mxu0
      %v1321 = vpop.f32.mrf.mxu0
      %v1322 = vadd.f32 %v1107, %v1321
      %v1323 = vpop.f32.mrf.mxu0
      %1324 = vmatprep.mubr.bf16.mxu0 0
      %1325 = vmatmul.mubr.bf16.gmra.mxu0 %v968
      %v1326 = vpop.f32.mrf.mxu0
      %v1327 = vadd.f32 %v1112, %v1326
      %v1328 = vpop.f32.mrf.mxu0
      %v1329 = vpop.f32.mrf.mxu0
      %v1330 = vadd.f32 %v1115, %v1329
      %v1331 = vpop.f32.mrf.mxu0
      %1332 = vmatprep.mubr.bf16.mxu0 0
      %1333 = vmatmul.mubr.bf16.gmra.mxu0 %v969
      %v1334 = vpop.f32.mrf.mxu0
      %v1335 = vadd.f32 %v1120, %v1334
      %v1336 = vpop.f32.mrf.mxu0
      %v1337 = vpop.f32.mrf.mxu0
      %v1338 = vadd.f32 %v1123, %v1337
      %v1339 = vpop.f32.mrf.mxu0
      %1340 = vmatprep.mubr.bf16.mxu0 0
      %1341 = vmatmul.mubr.bf16.gmra.mxu0 %v970
      %v1342 = vpop.f32.mrf.mxu0
      %v1343 = vadd.f32 %v1128, %v1342
      %v1344 = vpop.f32.mrf.mxu0
      %v1345 = vpop.f32.mrf.mxu0
      %v1346 = vadd.f32 %v1131, %v1345
      %v1347 = vpop.f32.mrf.mxu0
      %1348 = vmatprep.mubr.bf16.mxu0 0
      %1349 = vmatmul.mubr.bf16.gmra.mxu0 %v971
      %v1350 = vpop.f32.mrf.mxu0
      %v1351 = vadd.f32 %v1136, %v1350
      %v1352 = vpop.f32.mrf.mxu0
      %v1353 = vpop.f32.mrf.mxu0
      %v1354 = vadd.f32 %v1139, %v1353
      %v1355 = vpop.f32.mrf.mxu0
      %1356 = vmatprep.mubr.bf16.mxu0 0
      %1357 = vmatmul.mubr.bf16.gmra.mxu0 %v972
      %v1358 = vpop.f32.mrf.mxu0
      %v1359 = vadd.f32 %v1144, %v1358
      %v1360 = vpop.f32.mrf.mxu0
      %v1361 = vpop.f32.mrf.mxu0
      %v1362 = vadd.f32 %v1147, %v1361
      %v1363 = vpop.f32.mrf.mxu0
      %1364 = vmatprep.mubr.bf16.mxu0 0
      %1365 = vmatmul.mubr.bf16.gmra.mxu0 %v973
      %v1366 = vpop.f32.mrf.mxu0
      %v1367 = vadd.f32 %v1152, %v1366
      %v1368 = vpop.f32.mrf.mxu0
      %v1369 = vpop.f32.mrf.mxu0
      %v1370 = vadd.f32 %v1155, %v1369
      %v1371 = vpop.f32.mrf.mxu0
      %1372 = vmatprep.mubr.bf16.mxu0 0
      %1373 = vmatmul.mubr.bf16.gmra.mxu0 %v974
      %v1374 = vpop.f32.mrf.mxu0
      %v1375 = vadd.f32 %v1160, %v1374
      %v1376 = vpop.f32.mrf.mxu0
      %v1377 = vpop.f32.mrf.mxu0
      %v1378 = vadd.f32 %v1163, %v1377
      %v1379 = vpop.f32.mrf.mxu0
      %1380 = vmatprep.mubr.bf16.mxu0 0
      %1381 = vmatmul.mubr.bf16.gmra.mxu0 %v975
      %v1382 = vpop.f32.mrf.mxu0
      %v1383 = vadd.f32 %v1168, %v1382
      %v1384 = vpop.f32.mrf.mxu0
      %v1385 = vpop.f32.mrf.mxu0
      %v1386 = vadd.f32 %v1171, %v1385
      %v1387 = vpop.f32.mrf.mxu0
      %1388 = vmatprep.mubr.bf16.mxu0 0
      %1389 = vmatmul.mubr.bf16.gmra.mxu0 %v976
      %v1390 = vpop.f32.mrf.mxu0
      %v1391 = vadd.f32 %v1176, %v1390
      %v1392 = vpop.f32.mrf.mxu0
      %v1393 = vpop.f32.mrf.mxu0
      %v1394 = vadd.f32 %v1179, %v1393
      %v1395 = vpop.f32.mrf.mxu0
      %1396 = vmatprep.mubr.bf16.mxu0 0
      %1397 = vmatmul.mubr.bf16.gmra.mxu0 %v977
      %v1398 = vpop.f32.mrf.mxu0
      %v1399 = vadd.f32 %v1184, %v1398
      %v1400 = vpop.f32.mrf.mxu0
      %v1401 = vpop.f32.mrf.mxu0
      %v1402 = vadd.f32 %v1187, %v1401
      %v1403 = vpop.f32.mrf.mxu0
      %1404 = vmatprep.mubr.bf16.mxu0 0
      %1405 = vmatmul.mubr.bf16.gmra.mxu0 %v978
      %v1406 = vpop.f32.mrf.mxu0
      %v1407 = vadd.f32 %v1192, %v1406
      %v1408 = vpop.f32.mrf.mxu0
      %v1409 = vpop.f32.mrf.mxu0
      %v1410 = vadd.f32 %v1195, %v1409
      %v1411 = vpop.f32.mrf.mxu0
      %1412 = vmatprep.mubr.bf16.mxu0 0
      %1413 = vmatmul.mubr.bf16.gmra.mxu0 %v979
      %v1414 = vpop.f32.mrf.mxu0
      %v1415 = vadd.f32 %v1200, %v1414
      %v1416 = vpop.f32.mrf.mxu0
      %v1417 = vpop.f32.mrf.mxu0
      %v1418 = vadd.f32 %v1203, %v1417
      %v1419 = vpop.f32.mrf.mxu0
      %1420 = vdwg.mxu0
      %s1421 = scalar_lea.vmem %s3, 384
      %v1422 = vld [vmem:[%s1421] sm:$0xf]
      %v1423 = vld [vmem:[%s1421 + $0x4] sm:$0xf]
      %v1424 = vld [vmem:[%s1421 + $0x8] sm:$0xf]
      %v1425 = vld [vmem:[%s1421 + $0xc] sm:$0xf]
      %v1426 = vld [vmem:[%s1421 + $0x10] sm:$0xf]
      %v1427 = vld [vmem:[%s1421 + $0x14] sm:$0xf]
      %v1428 = vld [vmem:[%s1421 + $0x18] sm:$0xf]
      %v1429 = vld [vmem:[%s1421 + $0x1c] sm:$0xf]
      %v1430 = vld [vmem:[%s1421 + $0x20] sm:$0xf]
      %v1431 = vld [vmem:[%s1421 + $0x24] sm:$0xf]
      %v1432 = vld [vmem:[%s1421 + $0x28] sm:$0xf]
      %v1433 = vld [vmem:[%s1421 + $0x2c] sm:$0xf]
      %v1434 = vld [vmem:[%s1421 + $0x30] sm:$0xf]
      %v1435 = vld [vmem:[%s1421 + $0x34] sm:$0xf]
      %v1436 = vld [vmem:[%s1421 + $0x38] sm:$0xf]
      %v1437 = vld [vmem:[%s1421 + $0x3c] sm:$0xf]
      %v1440 = vunpack.c.l.b16 %v866
      %v1441 = vunpack.c.l.b16 %v867
      %v1442 = vpack.c.b16 %v1441, %v1440
      %v1460 = vunpack.c.l.b16 %v1422
      %v1461 = vunpack.c.l.b16 %v1423
      %v1462 = vunpack.c.l.b16 %v1424
      %v1463 = vunpack.c.l.b16 %v1425
      %v1464 = vunpack.c.l.b16 %v1426
      %v1465 = vunpack.c.l.b16 %v1427
      %v1466 = vunpack.c.l.b16 %v1428
      %v1467 = vunpack.c.l.b16 %v1429
      %v1468 = vunpack.c.l.b16 %v1430
      %v1469 = vunpack.c.l.b16 %v1431
      %v1470 = vunpack.c.l.b16 %v1432
      %v1471 = vunpack.c.l.b16 %v1433
      %v1472 = vunpack.c.l.b16 %v1434
      %v1473 = vunpack.c.l.b16 %v1435
      %v1474 = vunpack.c.l.b16 %v1436
      %v1475 = vunpack.c.l.b16 %v1437
      %v1476 = vpack.c.b16 %v1461, %v1460
      %v1477 = vpack.c.b16 %v1463, %v1462
      %v1478 = vpack.c.b16 %v1465, %v1464
      %v1479 = vpack.c.b16 %v1467, %v1466
      %v1480 = vpack.c.b16 %v1469, %v1468
      %v1481 = vpack.c.b16 %v1471, %v1470
      %v1482 = vpack.c.b16 %v1473, %v1472
      %v1483 = vpack.c.b16 %v1475, %v1474
      %1492 = vmatprep.subr.bf16.mxu0 0
      %1493 = vmatpush1.bf16.msra.mxu0 %v1483
      %1494 = vmatprep.subr.bf16.mxu0 0
      %1495 = vmatpush1.bf16.msra.mxu0 %v1482
      %1496 = vmatprep.subr.bf16.mxu0 0
      %1497 = vmatpush1.bf16.msra.mxu0 %v1481
      %1498 = vmatprep.subr.bf16.mxu0 0
      %1499 = vmatpush1.bf16.msra.mxu0 %v1480
      %1500 = vmatprep.subr.bf16.mxu0 0
      %1501 = vmatpush1.bf16.msra.mxu0 %v1479
      %1502 = vmatprep.subr.bf16.mxu0 0
      %1503 = vmatpush1.bf16.msra.mxu0 %v1478
      %1504 = vmatprep.subr.bf16.mxu0 0
      %1505 = vmatpush1.bf16.msra.mxu0 %v1477
      %1506 = vmatprep.subr.bf16.mxu0 0
      %1507 = vmatpush1.bf16.msra.mxu0 %v1476
      %1508 = vmatprep.subr.bf16.mxu0 0
      %1509 = vmatpush2.bf16.msra.mxu0 0
      %1510 = vmatprep.subr.bf16.mxu0 0
      %1511 = vmatpush2.bf16.msra.mxu0 0
      %1512 = vmatprep.subr.bf16.mxu0 0
      %1513 = vmatpush2.bf16.msra.mxu0 0
      %1514 = vmatprep.subr.bf16.mxu0 0
      %1515 = vmatpush2.bf16.msra.mxu0 0
      %1516 = vmatprep.subr.bf16.mxu0 0
      %1517 = vmatpush2.bf16.msra.mxu0 0
      %1518 = vmatprep.subr.bf16.mxu0 0
      %1519 = vmatpush2.bf16.msra.mxu0 0
      %1520 = vmatprep.subr.bf16.mxu0 0
      %1521 = vmatpush2.bf16.msra.mxu0 0
      %1522 = vmatprep.subr.bf16.mxu0 0
      %1523 = vmatpush2.bf16.msra.mxu0 0
      %1524 = vmatprep.mubr.bf16.mxu0 0
      %1525 = vmatmul.mubr.bf16.gmra.mxu0 %v966
      %v1526 = vpop.f32.mrf.mxu0
      %v1527 = vadd.f32 0.0, %v1526
      %v1528 = vpop.f32.mrf.mxu0
      %v1529 = vpop.f32.mrf.mxu0
      %v1530 = vadd.f32 0.0, %v1529
      %v1531 = vpop.f32.mrf.mxu0
      %1532 = vmatprep.mubr.bf16.mxu0 0
      %1533 = vmatmul.mubr.bf16.gmra.mxu0 %v967
      %v1534 = vpop.f32.mrf.mxu0
      %v1535 = vadd.f32 0.0, %v1534
      %v1536 = vpop.f32.mrf.mxu0
      %v1537 = vpop.f32.mrf.mxu0
      %v1538 = vadd.f32 0.0, %v1537
      %v1539 = vpop.f32.mrf.mxu0
      %1540 = vmatprep.mubr.bf16.mxu0 0
      %1541 = vmatmul.mubr.bf16.gmra.mxu0 %v968
      %v1542 = vpop.f32.mrf.mxu0
      %v1543 = vadd.f32 0.0, %v1542
      %v1544 = vpop.f32.mrf.mxu0
      %v1545 = vpop.f32.mrf.mxu0
      %v1546 = vadd.f32 0.0, %v1545
      %v1547 = vpop.f32.mrf.mxu0
      %1548 = vmatprep.mubr.bf16.mxu0 0
      %1549 = vmatmul.mubr.bf16.gmra.mxu0 %v969
      %v1550 = vpop.f32.mrf.mxu0
      %v1551 = vadd.f32 0.0, %v1550
      %v1552 = vpop.f32.mrf.mxu0
      %v1553 = vpop.f32.mrf.mxu0
      %v1554 = vadd.f32 0.0, %v1553
      %v1555 = vpop.f32.mrf.mxu0
      %1556 = vmatprep.mubr.bf16.mxu0 0
      %1557 = vmatmul.mubr.bf16.gmra.mxu0 %v970
      %v1558 = vpop.f32.mrf.mxu0
      %v1559 = vadd.f32 0.0, %v1558
      %v1560 = vpop.f32.mrf.mxu0
      %v1561 = vpop.f32.mrf.mxu0
      %v1562 = vadd.f32 0.0, %v1561
      %v1563 = vpop.f32.mrf.mxu0
      %1564 = vmatprep.mubr.bf16.mxu0 0
      %1565 = vmatmul.mubr.bf16.gmra.mxu0 %v971
      %v1566 = vpop.f32.mrf.mxu0
      %v1567 = vadd.f32 0.0, %v1566
      %v1568 = vpop.f32.mrf.mxu0
      %v1569 = vpop.f32.mrf.mxu0
      %v1570 = vadd.f32 0.0, %v1569
      %v1571 = vpop.f32.mrf.mxu0
      %1572 = vmatprep.mubr.bf16.mxu0 0
      %1573 = vmatmul.mubr.bf16.gmra.mxu0 %v972
      %v1574 = vpop.f32.mrf.mxu0
      %v1575 = vadd.f32 0.0, %v1574
      %v1576 = vpop.f32.mrf.mxu0
      %v1577 = vpop.f32.mrf.mxu0
      %v1578 = vadd.f32 0.0, %v1577
      %v1579 = vpop.f32.mrf.mxu0
      %1580 = vmatprep.mubr.bf16.mxu0 0
      %1581 = vmatmul.mubr.bf16.gmra.mxu0 %v973
      %v1582 = vpop.f32.mrf.mxu0
      %v1583 = vadd.f32 0.0, %v1582
      %v1584 = vpop.f32.mrf.mxu0
      %v1585 = vpop.f32.mrf.mxu0
      %v1586 = vadd.f32 0.0, %v1585
      %v1587 = vpop.f32.mrf.mxu0
      %1588 = vmatprep.mubr.bf16.mxu0 0
      %1589 = vmatmul.mubr.bf16.gmra.mxu0 %v974
      %v1590 = vpop.f32.mrf.mxu0
      %v1591 = vadd.f32 0.0, %v1590
      %v1592 = vpop.f32.mrf.mxu0
      %v1593 = vpop.f32.mrf.mxu0
      %v1594 = vadd.f32 0.0, %v1593
      %v1595 = vpop.f32.mrf.mxu0
      %1596 = vmatprep.mubr.bf16.mxu0 0
      %1597 = vmatmul.mubr.bf16.gmra.mxu0 %v975
      %v1598 = vpop.f32.mrf.mxu0
      %v1599 = vadd.f32 0.0, %v1598
      %v1600 = vpop.f32.mrf.mxu0
      %v1601 = vpop.f32.mrf.mxu0
      %v1602 = vadd.f32 0.0, %v1601
      %v1603 = vpop.f32.mrf.mxu0
      %1604 = vmatprep.mubr.bf16.mxu0 0
      %1605 = vmatmul.mubr.bf16.gmra.mxu0 %v976
      %v1606 = vpop.f32.mrf.mxu0
      %v1607 = vadd.f32 0.0, %v1606
      %v1608 = vpop.f32.mrf.mxu0
      %v1609 = vpop.f32.mrf.mxu0
      %v1610 = vadd.f32 0.0, %v1609
      %v1611 = vpop.f32.mrf.mxu0
      %1612 = vmatprep.mubr.bf16.mxu0 0
      %1613 = vmatmul.mubr.bf16.gmra.mxu0 %v977
      %v1614 = vpop.f32.mrf.mxu0
      %v1615 = vadd.f32 0.0, %v1614
      %v1616 = vpop.f32.mrf.mxu0
      %v1617 = vpop.f32.mrf.mxu0
      %v1618 = vadd.f32 0.0, %v1617
      %v1619 = vpop.f32.mrf.mxu0
      %1620 = vmatprep.mubr.bf16.mxu0 0
      %1621 = vmatmul.mubr.bf16.gmra.mxu0 %v978
      %v1622 = vpop.f32.mrf.mxu0
      %v1623 = vadd.f32 0.0, %v1622
      %v1624 = vpop.f32.mrf.mxu0
      %v1625 = vpop.f32.mrf.mxu0
      %v1626 = vadd.f32 0.0, %v1625
      %v1627 = vpop.f32.mrf.mxu0
      %1628 = vmatprep.mubr.bf16.mxu0 0
      %1629 = vmatmul.mubr.bf16.gmra.mxu0 %v979
      %v1630 = vpop.f32.mrf.mxu0
      %v1631 = vadd.f32 0.0, %v1630
      %v1632 = vpop.f32.mrf.mxu0
      %v1633 = vpop.f32.mrf.mxu0
      %v1634 = vadd.f32 0.0, %v1633
      %v1635 = vpop.f32.mrf.mxu0
      %1636 = vmatprep.mubr.bf16.mxu0 0
      %1637 = vmatmul.mubr.bf16.gmra.mxu0 %v980
      %v1638 = vpop.f32.mrf.mxu0
      %v1639 = vadd.f32 0.0, %v1638
      %v1640 = vpop.f32.mrf.mxu0
      %v1641 = vpop.f32.mrf.mxu0
      %v1642 = vadd.f32 0.0, %v1641
      %v1643 = vpop.f32.mrf.mxu0
      %1644 = vmatprep.mubr.bf16.mxu0 0
      %1645 = vmatmul.mubr.bf16.gmra.mxu0 %v1442
      %v1646 = vpop.f32.mrf.mxu0
      %v1647 = vadd.f32 0.0, %v1646
      %v1648 = vpop.f32.mrf.mxu0
      %v1649 = vpop.f32.mrf.mxu0
      %v1650 = vadd.f32 0.0, %v1649
      %v1651 = vpop.f32.mrf.mxu0
      %1652 = vdwg.mxu0
      %v1653 = vadd.f32 %v1295, %v1527
      %v1654 = vadd.f32 %v1298, %v1530
      %v1655 = vadd.f32 %v1303, %v1535
      %v1656 = vadd.f32 %v1306, %v1538
      %v1657 = vadd.f32 %v1311, %v1543
      %v1658 = vadd.f32 %v1314, %v1546
      %v1659 = vadd.f32 %v1319, %v1551
      %v1660 = vadd.f32 %v1322, %v1554
      %v1661 = vadd.f32 %v1327, %v1559
      %v1662 = vadd.f32 %v1330, %v1562
      %v1663 = vadd.f32 %v1335, %v1567
      %v1664 = vadd.f32 %v1338, %v1570
      %v1665 = vadd.f32 %v1343, %v1575
      %v1666 = vadd.f32 %v1346, %v1578
      %v1667 = vadd.f32 %v1351, %v1583
      %v1668 = vadd.f32 %v1354, %v1586
      %v1669 = vadd.f32 %v1359, %v1591
      %v1670 = vadd.f32 %v1362, %v1594
      %v1671 = vadd.f32 %v1367, %v1599
      %v1672 = vadd.f32 %v1370, %v1602
      %v1673 = vadd.f32 %v1375, %v1607
      %v1674 = vadd.f32 %v1378, %v1610
      %v1675 = vadd.f32 %v1383, %v1615
      %v1676 = vadd.f32 %v1386, %v1618
      %v1677 = vadd.f32 %v1391, %v1623
      %v1678 = vadd.f32 %v1394, %v1626
      %v1679 = vadd.f32 %v1399, %v1631
      %v1680 = vadd.f32 %v1402, %v1634
      %v1681 = vadd.f32 %v1407, %v1639
      %v1682 = vadd.f32 %v1410, %v1642
      %v1683 = vadd.f32 %v1415, %v1647
      %v1684 = vadd.f32 %v1418, %v1650
      %v1685 = vld [vmem:[#allocation3] sm:$0xf]
      %v1686 = vld [vmem:[#allocation3 + $0x4] sm:$0xf]
      %v1687 = vld [vmem:[#allocation3 + $0x8] sm:$0x1]
      %v1688 = vld [vmem:[#allocation3 + $0xc] sm:$0xf]
      %v1689 = vld [vmem:[#allocation3 + $0x10] sm:$0xf]
      %v1690 = vld [vmem:[#allocation3 + $0x14] sm:$0x1]
      %v1691 = vld [vmem:[#allocation3 + $0x18] sm:$0xf]
      %v1692 = vld [vmem:[#allocation3 + $0x1c] sm:$0xf]
      %v1693 = vld [vmem:[#allocation3 + $0x20] sm:$0x1]
      %v1694 = vld [vmem:[#allocation3 + $0x24] sm:$0xf]
      %v1695 = vld [vmem:[#allocation3 + $0x28] sm:$0xf]
      %v1696 = vld [vmem:[#allocation3 + $0x2c] sm:$0x1]
      %v1697 = vld [vmem:[#allocation3 + $0x30] sm:$0xf]
      %v1698 = vld [vmem:[#allocation3 + $0x34] sm:$0xf]
      %v1699 = vld [vmem:[#allocation3 + $0x38] sm:$0x1]
      %v1700 = vld [vmem:[#allocation3 + $0x3c] sm:$0xf]
      %v1701 = vld [vmem:[#allocation3 + $0x40] sm:$0xf]
      %v1702 = vld [vmem:[#allocation3 + $0x44] sm:$0x1]
      %v1703 = vld [vmem:[#allocation3 + $0x48] sm:$0xf]
      %v1704 = vld [vmem:[#allocation3 + $0x4c] sm:$0xf]
      %v1705 = vld [vmem:[#allocation3 + $0x50] sm:$0x1]
      %v1706 = vld [vmem:[#allocation3 + $0x54] sm:$0xf]
      %v1707 = vld [vmem:[#allocation3 + $0x58] sm:$0xf]
      %v1708 = vld [vmem:[#allocation3 + $0x5c] sm:$0x1]
      %v1709 = vld [vmem:[#allocation3 + $0x60] sm:$0xf]
      %v1710 = vld [vmem:[#allocation3 + $0x64] sm:$0xf]
      %v1711 = vld [vmem:[#allocation3 + $0x68] sm:$0x1]
      %v1712 = vld [vmem:[#allocation3 + $0x6c] sm:$0xf]
      %v1713 = vld [vmem:[#allocation3 + $0x70] sm:$0xf]
      %v1714 = vld [vmem:[#allocation3 + $0x74] sm:$0x1]
      %v1715 = vld [vmem:[#allocation3 + $0x78] sm:$0xf]
      %v1716 = vld [vmem:[#allocation3 + $0x7c] sm:$0xf]
      %v1717 = vld [vmem:[#allocation3 + $0x80] sm:$0x1]
      %v1718 = vld [vmem:[#allocation3 + $0x84] sm:$0xf]
      %v1719 = vld [vmem:[#allocation3 + $0x88] sm:$0xf]
      %v1720 = vld [vmem:[#allocation3 + $0x8c] sm:$0x1]
      %v1721 = vld [vmem:[#allocation3 + $0x90] sm:$0xf]
      %v1722 = vld [vmem:[#allocation3 + $0x94] sm:$0xf]
      %v1723 = vld [vmem:[#allocation3 + $0x98] sm:$0x1]
      %v1724 = vld [vmem:[#allocation3 + $0x9c] sm:$0xf]
      %v1725 = vld [vmem:[#allocation3 + $0xa0] sm:$0xf]
      %v1726 = vld [vmem:[#allocation3 + $0xa4] sm:$0x1]
      %v1727 = vld [vmem:[#allocation3 + $0xa8] sm:$0xf]
      %v1728 = vld [vmem:[#allocation3 + $0xac] sm:$0xf]
      %v1729 = vld [vmem:[#allocation3 + $0xb0] sm:$0x1]
      %v1730 = vld [vmem:[#allocation3 + $0xb4] sm:$0xf]
      %v1731 = vld [vmem:[#allocation3 + $0xb8] sm:$0xf]
      %v1732 = vld [vmem:[#allocation3 + $0xbc] sm:$0x1]
      %v1733 = vld [vmem:[#allocation3 + $0xc0] sm:$0xf]
      %v1734 = vld [vmem:[#allocation3 + $0xc4] sm:$0xf]
      %v1735 = vld [vmem:[#allocation3 + $0xc8] sm:$0x1]
      %v1736 = vld [vmem:[#allocation3 + $0xcc] sm:$0xf]
      %v1737 = vld [vmem:[#allocation3 + $0xd0] sm:$0xf]
      %v1738 = vld [vmem:[#allocation3 + $0xd4] sm:$0x1]
      %vm1739 = vsmask.f32 3328
      %vm1740 = vsmask.f32 7440
      %vm1741 = vmor %vm1739, %vm1740
      %v1743 = vshrl.u32 %v1685, 16
      %v1745 = vrot.slane %v1743, 4
      %v1746 = vshll.u32 %v1685, 16
      %v1748 = vrot.slane %v1746, 5
      %v1749 = vor.u32 %v1745, %v1748
      %v1750 = vrot.slane %v1749, 4
      %v1752 = vshll.u32 %v1686, 16
      %v1754 = vrot.slane %v1752, 5
      %v1755 = vsel %vm1741, %v1750, %v1754
      %v1756 = vshrl.u32 %v1686, 16
      %v1758 = vrot.slane %v1756, 4
      %v1759 = vor.u32 %v1758, %v1754
      %v1760 = vrot.slane %v1759, 4
      %v1762 = vshll.u32 %v1687, 16
      %v1764 = vrot.slane %v1762, 5
      %v1765 = vsel %vm1741, %v1760, %v1764
      %v1767 = vshrl.u32 %v1688, 16
      %v1769 = vrot.slane %v1767, 4
      %v1770 = vshll.u32 %v1688, 16
      %v1772 = vrot.slane %v1770, 5
      %v1773 = vor.u32 %v1769, %v1772
      %v1774 = vrot.slane %v1773, 4
      %v1776 = vshll.u32 %v1689, 16
      %v1778 = vrot.slane %v1776, 5
      %v1779 = vsel %vm1741, %v1774, %v1778
      %v1780 = vshrl.u32 %v1689, 16
      %v1782 = vrot.slane %v1780, 4
      %v1783 = vor.u32 %v1782, %v1778
      %v1784 = vrot.slane %v1783, 4
      %v1786 = vshll.u32 %v1690, 16
      %v1788 = vrot.slane %v1786, 5
      %v1789 = vsel %vm1741, %v1784, %v1788
      %v1791 = vshrl.u32 %v1691, 16
      %v1793 = vrot.slane %v1791, 4
      %v1794 = vshll.u32 %v1691, 16
      %v1796 = vrot.slane %v1794, 5
      %v1797 = vor.u32 %v1793, %v1796
      %v1798 = vrot.slane %v1797, 4
      %v1800 = vshll.u32 %v1692, 16
      %v1802 = vrot.slane %v1800, 5
      %v1803 = vsel %vm1741, %v1798, %v1802
      %v1804 = vshrl.u32 %v1692, 16
      %v1806 = vrot.slane %v1804, 4
      %v1807 = vor.u32 %v1806, %v1802
      %v1808 = vrot.slane %v1807, 4
      %v1810 = vshll.u32 %v1693, 16
      %v1812 = vrot.slane %v1810, 5
      %v1813 = vsel %vm1741, %v1808, %v1812
      %v1815 = vshrl.u32 %v1694, 16
      %v1817 = vrot.slane %v1815, 4
      %v1818 = vshll.u32 %v1694, 16
      %v1820 = vrot.slane %v1818, 5
      %v1821 = vor.u32 %v1817, %v1820
      %v1822 = vrot.slane %v1821, 4
      %v1824 = vshll.u32 %v1695, 16
      %v1826 = vrot.slane %v1824, 5
      %v1827 = vsel %vm1741, %v1822, %v1826
      %v1828 = vshrl.u32 %v1695, 16
      %v1830 = vrot.slane %v1828, 4
      %v1831 = vor.u32 %v1830, %v1826
      %v1832 = vrot.slane %v1831, 4
      %v1834 = vshll.u32 %v1696, 16
      %v1836 = vrot.slane %v1834, 5
      %v1837 = vsel %vm1741, %v1832, %v1836
      %v1839 = vshrl.u32 %v1697, 16
      %v1841 = vrot.slane %v1839, 4
      %v1842 = vshll.u32 %v1697, 16
      %v1844 = vrot.slane %v1842, 5
      %v1845 = vor.u32 %v1841, %v1844
      %v1846 = vrot.slane %v1845, 4
      %v1848 = vshll.u32 %v1698, 16
      %v1850 = vrot.slane %v1848, 5
      %v1851 = vsel %vm1741, %v1846, %v1850
      %v1852 = vshrl.u32 %v1698, 16
      %v1854 = vrot.slane %v1852, 4
      %v1855 = vor.u32 %v1854, %v1850
      %v1856 = vrot.slane %v1855, 4
      %v1858 = vshll.u32 %v1699, 16
      %v1860 = vrot.slane %v1858, 5
      %v1861 = vsel %vm1741, %v1856, %v1860
      %v1863 = vshrl.u32 %v1700, 16
      %v1865 = vrot.slane %v1863, 4
      %v1866 = vshll.u32 %v1700, 16
      %v1868 = vrot.slane %v1866, 5
      %v1869 = vor.u32 %v1865, %v1868
      %v1870 = vrot.slane %v1869, 4
      %v1872 = vshll.u32 %v1701, 16
      %v1874 = vrot.slane %v1872, 5
      %v1875 = vsel %vm1741, %v1870, %v1874
      %v1876 = vshrl.u32 %v1701, 16
      %v1878 = vrot.slane %v1876, 4
      %v1879 = vor.u32 %v1878, %v1874
      %v1880 = vrot.slane %v1879, 4
      %v1882 = vshll.u32 %v1702, 16
      %v1884 = vrot.slane %v1882, 5
      %v1885 = vsel %vm1741, %v1880, %v1884
      %v1887 = vshrl.u32 %v1703, 16
      %v1889 = vrot.slane %v1887, 4
      %v1890 = vshll.u32 %v1703, 16
      %v1892 = vrot.slane %v1890, 5
      %v1893 = vor.u32 %v1889, %v1892
      %v1894 = vrot.slane %v1893, 4
      %v1896 = vshll.u32 %v1704, 16
      %v1898 = vrot.slane %v1896, 5
      %v1899 = vsel %vm1741, %v1894, %v1898
      %v1900 = vshrl.u32 %v1704, 16
      %v1902 = vrot.slane %v1900, 4
      %v1903 = vor.u32 %v1902, %v1898
      %v1904 = vrot.slane %v1903, 4
      %v1906 = vshll.u32 %v1705, 16
      %v1908 = vrot.slane %v1906, 5
      %v1909 = vsel %vm1741, %v1904, %v1908
      %v1911 = vshrl.u32 %v1706, 16
      %v1913 = vrot.slane %v1911, 4
      %v1914 = vshll.u32 %v1706, 16
      %v1916 = vrot.slane %v1914, 5
      %v1917 = vor.u32 %v1913, %v1916
      %v1918 = vrot.slane %v1917, 4
      %v1920 = vshll.u32 %v1707, 16
      %v1922 = vrot.slane %v1920, 5
      %v1923 = vsel %vm1741, %v1918, %v1922
      %v1924 = vshrl.u32 %v1707, 16
      %v1926 = vrot.slane %v1924, 4
      %v1927 = vor.u32 %v1926, %v1922
      %v1928 = vrot.slane %v1927, 4
      %v1930 = vshll.u32 %v1708, 16
      %v1932 = vrot.slane %v1930, 5
      %v1933 = vsel %vm1741, %v1928, %v1932
      %v1935 = vshrl.u32 %v1709, 16
      %v1937 = vrot.slane %v1935, 4
      %v1938 = vshll.u32 %v1709, 16
      %v1940 = vrot.slane %v1938, 5
      %v1941 = vor.u32 %v1937, %v1940
      %v1942 = vrot.slane %v1941, 4
      %v1944 = vshll.u32 %v1710, 16
      %v1946 = vrot.slane %v1944, 5
      %v1947 = vsel %vm1741, %v1942, %v1946
      %v1948 = vshrl.u32 %v1710, 16
      %v1950 = vrot.slane %v1948, 4
      %v1951 = vor.u32 %v1950, %v1946
      %v1952 = vrot.slane %v1951, 4
      %v1954 = vshll.u32 %v1711, 16
      %v1956 = vrot.slane %v1954, 5
      %v1957 = vsel %vm1741, %v1952, %v1956
      %v1959 = vshrl.u32 %v1712, 16
      %v1961 = vrot.slane %v1959, 4
      %v1962 = vshll.u32 %v1712, 16
      %v1964 = vrot.slane %v1962, 5
      %v1965 = vor.u32 %v1961, %v1964
      %v1966 = vrot.slane %v1965, 4
      %v1968 = vshll.u32 %v1713, 16
      %v1970 = vrot.slane %v1968, 5
      %v1971 = vsel %vm1741, %v1966, %v1970
      %v1972 = vshrl.u32 %v1713, 16
      %v1974 = vrot.slane %v1972, 4
      %v1975 = vor.u32 %v1974, %v1970
      %v1976 = vrot.slane %v1975, 4
      %v1978 = vshll.u32 %v1714, 16
      %v1980 = vrot.slane %v1978, 5
      %v1981 = vsel %vm1741, %v1976, %v1980
      %v1983 = vshrl.u32 %v1715, 16
      %v1985 = vrot.slane %v1983, 4
      %v1986 = vshll.u32 %v1715, 16
      %v1988 = vrot.slane %v1986, 5
      %v1989 = vor.u32 %v1985, %v1988
      %v1990 = vrot.slane %v1989, 4
      %v1992 = vshll.u32 %v1716, 16
      %v1994 = vrot.slane %v1992, 5
      %v1995 = vsel %vm1741, %v1990, %v1994
      %v1996 = vshrl.u32 %v1716, 16
      %v1998 = vrot.slane %v1996, 4
      %v1999 = vor.u32 %v1998, %v1994
      %v2000 = vrot.slane %v1999, 4
      %v2002 = vshll.u32 %v1717, 16
      %v2004 = vrot.slane %v2002, 5
      %v2005 = vsel %vm1741, %v2000, %v2004
      %v2007 = vshrl.u32 %v1718, 16
      %v2009 = vrot.slane %v2007, 4
      %v2010 = vshll.u32 %v1718, 16
      %v2012 = vrot.slane %v2010, 5
      %v2013 = vor.u32 %v2009, %v2012
      %v2014 = vrot.slane %v2013, 4
      %v2016 = vshll.u32 %v1719, 16
      %v2018 = vrot.slane %v2016, 5
      %v2019 = vsel %vm1741, %v2014, %v2018
      %v2020 = vshrl.u32 %v1719, 16
      %v2022 = vrot.slane %v2020, 4
      %v2023 = vor.u32 %v2022, %v2018
      %v2024 = vrot.slane %v2023, 4
      %v2026 = vshll.u32 %v1720, 16
      %v2028 = vrot.slane %v2026, 5
      %v2029 = vsel %vm1741, %v2024, %v2028
      %v2031 = vshrl.u32 %v1721, 16
      %v2033 = vrot.slane %v2031, 4
      %v2034 = vshll.u32 %v1721, 16
      %v2036 = vrot.slane %v2034, 5
      %v2037 = vor.u32 %v2033, %v2036
      %v2038 = vrot.slane %v2037, 4
      %v2040 = vshll.u32 %v1722, 16
      %v2042 = vrot.slane %v2040, 5
      %v2043 = vsel %vm1741, %v2038, %v2042
      %v2044 = vshrl.u32 %v1722, 16
      %v2046 = vrot.slane %v2044, 4
      %v2047 = vor.u32 %v2046, %v2042
      %v2048 = vrot.slane %v2047, 4
      %v2050 = vshll.u32 %v1723, 16
      %v2052 = vrot.slane %v2050, 5
      %v2053 = vsel %vm1741, %v2048, %v2052
      %v2055 = vshrl.u32 %v1724, 16
      %v2057 = vrot.slane %v2055, 4
      %v2058 = vshll.u32 %v1724, 16
      %v2060 = vrot.slane %v2058, 5
      %v2061 = vor.u32 %v2057, %v2060
      %v2062 = vrot.slane %v2061, 4
      %v2064 = vshll.u32 %v1725, 16
      %v2066 = vrot.slane %v2064, 5
      %v2067 = vsel %vm1741, %v2062, %v2066
      %v2068 = vshrl.u32 %v1725, 16
      %v2070 = vrot.slane %v2068, 4
      %v2071 = vor.u32 %v2070, %v2066
      %v2072 = vrot.slane %v2071, 4
      %v2074 = vshll.u32 %v1726, 16
      %v2076 = vrot.slane %v2074, 5
      %v2077 = vsel %vm1741, %v2072, %v2076
      %v2079 = vshrl.u32 %v1727, 16
      %v2081 = vrot.slane %v2079, 4
      %v2082 = vshll.u32 %v1727, 16
      %v2084 = vrot.slane %v2082, 5
      %v2085 = vor.u32 %v2081, %v2084
      %v2086 = vrot.slane %v2085, 4
      %v2088 = vshll.u32 %v1728, 16
      %v2090 = vrot.slane %v2088, 5
      %v2091 = vsel %vm1741, %v2086, %v2090
      %v2092 = vshrl.u32 %v1728, 16
      %v2094 = vrot.slane %v2092, 4
      %v2095 = vor.u32 %v2094, %v2090
      %v2096 = vrot.slane %v2095, 4
      %v2098 = vshll.u32 %v1729, 16
      %v2100 = vrot.slane %v2098, 5
      %v2101 = vsel %vm1741, %v2096, %v2100
      %v2103 = vshrl.u32 %v1730, 16
      %v2105 = vrot.slane %v2103, 4
      %v2106 = vshll.u32 %v1730, 16
      %v2108 = vrot.slane %v2106, 5
      %v2109 = vor.u32 %v2105, %v2108
      %v2110 = vrot.slane %v2109, 4
      %v2112 = vshll.u32 %v1731, 16
      %v2114 = vrot.slane %v2112, 5
      %v2115 = vsel %vm1741, %v2110, %v2114
      %v2116 = vshrl.u32 %v1731, 16
      %v2118 = vrot.slane %v2116, 4
      %v2119 = vor.u32 %v2118, %v2114
      %v2120 = vrot.slane %v2119, 4
      %v2122 = vshll.u32 %v1732, 16
      %v2124 = vrot.slane %v2122, 5
      %v2125 = vsel %vm1741, %v2120, %v2124
      %s2126 = scalar_lea.vmem %s3, 64
      %v2127 = vld [vmem:[%s2126] sm:$0xf]
      %v2128 = vld [vmem:[%s2126 + $0x4] sm:$0xf]
      %v2129 = vld [vmem:[%s2126 + $0x8] sm:$0xf]
      %v2130 = vld [vmem:[%s2126 + $0xc] sm:$0xf]
      %v2131 = vld [vmem:[%s2126 + $0x10] sm:$0xf]
      %v2132 = vld [vmem:[%s2126 + $0x14] sm:$0xf]
      %v2133 = vld [vmem:[%s2126 + $0x18] sm:$0xf]
      %v2134 = vld [vmem:[%s2126 + $0x1c] sm:$0xf]
      %v2135 = vld [vmem:[%s2126 + $0x20] sm:$0xf]
      %v2136 = vld [vmem:[%s2126 + $0x24] sm:$0xf]
      %v2137 = vld [vmem:[%s2126 + $0x28] sm:$0xf]
      %v2138 = vld [vmem:[%s2126 + $0x2c] sm:$0xf]
      %v2139 = vld [vmem:[%s2126 + $0x30] sm:$0xf]
      %v2140 = vld [vmem:[%s2126 + $0x34] sm:$0xf]
      %v2141 = vld [vmem:[%s2126 + $0x38] sm:$0xf]
      %v2142 = vld [vmem:[%s2126 + $0x3c] sm:$0xf]
      %v2143 = vunpack.c.l.b16 %v1755
      %v2144 = vunpack.c.l.b16 %v1765
      %v2145 = vunpack.c.l.b16 %v1779
      %v2146 = vunpack.c.l.b16 %v1789
      %v2147 = vunpack.c.l.b16 %v1803
      %v2148 = vunpack.c.l.b16 %v1813
      %v2149 = vunpack.c.l.b16 %v1827
      %v2150 = vunpack.c.l.b16 %v1837
      %v2151 = vunpack.c.l.b16 %v1851
      %v2152 = vunpack.c.l.b16 %v1861
      %v2153 = vunpack.c.l.b16 %v1875
      %v2154 = vunpack.c.l.b16 %v1885
      %v2155 = vunpack.c.l.b16 %v1899
      %v2156 = vunpack.c.l.b16 %v1909
      %v2157 = vunpack.c.l.b16 %v1923
      %v2158 = vunpack.c.l.b16 %v1933
      %v2159 = vunpack.c.l.b16 %v1947
      %v2160 = vunpack.c.l.b16 %v1957
      %v2161 = vunpack.c.l.b16 %v1971
      %v2162 = vunpack.c.l.b16 %v1981
      %v2163 = vunpack.c.l.b16 %v1995
      %v2164 = vunpack.c.l.b16 %v2005
      %v2165 = vunpack.c.l.b16 %v2019
      %v2166 = vunpack.c.l.b16 %v2029
      %v2167 = vunpack.c.l.b16 %v2043
      %v2168 = vunpack.c.l.b16 %v2053
      %v2169 = vunpack.c.l.b16 %v2067
      %v2170 = vunpack.c.l.b16 %v2077
      %v2171 = vunpack.c.l.b16 %v2091
      %v2172 = vunpack.c.l.b16 %v2101
      %v2173 = vunpack.c.l.b16 %v2115
      %v2174 = vunpack.c.l.b16 %v2125
      %v2175 = vpack.c.b16 %v2144, %v2143
      %v2176 = vpack.c.b16 %v2146, %v2145
      %v2177 = vpack.c.b16 %v2148, %v2147
      %v2178 = vpack.c.b16 %v2150, %v2149
      %v2179 = vpack.c.b16 %v2152, %v2151
      %v2180 = vpack.c.b16 %v2154, %v2153
      %v2181 = vpack.c.b16 %v2156, %v2155
      %v2182 = vpack.c.b16 %v2158, %v2157
      %v2183 = vpack.c.b16 %v2160, %v2159
      %v2184 = vpack.c.b16 %v2162, %v2161
      %v2185 = vpack.c.b16 %v2164, %v2163
      %v2186 = vpack.c.b16 %v2166, %v2165
      %v2187 = vpack.c.b16 %v2168, %v2167
      %v2188 = vpack.c.b16 %v2170, %v2169
      %v2189 = vpack.c.b16 %v2172, %v2171
      %v2190 = vpack.c.b16 %v2174, %v2173
      %v2223 = vunpack.c.l.b16 %v2127
      %v2224 = vunpack.c.l.b16 %v2128
      %v2225 = vunpack.c.l.b16 %v2129
      %v2226 = vunpack.c.l.b16 %v2130
      %v2227 = vunpack.c.l.b16 %v2131
      %v2228 = vunpack.c.l.b16 %v2132
      %v2229 = vunpack.c.l.b16 %v2133
      %v2230 = vunpack.c.l.b16 %v2134
      %v2231 = vunpack.c.l.b16 %v2135
      %v2232 = vunpack.c.l.b16 %v2136
      %v2233 = vunpack.c.l.b16 %v2137
      %v2234 = vunpack.c.l.b16 %v2138
      %v2235 = vunpack.c.l.b16 %v2139
      %v2236 = vunpack.c.l.b16 %v2140
      %v2237 = vunpack.c.l.b16 %v2141
      %v2238 = vunpack.c.l.b16 %v2142
      %v2239 = vpack.c.b16 %v2224, %v2223
      %v2240 = vpack.c.b16 %v2226, %v2225
      %v2241 = vpack.c.b16 %v2228, %v2227
      %v2242 = vpack.c.b16 %v2230, %v2229
      %v2243 = vpack.c.b16 %v2232, %v2231
      %v2244 = vpack.c.b16 %v2234, %v2233
      %v2245 = vpack.c.b16 %v2236, %v2235
      %v2246 = vpack.c.b16 %v2238, %v2237
      %2255 = vmatprep.subr.bf16.mxu0 0
      %2256 = vmatpush1.bf16.msra.mxu0 %v2246
      %2257 = vmatprep.subr.bf16.mxu0 0
      %2258 = vmatpush1.bf16.msra.mxu0 %v2245
      %2259 = vmatprep.subr.bf16.mxu0 0
      %2260 = vmatpush1.bf16.msra.mxu0 %v2244
      %2261 = vmatprep.subr.bf16.mxu0 0
      %2262 = vmatpush1.bf16.msra.mxu0 %v2243
      %2263 = vmatprep.subr.bf16.mxu0 0
      %2264 = vmatpush1.bf16.msra.mxu0 %v2242
      %2265 = vmatprep.subr.bf16.mxu0 0
      %2266 = vmatpush1.bf16.msra.mxu0 %v2241
      %2267 = vmatprep.subr.bf16.mxu0 0
      %2268 = vmatpush1.bf16.msra.mxu0 %v2240
      %2269 = vmatprep.subr.bf16.mxu0 0
      %2270 = vmatpush1.bf16.msra.mxu0 %v2239
      %2271 = vmatprep.subr.bf16.mxu0 0
      %2272 = vmatpush2.bf16.msra.mxu0 0
      %2273 = vmatprep.subr.bf16.mxu0 0
      %2274 = vmatpush2.bf16.msra.mxu0 0
      %2275 = vmatprep.subr.bf16.mxu0 0
      %2276 = vmatpush2.bf16.msra.mxu0 0
      %2277 = vmatprep.subr.bf16.mxu0 0
      %2278 = vmatpush2.bf16.msra.mxu0 0
      %2279 = vmatprep.subr.bf16.mxu0 0
      %2280 = vmatpush2.bf16.msra.mxu0 0
      %2281 = vmatprep.subr.bf16.mxu0 0
      %2282 = vmatpush2.bf16.msra.mxu0 0
      %2283 = vmatprep.subr.bf16.mxu0 0
      %2284 = vmatpush2.bf16.msra.mxu0 0
      %2285 = vmatprep.subr.bf16.mxu0 0
      %2286 = vmatpush2.bf16.msra.mxu0 0
      %2287 = vmatprep.mubr.bf16.mxu0 0
      %2288 = vmatmul.mubr.bf16.gmra.mxu0 %v2175
      %v2289 = vpop.f32.mrf.mxu0
      %v2290 = vadd.f32 0.0, %v2289
      %v2291 = vpop.f32.mrf.mxu0
      %v2292 = vpop.f32.mrf.mxu0
      %v2293 = vadd.f32 0.0, %v2292
      %v2294 = vpop.f32.mrf.mxu0
      %2295 = vmatprep.mubr.bf16.mxu0 0
      %2296 = vmatmul.mubr.bf16.gmra.mxu0 %v2176
      %v2297 = vpop.f32.mrf.mxu0
      %v2298 = vadd.f32 0.0, %v2297
      %v2299 = vpop.f32.mrf.mxu0
      %v2300 = vpop.f32.mrf.mxu0
      %v2301 = vadd.f32 0.0, %v2300
      %v2302 = vpop.f32.mrf.mxu0
      %2303 = vmatprep.mubr.bf16.mxu0 0
      %2304 = vmatmul.mubr.bf16.gmra.mxu0 %v2177
      %v2305 = vpop.f32.mrf.mxu0
      %v2306 = vadd.f32 0.0, %v2305
      %v2307 = vpop.f32.mrf.mxu0
      %v2308 = vpop.f32.mrf.mxu0
      %v2309 = vadd.f32 0.0, %v2308
      %v2310 = vpop.f32.mrf.mxu0
      %2311 = vmatprep.mubr.bf16.mxu0 0
      %2312 = vmatmul.mubr.bf16.gmra.mxu0 %v2178
      %v2313 = vpop.f32.mrf.mxu0
      %v2314 = vadd.f32 0.0, %v2313
      %v2315 = vpop.f32.mrf.mxu0
      %v2316 = vpop.f32.mrf.mxu0
      %v2317 = vadd.f32 0.0, %v2316
      %v2318 = vpop.f32.mrf.mxu0
      %2319 = vmatprep.mubr.bf16.mxu0 0
      %2320 = vmatmul.mubr.bf16.gmra.mxu0 %v2179
      %v2321 = vpop.f32.mrf.mxu0
      %v2322 = vadd.f32 0.0, %v2321
      %v2323 = vpop.f32.mrf.mxu0
      %v2324 = vpop.f32.mrf.mxu0
      %v2325 = vadd.f32 0.0, %v2324
      %v2326 = vpop.f32.mrf.mxu0
      %2327 = vmatprep.mubr.bf16.mxu0 0
      %2328 = vmatmul.mubr.bf16.gmra.mxu0 %v2180
      %v2329 = vpop.f32.mrf.mxu0
      %v2330 = vadd.f32 0.0, %v2329
      %v2331 = vpop.f32.mrf.mxu0
      %v2332 = vpop.f32.mrf.mxu0
      %v2333 = vadd.f32 0.0, %v2332
      %v2334 = vpop.f32.mrf.mxu0
      %2335 = vmatprep.mubr.bf16.mxu0 0
      %2336 = vmatmul.mubr.bf16.gmra.mxu0 %v2181
      %v2337 = vpop.f32.mrf.mxu0
      %v2338 = vadd.f32 0.0, %v2337
      %v2339 = vpop.f32.mrf.mxu0
      %v2340 = vpop.f32.mrf.mxu0
      %v2341 = vadd.f32 0.0, %v2340
      %v2342 = vpop.f32.mrf.mxu0
      %2343 = vmatprep.mubr.bf16.mxu0 0
      %2344 = vmatmul.mubr.bf16.gmra.mxu0 %v2182
      %v2345 = vpop.f32.mrf.mxu0
      %v2346 = vadd.f32 0.0, %v2345
      %v2347 = vpop.f32.mrf.mxu0
      %v2348 = vpop.f32.mrf.mxu0
      %v2349 = vadd.f32 0.0, %v2348
      %v2350 = vpop.f32.mrf.mxu0
      %2351 = vmatprep.mubr.bf16.mxu0 0
      %2352 = vmatmul.mubr.bf16.gmra.mxu0 %v2183
      %v2353 = vpop.f32.mrf.mxu0
      %v2354 = vadd.f32 0.0, %v2353
      %v2355 = vpop.f32.mrf.mxu0
      %v2356 = vpop.f32.mrf.mxu0
      %v2357 = vadd.f32 0.0, %v2356
      %v2358 = vpop.f32.mrf.mxu0
      %2359 = vmatprep.mubr.bf16.mxu0 0
      %2360 = vmatmul.mubr.bf16.gmra.mxu0 %v2184
      %v2361 = vpop.f32.mrf.mxu0
      %v2362 = vadd.f32 0.0, %v2361
      %v2363 = vpop.f32.mrf.mxu0
      %v2364 = vpop.f32.mrf.mxu0
      %v2365 = vadd.f32 0.0, %v2364
      %v2366 = vpop.f32.mrf.mxu0
      %2367 = vmatprep.mubr.bf16.mxu0 0
      %2368 = vmatmul.mubr.bf16.gmra.mxu0 %v2185
      %v2369 = vpop.f32.mrf.mxu0
      %v2370 = vadd.f32 0.0, %v2369
      %v2371 = vpop.f32.mrf.mxu0
      %v2372 = vpop.f32.mrf.mxu0
      %v2373 = vadd.f32 0.0, %v2372
      %v2374 = vpop.f32.mrf.mxu0
      %2375 = vmatprep.mubr.bf16.mxu0 0
      %2376 = vmatmul.mubr.bf16.gmra.mxu0 %v2186
      %v2377 = vpop.f32.mrf.mxu0
      %v2378 = vadd.f32 0.0, %v2377
      %v2379 = vpop.f32.mrf.mxu0
      %v2380 = vpop.f32.mrf.mxu0
      %v2381 = vadd.f32 0.0, %v2380
      %v2382 = vpop.f32.mrf.mxu0
      %2383 = vmatprep.mubr.bf16.mxu0 0
      %2384 = vmatmul.mubr.bf16.gmra.mxu0 %v2187
      %v2385 = vpop.f32.mrf.mxu0
      %v2386 = vadd.f32 0.0, %v2385
      %v2387 = vpop.f32.mrf.mxu0
      %v2388 = vpop.f32.mrf.mxu0
      %v2389 = vadd.f32 0.0, %v2388
      %v2390 = vpop.f32.mrf.mxu0
      %2391 = vmatprep.mubr.bf16.mxu0 0
      %2392 = vmatmul.mubr.bf16.gmra.mxu0 %v2188
      %v2393 = vpop.f32.mrf.mxu0
      %v2394 = vadd.f32 0.0, %v2393
      %v2395 = vpop.f32.mrf.mxu0
      %v2396 = vpop.f32.mrf.mxu0
      %v2397 = vadd.f32 0.0, %v2396
      %v2398 = vpop.f32.mrf.mxu0
      %2399 = vmatprep.mubr.bf16.mxu0 0
      %2400 = vmatmul.mubr.bf16.gmra.mxu0 %v2189
      %v2401 = vpop.f32.mrf.mxu0
      %v2402 = vadd.f32 0.0, %v2401
      %v2403 = vpop.f32.mrf.mxu0
      %v2404 = vpop.f32.mrf.mxu0
      %v2405 = vadd.f32 0.0, %v2404
      %v2406 = vpop.f32.mrf.mxu0
      %2407 = vmatprep.mubr.bf16.mxu0 0
      %2408 = vmatmul.mubr.bf16.gmra.mxu0 %v2190
      %v2409 = vpop.f32.mrf.mxu0
      %v2410 = vadd.f32 0.0, %v2409
      %v2411 = vpop.f32.mrf.mxu0
      %v2412 = vpop.f32.mrf.mxu0
      %v2413 = vadd.f32 0.0, %v2412
      %v2414 = vpop.f32.mrf.mxu0
      %2415 = vdwg.mxu0
      %v2416 = vadd.f32 %v1653, %v2290
      %v2417 = vadd.f32 %v1654, %v2293
      %v2418 = vadd.f32 %v1655, %v2298
      %v2419 = vadd.f32 %v1656, %v2301
      %v2420 = vadd.f32 %v1657, %v2306
      %v2421 = vadd.f32 %v1658, %v2309
      %v2422 = vadd.f32 %v1659, %v2314
      %v2423 = vadd.f32 %v1660, %v2317
      %v2424 = vadd.f32 %v1661, %v2322
      %v2425 = vadd.f32 %v1662, %v2325
      %v2426 = vadd.f32 %v1663, %v2330
      %v2427 = vadd.f32 %v1664, %v2333
      %v2428 = vadd.f32 %v1665, %v2338
      %v2429 = vadd.f32 %v1666, %v2341
      %v2430 = vadd.f32 %v1667, %v2346
      %v2431 = vadd.f32 %v1668, %v2349
      %v2432 = vadd.f32 %v1669, %v2354
      %v2433 = vadd.f32 %v1670, %v2357
      %v2434 = vadd.f32 %v1671, %v2362
      %v2435 = vadd.f32 %v1672, %v2365
      %v2436 = vadd.f32 %v1673, %v2370
      %v2437 = vadd.f32 %v1674, %v2373
      %v2438 = vadd.f32 %v1675, %v2378
      %v2439 = vadd.f32 %v1676, %v2381
      %v2440 = vadd.f32 %v1677, %v2386
      %v2441 = vadd.f32 %v1678, %v2389
      %v2442 = vadd.f32 %v1679, %v2394
      %v2443 = vadd.f32 %v1680, %v2397
      %v2444 = vadd.f32 %v1681, %v2402
      %v2445 = vadd.f32 %v1682, %v2405
      %v2446 = vadd.f32 %v1683, %v2410
      %v2447 = vadd.f32 %v1684, %v2413
      %v2449 = vshrl.u32 %v1733, 16
      %v2451 = vrot.slane %v2449, 4
      %v2452 = vshll.u32 %v1733, 16
      %v2454 = vrot.slane %v2452, 5
      %v2455 = vor.u32 %v2451, %v2454
      %v2456 = vrot.slane %v2455, 4
      %v2458 = vshll.u32 %v1734, 16
      %v2460 = vrot.slane %v2458, 5
      %v2461 = vsel %vm1741, %v2456, %v2460
      %v2462 = vshrl.u32 %v1734, 16
      %v2464 = vrot.slane %v2462, 4
      %v2465 = vor.u32 %v2464, %v2460
      %v2466 = vrot.slane %v2465, 4
      %v2468 = vshll.u32 %v1735, 16
      %v2470 = vrot.slane %v2468, 5
      %v2471 = vsel %vm1741, %v2466, %v2470
      %s2472 = scalar_lea.vmem %s3, 256
      %v2473 = vld [vmem:[%s2472] sm:$0xf]
      %v2474 = vld [vmem:[%s2472 + $0x4] sm:$0xf]
      %v2475 = vld [vmem:[%s2472 + $0x8] sm:$0xf]
      %v2476 = vld [vmem:[%s2472 + $0xc] sm:$0xf]
      %v2477 = vld [vmem:[%s2472 + $0x10] sm:$0xf]
      %v2478 = vld [vmem:[%s2472 + $0x14] sm:$0xf]
      %v2479 = vld [vmem:[%s2472 + $0x18] sm:$0xf]
      %v2480 = vld [vmem:[%s2472 + $0x1c] sm:$0xf]
      %v2481 = vld [vmem:[%s2472 + $0x20] sm:$0xf]
      %v2482 = vld [vmem:[%s2472 + $0x24] sm:$0xf]
      %v2483 = vld [vmem:[%s2472 + $0x28] sm:$0xf]
      %v2484 = vld [vmem:[%s2472 + $0x2c] sm:$0xf]
      %v2485 = vld [vmem:[%s2472 + $0x30] sm:$0xf]
      %v2486 = vld [vmem:[%s2472 + $0x34] sm:$0xf]
      %v2487 = vld [vmem:[%s2472 + $0x38] sm:$0xf]
      %v2488 = vld [vmem:[%s2472 + $0x3c] sm:$0xf]
      %v2489 = vunpack.c.l.b16 %v2461
      %v2490 = vunpack.c.l.b16 %v2471
      %v2491 = vpack.c.b16 %v2490, %v2489
      %v2509 = vunpack.c.l.b16 %v2473
      %v2510 = vunpack.c.l.b16 %v2474
      %v2511 = vunpack.c.l.b16 %v2475
      %v2512 = vunpack.c.l.b16 %v2476
      %v2513 = vunpack.c.l.b16 %v2477
      %v2514 = vunpack.c.l.b16 %v2478
      %v2515 = vunpack.c.l.b16 %v2479
      %v2516 = vunpack.c.l.b16 %v2480
      %v2517 = vunpack.c.l.b16 %v2481
      %v2518 = vunpack.c.l.b16 %v2482
      %v2519 = vunpack.c.l.b16 %v2483
      %v2520 = vunpack.c.l.b16 %v2484
      %v2521 = vunpack.c.l.b16 %v2485
      %v2522 = vunpack.c.l.b16 %v2486
      %v2523 = vunpack.c.l.b16 %v2487
      %v2524 = vunpack.c.l.b16 %v2488
      %v2525 = vpack.c.b16 %v2510, %v2509
      %v2526 = vpack.c.b16 %v2512, %v2511
      %v2527 = vpack.c.b16 %v2514, %v2513
      %v2528 = vpack.c.b16 %v2516, %v2515
      %v2529 = vpack.c.b16 %v2518, %v2517
      %v2530 = vpack.c.b16 %v2520, %v2519
      %v2531 = vpack.c.b16 %v2522, %v2521
      %v2532 = vpack.c.b16 %v2524, %v2523
      %2541 = vmatprep.subr.bf16.mxu0 0
      %2542 = vmatpush1.bf16.msra.mxu0 %v2532
      %2543 = vmatprep.subr.bf16.mxu0 0
      %2544 = vmatpush1.bf16.msra.mxu0 %v2531
      %2545 = vmatprep.subr.bf16.mxu0 0
      %2546 = vmatpush1.bf16.msra.mxu0 %v2530
      %2547 = vmatprep.subr.bf16.mxu0 0
      %2548 = vmatpush1.bf16.msra.mxu0 %v2529
      %2549 = vmatprep.subr.bf16.mxu0 0
      %2550 = vmatpush1.bf16.msra.mxu0 %v2528
      %2551 = vmatprep.subr.bf16.mxu0 0
      %2552 = vmatpush1.bf16.msra.mxu0 %v2527
      %2553 = vmatprep.subr.bf16.mxu0 0
      %2554 = vmatpush1.bf16.msra.mxu0 %v2526
      %2555 = vmatprep.subr.bf16.mxu0 0
      %2556 = vmatpush1.bf16.msra.mxu0 %v2525
      %2557 = vmatprep.subr.bf16.mxu0 0
      %2558 = vmatpush2.bf16.msra.mxu0 0
      %2559 = vmatprep.subr.bf16.mxu0 0
      %2560 = vmatpush2.bf16.msra.mxu0 0
      %2561 = vmatprep.subr.bf16.mxu0 0
      %2562 = vmatpush2.bf16.msra.mxu0 0
      %2563 = vmatprep.subr.bf16.mxu0 0
      %2564 = vmatpush2.bf16.msra.mxu0 0
      %2565 = vmatprep.subr.bf16.mxu0 0
      %2566 = vmatpush2.bf16.msra.mxu0 0
      %2567 = vmatprep.subr.bf16.mxu0 0
      %2568 = vmatpush2.bf16.msra.mxu0 0
      %2569 = vmatprep.subr.bf16.mxu0 0
      %2570 = vmatpush2.bf16.msra.mxu0 0
      %2571 = vmatprep.subr.bf16.mxu0 0
      %2572 = vmatpush2.bf16.msra.mxu0 0
      %2573 = vmatprep.mubr.bf16.mxu0 0
      %2574 = vmatmul.mubr.bf16.gmra.mxu0 %v2176
      %v2575 = vpop.f32.mrf.mxu0
      %v2576 = vadd.f32 0.0, %v2575
      %v2577 = vpop.f32.mrf.mxu0
      %v2578 = vpop.f32.mrf.mxu0
      %v2579 = vadd.f32 0.0, %v2578
      %v2580 = vpop.f32.mrf.mxu0
      %2581 = vmatprep.mubr.bf16.mxu0 0
      %2582 = vmatmul.mubr.bf16.gmra.mxu0 %v2177
      %v2583 = vpop.f32.mrf.mxu0
      %v2584 = vadd.f32 0.0, %v2583
      %v2585 = vpop.f32.mrf.mxu0
      %v2586 = vpop.f32.mrf.mxu0
      %v2587 = vadd.f32 0.0, %v2586
      %v2588 = vpop.f32.mrf.mxu0
      %2589 = vmatprep.mubr.bf16.mxu0 0
      %2590 = vmatmul.mubr.bf16.gmra.mxu0 %v2178
      %v2591 = vpop.f32.mrf.mxu0
      %v2592 = vadd.f32 0.0, %v2591
      %v2593 = vpop.f32.mrf.mxu0
      %v2594 = vpop.f32.mrf.mxu0
      %v2595 = vadd.f32 0.0, %v2594
      %v2596 = vpop.f32.mrf.mxu0
      %2597 = vmatprep.mubr.bf16.mxu0 0
      %2598 = vmatmul.mubr.bf16.gmra.mxu0 %v2179
      %v2599 = vpop.f32.mrf.mxu0
      %v2600 = vadd.f32 0.0, %v2599
      %v2601 = vpop.f32.mrf.mxu0
      %v2602 = vpop.f32.mrf.mxu0
      %v2603 = vadd.f32 0.0, %v2602
      %v2604 = vpop.f32.mrf.mxu0
      %2605 = vmatprep.mubr.bf16.mxu0 0
      %2606 = vmatmul.mubr.bf16.gmra.mxu0 %v2180
      %v2607 = vpop.f32.mrf.mxu0
      %v2608 = vadd.f32 0.0, %v2607
      %v2609 = vpop.f32.mrf.mxu0
      %v2610 = vpop.f32.mrf.mxu0
      %v2611 = vadd.f32 0.0, %v2610
      %v2612 = vpop.f32.mrf.mxu0
      %2613 = vmatprep.mubr.bf16.mxu0 0
      %2614 = vmatmul.mubr.bf16.gmra.mxu0 %v2181
      %v2615 = vpop.f32.mrf.mxu0
      %v2616 = vadd.f32 0.0, %v2615
      %v2617 = vpop.f32.mrf.mxu0
      %v2618 = vpop.f32.mrf.mxu0
      %v2619 = vadd.f32 0.0, %v2618
      %v2620 = vpop.f32.mrf.mxu0
      %2621 = vmatprep.mubr.bf16.mxu0 0
      %2622 = vmatmul.mubr.bf16.gmra.mxu0 %v2182
      %v2623 = vpop.f32.mrf.mxu0
      %v2624 = vadd.f32 0.0, %v2623
      %v2625 = vpop.f32.mrf.mxu0
      %v2626 = vpop.f32.mrf.mxu0
      %v2627 = vadd.f32 0.0, %v2626
      %v2628 = vpop.f32.mrf.mxu0
      %2629 = vmatprep.mubr.bf16.mxu0 0
      %2630 = vmatmul.mubr.bf16.gmra.mxu0 %v2183
      %v2631 = vpop.f32.mrf.mxu0
      %v2632 = vadd.f32 0.0, %v2631
      %v2633 = vpop.f32.mrf.mxu0
      %v2634 = vpop.f32.mrf.mxu0
      %v2635 = vadd.f32 0.0, %v2634
      %v2636 = vpop.f32.mrf.mxu0
      %2637 = vmatprep.mubr.bf16.mxu0 0
      %2638 = vmatmul.mubr.bf16.gmra.mxu0 %v2184
      %v2639 = vpop.f32.mrf.mxu0
      %v2640 = vadd.f32 0.0, %v2639
      %v2641 = vpop.f32.mrf.mxu0
      %v2642 = vpop.f32.mrf.mxu0
      %v2643 = vadd.f32 0.0, %v2642
      %v2644 = vpop.f32.mrf.mxu0
      %2645 = vmatprep.mubr.bf16.mxu0 0
      %2646 = vmatmul.mubr.bf16.gmra.mxu0 %v2185
      %v2647 = vpop.f32.mrf.mxu0
      %v2648 = vadd.f32 0.0, %v2647
      %v2649 = vpop.f32.mrf.mxu0
      %v2650 = vpop.f32.mrf.mxu0
      %v2651 = vadd.f32 0.0, %v2650
      %v2652 = vpop.f32.mrf.mxu0
      %2653 = vmatprep.mubr.bf16.mxu0 0
      %2654 = vmatmul.mubr.bf16.gmra.mxu0 %v2186
      %v2655 = vpop.f32.mrf.mxu0
      %v2656 = vadd.f32 0.0, %v2655
      %v2657 = vpop.f32.mrf.mxu0
      %v2658 = vpop.f32.mrf.mxu0
      %v2659 = vadd.f32 0.0, %v2658
      %v2660 = vpop.f32.mrf.mxu0
      %2661 = vmatprep.mubr.bf16.mxu0 0
      %2662 = vmatmul.mubr.bf16.gmra.mxu0 %v2187
      %v2663 = vpop.f32.mrf.mxu0
      %v2664 = vadd.f32 0.0, %v2663
      %v2665 = vpop.f32.mrf.mxu0
      %v2666 = vpop.f32.mrf.mxu0
      %v2667 = vadd.f32 0.0, %v2666
      %v2668 = vpop.f32.mrf.mxu0
      %2669 = vmatprep.mubr.bf16.mxu0 0
      %2670 = vmatmul.mubr.bf16.gmra.mxu0 %v2188
      %v2671 = vpop.f32.mrf.mxu0
      %v2672 = vadd.f32 0.0, %v2671
      %v2673 = vpop.f32.mrf.mxu0
      %v2674 = vpop.f32.mrf.mxu0
      %v2675 = vadd.f32 0.0, %v2674
      %v2676 = vpop.f32.mrf.mxu0
      %2677 = vmatprep.mubr.bf16.mxu0 0
      %2678 = vmatmul.mubr.bf16.gmra.mxu0 %v2189
      %v2679 = vpop.f32.mrf.mxu0
      %v2680 = vadd.f32 0.0, %v2679
      %v2681 = vpop.f32.mrf.mxu0
      %v2682 = vpop.f32.mrf.mxu0
      %v2683 = vadd.f32 0.0, %v2682
      %v2684 = vpop.f32.mrf.mxu0
      %2685 = vmatprep.mubr.bf16.mxu0 0
      %2686 = vmatmul.mubr.bf16.gmra.mxu0 %v2190
      %v2687 = vpop.f32.mrf.mxu0
      %v2688 = vadd.f32 0.0, %v2687
      %v2689 = vpop.f32.mrf.mxu0
      %v2690 = vpop.f32.mrf.mxu0
      %v2691 = vadd.f32 0.0, %v2690
      %v2692 = vpop.f32.mrf.mxu0
      %2693 = vmatprep.mubr.bf16.mxu0 0
      %2694 = vmatmul.mubr.bf16.gmra.mxu0 %v2491
      %v2695 = vpop.f32.mrf.mxu0
      %v2696 = vadd.f32 0.0, %v2695
      %v2697 = vpop.f32.mrf.mxu0
      %v2698 = vpop.f32.mrf.mxu0
      %v2699 = vadd.f32 0.0, %v2698
      %v2700 = vpop.f32.mrf.mxu0
      %2701 = vdwg.mxu0
      %v2702 = vadd.f32 %v2416, %v2576
      %v2703 = vadd.f32 %v2417, %v2579
      %v2704 = vadd.f32 %v2418, %v2584
      %v2705 = vadd.f32 %v2419, %v2587
      %v2706 = vadd.f32 %v2420, %v2592
      %v2707 = vadd.f32 %v2421, %v2595
      %v2708 = vadd.f32 %v2422, %v2600
      %v2709 = vadd.f32 %v2423, %v2603
      %v2710 = vadd.f32 %v2424, %v2608
      %v2711 = vadd.f32 %v2425, %v2611
      %v2712 = vadd.f32 %v2426, %v2616
      %v2713 = vadd.f32 %v2427, %v2619
      %v2714 = vadd.f32 %v2428, %v2624
      %v2715 = vadd.f32 %v2429, %v2627
      %v2716 = vadd.f32 %v2430, %v2632
      %v2717 = vadd.f32 %v2431, %v2635
      %v2718 = vadd.f32 %v2432, %v2640
      %v2719 = vadd.f32 %v2433, %v2643
      %v2720 = vadd.f32 %v2434, %v2648
      %v2721 = vadd.f32 %v2435, %v2651
      %v2722 = vadd.f32 %v2436, %v2656
      %v2723 = vadd.f32 %v2437, %v2659
      %v2724 = vadd.f32 %v2438, %v2664
      %v2725 = vadd.f32 %v2439, %v2667
      %v2726 = vadd.f32 %v2440, %v2672
      %v2727 = vadd.f32 %v2441, %v2675
      %v2728 = vadd.f32 %v2442, %v2680
      %v2729 = vadd.f32 %v2443, %v2683
      %v2730 = vadd.f32 %v2444, %v2688
      %v2731 = vadd.f32 %v2445, %v2691
      %v2732 = vadd.f32 %v2446, %v2696
      %v2733 = vadd.f32 %v2447, %v2699
      %v2735 = vshrl.u32 %v1736, 16
      %v2737 = vrot.slane %v2735, 4
      %v2738 = vshll.u32 %v1736, 16
      %v2740 = vrot.slane %v2738, 5
      %v2741 = vor.u32 %v2737, %v2740
      %v2742 = vrot.slane %v2741, 4
      %v2744 = vshll.u32 %v1737, 16
      %v2746 = vrot.slane %v2744, 5
      %v2747 = vsel %vm1741, %v2742, %v2746
      %v2748 = vshrl.u32 %v1737, 16
      %v2750 = vrot.slane %v2748, 4
      %v2751 = vor.u32 %v2750, %v2746
      %v2752 = vrot.slane %v2751, 4
      %v2754 = vshll.u32 %v1738, 16
      %v2756 = vrot.slane %v2754, 5
      %v2757 = vsel %vm1741, %v2752, %v2756
      %s2758 = scalar_lea.vmem %s3, 448
      %v2759 = vld [vmem:[%s2758] sm:$0xf]
      %v2760 = vld [vmem:[%s2758 + $0x4] sm:$0xf]
      %v2761 = vld [vmem:[%s2758 + $0x8] sm:$0xf]
      %v2762 = vld [vmem:[%s2758 + $0xc] sm:$0xf]
      %v2763 = vld [vmem:[%s2758 + $0x10] sm:$0xf]
      %v2764 = vld [vmem:[%s2758 + $0x14] sm:$0xf]
      %v2765 = vld [vmem:[%s2758 + $0x18] sm:$0xf]
      %v2766 = vld [vmem:[%s2758 + $0x1c] sm:$0xf]
      %v2767 = vld [vmem:[%s2758 + $0x20] sm:$0xf]
      %v2768 = vld [vmem:[%s2758 + $0x24] sm:$0xf]
      %v2769 = vld [vmem:[%s2758 + $0x28] sm:$0xf]
      %v2770 = vld [vmem:[%s2758 + $0x2c] sm:$0xf]
      %v2771 = vld [vmem:[%s2758 + $0x30] sm:$0xf]
      %v2772 = vld [vmem:[%s2758 + $0x34] sm:$0xf]
      %v2773 = vld [vmem:[%s2758 + $0x38] sm:$0xf]
      %v2774 = vld [vmem:[%s2758 + $0x3c] sm:$0xf]
      %v2775 = vunpack.c.l.b16 %v2747
      %v2776 = vunpack.c.l.b16 %v2757
      %v2777 = vpack.c.b16 %v2776, %v2775
      %v2795 = vunpack.c.l.b16 %v2759
      %v2796 = vunpack.c.l.b16 %v2760
      %v2797 = vunpack.c.l.b16 %v2761
      %v2798 = vunpack.c.l.b16 %v2762
      %v2799 = vunpack.c.l.b16 %v2763
      %v2800 = vunpack.c.l.b16 %v2764
      %v2801 = vunpack.c.l.b16 %v2765
      %v2802 = vunpack.c.l.b16 %v2766
      %v2803 = vunpack.c.l.b16 %v2767
      %v2804 = vunpack.c.l.b16 %v2768
      %v2805 = vunpack.c.l.b16 %v2769
      %v2806 = vunpack.c.l.b16 %v2770
      %v2807 = vunpack.c.l.b16 %v2771
      %v2808 = vunpack.c.l.b16 %v2772
      %v2809 = vunpack.c.l.b16 %v2773
      %v2810 = vunpack.c.l.b16 %v2774
      %v2811 = vpack.c.b16 %v2796, %v2795
      %v2812 = vpack.c.b16 %v2798, %v2797
      %v2813 = vpack.c.b16 %v2800, %v2799
      %v2814 = vpack.c.b16 %v2802, %v2801
      %v2815 = vpack.c.b16 %v2804, %v2803
      %v2816 = vpack.c.b16 %v2806, %v2805
      %v2817 = vpack.c.b16 %v2808, %v2807
      %v2818 = vpack.c.b16 %v2810, %v2809
      %2827 = vmatprep.subr.bf16.mxu0 0
      %2828 = vmatpush1.bf16.msra.mxu0 %v2818
      %2829 = vmatprep.subr.bf16.mxu0 0
      %2830 = vmatpush1.bf16.msra.mxu0 %v2817
      %2831 = vmatprep.subr.bf16.mxu0 0
      %2832 = vmatpush1.bf16.msra.mxu0 %v2816
      %2833 = vmatprep.subr.bf16.mxu0 0
      %2834 = vmatpush1.bf16.msra.mxu0 %v2815
      %2835 = vmatprep.subr.bf16.mxu0 0
      %2836 = vmatpush1.bf16.msra.mxu0 %v2814
      %2837 = vmatprep.subr.bf16.mxu0 0
      %2838 = vmatpush1.bf16.msra.mxu0 %v2813
      %2839 = vmatprep.subr.bf16.mxu0 0
      %2840 = vmatpush1.bf16.msra.mxu0 %v2812
      %2841 = vmatprep.subr.bf16.mxu0 0
      %2842 = vmatpush1.bf16.msra.mxu0 %v2811
      %2843 = vmatprep.subr.bf16.mxu0 0
      %2844 = vmatpush2.bf16.msra.mxu0 0
      %2845 = vmatprep.subr.bf16.mxu0 0
      %2846 = vmatpush2.bf16.msra.mxu0 0
      %2847 = vmatprep.subr.bf16.mxu0 0
      %2848 = vmatpush2.bf16.msra.mxu0 0
      %2849 = vmatprep.subr.bf16.mxu0 0
      %2850 = vmatpush2.bf16.msra.mxu0 0
      %2851 = vmatprep.subr.bf16.mxu0 0
      %2852 = vmatpush2.bf16.msra.mxu0 0
      %2853 = vmatprep.subr.bf16.mxu0 0
      %2854 = vmatpush2.bf16.msra.mxu0 0
      %2855 = vmatprep.subr.bf16.mxu0 0
      %2856 = vmatpush2.bf16.msra.mxu0 0
      %2857 = vmatprep.subr.bf16.mxu0 0
      %2858 = vmatpush2.bf16.msra.mxu0 0
      %2859 = vmatprep.mubr.bf16.mxu0 0
      %2860 = vmatmul.mubr.bf16.gmra.mxu0 %v2177
      %v2861 = vpop.f32.mrf.mxu0
      %v2862 = vadd.f32 0.0, %v2861
      %v2863 = vpop.f32.mrf.mxu0
      %v2864 = vpop.f32.mrf.mxu0
      %v2865 = vadd.f32 0.0, %v2864
      %v2866 = vpop.f32.mrf.mxu0
      %2867 = vmatprep.mubr.bf16.mxu0 0
      %2868 = vmatmul.mubr.bf16.gmra.mxu0 %v2178
      %v2869 = vpop.f32.mrf.mxu0
      %v2870 = vadd.f32 0.0, %v2869
      %v2871 = vpop.f32.mrf.mxu0
      %v2872 = vpop.f32.mrf.mxu0
      %v2873 = vadd.f32 0.0, %v2872
      %v2874 = vpop.f32.mrf.mxu0
      %2875 = vmatprep.mubr.bf16.mxu0 0
      %2876 = vmatmul.mubr.bf16.gmra.mxu0 %v2179
      %v2877 = vpop.f32.mrf.mxu0
      %v2878 = vadd.f32 0.0, %v2877
      %v2879 = vpop.f32.mrf.mxu0
      %v2880 = vpop.f32.mrf.mxu0
      %v2881 = vadd.f32 0.0, %v2880
      %v2882 = vpop.f32.mrf.mxu0
      %2883 = vmatprep.mubr.bf16.mxu0 0
      %2884 = vmatmul.mubr.bf16.gmra.mxu0 %v2180
      %v2885 = vpop.f32.mrf.mxu0
      %v2886 = vadd.f32 0.0, %v2885
      %v2887 = vpop.f32.mrf.mxu0
      %v2888 = vpop.f32.mrf.mxu0
      %v2889 = vadd.f32 0.0, %v2888
      %v2890 = vpop.f32.mrf.mxu0
      %2891 = vmatprep.mubr.bf16.mxu0 0
      %2892 = vmatmul.mubr.bf16.gmra.mxu0 %v2181
      %v2893 = vpop.f32.mrf.mxu0
      %v2894 = vadd.f32 0.0, %v2893
      %v2895 = vpop.f32.mrf.mxu0
      %v2896 = vpop.f32.mrf.mxu0
      %v2897 = vadd.f32 0.0, %v2896
      %v2898 = vpop.f32.mrf.mxu0
      %2899 = vmatprep.mubr.bf16.mxu0 0
      %2900 = vmatmul.mubr.bf16.gmra.mxu0 %v2182
      %v2901 = vpop.f32.mrf.mxu0
      %v2902 = vadd.f32 0.0, %v2901
      %v2903 = vpop.f32.mrf.mxu0
      %v2904 = vpop.f32.mrf.mxu0
      %v2905 = vadd.f32 0.0, %v2904
      %v2906 = vpop.f32.mrf.mxu0
      %2907 = vmatprep.mubr.bf16.mxu0 0
      %2908 = vmatmul.mubr.bf16.gmra.mxu0 %v2183
      %v2909 = vpop.f32.mrf.mxu0
      %v2910 = vadd.f32 0.0, %v2909
      %v2911 = vpop.f32.mrf.mxu0
      %v2912 = vpop.f32.mrf.mxu0
      %v2913 = vadd.f32 0.0, %v2912
      %v2914 = vpop.f32.mrf.mxu0
      %2915 = vmatprep.mubr.bf16.mxu0 0
      %2916 = vmatmul.mubr.bf16.gmra.mxu0 %v2184
      %v2917 = vpop.f32.mrf.mxu0
      %v2918 = vadd.f32 0.0, %v2917
      %v2919 = vpop.f32.mrf.mxu0
      %v2920 = vpop.f32.mrf.mxu0
      %v2921 = vadd.f32 0.0, %v2920
      %v2922 = vpop.f32.mrf.mxu0
      %2923 = vmatprep.mubr.bf16.mxu0 0
      %2924 = vmatmul.mubr.bf16.gmra.mxu0 %v2185
      %v2925 = vpop.f32.mrf.mxu0
      %v2926 = vadd.f32 0.0, %v2925
      %v2927 = vpop.f32.mrf.mxu0
      %v2928 = vpop.f32.mrf.mxu0
      %v2929 = vadd.f32 0.0, %v2928
      %v2930 = vpop.f32.mrf.mxu0
      %2931 = vmatprep.mubr.bf16.mxu0 0
      %2932 = vmatmul.mubr.bf16.gmra.mxu0 %v2186
      %v2933 = vpop.f32.mrf.mxu0
      %v2934 = vadd.f32 0.0, %v2933
      %v2935 = vpop.f32.mrf.mxu0
      %v2936 = vpop.f32.mrf.mxu0
      %v2937 = vadd.f32 0.0, %v2936
      %v2938 = vpop.f32.mrf.mxu0
      %2939 = vmatprep.mubr.bf16.mxu0 0
      %2940 = vmatmul.mubr.bf16.gmra.mxu0 %v2187
      %v2941 = vpop.f32.mrf.mxu0
      %v2942 = vadd.f32 0.0, %v2941
      %v2943 = vpop.f32.mrf.mxu0
      %v2944 = vpop.f32.mrf.mxu0
      %v2945 = vadd.f32 0.0, %v2944
      %v2946 = vpop.f32.mrf.mxu0
      %2947 = vmatprep.mubr.bf16.mxu0 0
      %2948 = vmatmul.mubr.bf16.gmra.mxu0 %v2188
      %v2949 = vpop.f32.mrf.mxu0
      %v2950 = vadd.f32 0.0, %v2949
      %v2951 = vpop.f32.mrf.mxu0
      %v2952 = vpop.f32.mrf.mxu0
      %v2953 = vadd.f32 0.0, %v2952
      %v2954 = vpop.f32.mrf.mxu0
      %2955 = vmatprep.mubr.bf16.mxu0 0
      %2956 = vmatmul.mubr.bf16.gmra.mxu0 %v2189
      %v2957 = vpop.f32.mrf.mxu0
      %v2958 = vadd.f32 0.0, %v2957
      %v2959 = vpop.f32.mrf.mxu0
      %v2960 = vpop.f32.mrf.mxu0
      %v2961 = vadd.f32 0.0, %v2960
      %v2962 = vpop.f32.mrf.mxu0
      %2963 = vmatprep.mubr.bf16.mxu0 0
      %2964 = vmatmul.mubr.bf16.gmra.mxu0 %v2190
      %v2965 = vpop.f32.mrf.mxu0
      %v2966 = vadd.f32 0.0, %v2965
      %v2967 = vpop.f32.mrf.mxu0
      %v2968 = vpop.f32.mrf.mxu0
      %v2969 = vadd.f32 0.0, %v2968
      %v2970 = vpop.f32.mrf.mxu0
      %2971 = vmatprep.mubr.bf16.mxu0 0
      %2972 = vmatmul.mubr.bf16.gmra.mxu0 %v2491
      %v2973 = vpop.f32.mrf.mxu0
      %v2974 = vadd.f32 0.0, %v2973
      %v2975 = vpop.f32.mrf.mxu0
      %v2976 = vpop.f32.mrf.mxu0
      %v2977 = vadd.f32 0.0, %v2976
      %v2978 = vpop.f32.mrf.mxu0
      %2979 = vmatprep.mubr.bf16.mxu0 0
      %2980 = vmatmul.mubr.bf16.gmra.mxu0 %v2777
      %v2981 = vpop.f32.mrf.mxu0
      %v2982 = vadd.f32 0.0, %v2981
      %v2983 = vpop.f32.mrf.mxu0
      %v2984 = vpop.f32.mrf.mxu0
      %v2985 = vadd.f32 0.0, %v2984
      %v2986 = vpop.f32.mrf.mxu0
      %2987 = vdwg.mxu0
      %v2988 = vadd.f32 %v2702, %v2862
      %v2989 = vadd.f32 %v2703, %v2865
      %v2990 = vadd.f32 %v2704, %v2870
      %v2991 = vadd.f32 %v2705, %v2873
      %v2992 = vadd.f32 %v2706, %v2878
      %v2993 = vadd.f32 %v2707, %v2881
      %v2994 = vadd.f32 %v2708, %v2886
      %v2995 = vadd.f32 %v2709, %v2889
      %v2996 = vadd.f32 %v2710, %v2894
      %v2997 = vadd.f32 %v2711, %v2897
      %v2998 = vadd.f32 %v2712, %v2902
      %v2999 = vadd.f32 %v2713, %v2905
      %v3000 = vadd.f32 %v2714, %v2910
      %v3001 = vadd.f32 %v2715, %v2913
      %v3002 = vadd.f32 %v2716, %v2918
      %v3003 = vadd.f32 %v2717, %v2921
      %v3004 = vadd.f32 %v2718, %v2926
      %v3005 = vadd.f32 %v2719, %v2929
      %v3006 = vadd.f32 %v2720, %v2934
      %v3007 = vadd.f32 %v2721, %v2937
      %v3008 = vadd.f32 %v2722, %v2942
      %v3009 = vadd.f32 %v2723, %v2945
      %v3010 = vadd.f32 %v2724, %v2950
      %v3011 = vadd.f32 %v2725, %v2953
      %v3012 = vadd.f32 %v2726, %v2958
      %v3013 = vadd.f32 %v2727, %v2961
      %v3014 = vadd.f32 %v2728, %v2966
      %v3015 = vadd.f32 %v2729, %v2969
      %v3016 = vadd.f32 %v2730, %v2974
      %v3017 = vadd.f32 %v2731, %v2977
      %v3018 = vadd.f32 %v2732, %v2982
      %v3019 = vadd.f32 %v2733, %v2985
      %v3020 = vld [vmem:[#allocation3] sm:$0xe]
      %v3021 = vld [vmem:[#allocation3 + $0xc] sm:$0xe]
      %v3022 = vld [vmem:[#allocation3 + $0x18] sm:$0xe]
      %v3023 = vld [vmem:[#allocation3 + $0x24] sm:$0xe]
      %v3024 = vld [vmem:[#allocation3 + $0x30] sm:$0xe]
      %v3025 = vld [vmem:[#allocation3 + $0x3c] sm:$0xe]
      %v3026 = vld [vmem:[#allocation3 + $0x48] sm:$0xe]
      %v3027 = vld [vmem:[#allocation3 + $0x54] sm:$0xe]
      %v3028 = vld [vmem:[#allocation3 + $0x60] sm:$0xe]
      %v3029 = vld [vmem:[#allocation3 + $0x6c] sm:$0xe]
      %v3030 = vld [vmem:[#allocation3 + $0x78] sm:$0xe]
      %v3031 = vld [vmem:[#allocation3 + $0x84] sm:$0xe]
      %v3032 = vld [vmem:[#allocation3 + $0x90] sm:$0xe]
      %v3033 = vld [vmem:[#allocation3 + $0x9c] sm:$0xe]
      %v3034 = vld [vmem:[#allocation3 + $0xa8] sm:$0xe]
      %v3035 = vld [vmem:[#allocation3 + $0xb4] sm:$0xe]
      %v3036 = vld [vmem:[#allocation3 + $0xc0] sm:$0xe]
      %v3037 = vld [vmem:[#allocation3 + $0xcc] sm:$0xe]
      %vm3086 = vcmask 1042432
      %vm3087 = vcmask 1046532
      %vm3088 = vmor %vm3086, %vm3087
      %v3089 = vrot.slane %v3020, 5
      %v3090 = vrot.slane %v3089, 4
      %v3091 = vrot.slane %v1686, 5
      %v3092 = vsel %vm3088, %v3090, %v3091
      %v3093 = vrot.slane %v3091, 4
      %v3094 = vrot.slane %v1687, 5
      %v3095 = vsel %vm3088, %v3093, %v3094
      %v3096 = vrot.slane %v3021, 5
      %v3097 = vrot.slane %v3096, 4
      %v3098 = vrot.slane %v1689, 5
      %v3099 = vsel %vm3088, %v3097, %v3098
      %v3100 = vrot.slane %v3098, 4
      %v3101 = vrot.slane %v1690, 5
      %v3102 = vsel %vm3088, %v3100, %v3101
      %v3103 = vrot.slane %v3022, 5
      %v3104 = vrot.slane %v3103, 4
      %v3105 = vrot.slane %v1692, 5
      %v3106 = vsel %vm3088, %v3104, %v3105
      %v3107 = vrot.slane %v3105, 4
      %v3108 = vrot.slane %v1693, 5
      %v3109 = vsel %vm3088, %v3107, %v3108
      %v3110 = vrot.slane %v3023, 5
      %v3111 = vrot.slane %v3110, 4
      %v3112 = vrot.slane %v1695, 5
      %v3113 = vsel %vm3088, %v3111, %v3112
      %v3114 = vrot.slane %v3112, 4
      %v3115 = vrot.slane %v1696, 5
      %v3116 = vsel %vm3088, %v3114, %v3115
      %v3117 = vrot.slane %v3024, 5
      %v3118 = vrot.slane %v3117, 4
      %v3119 = vrot.slane %v1698, 5
      %v3120 = vsel %vm3088, %v3118, %v3119
      %v3121 = vrot.slane %v3119, 4
      %v3122 = vrot.slane %v1699, 5
      %v3123 = vsel %vm3088, %v3121, %v3122
      %v3124 = vrot.slane %v3025, 5
      %v3125 = vrot.slane %v3124, 4
      %v3126 = vrot.slane %v1701, 5
      %v3127 = vsel %vm3088, %v3125, %v3126
      %v3128 = vrot.slane %v3126, 4
      %v3129 = vrot.slane %v1702, 5
      %v3130 = vsel %vm3088, %v3128, %v3129
      %v3131 = vrot.slane %v3026, 5
      %v3132 = vrot.slane %v3131, 4
      %v3133 = vrot.slane %v1704, 5
      %v3134 = vsel %vm3088, %v3132, %v3133
      %v3135 = vrot.slane %v3133, 4
      %v3136 = vrot.slane %v1705, 5
      %v3137 = vsel %vm3088, %v3135, %v3136
      %v3138 = vrot.slane %v3027, 5
      %v3139 = vrot.slane %v3138, 4
      %v3140 = vrot.slane %v1707, 5
      %v3141 = vsel %vm3088, %v3139, %v3140
      %v3142 = vrot.slane %v3140, 4
      %v3143 = vrot.slane %v1708, 5
      %v3144 = vsel %vm3088, %v3142, %v3143
      %v3145 = vrot.slane %v3028, 5
      %v3146 = vrot.slane %v3145, 4
      %v3147 = vrot.slane %v1710, 5
      %v3148 = vsel %vm3088, %v3146, %v3147
      %v3149 = vrot.slane %v3147, 4
      %v3150 = vrot.slane %v1711, 5
      %v3151 = vsel %vm3088, %v3149, %v3150
      %v3152 = vrot.slane %v3029, 5
      %v3153 = vrot.slane %v3152, 4
      %v3154 = vrot.slane %v1713, 5
      %v3155 = vsel %vm3088, %v3153, %v3154
      %v3156 = vrot.slane %v3154, 4
      %v3157 = vrot.slane %v1714, 5
      %v3158 = vsel %vm3088, %v3156, %v3157
      %v3159 = vrot.slane %v3030, 5
      %v3160 = vrot.slane %v3159, 4
      %v3161 = vrot.slane %v1716, 5
      %v3162 = vsel %vm3088, %v3160, %v3161
      %v3163 = vrot.slane %v3161, 4
      %v3164 = vrot.slane %v1717, 5
      %v3165 = vsel %vm3088, %v3163, %v3164
      %v3166 = vrot.slane %v3031, 5
      %v3167 = vrot.slane %v3166, 4
      %v3168 = vrot.slane %v1719, 5
      %v3169 = vsel %vm3088, %v3167, %v3168
      %v3170 = vrot.slane %v3168, 4
      %v3171 = vrot.slane %v1720, 5
      %v3172 = vsel %vm3088, %v3170, %v3171
      %v3173 = vrot.slane %v3032, 5
      %v3174 = vrot.slane %v3173, 4
      %v3175 = vrot.slane %v1722, 5
      %v3176 = vsel %vm3088, %v3174, %v3175
      %v3177 = vrot.slane %v3175, 4
      %v3178 = vrot.slane %v1723, 5
      %v3179 = vsel %vm3088, %v3177, %v3178
      %v3180 = vrot.slane %v3033, 5
      %v3181 = vrot.slane %v3180, 4
      %v3182 = vrot.slane %v1725, 5
      %v3183 = vsel %vm3088, %v3181, %v3182
      %v3184 = vrot.slane %v3182, 4
      %v3185 = vrot.slane %v1726, 5
      %v3186 = vsel %vm3088, %v3184, %v3185
      %v3187 = vrot.slane %v3034, 5
      %v3188 = vrot.slane %v3187, 4
      %v3189 = vrot.slane %v1728, 5
      %v3190 = vsel %vm3088, %v3188, %v3189
      %v3191 = vrot.slane %v3189, 4
      %v3192 = vrot.slane %v1729, 5
      %v3193 = vsel %vm3088, %v3191, %v3192
      %v3194 = vrot.slane %v3035, 5
      %v3195 = vrot.slane %v3194, 4
      %v3196 = vrot.slane %v1731, 5
      %v3197 = vsel %vm3088, %v3195, %v3196
      %v3198 = vrot.slane %v3196, 4
      %v3199 = vrot.slane %v1732, 5
      %v3200 = vsel %vm3088, %v3198, %v3199
      %s3201 = scalar_lea.vmem %s3, 128
      %v3202 = vld [vmem:[%s3201] sm:$0xf]
      %v3203 = vld [vmem:[%s3201 + $0x4] sm:$0xf]
      %v3204 = vld [vmem:[%s3201 + $0x8] sm:$0xf]
      %v3205 = vld [vmem:[%s3201 + $0xc] sm:$0xf]
      %v3206 = vld [vmem:[%s3201 + $0x10] sm:$0xf]
      %v3207 = vld [vmem:[%s3201 + $0x14] sm:$0xf]
      %v3208 = vld [vmem:[%s3201 + $0x18] sm:$0xf]
      %v3209 = vld [vmem:[%s3201 + $0x1c] sm:$0xf]
      %v3210 = vld [vmem:[%s3201 + $0x20] sm:$0xf]
      %v3211 = vld [vmem:[%s3201 + $0x24] sm:$0xf]
      %v3212 = vld [vmem:[%s3201 + $0x28] sm:$0xf]
      %v3213 = vld [vmem:[%s3201 + $0x2c] sm:$0xf]
      %v3214 = vld [vmem:[%s3201 + $0x30] sm:$0xf]
      %v3215 = vld [vmem:[%s3201 + $0x34] sm:$0xf]
      %v3216 = vld [vmem:[%s3201 + $0x38] sm:$0xf]
      %v3217 = vld [vmem:[%s3201 + $0x3c] sm:$0xf]
      %v3218 = vunpack.c.l.b16 %v3092
      %v3219 = vunpack.c.l.b16 %v3095
      %v3220 = vunpack.c.l.b16 %v3099
      %v3221 = vunpack.c.l.b16 %v3102
      %v3222 = vunpack.c.l.b16 %v3106
      %v3223 = vunpack.c.l.b16 %v3109
      %v3224 = vunpack.c.l.b16 %v3113
      %v3225 = vunpack.c.l.b16 %v3116
      %v3226 = vunpack.c.l.b16 %v3120
      %v3227 = vunpack.c.l.b16 %v3123
      %v3228 = vunpack.c.l.b16 %v3127
      %v3229 = vunpack.c.l.b16 %v3130
      %v3230 = vunpack.c.l.b16 %v3134
      %v3231 = vunpack.c.l.b16 %v3137
      %v3232 = vunpack.c.l.b16 %v3141
      %v3233 = vunpack.c.l.b16 %v3144
      %v3234 = vunpack.c.l.b16 %v3148
      %v3235 = vunpack.c.l.b16 %v3151
      %v3236 = vunpack.c.l.b16 %v3155
      %v3237 = vunpack.c.l.b16 %v3158
      %v3238 = vunpack.c.l.b16 %v3162
      %v3239 = vunpack.c.l.b16 %v3165
      %v3240 = vunpack.c.l.b16 %v3169
      %v3241 = vunpack.c.l.b16 %v3172
      %v3242 = vunpack.c.l.b16 %v3176
      %v3243 = vunpack.c.l.b16 %v3179
      %v3244 = vunpack.c.l.b16 %v3183
      %v3245 = vunpack.c.l.b16 %v3186
      %v3246 = vunpack.c.l.b16 %v3190
      %v3247 = vunpack.c.l.b16 %v3193
      %v3248 = vunpack.c.l.b16 %v3197
      %v3249 = vunpack.c.l.b16 %v3200
      %v3250 = vpack.c.b16 %v3219, %v3218
      %v3251 = vpack.c.b16 %v3221, %v3220
      %v3252 = vpack.c.b16 %v3223, %v3222
      %v3253 = vpack.c.b16 %v3225, %v3224
      %v3254 = vpack.c.b16 %v3227, %v3226
      %v3255 = vpack.c.b16 %v3229, %v3228
      %v3256 = vpack.c.b16 %v3231, %v3230
      %v3257 = vpack.c.b16 %v3233, %v3232
      %v3258 = vpack.c.b16 %v3235, %v3234
      %v3259 = vpack.c.b16 %v3237, %v3236
      %v3260 = vpack.c.b16 %v3239, %v3238
      %v3261 = vpack.c.b16 %v3241, %v3240
      %v3262 = vpack.c.b16 %v3243, %v3242
      %v3263 = vpack.c.b16 %v3245, %v3244
      %v3264 = vpack.c.b16 %v3247, %v3246
      %v3265 = vpack.c.b16 %v3249, %v3248
      %v3298 = vunpack.c.l.b16 %v3202
      %v3299 = vunpack.c.l.b16 %v3203
      %v3300 = vunpack.c.l.b16 %v3204
      %v3301 = vunpack.c.l.b16 %v3205
      %v3302 = vunpack.c.l.b16 %v3206
      %v3303 = vunpack.c.l.b16 %v3207
      %v3304 = vunpack.c.l.b16 %v3208
      %v3305 = vunpack.c.l.b16 %v3209
      %v3306 = vunpack.c.l.b16 %v3210
      %v3307 = vunpack.c.l.b16 %v3211
      %v3308 = vunpack.c.l.b16 %v3212
      %v3309 = vunpack.c.l.b16 %v3213
      %v3310 = vunpack.c.l.b16 %v3214
      %v3311 = vunpack.c.l.b16 %v3215
      %v3312 = vunpack.c.l.b16 %v3216
      %v3313 = vunpack.c.l.b16 %v3217
      %v3314 = vpack.c.b16 %v3299, %v3298
      %v3315 = vpack.c.b16 %v3301, %v3300
      %v3316 = vpack.c.b16 %v3303, %v3302
      %v3317 = vpack.c.b16 %v3305, %v3304
      %v3318 = vpack.c.b16 %v3307, %v3306
      %v3319 = vpack.c.b16 %v3309, %v3308
      %v3320 = vpack.c.b16 %v3311, %v3310
      %v3321 = vpack.c.b16 %v3313, %v3312
      %3330 = vmatprep.subr.bf16.mxu0 0
      %3331 = vmatpush1.bf16.msra.mxu0 %v3321
      %3332 = vmatprep.subr.bf16.mxu0 0
      %3333 = vmatpush1.bf16.msra.mxu0 %v3320
      %3334 = vmatprep.subr.bf16.mxu0 0
      %3335 = vmatpush1.bf16.msra.mxu0 %v3319
      %3336 = vmatprep.subr.bf16.mxu0 0
      %3337 = vmatpush1.bf16.msra.mxu0 %v3318
      %3338 = vmatprep.subr.bf16.mxu0 0
      %3339 = vmatpush1.bf16.msra.mxu0 %v3317
      %3340 = vmatprep.subr.bf16.mxu0 0
      %3341 = vmatpush1.bf16.msra.mxu0 %v3316
      %3342 = vmatprep.subr.bf16.mxu0 0
      %3343 = vmatpush1.bf16.msra.mxu0 %v3315
      %3344 = vmatprep.subr.bf16.mxu0 0
      %3345 = vmatpush1.bf16.msra.mxu0 %v3314
      %3346 = vmatprep.subr.bf16.mxu0 0
      %3347 = vmatpush2.bf16.msra.mxu0 0
      %3348 = vmatprep.subr.bf16.mxu0 0
      %3349 = vmatpush2.bf16.msra.mxu0 0
      %3350 = vmatprep.subr.bf16.mxu0 0
      %3351 = vmatpush2.bf16.msra.mxu0 0
      %3352 = vmatprep.subr.bf16.mxu0 0
      %3353 = vmatpush2.bf16.msra.mxu0 0
      %3354 = vmatprep.subr.bf16.mxu0 0
      %3355 = vmatpush2.bf16.msra.mxu0 0
      %3356 = vmatprep.subr.bf16.mxu0 0
      %3357 = vmatpush2.bf16.msra.mxu0 0
      %3358 = vmatprep.subr.bf16.mxu0 0
      %3359 = vmatpush2.bf16.msra.mxu0 0
      %3360 = vmatprep.subr.bf16.mxu0 0
      %3361 = vmatpush2.bf16.msra.mxu0 0
      %3362 = vmatprep.mubr.bf16.mxu0 0
      %3363 = vmatmul.mubr.bf16.gmra.mxu0 %v3250
      %v3364 = vpop.f32.mrf.mxu0
      %v3365 = vadd.f32 0.0, %v3364
      %v3366 = vpop.f32.mrf.mxu0
      %v3367 = vpop.f32.mrf.mxu0
      %v3368 = vadd.f32 0.0, %v3367
      %v3369 = vpop.f32.mrf.mxu0
      %3370 = vmatprep.mubr.bf16.mxu0 0
      %3371 = vmatmul.mubr.bf16.gmra.mxu0 %v3251
      %v3372 = vpop.f32.mrf.mxu0
      %v3373 = vadd.f32 0.0, %v3372
      %v3374 = vpop.f32.mrf.mxu0
      %v3375 = vpop.f32.mrf.mxu0
      %v3376 = vadd.f32 0.0, %v3375
      %v3377 = vpop.f32.mrf.mxu0
      %3378 = vmatprep.mubr.bf16.mxu0 0
      %3379 = vmatmul.mubr.bf16.gmra.mxu0 %v3252
      %v3380 = vpop.f32.mrf.mxu0
      %v3381 = vadd.f32 0.0, %v3380
      %v3382 = vpop.f32.mrf.mxu0
      %v3383 = vpop.f32.mrf.mxu0
      %v3384 = vadd.f32 0.0, %v3383
      %v3385 = vpop.f32.mrf.mxu0
      %3386 = vmatprep.mubr.bf16.mxu0 0
      %3387 = vmatmul.mubr.bf16.gmra.mxu0 %v3253
      %v3388 = vpop.f32.mrf.mxu0
      %v3389 = vadd.f32 0.0, %v3388
      %v3390 = vpop.f32.mrf.mxu0
      %v3391 = vpop.f32.mrf.mxu0
      %v3392 = vadd.f32 0.0, %v3391
      %v3393 = vpop.f32.mrf.mxu0
      %3394 = vmatprep.mubr.bf16.mxu0 0
      %3395 = vmatmul.mubr.bf16.gmra.mxu0 %v3254
      %v3396 = vpop.f32.mrf.mxu0
      %v3397 = vadd.f32 0.0, %v3396
      %v3398 = vpop.f32.mrf.mxu0
      %v3399 = vpop.f32.mrf.mxu0
      %v3400 = vadd.f32 0.0, %v3399
      %v3401 = vpop.f32.mrf.mxu0
      %3402 = vmatprep.mubr.bf16.mxu0 0
      %3403 = vmatmul.mubr.bf16.gmra.mxu0 %v3255
      %v3404 = vpop.f32.mrf.mxu0
      %v3405 = vadd.f32 0.0, %v3404
      %v3406 = vpop.f32.mrf.mxu0
      %v3407 = vpop.f32.mrf.mxu0
      %v3408 = vadd.f32 0.0, %v3407
      %v3409 = vpop.f32.mrf.mxu0
      %3410 = vmatprep.mubr.bf16.mxu0 0
      %3411 = vmatmul.mubr.bf16.gmra.mxu0 %v3256
      %v3412 = vpop.f32.mrf.mxu0
      %v3413 = vadd.f32 0.0, %v3412
      %v3414 = vpop.f32.mrf.mxu0
      %v3415 = vpop.f32.mrf.mxu0
      %v3416 = vadd.f32 0.0, %v3415
      %v3417 = vpop.f32.mrf.mxu0
      %3418 = vmatprep.mubr.bf16.mxu0 0
      %3419 = vmatmul.mubr.bf16.gmra.mxu0 %v3257
      %v3420 = vpop.f32.mrf.mxu0
      %v3421 = vadd.f32 0.0, %v3420
      %v3422 = vpop.f32.mrf.mxu0
      %v3423 = vpop.f32.mrf.mxu0
      %v3424 = vadd.f32 0.0, %v3423
      %v3425 = vpop.f32.mrf.mxu0
      %3426 = vmatprep.mubr.bf16.mxu0 0
      %3427 = vmatmul.mubr.bf16.gmra.mxu0 %v3258
      %v3428 = vpop.f32.mrf.mxu0
      %v3429 = vadd.f32 0.0, %v3428
      %v3430 = vpop.f32.mrf.mxu0
      %v3431 = vpop.f32.mrf.mxu0
      %v3432 = vadd.f32 0.0, %v3431
      %v3433 = vpop.f32.mrf.mxu0
      %3434 = vmatprep.mubr.bf16.mxu0 0
      %3435 = vmatmul.mubr.bf16.gmra.mxu0 %v3259
      %v3436 = vpop.f32.mrf.mxu0
      %v3437 = vadd.f32 0.0, %v3436
      %v3438 = vpop.f32.mrf.mxu0
      %v3439 = vpop.f32.mrf.mxu0
      %v3440 = vadd.f32 0.0, %v3439
      %v3441 = vpop.f32.mrf.mxu0
      %3442 = vmatprep.mubr.bf16.mxu0 0
      %3443 = vmatmul.mubr.bf16.gmra.mxu0 %v3260
      %v3444 = vpop.f32.mrf.mxu0
      %v3445 = vadd.f32 0.0, %v3444
      %v3446 = vpop.f32.mrf.mxu0
      %v3447 = vpop.f32.mrf.mxu0
      %v3448 = vadd.f32 0.0, %v3447
      %v3449 = vpop.f32.mrf.mxu0
      %3450 = vmatprep.mubr.bf16.mxu0 0
      %3451 = vmatmul.mubr.bf16.gmra.mxu0 %v3261
      %v3452 = vpop.f32.mrf.mxu0
      %v3453 = vadd.f32 0.0, %v3452
      %v3454 = vpop.f32.mrf.mxu0
      %v3455 = vpop.f32.mrf.mxu0
      %v3456 = vadd.f32 0.0, %v3455
      %v3457 = vpop.f32.mrf.mxu0
      %3458 = vmatprep.mubr.bf16.mxu0 0
      %3459 = vmatmul.mubr.bf16.gmra.mxu0 %v3262
      %v3460 = vpop.f32.mrf.mxu0
      %v3461 = vadd.f32 0.0, %v3460
      %v3462 = vpop.f32.mrf.mxu0
      %v3463 = vpop.f32.mrf.mxu0
      %v3464 = vadd.f32 0.0, %v3463
      %v3465 = vpop.f32.mrf.mxu0
      %3466 = vmatprep.mubr.bf16.mxu0 0
      %3467 = vmatmul.mubr.bf16.gmra.mxu0 %v3263
      %v3468 = vpop.f32.mrf.mxu0
      %v3469 = vadd.f32 0.0, %v3468
      %v3470 = vpop.f32.mrf.mxu0
      %v3471 = vpop.f32.mrf.mxu0
      %v3472 = vadd.f32 0.0, %v3471
      %v3473 = vpop.f32.mrf.mxu0
      %3474 = vmatprep.mubr.bf16.mxu0 0
      %3475 = vmatmul.mubr.bf16.gmra.mxu0 %v3264
      %v3476 = vpop.f32.mrf.mxu0
      %v3477 = vadd.f32 0.0, %v3476
      %v3478 = vpop.f32.mrf.mxu0
      %v3479 = vpop.f32.mrf.mxu0
      %v3480 = vadd.f32 0.0, %v3479
      %v3481 = vpop.f32.mrf.mxu0
      %3482 = vmatprep.mubr.bf16.mxu0 0
      %3483 = vmatmul.mubr.bf16.gmra.mxu0 %v3265
      %v3484 = vpop.f32.mrf.mxu0
      %v3485 = vadd.f32 0.0, %v3484
      %v3486 = vpop.f32.mrf.mxu0
      %v3487 = vpop.f32.mrf.mxu0
      %v3488 = vadd.f32 0.0, %v3487
      %v3489 = vpop.f32.mrf.mxu0
      %3490 = vdwg.mxu0
      %v3491 = vadd.f32 %v2988, %v3365
      %v3492 = vadd.f32 %v2989, %v3368
      %v3493 = vadd.f32 %v2990, %v3373
      %v3494 = vadd.f32 %v2991, %v3376
      %v3495 = vadd.f32 %v2992, %v3381
      %v3496 = vadd.f32 %v2993, %v3384
      %v3497 = vadd.f32 %v2994, %v3389
      %v3498 = vadd.f32 %v2995, %v3392
      %v3499 = vadd.f32 %v2996, %v3397
      %v3500 = vadd.f32 %v2997, %v3400
      %v3501 = vadd.f32 %v2998, %v3405
      %v3502 = vadd.f32 %v2999, %v3408
      %v3503 = vadd.f32 %v3000, %v3413
      %v3504 = vadd.f32 %v3001, %v3416
      %v3505 = vadd.f32 %v3002, %v3421
      %v3506 = vadd.f32 %v3003, %v3424
      %v3507 = vadd.f32 %v3004, %v3429
      %v3508 = vadd.f32 %v3005, %v3432
      %v3509 = vadd.f32 %v3006, %v3437
      %v3510 = vadd.f32 %v3007, %v3440
      %v3511 = vadd.f32 %v3008, %v3445
      %v3512 = vadd.f32 %v3009, %v3448
      %v3513 = vadd.f32 %v3010, %v3453
      %v3514 = vadd.f32 %v3011, %v3456
      %v3515 = vadd.f32 %v3012, %v3461
      %v3516 = vadd.f32 %v3013, %v3464
      %v3517 = vadd.f32 %v3014, %v3469
      %v3518 = vadd.f32 %v3015, %v3472
      %v3519 = vadd.f32 %v3016, %v3477
      %v3520 = vadd.f32 %v3017, %v3480
      %v3521 = vadd.f32 %v3018, %v3485
      %v3522 = vadd.f32 %v3019, %v3488
      %v3526 = vrot.slane %v3036, 5
      %v3527 = vrot.slane %v3526, 4
      %v3528 = vrot.slane %v1734, 5
      %v3529 = vsel %vm3088, %v3527, %v3528
      %v3530 = vrot.slane %v3528, 4
      %v3531 = vrot.slane %v1735, 5
      %v3532 = vsel %vm3088, %v3530, %v3531
      %s3533 = scalar_lea.vmem %s3, 320
      %v3534 = vld [vmem:[%s3533] sm:$0xf]
      %v3535 = vld [vmem:[%s3533 + $0x4] sm:$0xf]
      %v3536 = vld [vmem:[%s3533 + $0x8] sm:$0xf]
      %v3537 = vld [vmem:[%s3533 + $0xc] sm:$0xf]
      %v3538 = vld [vmem:[%s3533 + $0x10] sm:$0xf]
      %v3539 = vld [vmem:[%s3533 + $0x14] sm:$0xf]
      %v3540 = vld [vmem:[%s3533 + $0x18] sm:$0xf]
      %v3541 = vld [vmem:[%s3533 + $0x1c] sm:$0xf]
      %v3542 = vld [vmem:[%s3533 + $0x20] sm:$0xf]
      %v3543 = vld [vmem:[%s3533 + $0x24] sm:$0xf]
      %v3544 = vld [vmem:[%s3533 + $0x28] sm:$0xf]
      %v3545 = vld [vmem:[%s3533 + $0x2c] sm:$0xf]
      %v3546 = vld [vmem:[%s3533 + $0x30] sm:$0xf]
      %v3547 = vld [vmem:[%s3533 + $0x34] sm:$0xf]
      %v3548 = vld [vmem:[%s3533 + $0x38] sm:$0xf]
      %v3549 = vld [vmem:[%s3533 + $0x3c] sm:$0xf]
      %v3550 = vunpack.c.l.b16 %v3529
      %v3551 = vunpack.c.l.b16 %v3532
      %v3552 = vpack.c.b16 %v3551, %v3550
      %v3570 = vunpack.c.l.b16 %v3534
      %v3571 = vunpack.c.l.b16 %v3535
      %v3572 = vunpack.c.l.b16 %v3536
      %v3573 = vunpack.c.l.b16 %v3537
      %v3574 = vunpack.c.l.b16 %v3538
      %v3575 = vunpack.c.l.b16 %v3539
      %v3576 = vunpack.c.l.b16 %v3540
      %v3577 = vunpack.c.l.b16 %v3541
      %v3578 = vunpack.c.l.b16 %v3542
      %v3579 = vunpack.c.l.b16 %v3543
      %v3580 = vunpack.c.l.b16 %v3544
      %v3581 = vunpack.c.l.b16 %v3545
      %v3582 = vunpack.c.l.b16 %v3546
      %v3583 = vunpack.c.l.b16 %v3547
      %v3584 = vunpack.c.l.b16 %v3548
      %v3585 = vunpack.c.l.b16 %v3549
      %v3586 = vpack.c.b16 %v3571, %v3570
      %v3587 = vpack.c.b16 %v3573, %v3572
      %v3588 = vpack.c.b16 %v3575, %v3574
      %v3589 = vpack.c.b16 %v3577, %v3576
      %v3590 = vpack.c.b16 %v3579, %v3578
      %v3591 = vpack.c.b16 %v3581, %v3580
      %v3592 = vpack.c.b16 %v3583, %v3582
      %v3593 = vpack.c.b16 %v3585, %v3584
      %3602 = vmatprep.subr.bf16.mxu0 0
      %3603 = vmatpush1.bf16.msra.mxu0 %v3593
      %3604 = vmatprep.subr.bf16.mxu0 0
      %3605 = vmatpush1.bf16.msra.mxu0 %v3592
      %3606 = vmatprep.subr.bf16.mxu0 0
      %3607 = vmatpush1.bf16.msra.mxu0 %v3591
      %3608 = vmatprep.subr.bf16.mxu0 0
      %3609 = vmatpush1.bf16.msra.mxu0 %v3590
      %3610 = vmatprep.subr.bf16.mxu0 0
      %3611 = vmatpush1.bf16.msra.mxu0 %v3589
      %3612 = vmatprep.subr.bf16.mxu0 0
      %3613 = vmatpush1.bf16.msra.mxu0 %v3588
      %3614 = vmatprep.subr.bf16.mxu0 0
      %3615 = vmatpush1.bf16.msra.mxu0 %v3587
      %3616 = vmatprep.subr.bf16.mxu0 0
      %3617 = vmatpush1.bf16.msra.mxu0 %v3586
      %3618 = vmatprep.subr.bf16.mxu0 0
      %3619 = vmatpush2.bf16.msra.mxu0 0
      %3620 = vmatprep.subr.bf16.mxu0 0
      %3621 = vmatpush2.bf16.msra.mxu0 0
      %3622 = vmatprep.subr.bf16.mxu0 0
      %3623 = vmatpush2.bf16.msra.mxu0 0
      %3624 = vmatprep.subr.bf16.mxu0 0
      %3625 = vmatpush2.bf16.msra.mxu0 0
      %3626 = vmatprep.subr.bf16.mxu0 0
      %3627 = vmatpush2.bf16.msra.mxu0 0
      %3628 = vmatprep.subr.bf16.mxu0 0
      %3629 = vmatpush2.bf16.msra.mxu0 0
      %3630 = vmatprep.subr.bf16.mxu0 0
      %3631 = vmatpush2.bf16.msra.mxu0 0
      %3632 = vmatprep.subr.bf16.mxu0 0
      %3633 = vmatpush2.bf16.msra.mxu0 0
      %3634 = vmatprep.mubr.bf16.mxu0 0
      %3635 = vmatmul.mubr.bf16.gmra.mxu0 %v3251
      %v3636 = vpop.f32.mrf.mxu0
      %v3637 = vadd.f32 0.0, %v3636
      %v3638 = vpop.f32.mrf.mxu0
      %v3639 = vpop.f32.mrf.mxu0
      %v3640 = vadd.f32 0.0, %v3639
      %v3641 = vpop.f32.mrf.mxu0
      %3642 = vmatprep.mubr.bf16.mxu0 0
      %3643 = vmatmul.mubr.bf16.gmra.mxu0 %v3252
      %v3644 = vpop.f32.mrf.mxu0
      %v3645 = vadd.f32 0.0, %v3644
      %v3646 = vpop.f32.mrf.mxu0
      %v3647 = vpop.f32.mrf.mxu0
      %v3648 = vadd.f32 0.0, %v3647
      %v3649 = vpop.f32.mrf.mxu0
      %3650 = vmatprep.mubr.bf16.mxu0 0
      %3651 = vmatmul.mubr.bf16.gmra.mxu0 %v3253
      %v3652 = vpop.f32.mrf.mxu0
      %v3653 = vadd.f32 0.0, %v3652
      %v3654 = vpop.f32.mrf.mxu0
      %v3655 = vpop.f32.mrf.mxu0
      %v3656 = vadd.f32 0.0, %v3655
      %v3657 = vpop.f32.mrf.mxu0
      %3658 = vmatprep.mubr.bf16.mxu0 0
      %3659 = vmatmul.mubr.bf16.gmra.mxu0 %v3254
      %v3660 = vpop.f32.mrf.mxu0
      %v3661 = vadd.f32 0.0, %v3660
      %v3662 = vpop.f32.mrf.mxu0
      %v3663 = vpop.f32.mrf.mxu0
      %v3664 = vadd.f32 0.0, %v3663
      %v3665 = vpop.f32.mrf.mxu0
      %3666 = vmatprep.mubr.bf16.mxu0 0
      %3667 = vmatmul.mubr.bf16.gmra.mxu0 %v3255
      %v3668 = vpop.f32.mrf.mxu0
      %v3669 = vadd.f32 0.0, %v3668
      %v3670 = vpop.f32.mrf.mxu0
      %v3671 = vpop.f32.mrf.mxu0
      %v3672 = vadd.f32 0.0, %v3671
      %v3673 = vpop.f32.mrf.mxu0
      %3674 = vmatprep.mubr.bf16.mxu0 0
      %3675 = vmatmul.mubr.bf16.gmra.mxu0 %v3256
      %v3676 = vpop.f32.mrf.mxu0
      %v3677 = vadd.f32 0.0, %v3676
      %v3678 = vpop.f32.mrf.mxu0
      %v3679 = vpop.f32.mrf.mxu0
      %v3680 = vadd.f32 0.0, %v3679
      %v3681 = vpop.f32.mrf.mxu0
      %3682 = vmatprep.mubr.bf16.mxu0 0
      %3683 = vmatmul.mubr.bf16.gmra.mxu0 %v3257
      %v3684 = vpop.f32.mrf.mxu0
      %v3685 = vadd.f32 0.0, %v3684
      %v3686 = vpop.f32.mrf.mxu0
      %v3687 = vpop.f32.mrf.mxu0
      %v3688 = vadd.f32 0.0, %v3687
      %v3689 = vpop.f32.mrf.mxu0
      %3690 = vmatprep.mubr.bf16.mxu0 0
      %3691 = vmatmul.mubr.bf16.gmra.mxu0 %v3258
      %v3692 = vpop.f32.mrf.mxu0
      %v3693 = vadd.f32 0.0, %v3692
      %v3694 = vpop.f32.mrf.mxu0
      %v3695 = vpop.f32.mrf.mxu0
      %v3696 = vadd.f32 0.0, %v3695
      %v3697 = vpop.f32.mrf.mxu0
      %3698 = vmatprep.mubr.bf16.mxu0 0
      %3699 = vmatmul.mubr.bf16.gmra.mxu0 %v3259
      %v3700 = vpop.f32.mrf.mxu0
      %v3701 = vadd.f32 0.0, %v3700
      %v3702 = vpop.f32.mrf.mxu0
      %v3703 = vpop.f32.mrf.mxu0
      %v3704 = vadd.f32 0.0, %v3703
      %v3705 = vpop.f32.mrf.mxu0
      %3706 = vmatprep.mubr.bf16.mxu0 0
      %3707 = vmatmul.mubr.bf16.gmra.mxu0 %v3260
      %v3708 = vpop.f32.mrf.mxu0
      %v3709 = vadd.f32 0.0, %v3708
      %v3710 = vpop.f32.mrf.mxu0
      %v3711 = vpop.f32.mrf.mxu0
      %v3712 = vadd.f32 0.0, %v3711
      %v3713 = vpop.f32.mrf.mxu0
      %3714 = vmatprep.mubr.bf16.mxu0 0
      %3715 = vmatmul.mubr.bf16.gmra.mxu0 %v3261
      %v3716 = vpop.f32.mrf.mxu0
      %v3717 = vadd.f32 0.0, %v3716
      %v3718 = vpop.f32.mrf.mxu0
      %v3719 = vpop.f32.mrf.mxu0
      %v3720 = vadd.f32 0.0, %v3719
      %v3721 = vpop.f32.mrf.mxu0
      %3722 = vmatprep.mubr.bf16.mxu0 0
      %3723 = vmatmul.mubr.bf16.gmra.mxu0 %v3262
      %v3724 = vpop.f32.mrf.mxu0
      %v3725 = vadd.f32 0.0, %v3724
      %v3726 = vpop.f32.mrf.mxu0
      %v3727 = vpop.f32.mrf.mxu0
      %v3728 = vadd.f32 0.0, %v3727
      %v3729 = vpop.f32.mrf.mxu0
      %3730 = vmatprep.mubr.bf16.mxu0 0
      %3731 = vmatmul.mubr.bf16.gmra.mxu0 %v3263
      %v3732 = vpop.f32.mrf.mxu0
      %v3733 = vadd.f32 0.0, %v3732
      %v3734 = vpop.f32.mrf.mxu0
      %v3735 = vpop.f32.mrf.mxu0
      %v3736 = vadd.f32 0.0, %v3735
      %v3737 = vpop.f32.mrf.mxu0
      %3738 = vmatprep.mubr.bf16.mxu0 0
      %3739 = vmatmul.mubr.bf16.gmra.mxu0 %v3264
      %v3740 = vpop.f32.mrf.mxu0
      %v3741 = vadd.f32 0.0, %v3740
      %v3742 = vpop.f32.mrf.mxu0
      %v3743 = vpop.f32.mrf.mxu0
      %v3744 = vadd.f32 0.0, %v3743
      %v3745 = vpop.f32.mrf.mxu0
      %3746 = vmatprep.mubr.bf16.mxu0 0
      %3747 = vmatmul.mubr.bf16.gmra.mxu0 %v3265
      %v3748 = vpop.f32.mrf.mxu0
      %v3749 = vadd.f32 0.0, %v3748
      %v3750 = vpop.f32.mrf.mxu0
      %v3751 = vpop.f32.mrf.mxu0
      %v3752 = vadd.f32 0.0, %v3751
      %v3753 = vpop.f32.mrf.mxu0
      %3754 = vmatprep.mubr.bf16.mxu0 0
      %3755 = vmatmul.mubr.bf16.gmra.mxu0 %v3552
      %v3756 = vpop.f32.mrf.mxu0
      %v3757 = vadd.f32 0.0, %v3756
      %v3758 = vpop.f32.mrf.mxu0
      %v3759 = vpop.f32.mrf.mxu0
      %v3760 = vadd.f32 0.0, %v3759
      %v3761 = vpop.f32.mrf.mxu0
      %3762 = vdwg.mxu0
      %v3763 = vadd.f32 %v3491, %v3637
      %v3764 = vadd.f32 %v3492, %v3640
      %v3765 = vadd.f32 %v3493, %v3645
      %v3766 = vadd.f32 %v3494, %v3648
      %v3767 = vadd.f32 %v3495, %v3653
      %v3768 = vadd.f32 %v3496, %v3656
      %v3769 = vadd.f32 %v3497, %v3661
      %v3770 = vadd.f32 %v3498, %v3664
      %v3771 = vadd.f32 %v3499, %v3669
      %v3772 = vadd.f32 %v3500, %v3672
      %v3773 = vadd.f32 %v3501, %v3677
      %v3774 = vadd.f32 %v3502, %v3680
      %v3775 = vadd.f32 %v3503, %v3685
      %v3776 = vadd.f32 %v3504, %v3688
      %v3777 = vadd.f32 %v3505, %v3693
      %v3778 = vadd.f32 %v3506, %v3696
      %v3779 = vadd.f32 %v3507, %v3701
      %v3780 = vadd.f32 %v3508, %v3704
      %v3781 = vadd.f32 %v3509, %v3709
      %v3782 = vadd.f32 %v3510, %v3712
      %v3783 = vadd.f32 %v3511, %v3717
      %v3784 = vadd.f32 %v3512, %v3720
      %v3785 = vadd.f32 %v3513, %v3725
      %v3786 = vadd.f32 %v3514, %v3728
      %v3787 = vadd.f32 %v3515, %v3733
      %v3788 = vadd.f32 %v3516, %v3736
      %v3789 = vadd.f32 %v3517, %v3741
      %v3790 = vadd.f32 %v3518, %v3744
      %v3791 = vadd.f32 %v3519, %v3749
      %v3792 = vadd.f32 %v3520, %v3752
      %v3793 = vadd.f32 %v3521, %v3757
      %v3794 = vadd.f32 %v3522, %v3760
      %v3798 = vrot.slane %v3037, 5
      %v3799 = vrot.slane %v3798, 4
      %v3800 = vrot.slane %v1737, 5
      %v3801 = vsel %vm3088, %v3799, %v3800
      %v3802 = vrot.slane %v3800, 4
      %v3803 = vrot.slane %v1738, 5
      %v3804 = vsel %vm3088, %v3802, %v3803
      %s3805 = scalar_lea.vmem %s3, 512
      %v3806 = vld [vmem:[%s3805] sm:$0xf]
      %v3807 = vld [vmem:[%s3805 + $0x4] sm:$0xf]
      %v3808 = vld [vmem:[%s3805 + $0x8] sm:$0xf]
      %v3809 = vld [vmem:[%s3805 + $0xc] sm:$0xf]
      %v3810 = vld [vmem:[%s3805 + $0x10] sm:$0xf]
      %v3811 = vld [vmem:[%s3805 + $0x14] sm:$0xf]
      %v3812 = vld [vmem:[%s3805 + $0x18] sm:$0xf]
      %v3813 = vld [vmem:[%s3805 + $0x1c] sm:$0xf]
      %v3814 = vld [vmem:[%s3805 + $0x20] sm:$0xf]
      %v3815 = vld [vmem:[%s3805 + $0x24] sm:$0xf]
      %v3816 = vld [vmem:[%s3805 + $0x28] sm:$0xf]
      %v3817 = vld [vmem:[%s3805 + $0x2c] sm:$0xf]
      %v3818 = vld [vmem:[%s3805 + $0x30] sm:$0xf]
      %v3819 = vld [vmem:[%s3805 + $0x34] sm:$0xf]
      %v3820 = vld [vmem:[%s3805 + $0x38] sm:$0xf]
      %v3821 = vld [vmem:[%s3805 + $0x3c] sm:$0xf]
      %v3822 = vunpack.c.l.b16 %v3801
      %v3823 = vunpack.c.l.b16 %v3804
      %v3824 = vpack.c.b16 %v3823, %v3822
      %v3842 = vunpack.c.l.b16 %v3806
      %v3843 = vunpack.c.l.b16 %v3807
      %v3844 = vunpack.c.l.b16 %v3808
      %v3845 = vunpack.c.l.b16 %v3809
      %v3846 = vunpack.c.l.b16 %v3810
      %v3847 = vunpack.c.l.b16 %v3811
      %v3848 = vunpack.c.l.b16 %v3812
      %v3849 = vunpack.c.l.b16 %v3813
      %v3850 = vunpack.c.l.b16 %v3814
      %v3851 = vunpack.c.l.b16 %v3815
      %v3852 = vunpack.c.l.b16 %v3816
      %v3853 = vunpack.c.l.b16 %v3817
      %v3854 = vunpack.c.l.b16 %v3818
      %v3855 = vunpack.c.l.b16 %v3819
      %v3856 = vunpack.c.l.b16 %v3820
      %v3857 = vunpack.c.l.b16 %v3821
      %v3858 = vpack.c.b16 %v3843, %v3842
      %v3859 = vpack.c.b16 %v3845, %v3844
      %v3860 = vpack.c.b16 %v3847, %v3846
      %v3861 = vpack.c.b16 %v3849, %v3848
      %v3862 = vpack.c.b16 %v3851, %v3850
      %v3863 = vpack.c.b16 %v3853, %v3852
      %v3864 = vpack.c.b16 %v3855, %v3854
      %v3865 = vpack.c.b16 %v3857, %v3856
      %3874 = vmatprep.subr.bf16.mxu0 0
      %3875 = vmatpush1.bf16.msra.mxu0 %v3865
      %3876 = vmatprep.subr.bf16.mxu0 0
      %3877 = vmatpush1.bf16.msra.mxu0 %v3864
      %3878 = vmatprep.subr.bf16.mxu0 0
      %3879 = vmatpush1.bf16.msra.mxu0 %v3863
      %3880 = vmatprep.subr.bf16.mxu0 0
      %3881 = vmatpush1.bf16.msra.mxu0 %v3862
      %3882 = vmatprep.subr.bf16.mxu0 0
      %3883 = vmatpush1.bf16.msra.mxu0 %v3861
      %3884 = vmatprep.subr.bf16.mxu0 0
      %3885 = vmatpush1.bf16.msra.mxu0 %v3860
      %3886 = vmatprep.subr.bf16.mxu0 0
      %3887 = vmatpush1.bf16.msra.mxu0 %v3859
      %3888 = vmatprep.subr.bf16.mxu0 0
      %3889 = vmatpush1.bf16.msra.mxu0 %v3858
      %3890 = vmatprep.subr.bf16.mxu0 0
      %3891 = vmatpush2.bf16.msra.mxu0 0
      %3892 = vmatprep.subr.bf16.mxu0 0
      %3893 = vmatpush2.bf16.msra.mxu0 0
      %3894 = vmatprep.subr.bf16.mxu0 0
      %3895 = vmatpush2.bf16.msra.mxu0 0
      %3896 = vmatprep.subr.bf16.mxu0 0
      %3897 = vmatpush2.bf16.msra.mxu0 0
      %3898 = vmatprep.subr.bf16.mxu0 0
      %3899 = vmatpush2.bf16.msra.mxu0 0
      %3900 = vmatprep.subr.bf16.mxu0 0
      %3901 = vmatpush2.bf16.msra.mxu0 0
      %3902 = vmatprep.subr.bf16.mxu0 0
      %3903 = vmatpush2.bf16.msra.mxu0 0
      %3904 = vmatprep.subr.bf16.mxu0 0
      %3905 = vmatpush2.bf16.msra.mxu0 0
      %3906 = vmatprep.mubr.bf16.mxu0 0
      %3907 = vmatmul.mubr.bf16.gmra.mxu0 %v3252
      %v3908 = vpop.f32.mrf.mxu0
      %v3909 = vadd.f32 0.0, %v3908
      %v3910 = vpop.f32.mrf.mxu0
      %v3911 = vpop.f32.mrf.mxu0
      %v3912 = vadd.f32 0.0, %v3911
      %v3913 = vpop.f32.mrf.mxu0
      %3914 = vmatprep.mubr.bf16.mxu0 0
      %3915 = vmatmul.mubr.bf16.gmra.mxu0 %v3253
      %v3916 = vpop.f32.mrf.mxu0
      %v3917 = vadd.f32 0.0, %v3916
      %v3918 = vpop.f32.mrf.mxu0
      %v3919 = vpop.f32.mrf.mxu0
      %v3920 = vadd.f32 0.0, %v3919
      %v3921 = vpop.f32.mrf.mxu0
      %3922 = vmatprep.mubr.bf16.mxu0 0
      %3923 = vmatmul.mubr.bf16.gmra.mxu0 %v3254
      %v3924 = vpop.f32.mrf.mxu0
      %v3925 = vadd.f32 0.0, %v3924
      %v3926 = vpop.f32.mrf.mxu0
      %v3927 = vpop.f32.mrf.mxu0
      %v3928 = vadd.f32 0.0, %v3927
      %v3929 = vpop.f32.mrf.mxu0
      %3930 = vmatprep.mubr.bf16.mxu0 0
      %3931 = vmatmul.mubr.bf16.gmra.mxu0 %v3255
      %v3932 = vpop.f32.mrf.mxu0
      %v3933 = vadd.f32 0.0, %v3932
      %v3934 = vpop.f32.mrf.mxu0
      %v3935 = vpop.f32.mrf.mxu0
      %v3936 = vadd.f32 0.0, %v3935
      %v3937 = vpop.f32.mrf.mxu0
      %3938 = vmatprep.mubr.bf16.mxu0 0
      %3939 = vmatmul.mubr.bf16.gmra.mxu0 %v3256
      %v3940 = vpop.f32.mrf.mxu0
      %v3941 = vadd.f32 0.0, %v3940
      %v3942 = vpop.f32.mrf.mxu0
      %v3943 = vpop.f32.mrf.mxu0
      %v3944 = vadd.f32 0.0, %v3943
      %v3945 = vpop.f32.mrf.mxu0
      %3946 = vmatprep.mubr.bf16.mxu0 0
      %3947 = vmatmul.mubr.bf16.gmra.mxu0 %v3257
      %v3948 = vpop.f32.mrf.mxu0
      %v3949 = vadd.f32 0.0, %v3948
      %v3950 = vpop.f32.mrf.mxu0
      %v3951 = vpop.f32.mrf.mxu0
      %v3952 = vadd.f32 0.0, %v3951
      %v3953 = vpop.f32.mrf.mxu0
      %3954 = vmatprep.mubr.bf16.mxu0 0
      %3955 = vmatmul.mubr.bf16.gmra.mxu0 %v3258
      %v3956 = vpop.f32.mrf.mxu0
      %v3957 = vadd.f32 0.0, %v3956
      %v3958 = vpop.f32.mrf.mxu0
      %v3959 = vpop.f32.mrf.mxu0
      %v3960 = vadd.f32 0.0, %v3959
      %v3961 = vpop.f32.mrf.mxu0
      %3962 = vmatprep.mubr.bf16.mxu0 0
      %3963 = vmatmul.mubr.bf16.gmra.mxu0 %v3259
      %v3964 = vpop.f32.mrf.mxu0
      %v3965 = vadd.f32 0.0, %v3964
      %v3966 = vpop.f32.mrf.mxu0
      %v3967 = vpop.f32.mrf.mxu0
      %v3968 = vadd.f32 0.0, %v3967
      %v3969 = vpop.f32.mrf.mxu0
      %3970 = vmatprep.mubr.bf16.mxu0 0
      %3971 = vmatmul.mubr.bf16.gmra.mxu0 %v3260
      %v3972 = vpop.f32.mrf.mxu0
      %v3973 = vadd.f32 0.0, %v3972
      %v3974 = vpop.f32.mrf.mxu0
      %v3975 = vpop.f32.mrf.mxu0
      %v3976 = vadd.f32 0.0, %v3975
      %v3977 = vpop.f32.mrf.mxu0
      %3978 = vmatprep.mubr.bf16.mxu0 0
      %3979 = vmatmul.mubr.bf16.gmra.mxu0 %v3261
      %v3980 = vpop.f32.mrf.mxu0
      %v3981 = vadd.f32 0.0, %v3980
      %v3982 = vpop.f32.mrf.mxu0
      %v3983 = vpop.f32.mrf.mxu0
      %v3984 = vadd.f32 0.0, %v3983
      %v3985 = vpop.f32.mrf.mxu0
      %3986 = vmatprep.mubr.bf16.mxu0 0
      %3987 = vmatmul.mubr.bf16.gmra.mxu0 %v3262
      %v3988 = vpop.f32.mrf.mxu0
      %v3989 = vadd.f32 0.0, %v3988
      %v3990 = vpop.f32.mrf.mxu0
      %v3991 = vpop.f32.mrf.mxu0
      %v3992 = vadd.f32 0.0, %v3991
      %v3993 = vpop.f32.mrf.mxu0
      %3994 = vmatprep.mubr.bf16.mxu0 0
      %3995 = vmatmul.mubr.bf16.gmra.mxu0 %v3263
      %v3996 = vpop.f32.mrf.mxu0
      %v3997 = vadd.f32 0.0, %v3996
      %v3998 = vpop.f32.mrf.mxu0
      %v3999 = vpop.f32.mrf.mxu0
      %v4000 = vadd.f32 0.0, %v3999
      %v4001 = vpop.f32.mrf.mxu0
      %4002 = vmatprep.mubr.bf16.mxu0 0
      %4003 = vmatmul.mubr.bf16.gmra.mxu0 %v3264
      %v4004 = vpop.f32.mrf.mxu0
      %v4005 = vadd.f32 0.0, %v4004
      %v4006 = vpop.f32.mrf.mxu0
      %v4007 = vpop.f32.mrf.mxu0
      %v4008 = vadd.f32 0.0, %v4007
      %v4009 = vpop.f32.mrf.mxu0
      %4010 = vmatprep.mubr.bf16.mxu0 0
      %4011 = vmatmul.mubr.bf16.gmra.mxu0 %v3265
      %v4012 = vpop.f32.mrf.mxu0
      %v4013 = vadd.f32 0.0, %v4012
      %v4014 = vpop.f32.mrf.mxu0
      %v4015 = vpop.f32.mrf.mxu0
      %v4016 = vadd.f32 0.0, %v4015
      %v4017 = vpop.f32.mrf.mxu0
      %4018 = vmatprep.mubr.bf16.mxu0 0
      %4019 = vmatmul.mubr.bf16.gmra.mxu0 %v3552
      %v4020 = vpop.f32.mrf.mxu0
      %v4021 = vadd.f32 0.0, %v4020
      %v4022 = vpop.f32.mrf.mxu0
      %v4023 = vpop.f32.mrf.mxu0
      %v4024 = vadd.f32 0.0, %v4023
      %v4025 = vpop.f32.mrf.mxu0
      %4026 = vmatprep.mubr.bf16.mxu0 0
      %4027 = vmatmul.mubr.bf16.gmra.mxu0 %v3824
      %v4028 = vpop.f32.mrf.mxu0
      %v4029 = vadd.f32 0.0, %v4028
      %v4030 = vpop.f32.mrf.mxu0
      %v4031 = vpop.f32.mrf.mxu0
      %v4032 = vadd.f32 0.0, %v4031
      %v4033 = vpop.f32.mrf.mxu0
      %4034 = vdwg.mxu0
      %v4035 = vadd.f32 %v3763, %v3909
      %v4036 = vadd.f32 %v3764, %v3912
      %v4037 = vadd.f32 %v3765, %v3917
      %v4038 = vadd.f32 %v3766, %v3920
      %v4039 = vadd.f32 %v3767, %v3925
      %v4040 = vadd.f32 %v3768, %v3928
      %v4041 = vadd.f32 %v3769, %v3933
      %v4042 = vadd.f32 %v3770, %v3936
      %v4043 = vadd.f32 %v3771, %v3941
      %v4044 = vadd.f32 %v3772, %v3944
      %v4045 = vadd.f32 %v3773, %v3949
      %v4046 = vadd.f32 %v3774, %v3952
      %v4047 = vadd.f32 %v3775, %v3957
      %v4048 = vadd.f32 %v3776, %v3960
      %v4049 = vadd.f32 %v3777, %v3965
      %v4050 = vadd.f32 %v3778, %v3968
      %v4051 = vadd.f32 %v3779, %v3973
      %v4052 = vadd.f32 %v3780, %v3976
      %v4053 = vadd.f32 %v3781, %v3981
      %v4054 = vadd.f32 %v3782, %v3984
      %v4055 = vadd.f32 %v3783, %v3989
      %v4056 = vadd.f32 %v3784, %v3992
      %v4057 = vadd.f32 %v3785, %v3997
      %v4058 = vadd.f32 %v3786, %v4000
      %v4059 = vadd.f32 %v3787, %v4005
      %v4060 = vadd.f32 %v3788, %v4008
      %v4061 = vadd.f32 %v3789, %v4013
      %v4062 = vadd.f32 %v3790, %v4016
      %v4063 = vadd.f32 %v3791, %v4021
      %v4064 = vadd.f32 %v3792, %v4024
      %v4065 = vadd.f32 %v3793, %v4029
      %v4066 = vadd.f32 %v3794, %v4032
      %v4067 = vpack.c.bf16 %v4036, %v4035
      %v4068 = vpack.c.bf16 %v4038, %v4037
      %v4069 = vpack.c.bf16 %v4040, %v4039
      %v4070 = vpack.c.bf16 %v4042, %v4041
      %v4071 = vpack.c.bf16 %v4044, %v4043
      %v4072 = vpack.c.bf16 %v4046, %v4045
      %v4073 = vpack.c.bf16 %v4048, %v4047
      %v4074 = vpack.c.bf16 %v4050, %v4049
      %v4075 = vpack.c.bf16 %v4052, %v4051
      %v4076 = vpack.c.bf16 %v4054, %v4053
      %v4077 = vpack.c.bf16 %v4056, %v4055
      %v4078 = vpack.c.bf16 %v4058, %v4057
      %v4079 = vpack.c.bf16 %v4060, %v4059
      %v4080 = vpack.c.bf16 %v4062, %v4061
      %v4081 = vpack.c.bf16 %v4064, %v4063
      %v4082 = vpack.c.bf16 %v4066, %v4065
      %v4099 = vunpack.c.l.b16 %v4067
      %v4100 = vunpack.c.h.b16 %v4067
      %v4101 = vunpack.c.l.b16 %v4068
      %v4102 = vunpack.c.h.b16 %v4068
      %v4103 = vunpack.c.l.b16 %v4069
      %v4104 = vunpack.c.h.b16 %v4069
      %v4105 = vunpack.c.l.b16 %v4070
      %v4106 = vunpack.c.h.b16 %v4070
      %v4107 = vunpack.c.l.b16 %v4071
      %v4108 = vunpack.c.h.b16 %v4071
      %v4109 = vunpack.c.l.b16 %v4072
      %v4110 = vunpack.c.h.b16 %v4072
      %v4111 = vunpack.c.l.b16 %v4073
      %v4112 = vunpack.c.h.b16 %v4073
      %v4113 = vunpack.c.l.b16 %v4074
      %v4114 = vunpack.c.h.b16 %v4074
      %v4115 = vunpack.c.l.b16 %v4075
      %v4116 = vunpack.c.h.b16 %v4075
      %v4117 = vunpack.c.l.b16 %v4076
      %v4118 = vunpack.c.h.b16 %v4076
      %v4119 = vunpack.c.l.b16 %v4077
      %v4120 = vunpack.c.h.b16 %v4077
      %v4121 = vunpack.c.l.b16 %v4078
      %v4122 = vunpack.c.h.b16 %v4078
      %v4123 = vunpack.c.l.b16 %v4079
      %v4124 = vunpack.c.h.b16 %v4079
      %v4125 = vunpack.c.l.b16 %v4080
      %v4126 = vunpack.c.h.b16 %v4080
      %v4127 = vunpack.c.l.b16 %v4081
      %v4128 = vunpack.c.h.b16 %v4081
      %v4129 = vunpack.c.l.b16 %v4082
      %v4130 = vunpack.c.h.b16 %v4082
      %v4131 = vpack.c.b16 %v4099, %v4099
      %v4132 = vpack.c.b16 %v4100, %v4100
      %v4133 = vpack.c.b16 %v4101, %v4101
      %v4134 = vpack.c.b16 %v4102, %v4102
      %v4135 = vpack.c.b16 %v4103, %v4103
      %v4136 = vpack.c.b16 %v4104, %v4104
      %v4137 = vpack.c.b16 %v4105, %v4105
      %v4138 = vpack.c.b16 %v4106, %v4106
      %v4139 = vpack.c.b16 %v4107, %v4107
      %v4140 = vpack.c.b16 %v4108, %v4108
      %v4141 = vpack.c.b16 %v4109, %v4109
      %v4142 = vpack.c.b16 %v4110, %v4110
      %v4143 = vpack.c.b16 %v4111, %v4111
      %v4144 = vpack.c.b16 %v4112, %v4112
      %v4145 = vpack.c.b16 %v4113, %v4113
      %v4146 = vpack.c.b16 %v4114, %v4114
      %v4147 = vpack.c.b16 %v4115, %v4115
      %v4148 = vpack.c.b16 %v4116, %v4116
      %v4149 = vpack.c.b16 %v4117, %v4117
      %v4150 = vpack.c.b16 %v4118, %v4118
      %v4151 = vpack.c.b16 %v4119, %v4119
      %v4152 = vpack.c.b16 %v4120, %v4120
      %v4153 = vpack.c.b16 %v4121, %v4121
      %v4154 = vpack.c.b16 %v4122, %v4122
      %v4155 = vpack.c.b16 %v4123, %v4123
      %v4156 = vpack.c.b16 %v4124, %v4124
      %v4157 = vpack.c.b16 %v4125, %v4125
      %v4158 = vpack.c.b16 %v4126, %v4126
      %v4159 = vpack.c.b16 %v4127, %v4127
      %v4160 = vpack.c.b16 %v4128, %v4128
      %v4161 = vpack.c.b16 %v4129, %v4129
      %v4162 = vpack.c.b16 %v4130, %v4130
      %4195 = vst [vmem:[%s214] sm:$0xf] %v4131
      %4196 = vst [vmem:[%s214 + $0x4] sm:$0xf] %v4132
      %4197 = vst [vmem:[%s214 + $0x8] sm:$0xf] %v4133
      %4198 = vst [vmem:[%s214 + $0xc] sm:$0xf] %v4134
      %4199 = vst [vmem:[%s214 + $0x10] sm:$0xf] %v4135
      %4200 = vst [vmem:[%s214 + $0x14] sm:$0xf] %v4136
      %4201 = vst [vmem:[%s214 + $0x18] sm:$0xf] %v4137
      %4202 = vst [vmem:[%s214 + $0x1c] sm:$0xf] %v4138
      %4203 = vst [vmem:[%s214 + $0x20] sm:$0xf] %v4139
      %4204 = vst [vmem:[%s214 + $0x24] sm:$0xf] %v4140
      %4205 = vst [vmem:[%s214 + $0x28] sm:$0xf] %v4141
      %4206 = vst [vmem:[%s214 + $0x2c] sm:$0xf] %v4142
      %4207 = vst [vmem:[%s214 + $0x30] sm:$0xf] %v4143
      %4208 = vst [vmem:[%s214 + $0x34] sm:$0xf] %v4144
      %4209 = vst [vmem:[%s214 + $0x38] sm:$0xf] %v4145
      %4210 = vst [vmem:[%s214 + $0x3c] sm:$0xf] %v4146
      %4211 = vst [vmem:[%s214 + $0x40] sm:$0xf] %v4147
      %4212 = vst [vmem:[%s214 + $0x44] sm:$0xf] %v4148
      %4213 = vst [vmem:[%s214 + $0x48] sm:$0xf] %v4149
      %4214 = vst [vmem:[%s214 + $0x4c] sm:$0xf] %v4150
      %4215 = vst [vmem:[%s214 + $0x50] sm:$0xf] %v4151
      %4216 = vst [vmem:[%s214 + $0x54] sm:$0xf] %v4152
      %4217 = vst [vmem:[%s214 + $0x58] sm:$0xf] %v4153
      %4218 = vst [vmem:[%s214 + $0x5c] sm:$0xf] %v4154
      %4219 = vst [vmem:[%s214 + $0x60] sm:$0xf] %v4155
      %4220 = vst [vmem:[%s214 + $0x64] sm:$0xf] %v4156
      %4221 = vst [vmem:[%s214 + $0x68] sm:$0xf] %v4157
      %4222 = vst [vmem:[%s214 + $0x6c] sm:$0xf] %v4158
      %4223 = vst [vmem:[%s214 + $0x70] sm:$0xf] %v4159
      %4224 = vst [vmem:[%s214 + $0x74] sm:$0xf] %v4160
      %4225 = vst [vmem:[%s214 + $0x78] sm:$0xf] %v4161
      %4226 = vst [vmem:[%s214 + $0x7c] sm:$0xf] %v4162
      %v4227 = vadd.f32 %v4035, %v4036
      %v4228 = vadd.f32 %v4227, %v4037
      %v4229 = vadd.f32 %v4228, %v4038
      %v4230 = vadd.f32 %v4229, %v4039
      %v4231 = vadd.f32 %v4230, %v4040
      %v4232 = vadd.f32 %v4231, %v4041
      %v4233 = vadd.f32 %v4232, %v4042
      %v4234 = vadd.f32 %v4233, %v4043
      %v4235 = vadd.f32 %v4234, %v4044
      %v4236 = vadd.f32 %v4235, %v4045
      %v4237 = vadd.f32 %v4236, %v4046
      %v4238 = vadd.f32 %v4237, %v4047
      %v4239 = vadd.f32 %v4238, %v4048
      %v4240 = vadd.f32 %v4239, %v4049
      %v4241 = vadd.f32 %v4240, %v4050
      %v4242 = vadd.f32 %v4241, %v4051
      %v4243 = vadd.f32 %v4242, %v4052
      %v4244 = vadd.f32 %v4243, %v4053
      %v4245 = vadd.f32 %v4244, %v4054
      %v4246 = vadd.f32 %v4245, %v4055
      %v4247 = vadd.f32 %v4246, %v4056
      %v4248 = vadd.f32 %v4247, %v4057
      %v4249 = vadd.f32 %v4248, %v4058
      %v4250 = vadd.f32 %v4249, %v4059
      %v4251 = vadd.f32 %v4250, %v4060
      %v4252 = vadd.f32 %v4251, %v4061
      %v4253 = vadd.f32 %v4252, %v4062
      %v4254 = vadd.f32 %v4253, %v4063
      %v4255 = vadd.f32 %v4254, %v4064
      %v4256 = vadd.f32 %v4255, %v4065
      %v4257 = vadd.f32 %v4256, %v4066
      %v4258 = vrot.slane %v4257, 4
      %v4259 = vadd.f32 %v4257, %v4258
      %v4260 = vrot.slane %v4259, 2
      %v4261 = vadd.f32 %v4259, %v4260
      %v4262 = vrot.slane %v4261, 1
      %v4263 = vadd.f32 %v4261, %v4262
      %v4264 = vmul.f32 %v4035, %v4035
      %v4265 = vmul.f32 %v4036, %v4036
      %v4266 = vmul.f32 %v4037, %v4037
      %v4267 = vmul.f32 %v4038, %v4038
      %v4268 = vmul.f32 %v4039, %v4039
      %v4269 = vmul.f32 %v4040, %v4040
      %v4270 = vmul.f32 %v4041, %v4041
      %v4271 = vmul.f32 %v4042, %v4042
      %v4272 = vmul.f32 %v4043, %v4043
      %v4273 = vmul.f32 %v4044, %v4044
      %v4274 = vmul.f32 %v4045, %v4045
      %v4275 = vmul.f32 %v4046, %v4046
      %v4276 = vmul.f32 %v4047, %v4047
      %v4277 = vmul.f32 %v4048, %v4048
      %v4278 = vmul.f32 %v4049, %v4049
      %v4279 = vmul.f32 %v4050, %v4050
      %v4280 = vmul.f32 %v4051, %v4051
      %v4281 = vmul.f32 %v4052, %v4052
      %v4282 = vmul.f32 %v4053, %v4053
      %v4283 = vmul.f32 %v4054, %v4054
      %v4284 = vmul.f32 %v4055, %v4055
      %v4285 = vmul.f32 %v4056, %v4056
      %v4286 = vmul.f32 %v4057, %v4057
      %v4287 = vmul.f32 %v4058, %v4058
      %v4288 = vmul.f32 %v4059, %v4059
      %v4289 = vmul.f32 %v4060, %v4060
      %v4290 = vmul.f32 %v4061, %v4061
      %v4291 = vmul.f32 %v4062, %v4062
      %v4292 = vmul.f32 %v4063, %v4063
      %v4293 = vmul.f32 %v4064, %v4064
      %v4294 = vmul.f32 %v4065, %v4065
      %v4295 = vmul.f32 %v4066, %v4066
      %v4296 = vadd.f32 %v4264, %v4265
      %v4297 = vadd.f32 %v4296, %v4266
      %v4298 = vadd.f32 %v4297, %v4267
      %v4299 = vadd.f32 %v4298, %v4268
      %v4300 = vadd.f32 %v4299, %v4269
      %v4301 = vadd.f32 %v4300, %v4270
      %v4302 = vadd.f32 %v4301, %v4271
      %v4303 = vadd.f32 %v4302, %v4272
      %v4304 = vadd.f32 %v4303, %v4273
      %v4305 = vadd.f32 %v4304, %v4274
      %v4306 = vadd.f32 %v4305, %v4275
      %v4307 = vadd.f32 %v4306, %v4276
      %v4308 = vadd.f32 %v4307, %v4277
      %v4309 = vadd.f32 %v4308, %v4278
      %v4310 = vadd.f32 %v4309, %v4279
      %v4311 = vadd.f32 %v4310, %v4280
      %v4312 = vadd.f32 %v4311, %v4281
      %v4313 = vadd.f32 %v4312, %v4282
      %v4314 = vadd.f32 %v4313, %v4283
      %v4315 = vadd.f32 %v4314, %v4284
      %v4316 = vadd.f32 %v4315, %v4285
      %v4317 = vadd.f32 %v4316, %v4286
      %v4318 = vadd.f32 %v4317, %v4287
      %v4319 = vadd.f32 %v4318, %v4288
      %v4320 = vadd.f32 %v4319, %v4289
      %v4321 = vadd.f32 %v4320, %v4290
      %v4322 = vadd.f32 %v4321, %v4291
      %v4323 = vadd.f32 %v4322, %v4292
      %v4324 = vadd.f32 %v4323, %v4293
      %v4325 = vadd.f32 %v4324, %v4294
      %v4326 = vadd.f32 %v4325, %v4295
      %v4327 = vrot.slane %v4326, 4
      %v4328 = vadd.f32 %v4326, %v4327
      %v4329 = vrot.slane %v4328, 2
      %v4330 = vadd.f32 %v4328, %v4329
      %v4331 = vrot.slane %v4330, 1
      %v4332 = vadd.f32 %v4330, %v4331
      %vm4333 = vcmask 1040384
      %v4334 = vsel %vm4333, %v4263, %v4332
      %4335 = vst [vmem:[%s222] sm:$0x3] %v4334
      %s4336 = smul.u32 16, %s22
      %p4337 = scmp.lt.s32.totalorder %s21, 1
      %s4338 = scalar_select %p4337, %s21, 1
      %p4339 = scmp.lt.s32.totalorder %s4336, 15
      %s4340 = scalar_select %p4339, %s4336, 15
      %s4341 = smul.addr %s4340, 2
      %s4342 = smul.addr %s4338, 32
      %s4343 = sadd.s32 %s4341, %s4342
      %s4344 = smul.addr %s4343, 4
      %s4345 = scalar_lea.vmem %s4, %s4344
      %p4346 = scmp.lt.s32.totalorder %s21, 1
      %s4347 = scalar_select %p4346, %s21, 1
      %p4348 = scmp.lt.s32.totalorder %s22, 0
      %s4349 = scalar_select %p4348, %s22, 0
      %s4350 = sadd.s32 %s4349, %s4347
      %s4351 = smul.addr %s4350, 2
      %s4352 = scalar_lea.vmem %s5, %s4351
      // Predicated region
      $region67: #{encoder_forward.3} parent=31 // pred_check
        %p4353 = pneg %p112
      $region68: #{encoder_forward.3} parent=31 // pred_check_branch
        %4355 = sbr.rel (%p4353) target = $region70
      $region69: #{encoder_forward.3} parent=31 // pred_region
        %s4356 = smul.u32 16, %s22
      $region70: #{encoder_forward.3} parent=31 // pred_fallthru
        _
      // Predicated region
      $region71: #{encoder_forward.3} parent=31 // pred_check
        %p4357 = pneg %p140
      $region72: #{encoder_forward.3} parent=31 // pred_check_branch
        %4359 = sbr.rel (%p4357) target = $region74
      $region73: #{encoder_forward.3} parent=31 // pred_region
        _
      $region74: #{encoder_forward.3} parent=31 // pred_fallthru
        _
    $region32: #{encoder_forward.3} parent=5 // pred_fallthru
      _
    %p4360 = scmp.le.s32.totalorder 2, %s12
    // Predicated region
    $region75: #{encoder_forward.3} parent=5 // pred_check
      %p4361 = pneg %p4360
    $region76: #{encoder_forward.3} parent=5 // pred_check_branch
      %4363 = sbr.rel (%p4361) target = $region78
    $region77: #{encoder_forward.3} parent=5 // pred_region
      %s4364 = ssub.s32 %s12, 2
      // Predicated region
      $region79: #{encoder_forward.3} parent=77 // pred_check
        %p4365 = pneg %p118
      $region80: #{encoder_forward.3} parent=77 // pred_check_branch
        %4367 = sbr.rel (%p4365) target = $region82
      $region81: #{encoder_forward.3} parent=77 // pred_region
        %s4368 = smul.u32 16, %s24
        %p4369 = scmp.lt.s32.totalorder %s23, 1
        %s4370 = scalar_select %p4369, %s23, 1
        %p4371 = scmp.lt.s32.totalorder %s4368, 15
        %s4372 = scalar_select %p4371, %s4368, 15
        %s4373 = smul.addr %s4372, 2
        %s4374 = smul.addr %s4370, 32
        %s4375 = sadd.s32 %s4373, %s4374
        %s4376 = smul.addr %s4375, 4
        %s4377 = scalar_lea.vmem %s4, %s4376
      $region82: #{encoder_forward.3} parent=77 // pred_fallthru
        _
      // Predicated region
      $region83: #{encoder_forward.3} parent=77 // pred_check
        %p4378 = pneg %p146
      $region84: #{encoder_forward.3} parent=77 // pred_check_branch
        %4380 = sbr.rel (%p4378) target = $region86
      $region85: #{encoder_forward.3} parent=77 // pred_region
        %p4381 = scmp.lt.s32.totalorder %s23, 1
        %s4382 = scalar_select %p4381, %s23, 1
        %p4383 = scmp.lt.s32.totalorder %s24, 0
        %s4384 = scalar_select %p4383, %s24, 0
        %s4385 = sadd.s32 %s4384, %s4382
        %s4386 = smul.addr %s4385, 2
        %s4387 = scalar_lea.vmem %s5, %s4386
      $region86: #{encoder_forward.3} parent=77 // pred_fallthru
        _
    $region78: #{encoder_forward.3} parent=5 // pred_fallthru
      _
  $region6: #{encoder_forward.3} parent=0 // loop_footer
    %s16 = sadd.s32 1, %s12
  $region7: #{encoder_forward.3} parent=0 // loop_footer_branch
    %11 = sbr.rel target = $region3
  $region8: #{encoder_forward.3} parent=0 // loop_exit
    _
  %4388 = vsyncmov [#allocation4]
  %s4389 = vpop.sfrf %4388
  %p4390 = scmp.eq.s32.totalorder %s4389, 0
  %p4391 = pneg %p4390
  %4393 = shalt.err (%p4391)

// kernel: encoder_forward.4
$region0: #{encoder_forward.4}
  #allocation0 [shape = 'u32[]', space=smem, size = 0x4, offset = 0x4, fixed_abs, tag = 'smem constant byte address 0x4 - core index']
  #allocation1 [shape = 'u32[144,128]{1,0:T(1,128)}', space=vmem, size = 0x12000, scoped, tag = 'internal scratch']
  #allocation2 [shape = 'bf16[1,16,16,128]{3,2,1,0:T(8,128)(2,1)}', space=vmem, size = 0x10000, scoped, tag = 'scratch operand']
  #allocation3 [shape = 'bf16[18,18,128]{2,1,0:T(8,128)(2,1)}', space=vmem, size = 0x1b000, scoped, tag = 'scratch operand']
  #allocation4 [shape = 's32[1]{0}', space=sflag, size = 0x4, scoped, tag = 'scratch operand']
  #allocation5 [shape = 's32[]', space=sflag, size = 0x4, offset = 0, fixed_abs, tag = 'sflag constant byte address 0x0 - dummy sync flag']
  %s0 = inlined_call_operand.vmem [shape: bf16[2,16,16,128], index: 0, kind: input, shape index: {}]
  %s1 = inlined_call_operand.vmem [shape: f32[1,1,128], index: 1, kind: input, shape index: {}]
  %s2 = inlined_call_operand.vmem [shape: f32[1,1,128], index: 2, kind: input, shape index: {}]
  %s3 = inlined_call_operand.vmem [shape: bf16[9,128,128], index: 3, kind: input, shape index: {}]
  %s4 = inlined_call_operand.vmem [shape: bf16[2,16,16,128], index: 4, kind: output, shape index: {0}]
  %s5 = inlined_call_operand.vmem [shape: f32[2,1,2,128], index: 5, kind: output, shape index: {1}]
  %6 = xla_tuple %s4, %s5
  %s7 = sld [smem:[#allocation0]]
  $region87: #{encoder_forward.4} parent=0
    _
  %s9 = ssub.s32 1, %s7
  %s10 = scalar_select 0, %s9, %s7
  loop: start=0, step=1, limit=4
  $region2: #{encoder_forward.4} parent=0 // loop_pre_header
    _
  $region3: #{encoder_forward.4} parent=0 // loop_header
    %s12 = sphi 0, %s16
    %p13 = scmp.ge.s32.totalorder %s12, 4
    %s19 = sphi 0, %s31
    %s20 = sphi 0, %s27
    %s21 = sphi 0, %s19
    %s22 = sphi 0, %s20
    %s23 = sphi 0, %s21
    %s24 = sphi 0, %s22
    %s32 = sphi 0, %s32
    %s34 = sphi 0, %s32
    %s35 = sphi 0, %s34
    %s49 = sphi 0, %s35
    %s53 = sphi 0, %s53
    %s55 = sphi 0, %s53
    %s56 = sphi 0, %s55
    %s70 = sphi 0, %s56
    %s74 = sphi 0, %s74
    %s76 = sphi 0, %s74
    %s77 = sphi 0, %s76
    %s91 = sphi 0, %s77
    %s99 = sphi 0, %s101
    %s102 = sphi 0, %s99
    %s103 = sphi 0, %s102
    %s119 = sphi 0, %s103
    %s127 = sphi 0, %s129
    %s130 = sphi 0, %s127
    %s131 = sphi 0, %s130
    %s147 = sphi 0, %s131
  $region4: #{encoder_forward.4} parent=0 // loop_header_branch
    %15 = sbr.rel (%p13) target = $region8
  $region5: #{encoder_forward.4} parent=0 // loop_body
    %s17 = ssub.s32 %s12, 1
    %s18 = ssub.s32 %s12, 2
    %s25 = sadd.s32 1, %s20
    %p26 = scmp.ge.s32.totalorder %s25, 1
    %s27 = scalar_select %p26, 0, %s25
    %s28 = sadd.s32 1, %s19
    %s29 = scalar_select %p26, %s28, %s19
    %p30 = scmp.ge.s32.totalorder %s29, 2
    %s31 = scalar_select %p30, 0, %s29
    %s33 = sadd.s32 %s32, 1
    %p36 = scmp.eq.s32.totalorder %s12, 1
    %p37 = scmp.ne.s32.totalorder %s32, %s34
    %p38 = scmp.eq.s32.totalorder %s12, 0
    %p39 = por %p37, %p38
    %p40 = scmp.ne.s32.totalorder %s32, %s34
    %p41 = scmp.eq.s32.totalorder %s17, 1
    %p42 = por %p40, %p41
    %p43 = scmp.ne.s32.totalorder %s34, %s35
    %p44 = scmp.eq.s32.totalorder %s17, 0
    %p45 = por %p43, %p44
    %p46 = scmp.ne.s32.totalorder %s34, %s35
    %p47 = scmp.eq.s32.totalorder %s18, 1
    %p48 = por %p46, %p47
    %p50 = scmp.ne.s32.totalorder %s35, %s49
    %p51 = scmp.eq.s32.totalorder %s18, 0
    %p52 = por %p50, %p51
    %s54 = sadd.s32 %s53, 1
    %p57 = scmp.eq.s32.totalorder %s12, 1
    %p58 = scmp.ne.s32.totalorder %s53, %s55
    %p59 = scmp.eq.s32.totalorder %s12, 0
    %p60 = por %p58, %p59
    %p61 = scmp.ne.s32.totalorder %s53, %s55
    %p62 = scmp.eq.s32.totalorder %s17, 1
    %p63 = por %p61, %p62
    %p64 = scmp.ne.s32.totalorder %s55, %s56
    %p65 = scmp.eq.s32.totalorder %s17, 0
    %p66 = por %p64, %p65
    %p67 = scmp.ne.s32.totalorder %s55, %s56
    %p68 = scmp.eq.s32.totalorder %s18, 1
    %p69 = por %p67, %p68
    %p71 = scmp.ne.s32.totalorder %s56, %s70
    %p72 = scmp.eq.s32.totalorder %s18, 0
    %p73 = por %p71, %p72
    %s75 = sadd.s32 %s74, 1
    %p78 = scmp.eq.s32.totalorder %s12, 1
    %p79 = scmp.ne.s32.totalorder %s74, %s76
    %p80 = scmp.eq.s32.totalorder %s12, 0
    %p81 = por %p79, %p80
    %p82 = scmp.ne.s32.totalorder %s74, %s76
    %p83 = scmp.eq.s32.totalorder %s17, 1
    %p84 = por %p82, %p83
    %p85 = scmp.ne.s32.totalorder %s76, %s77
    %p86 = scmp.eq.s32.totalorder %s17, 0
    %p87 = por %p85, %p86
    %p88 = scmp.ne.s32.totalorder %s76, %s77
    %p89 = scmp.eq.s32.totalorder %s18, 1
    %p90 = por %p88, %p89
    %p92 = scmp.ne.s32.totalorder %s77, %s91
    %p93 = scmp.eq.s32.totalorder %s18, 0
    %p94 = por %p92, %p93
    %s95 = ssub.s32 %s19, %s31
    %s96 = ssub.s32 %s20, %s27
    %s97 = sor.u32 %s95, %s96
    %p98 = scmp.eq.s32.totalorder %s97, 0
    %s100 = sadd.s32 %s99, 1
    %s101 = scalar_select %p98, %s99, %s100
    %p104 = pneg %p98
    %p105 = scmp.eq.s32.totalorder %s12, 1
    %p106 = por %p104, %p105
    %p107 = scmp.ne.s32.totalorder %s99, %s102
    %p108 = scmp.eq.s32.totalorder %s12, 0
    %p109 = por %p107, %p108
    %p110 = scmp.ne.s32.totalorder %s99, %s102
    %p111 = scmp.eq.s32.totalorder %s17, 1
    %p112 = por %p110, %p111
    %p113 = scmp.ne.s32.totalorder %s102, %s103
    %p114 = scmp.eq.s32.totalorder %s17, 0
    %p115 = por %p113, %p114
    %p116 = scmp.ne.s32.totalorder %s102, %s103
    %p117 = scmp.eq.s32.totalorder %s18, 1
    %p118 = por %p116, %p117
    %p120 = scmp.ne.s32.totalorder %s103, %s119
    %p121 = scmp.eq.s32.totalorder %s18, 0
    %p122 = por %p120, %p121
    %s123 = ssub.s32 %s19, %s31
    %s124 = ssub.s32 %s20, %s27
    %s125 = sor.u32 %s123, %s124
    %p126 = scmp.eq.s32.totalorder %s125, 0
    %s128 = sadd.s32 %s127, 1
    %s129 = scalar_select %p126, %s127, %s128
    %p132 = pneg %p126
    %p133 = scmp.eq.s32.totalorder %s12, 1
    %p134 = por %p132, %p133
    %p135 = scmp.ne.s32.totalorder %s127, %s130
    %p136 = scmp.eq.s32.totalorder %s12, 0
    %p137 = por %p135, %p136
    %p138 = scmp.ne.s32.totalorder %s127, %s130
    %p139 = scmp.eq.s32.totalorder %s17, 1
    %p140 = por %p138, %p139
    %p141 = scmp.ne.s32.totalorder %s130, %s131
    %p142 = scmp.eq.s32.totalorder %s17, 0
    %p143 = por %p141, %p142
    %p144 = scmp.ne.s32.totalorder %s130, %s131
    %p145 = scmp.eq.s32.totalorder %s18, 1
    %p146 = por %p144, %p145
    %p148 = scmp.ne.s32.totalorder %s131, %s147
    %p149 = scmp.eq.s32.totalorder %s18, 0
    %p150 = por %p148, %p149
    %p151 = scmp.le.s32.totalorder 1, %s12
    %p152 = scmp.lt.s32.totalorder %s12, 3
    %p153 = pnand %p151, %p152
    %p154 = pneg %p153
    // Predicated region
    $region9: #{encoder_forward.4} parent=5 // pred_check
      _
    $region10: #{encoder_forward.4} parent=5 // pred_check_branch
      %156 = sbr.rel (%p153) target = $region12
    $region11: #{encoder_forward.4} parent=5 // pred_region
      %s157 = ssub.s32 %s12, 1
      // Predicated region
      $region13: #{encoder_forward.4} parent=11 // pred_check
        %p158 = pneg %p45
      $region14: #{encoder_forward.4} parent=11 // pred_check_branch
        %160 = sbr.rel (%p158) target = $region16
      $region15: #{encoder_forward.4} parent=11 // pred_region
        _
      $region16: #{encoder_forward.4} parent=11 // pred_fallthru
        _
      // Predicated region
      $region17: #{encoder_forward.4} parent=11 // pred_check
        %p161 = pneg %p66
      $region18: #{encoder_forward.4} parent=11 // pred_check_branch
        %163 = sbr.rel (%p161) target = $region20
      $region19: #{encoder_forward.4} parent=11 // pred_region
        _
      $region20: #{encoder_forward.4} parent=11 // pred_fallthru
        _
      // Predicated region
      $region21: #{encoder_forward.4} parent=11 // pred_check
        %p164 = pneg %p87
      $region22: #{encoder_forward.4} parent=11 // pred_check_branch
        %166 = sbr.rel (%p164) target = $region24
      $region23: #{encoder_forward.4} parent=11 // pred_region
        _
      $region24: #{encoder_forward.4} parent=11 // pred_fallthru
        _
    $region12: #{encoder_forward.4} parent=5 // pred_fallthru
      _
    %p167 = scmp.lt.s32.totalorder %s12, 2
    // Predicated region
    $region25: #{encoder_forward.4} parent=5 // pred_check
      %p168 = pneg %p167
    $region26: #{encoder_forward.4} parent=5 // pred_check_branch
      %170 = sbr.rel (%p168) target = $region28
    $region27: #{encoder_forward.4} parent=5 // pred_region
      _
    $region28: #{encoder_forward.4} parent=5 // pred_fallthru
      _
    %p171 = scmp.le.s32.totalorder 1, %s12
    %p172 = scmp.lt.s32.totalorder %s12, 3
    %p173 = pnand %p171, %p172
    %p174 = pneg %p173
    // Predicated region
    $region29: #{encoder_forward.4} parent=5 // pred_check
      _
    $region30: #{encoder_forward.4} parent=5 // pred_check_branch
      %176 = sbr.rel (%p173) target = $region32
    $region31: #{encoder_forward.4} parent=5 // pred_region
      %s177 = ssub.s32 %s12, 1
      %p178 = pneg %p45
      %p179 = pneg %p42
      %p180 = pneg %p66
      %p181 = pneg %p63
      %p182 = pneg %p87
      %p183 = pneg %p84
      %p184 = pneg %p115
      %p185 = pneg %p112
      %s186 = smul.u32 16, %s22
      %p187 = scmp.lt.s32.totalorder %s21, 1
      %s188 = scalar_select %p187, %s21, 1
      %p189 = scmp.lt.s32.totalorder %s186, 15
      %s190 = scalar_select %p189, %s186, 15
      %s191 = smul.addr %s190, 2
      %s192 = smul.addr %s188, 32
      %s193 = sadd.s32 %s191, %s192
      %s194 = smul.addr %s193, 4
      %s195 = scalar_lea.vmem %s4, %s194
      %p196 = pneg %p143
      %p197 = pneg %p140
      %p198 = scmp.lt.s32.totalorder %s21, 1
      %s199 = scalar_select %p198, %s21, 1
      %p200 = scmp.lt.s32.totalorder %s22, 0
      %s201 = scalar_select %p200, %s22, 0
      %s202 = sadd.s32 %s201, %s199
      %s203 = smul.addr %s202, 2
      %s204 = scalar_lea.vmem %s5, %s203
      %s205 = smul.u32 16, %s22
      %p206 = scmp.lt.s32.totalorder %s21, 1
      %s207 = scalar_select %p206, %s21, 1
      %p208 = scmp.lt.s32.totalorder %s205, 15
      %s209 = scalar_select %p208, %s205, 15
      %s210 = smul.addr %s209, 2
      %s211 = smul.addr %s207, 32
      %s212 = sadd.s32 %s210, %s211
      %s213 = smul.addr %s212, 4
      %s214 = scalar_lea.vmem %s4, %s213
      %s215 = smul.u32 16, %s22
      %p216 = scmp.lt.s32.totalorder %s21, 1
      %s217 = scalar_select %p216, %s21, 1
      %p218 = scmp.lt.s32.totalorder %s22, 0
      %s219 = scalar_select %p218, %s22, 0
      %s220 = sadd.s32 %s219, %s217
      %s221 = smul.addr %s220, 2
      %s222 = scalar_lea.vmem %s5, %s221
      %s224 = smul.u32 %s21, 32
      %s225 = smul.addr %s224, 4
      %s226 = scalar_lea.vmem %s0, %s225
      %p228 = scmp.lt.u32.totalorder 128, 8
      %p229 = pneg %p228
      // Predicated region
      $region33: #{encoder_forward.4} parent=31 // pred_check
        _
      $region34: #{encoder_forward.4} parent=31 // pred_check_branch
        %231 = sbr.rel (%p228) target = $region36
      $region35: #{encoder_forward.4} parent=31 // pred_region
        %s247 = sand.u32 128, 7
        %p248 = scmp.eq.s32.totalorder %s247, 0
        // Predicated region
        $region48: #{encoder_forward.4} parent=35 // pred_check
          %p249 = pneg %p248
        $region49: #{encoder_forward.4} parent=35 // pred_check_branch
          %251 = sbr.rel (%p249) target = $region51
        $region50: #{encoder_forward.4} parent=35 // pred_region
          loop: start=0, step=1, limit=1
          $region52: #{encoder_forward.4} parent=50 // loop_pre_header
            _
          $region53: #{encoder_forward.4} parent=50 // loop_header
            %s253 = sphi 0, %s257
            %p254 = scmp.ge.s32.totalorder %s253, 1
            %s258 = sphi %s226, %s226
            %s259 = sphi [#allocation2], [#allocation2]
          $region54: #{encoder_forward.4} parent=50 // loop_header_branch
            %256 = sbr.rel (%p254) target = $region58
          $region55: #{encoder_forward.4} parent=50 // loop_body
            %v260 = vld [vmem:[%s258] sm:$0xff]
            %261 = vst [vmem:[%s259] sm:$0xff] %v260
            %v262 = vld [vmem:[%s258 + $0x8] sm:$0xff]
            %263 = vst [vmem:[%s259 + $0x8] sm:$0xff] %v262
            %v264 = vld [vmem:[%s258 + $0x10] sm:$0xff]
            %265 = vst [vmem:[%s259 + $0x10] sm:$0xff] %v264
            %v266 = vld [vmem:[%s258 + $0x18] sm:$0xff]
            %267 = vst [vmem:[%s259 + $0x18] sm:$0xff] %v266
            %v268 = vld [vmem:[%s258 + $0x20] sm:$0xff]
            %269 = vst [vmem:[%s259 + $0x20] sm:$0xff] %v268
            %v270 = vld [vmem:[%s258 + $0x28] sm:$0xff]
            %271 = vst [vmem:[%s259 + $0x28] sm:$0xff] %v270
            %v272 = vld [vmem:[%s258 + $0x30] sm:$0xff]
            %273 = vst [vmem:[%s259 + $0x30] sm:$0xff] %v272
            %v274 = vld [vmem:[%s258 + $0x38] sm:$0xff]
            %275 = vst [vmem:[%s259 + $0x38] sm:$0xff] %v274
            %v276 = vld [vmem:[%s258 + $0x40] sm:$0xff]
            %277 = vst [vmem:[%s259 + $0x40] sm:$0xff] %v276
            %v278 = vld [vmem:[%s258 + $0x48] sm:$0xff]
            %279 = vst [vmem:[%s259 + $0x48] sm:$0xff] %v278
            %v280 = vld [vmem:[%s258 + $0x50] sm:$0xff]
            %281 = vst [vmem:[%s259 + $0x50] sm:$0xff] %v280
            %v282 = vld [vmem:[%s258 + $0x58] sm:$0xff]
            %283 = vst [vmem:[%s259 + $0x58] sm:$0xff] %v282
            %v284 = vld [vmem:[%s258 + $0x60] sm:$0xff]
            %285 = vst [vmem:[%s259 + $0x60] sm:$0xff] %v284
            %v286 = vld [vmem:[%s258 + $0x68] sm:$0xff]
            %287 = vst [vmem:[%s259 + $0x68] sm:$0xff] %v286
            %v288 = vld [vmem:[%s258 + $0x70] sm:$0xff]
            %289 = vst [vmem:[%s259 + $0x70] sm:$0xff] %v288
            %v290 = vld [vmem:[%s258 + $0x78] sm:$0xff]
            %291 = vst [vmem:[%s259 + $0x78] sm:$0xff] %v290
          $region56: #{encoder_forward.4} parent=50 // loop_footer
            %s257 = sadd.s32 1, %s253
          $region57: #{encoder_forward.4} parent=50 // loop_footer_branch
            %252 = sbr.rel target = $region53
          $region58: #{encoder_forward.4} parent=50 // loop_exit
            _
        $region51: #{encoder_forward.4} parent=35 // pred_fallthru
          _
        %p292 = pneg %p248
        // Predicated region
        $region59: #{encoder_forward.4} parent=35 // pred_check
          _
        $region60: #{encoder_forward.4} parent=35 // pred_check_branch
          %294 = sbr.rel (%p248) target = $region62
        $region61: #{encoder_forward.4} parent=35 // pred_region
          %s295 = sand.u32 128, 7
        $region62: #{encoder_forward.4} parent=35 // pred_fallthru
          _
      $region36: #{encoder_forward.4} parent=31 // pred_fallthru
        _
      // Predicated region
      $region37: #{encoder_forward.4} parent=31 // pred_check
        %p232 = pneg %p228
      $region38: #{encoder_forward.4} parent=31 // pred_check_branch
        %234 = sbr.rel (%p232) target = $region40
      $region39: #{encoder_forward.4} parent=31 // pred_region
        %s235 = sshll.u32 1, 128
        %s236 = ssub.s32 %s235, 1
        loop: start=0, step=1, limit=1
        $region41: #{encoder_forward.4} parent=39 // loop_pre_header
          _
        $region42: #{encoder_forward.4} parent=39 // loop_header
          %s238 = sphi 0, %s242
          %p239 = scmp.ge.s32.totalorder %s238, 1
          %s243 = sphi %s226, %s226
          %s244 = sphi [#allocation2], [#allocation2]
        $region43: #{encoder_forward.4} parent=39 // loop_header_branch
          %241 = sbr.rel (%p239) target = $region47
        $region44: #{encoder_forward.4} parent=39 // loop_body
          %v245 = vld [vmem:[%s243] sm:%s236]
          %246 = vst [vmem:[%s244] sm:%s236] %v245
        $region45: #{encoder_forward.4} parent=39 // loop_footer
          %s242 = sadd.s32 1, %s238
        $region46: #{encoder_forward.4} parent=39 // loop_footer_branch
          %237 = sbr.rel target = $region42
        $region47: #{encoder_forward.4} parent=39 // loop_exit
          _
      $region40: #{encoder_forward.4} parent=31 // pred_fallthru
        _
      // Predicated region
      $region63: #{encoder_forward.4} parent=31 // pred_check
        _
      $region64: #{encoder_forward.4} parent=31 // pred_check_branch
        %298 = sbr.rel (0) target = $region66
      $region65: #{encoder_forward.4} parent=31 // pred_region
        %299 = vsyncadd [#allocation4], 2048
      $region66: #{encoder_forward.4} parent=31 // pred_fallthru
        _
      %300 = vst [vmem:[#allocation3] sm:$0xf] 0
      %301 = vst [vmem:[#allocation3 + $0x4] sm:$0xf] 0
      %302 = vst [vmem:[#allocation3 + $0x8] sm:$0x1] 0
      %303 = vst [vmem:[#allocation3 + $0xc] sm:$0xf] 0
      %304 = vst [vmem:[#allocation3 + $0x10] sm:$0xf] 0
      %305 = vst [vmem:[#allocation3 + $0x14] sm:$0x1] 0
      %306 = vst [vmem:[#allocation3 + $0x18] sm:$0xf] 0
      %307 = vst [vmem:[#allocation3 + $0x1c] sm:$0xf] 0
      %308 = vst [vmem:[#allocation3 + $0x20] sm:$0x1] 0
      %309 = vst [vmem:[#allocation3 + $0x24] sm:$0xf] 0
      %310 = vst [vmem:[#allocation3 + $0x28] sm:$0xf] 0
      %311 = vst [vmem:[#allocation3 + $0x2c] sm:$0x1] 0
      %312 = vst [vmem:[#allocation3 + $0x30] sm:$0xf] 0
      %313 = vst [vmem:[#allocation3 + $0x34] sm:$0xf] 0
      %314 = vst [vmem:[#allocation3 + $0x38] sm:$0x1] 0
      %315 = vst [vmem:[#allocation3 + $0x3c] sm:$0xf] 0
      %316 = vst [vmem:[#allocation3 + $0x40] sm:$0xf] 0
      %317 = vst [vmem:[#allocation3 + $0x44] sm:$0x1] 0
      %318 = vst [vmem:[#allocation3 + $0x48] sm:$0xf] 0
      %319 = vst [vmem:[#allocation3 + $0x4c] sm:$0xf] 0
      %320 = vst [vmem:[#allocation3 + $0x50] sm:$0x1] 0
      %321 = vst [vmem:[#allocation3 + $0x54] sm:$0xf] 0
      %322 = vst [vmem:[#allocation3 + $0x58] sm:$0xf] 0
      %323 = vst [vmem:[#allocation3 + $0x5c] sm:$0x1] 0
      %324 = vst [vmem:[#allocation3 + $0x60] sm:$0xf] 0
      %325 = vst [vmem:[#allocation3 + $0x64] sm:$0xf] 0
      %326 = vst [vmem:[#allocation3 + $0x68] sm:$0x1] 0
      %327 = vst [vmem:[#allocation3 + $0x6c] sm:$0xf] 0
      %328 = vst [vmem:[#allocation3 + $0x70] sm:$0xf] 0
      %329 = vst [vmem:[#allocation3 + $0x74] sm:$0x1] 0
      %330 = vst [vmem:[#allocation3 + $0x78] sm:$0xf] 0
      %331 = vst [vmem:[#allocation3 + $0x7c] sm:$0xf] 0
      %332 = vst [vmem:[#allocation3 + $0x80] sm:$0x1] 0
      %333 = vst [vmem:[#allocation3 + $0x84] sm:$0xf] 0
      %334 = vst [vmem:[#allocation3 + $0x88] sm:$0xf] 0
      %335 = vst [vmem:[#allocation3 + $0x8c] sm:$0x1] 0
      %336 = vst [vmem:[#allocation3 + $0x90] sm:$0xf] 0
      %337 = vst [vmem:[#allocation3 + $0x94] sm:$0xf] 0
      %338 = vst [vmem:[#allocation3 + $0x98] sm:$0x1] 0
      %339 = vst [vmem:[#allocation3 + $0x9c] sm:$0xf] 0
      %340 = vst [vmem:[#allocation3 + $0xa0] sm:$0xf] 0
      %341 = vst [vmem:[#allocation3 + $0xa4] sm:$0x1] 0
      %342 = vst [vmem:[#allocation3 + $0xa8] sm:$0xf] 0
      %343 = vst [vmem:[#allocation3 + $0xac] sm:$0xf] 0
      %344 = vst [vmem:[#allocation3 + $0xb0] sm:$0x1] 0
      %345 = vst [vmem:[#allocation3 + $0xb4] sm:$0xf] 0
      %346 = vst [vmem:[#allocation3 + $0xb8] sm:$0xf] 0
      %347 = vst [vmem:[#allocation3 + $0xbc] sm:$0x1] 0
      %348 = vst [vmem:[#allocation3 + $0xc0] sm:$0xf] 0
      %349 = vst [vmem:[#allocation3 + $0xc4] sm:$0xf] 0
      %350 = vst [vmem:[#allocation3 + $0xc8] sm:$0x1] 0
      %351 = vst [vmem:[#allocation3 + $0xcc] sm:$0xf] 0
      %352 = vst [vmem:[#allocation3 + $0xd0] sm:$0xf] 0
      %353 = vst [vmem:[#allocation3 + $0xd4] sm:$0x1] 0
      %s354 = smul.u32 4, 16
      %s355 = smul.u32 %s354, 2
      %s356 = smul.u32 %s355, 1
      %s357 = sshll.u32 %s356, 4
      %358 = dma.done [#allocation4], %s357
      %v359 = vld [vmem:[#allocation2] sm:$0xf]
      %v360 = vld [vmem:[#allocation2 + $0x4] sm:$0xf]
      %v361 = vld [vmem:[#allocation2 + $0x8] sm:$0xf]
      %v362 = vld [vmem:[#allocation2 + $0xc] sm:$0xf]
      %v363 = vld [vmem:[#allocation2 + $0x10] sm:$0xf]
      %v364 = vld [vmem:[#allocation2 + $0x14] sm:$0xf]
      %v365 = vld [vmem:[#allocation2 + $0x18] sm:$0xf]
      %v366 = vld [vmem:[#allocation2 + $0x1c] sm:$0xf]
      %v367 = vld [vmem:[#allocation2 + $0x20] sm:$0xf]
      %v368 = vld [vmem:[#allocation2 + $0x24] sm:$0xf]
      %v369 = vld [vmem:[#allocation2 + $0x28] sm:$0xf]
      %v370 = vld [vmem:[#allocation2 + $0x2c] sm:$0xf]
      %v371 = vld [vmem:[#allocation2 + $0x30] sm:$0xf]
      %v372 = vld [vmem:[#allocation2 + $0x34] sm:$0xf]
      %v373 = vld [vmem:[#allocation2 + $0x38] sm:$0xf]
      %v374 = vld [vmem:[#allocation2 + $0x3c] sm:$0xf]
      %v375 = vld [vmem:[#allocation2 + $0x40] sm:$0xf]
      %v376 = vld [vmem:[#allocation2 + $0x44] sm:$0xf]
      %v377 = vld [vmem:[#allocation2 + $0x48] sm:$0xf]
      %v378 = vld [vmem:[#allocation2 + $0x4c] sm:$0xf]
      %v379 = vld [vmem:[#allocation2 + $0x50] sm:$0xf]
      %v380 = vld [vmem:[#allocation2 + $0x54] sm:$0xf]
      %v381 = vld [vmem:[#allocation2 + $0x58] sm:$0xf]
      %v382 = vld [vmem:[#allocation2 + $0x5c] sm:$0xf]
      %v383 = vld [vmem:[#allocation2 + $0x60] sm:$0xf]
      %v384 = vld [vmem:[#allocation2 + $0x64] sm:$0xf]
      %v385 = vld [vmem:[#allocation2 + $0x68] sm:$0xf]
      %v386 = vld [vmem:[#allocation2 + $0x6c] sm:$0xf]
      %v387 = vld [vmem:[#allocation2 + $0x70] sm:$0xf]
      %v388 = vld [vmem:[#allocation2 + $0x74] sm:$0xf]
      %v389 = vld [vmem:[#allocation2 + $0x78] sm:$0xf]
      %v390 = vld [vmem:[#allocation2 + $0x7c] sm:$0xf]
      %v391 = vunpack.c.l.bf16 %v359
      %v392 = vunpack.c.l.bf16 %v360
      %v393 = vunpack.c.l.bf16 %v361
      %v394 = vunpack.c.l.bf16 %v362
      %v395 = vunpack.c.l.bf16 %v363
      %v396 = vunpack.c.l.bf16 %v364
      %v397 = vunpack.c.l.bf16 %v365
      %v398 = vunpack.c.l.bf16 %v366
      %v399 = vunpack.c.l.bf16 %v367
      %v400 = vunpack.c.l.bf16 %v368
      %v401 = vunpack.c.l.bf16 %v369
      %v402 = vunpack.c.l.bf16 %v370
      %v403 = vunpack.c.l.bf16 %v371
      %v404 = vunpack.c.l.bf16 %v372
      %v405 = vunpack.c.l.bf16 %v373
      %v406 = vunpack.c.l.bf16 %v374
      %v407 = vunpack.c.l.bf16 %v375
      %v408 = vunpack.c.l.bf16 %v376
      %v409 = vunpack.c.l.bf16 %v377
      %v410 = vunpack.c.l.bf16 %v378
      %v411 = vunpack.c.l.bf16 %v379
      %v412 = vunpack.c.l.bf16 %v380
      %v413 = vunpack.c.l.bf16 %v381
      %v414 = vunpack.c.l.bf16 %v382
      %v415 = vunpack.c.l.bf16 %v383
      %v416 = vunpack.c.l.bf16 %v384
      %v417 = vunpack.c.l.bf16 %v385
      %v418 = vunpack.c.l.bf16 %v386
      %v419 = vunpack.c.l.bf16 %v387
      %v420 = vunpack.c.l.bf16 %v388
      %v421 = vunpack.c.l.bf16 %v389
      %v422 = vunpack.c.l.bf16 %v390
      %v423 = vld [vmem:[%s1] sm:$0x1]
      %v425 = vlaneseq
      %v426 = vshrl.u32 %v425, 7
      %v427 = vsub.s32 0, %v426
      %v428 = vrot.slane %v423, %v427
      %v430 = vmul.f32 %v391, %v428
      %v431 = vmul.f32 %v392, %v428
      %v432 = vmul.f32 %v393, %v428
      %v433 = vmul.f32 %v394, %v428
      %v434 = vmul.f32 %v395, %v428
      %v435 = vmul.f32 %v396, %v428
      %v436 = vmul.f32 %v397, %v428
      %v437 = vmul.f32 %v398, %v428
      %v438 = vmul.f32 %v399, %v428
      %v439 = vmul.f32 %v400, %v428
      %v440 = vmul.f32 %v401, %v428
      %v441 = vmul.f32 %v402, %v428
      %v442 = vmul.f32 %v403, %v428
      %v443 = vmul.f32 %v404, %v428
      %v444 = vmul.f32 %v405, %v428
      %v445 = vmul.f32 %v406, %v428
      %v446 = vmul.f32 %v407, %v428
      %v447 = vmul.f32 %v408, %v428
      %v448 = vmul.f32 %v409, %v428
      %v449 = vmul.f32 %v410, %v428
      %v450 = vmul.f32 %v411, %v428
      %v451 = vmul.f32 %v412, %v428
      %v452 = vmul.f32 %v413, %v428
      %v453 = vmul.f32 %v414, %v428
      %v454 = vmul.f32 %v415, %v428
      %v455 = vmul.f32 %v416, %v428
      %v456 = vmul.f32 %v417, %v428
      %v457 = vmul.f32 %v418, %v428
      %v458 = vmul.f32 %v419, %v428
      %v459 = vmul.f32 %v420, %v428
      %v460 = vmul.f32 %v421, %v428
      %v461 = vmul.f32 %v422, %v428
      %v462 = vld [vmem:[%s2] sm:$0x1]
      %v464 = vlaneseq
      %v465 = vshrl.u32 %v464, 7
      %v466 = vsub.s32 0, %v465
      %v467 = vrot.slane %v462, %v466
      %v469 = vadd.f32 %v430, %v467
      %v470 = vadd.f32 %v431, %v467
      %v471 = vadd.f32 %v432, %v467
      %v472 = vadd.f32 %v433, %v467
      %v473 = vadd.f32 %v434, %v467
      %v474 = vadd.f32 %v435, %v467
      %v475 = vadd.f32 %v436, %v467
      %v476 = vadd.f32 %v437, %v467
      %v477 = vadd.f32 %v438, %v467
      %v478 = vadd.f32 %v439, %v467
      %v479 = vadd.f32 %v440, %v467
      %v480 = vadd.f32 %v441, %v467
      %v481 = vadd.f32 %v442, %v467
      %v482 = vadd.f32 %v443, %v467
      %v483 = vadd.f32 %v444, %v467
      %v484 = vadd.f32 %v445, %v467
      %v485 = vadd.f32 %v446, %v467
      %v486 = vadd.f32 %v447, %v467
      %v487 = vadd.f32 %v448, %v467
      %v488 = vadd.f32 %v449, %v467
      %v489 = vadd.f32 %v450, %v467
      %v490 = vadd.f32 %v451, %v467
      %v491 = vadd.f32 %v452, %v467
      %v492 = vadd.f32 %v453, %v467
      %v493 = vadd.f32 %v454, %v467
      %v494 = vadd.f32 %v455, %v467
      %v495 = vadd.f32 %v456, %v467
      %v496 = vadd.f32 %v457, %v467
      %v497 = vadd.f32 %v458, %v467
      %v498 = vadd.f32 %v459, %v467
      %v499 = vadd.f32 %v460, %v467
      %v500 = vadd.f32 %v461, %v467
      %v501 = vmax.f32 %v469, 0.0
      %v502 = vmax.f32 %v470, 0.0
      %v503 = vmax.f32 %v471, 0.0
      %v504 = vmax.f32 %v472, 0.0
      %v505 = vmax.f32 %v473, 0.0
      %v506 = vmax.f32 %v474, 0.0
      %v507 = vmax.f32 %v475, 0.0
      %v508 = vmax.f32 %v476, 0.0
      %v509 = vmax.f32 %v477, 0.0
      %v510 = vmax.f32 %v478, 0.0
      %v511 = vmax.f32 %v479, 0.0
      %v512 = vmax.f32 %v480, 0.0
      %v513 = vmax.f32 %v481, 0.0
      %v514 = vmax.f32 %v482, 0.0
      %v515 = vmax.f32 %v483, 0.0
      %v516 = vmax.f32 %v484, 0.0
      %v517 = vmax.f32 %v485, 0.0
      %v518 = vmax.f32 %v486, 0.0
      %v519 = vmax.f32 %v487, 0.0
      %v520 = vmax.f32 %v488, 0.0
      %v521 = vmax.f32 %v489, 0.0
      %v522 = vmax.f32 %v490, 0.0
      %v523 = vmax.f32 %v491, 0.0
      %v524 = vmax.f32 %v492, 0.0
      %v525 = vmax.f32 %v493, 0.0
      %v526 = vmax.f32 %v494, 0.0
      %v527 = vmax.f32 %v495, 0.0
      %v528 = vmax.f32 %v496, 0.0
      %v529 = vmax.f32 %v497, 0.0
      %v530 = vmax.f32 %v498, 0.0
      %v531 = vmax.f32 %v499, 0.0
      %v532 = vmax.f32 %v500, 0.0
      %v533 = vpack.c.bf16 %v502, %v501
      %v534 = vpack.c.bf16 %v504, %v503
      %v535 = vpack.c.bf16 %v506, %v505
      %v536 = vpack.c.bf16 %v508, %v507
      %v537 = vpack.c.bf16 %v510, %v509
      %v538 = vpack.c.bf16 %v512, %v511
      %v539 = vpack.c.bf16 %v514, %v513
      %v540 = vpack.c.bf16 %v516, %v515
      %v541 = vpack.c.bf16 %v518, %v517
      %v542 = vpack.c.bf16 %v520, %v519
      %v543 = vpack.c.bf16 %v522, %v521
      %v544 = vpack.c.bf16 %v524, %v523
      %v545 = vpack.c.bf16 %v526, %v525
      %v546 = vpack.c.bf16 %v528, %v527
      %v547 = vpack.c.bf16 %v530, %v529
      %v548 = vpack.c.bf16 %v532, %v531
      %v565 = vunpack.c.l.b16 %v533
      %v566 = vunpack.c.h.b16 %v533
      %v567 = vunpack.c.l.b16 %v534
      %v568 = vunpack.c.h.b16 %v534
      %v569 = vunpack.c.l.b16 %v535
      %v570 = vunpack.c.h.b16 %v535
      %v571 = vunpack.c.l.b16 %v536
      %v572 = vunpack.c.h.b16 %v536
      %v573 = vunpack.c.l.b16 %v537
      %v574 = vunpack.c.h.b16 %v537
      %v575 = vunpack.c.l.b16 %v538
      %v576 = vunpack.c.h.b16 %v538
      %v577 = vunpack.c.l.b16 %v539
      %v578 = vunpack.c.h.b16 %v539
      %v579 = vunpack.c.l.b16 %v540
      %v580 = vunpack.c.h.b16 %v540
      %v581 = vunpack.c.l.b16 %v541
      %v582 = vunpack.c.h.b16 %v541
      %v583 = vunpack.c.l.b16 %v542
      %v584 = vunpack.c.h.b16 %v542
      %v585 = vunpack.c.l.b16 %v543
      %v586 = vunpack.c.h.b16 %v543
      %v587 = vunpack.c.l.b16 %v544
      %v588 = vunpack.c.h.b16 %v544
      %v589 = vunpack.c.l.b16 %v545
      %v590 = vunpack.c.h.b16 %v545
      %v591 = vunpack.c.l.b16 %v546
      %v592 = vunpack.c.h.b16 %v546
      %v593 = vunpack.c.l.b16 %v547
      %v594 = vunpack.c.h.b16 %v547
      %v595 = vunpack.c.l.b16 %v548
      %v596 = vunpack.c.h.b16 %v548
      %v597 = vpack.c.b16 %v565, %v565
      %v598 = vpack.c.b16 %v566, %v566
      %v599 = vpack.c.b16 %v567, %v567
      %v600 = vpack.c.b16 %v568, %v568
      %v601 = vpack.c.b16 %v569, %v569
      %v602 = vpack.c.b16 %v570, %v570
      %v603 = vpack.c.b16 %v571, %v571
      %v604 = vpack.c.b16 %v572, %v572
      %v605 = vpack.c.b16 %v573, %v573
      %v606 = vpack.c.b16 %v574, %v574
      %v607 = vpack.c.b16 %v575, %v575
      %v608 = vpack.c.b16 %v576, %v576
      %v609 = vpack.c.b16 %v577, %v577
      %v610 = vpack.c.b16 %v578, %v578
      %v611 = vpack.c.b16 %v579, %v579
      %v612 = vpack.c.b16 %v580, %v580
      %v613 = vpack.c.b16 %v581, %v581
      %v614 = vpack.c.b16 %v582, %v582
      %v615 = vpack.c.b16 %v583, %v583
      %v616 = vpack.c.b16 %v584, %v584
      %v617 = vpack.c.b16 %v585, %v585
      %v618 = vpack.c.b16 %v586, %v586
      %v619 = vpack.c.b16 %v587, %v587
      %v620 = vpack.c.b16 %v588, %v588
      %v621 = vpack.c.b16 %v589, %v589
      %v622 = vpack.c.b16 %v590, %v590
      %v623 = vpack.c.b16 %v591, %v591
      %v624 = vpack.c.b16 %v592, %v592
      %v625 = vpack.c.b16 %v593, %v593
      %v626 = vpack.c.b16 %v594, %v594
      %v627 = vpack.c.b16 %v595, %v595
      %v628 = vpack.c.b16 %v596, %v596
      %vm629 = vsmask.f32 256
      %vm630 = vsmask.f32 4368
      %vm631 = vmor %vm629, %vm630
      %v633 = vshrl.u32 %v597, 16
      %v635 = vrot.slane %v633, 7
      %v636 = vshll.u32 %v597, 16
      %v638 = vor.u32 %v635, %v636
      %v639 = vrot.slane %v635, 4
      %v641 = vshrl.u32 %v598, 16
      %v643 = vrot.slane %v641, 7
      %v644 = vshll.u32 %v598, 16
      %v646 = vor.u32 %v643, %v644
      %v647 = vsel %vm631, %v639, %v646
      %v648 = vrot.slane %v643, 4
      %v650 = vshrl.u32 %v599, 16
      %v652 = vrot.slane %v650, 7
      %v653 = vshll.u32 %v599, 16
      %v655 = vor.u32 %v652, %v653
      %v656 = vrot.slane %v652, 4
      %v658 = vshrl.u32 %v600, 16
      %v660 = vrot.slane %v658, 7
      %v661 = vshll.u32 %v600, 16
      %v663 = vor.u32 %v660, %v661
      %v664 = vsel %vm631, %v656, %v663
      %v665 = vrot.slane %v660, 4
      %v667 = vshrl.u32 %v601, 16
      %v669 = vrot.slane %v667, 7
      %v670 = vshll.u32 %v601, 16
      %v672 = vor.u32 %v669, %v670
      %v673 = vrot.slane %v669, 4
      %v675 = vshrl.u32 %v602, 16
      %v677 = vrot.slane %v675, 7
      %v678 = vshll.u32 %v602, 16
      %v680 = vor.u32 %v677, %v678
      %v681 = vsel %vm631, %v673, %v680
      %v682 = vrot.slane %v677, 4
      %v684 = vshrl.u32 %v603, 16
      %v686 = vrot.slane %v684, 7
      %v687 = vshll.u32 %v603, 16
      %v689 = vor.u32 %v686, %v687
      %v690 = vrot.slane %v686, 4
      %v692 = vshrl.u32 %v604, 16
      %v694 = vrot.slane %v692, 7
      %v695 = vshll.u32 %v604, 16
      %v697 = vor.u32 %v694, %v695
      %v698 = vsel %vm631, %v690, %v697
      %v699 = vrot.slane %v694, 4
      %v701 = vshrl.u32 %v605, 16
      %v703 = vrot.slane %v701, 7
      %v704 = vshll.u32 %v605, 16
      %v706 = vor.u32 %v703, %v704
      %v707 = vrot.slane %v703, 4
      %v709 = vshrl.u32 %v606, 16
      %v711 = vrot.slane %v709, 7
      %v712 = vshll.u32 %v606, 16
      %v714 = vor.u32 %v711, %v712
      %v715 = vsel %vm631, %v707, %v714
      %v716 = vrot.slane %v711, 4
      %v718 = vshrl.u32 %v607, 16
      %v720 = vrot.slane %v718, 7
      %v721 = vshll.u32 %v607, 16
      %v723 = vor.u32 %v720, %v721
      %v724 = vrot.slane %v720, 4
      %v726 = vshrl.u32 %v608, 16
      %v728 = vrot.slane %v726, 7
      %v729 = vshll.u32 %v608, 16
      %v731 = vor.u32 %v728, %v729
      %v732 = vsel %vm631, %v724, %v731
      %v733 = vrot.slane %v728, 4
      %v735 = vshrl.u32 %v609, 16
      %v737 = vrot.slane %v735, 7
      %v738 = vshll.u32 %v609, 16
      %v740 = vor.u32 %v737, %v738
      %v741 = vrot.slane %v737, 4
      %v743 = vshrl.u32 %v610, 16
      %v745 = vrot.slane %v743, 7
      %v746 = vshll.u32 %v610, 16
      %v748 = vor.u32 %v745, %v746
      %v749 = vsel %vm631, %v741, %v748
      %v750 = vrot.slane %v745, 4
      %v752 = vshrl.u32 %v611, 16
      %v754 = vrot.slane %v752, 7
      %v755 = vshll.u32 %v611, 16
      %v757 = vor.u32 %v754, %v755
      %v758 = vrot.slane %v754, 4
      %v760 = vshrl.u32 %v612, 16
      %v762 = vrot.slane %v760, 7
      %v763 = vshll.u32 %v612, 16
      %v765 = vor.u32 %v762, %v763
      %v766 = vsel %vm631, %v758, %v765
      %v767 = vrot.slane %v762, 4
      %v769 = vshrl.u32 %v613, 16
      %v771 = vrot.slane %v769, 7
      %v772 = vshll.u32 %v613, 16
      %v774 = vor.u32 %v771, %v772
      %v775 = vrot.slane %v771, 4
      %v777 = vshrl.u32 %v614, 16
      %v779 = vrot.slane %v777, 7
      %v780 = vshll.u32 %v614, 16
      %v782 = vor.u32 %v779, %v780
      %v783 = vsel %vm631, %v775, %v782
      %v784 = vrot.slane %v779, 4
      %v786 = vshrl.u32 %v615, 16
      %v788 = vrot.slane %v786, 7
      %v789 = vshll.u32 %v615, 16
      %v791 = vor.u32 %v788, %v789
      %v792 = vrot.slane %v788, 4
      %v794 = vshrl.u32 %v616, 16
      %v796 = vrot.slane %v794, 7
      %v797 = vshll.u32 %v616, 16
      %v799 = vor.u32 %v796, %v797
      %v800 = vsel %vm631, %v792, %v799
      %v801 = vrot.slane %v796, 4
      %v803 = vshrl.u32 %v617, 16
      %v805 = vrot.slane %v803, 7
      %v806 = vshll.u32 %v617, 16
      %v808 = vor.u32 %v805, %v806
      %v809 = vrot.slane %v805, 4
      %v811 = vshrl.u32 %v618, 16
      %v813 = vrot.slane %v811, 7
      %v814 = vshll.u32 %v618, 16
      %v816 = vor.u32 %v813, %v814
      %v817 = vsel %vm631, %v809, %v816
      %v818 = vrot.slane %v813, 4
      %v820 = vshrl.u32 %v619, 16
      %v822 = vrot.slane %v820, 7
      %v823 = vshll.u32 %v619, 16
      %v825 = vor.u32 %v822, %v823
      %v826 = vrot.slane %v822, 4
      %v828 = vshrl.u32 %v620, 16
      %v830 = vrot.slane %v828, 7
      %v831 = vshll.u32 %v620, 16
      %v833 = vor.u32 %v830, %v831
      %v834 = vsel %vm631, %v826, %v833
      %v835 = vrot.slane %v830, 4
      %v837 = vshrl.u32 %v621, 16
      %v839 = vrot.slane %v837, 7
      %v840 = vshll.u32 %v621, 16
      %v842 = vor.u32 %v839, %v840
      %v843 = vrot.slane %v839, 4
      %v845 = vshrl.u32 %v622, 16
      %v847 = vrot.slane %v845, 7
      %v848 = vshll.u32 %v622, 16
      %v850 = vor.u32 %v847, %v848
      %v851 = vsel %vm631, %v843, %v850
      %v852 = vrot.slane %v847, 4
      %v854 = vshrl.u32 %v623, 16
      %v856 = vrot.slane %v854, 7
      %v857 = vshll.u32 %v623, 16
      %v859 = vor.u32 %v856, %v857
      %v860 = vrot.slane %v856, 4
      %v862 = vshrl.u32 %v624, 16
      %v864 = vrot.slane %v862, 7
      %v865 = vshll.u32 %v624, 16
      %v867 = vor.u32 %v864, %v865
      %v868 = vsel %vm631, %v860, %v867
      %v869 = vrot.slane %v864, 4
      %v871 = vshrl.u32 %v625, 16
      %v873 = vrot.slane %v871, 7
      %v874 = vshll.u32 %v625, 16
      %v876 = vor.u32 %v873, %v874
      %v877 = vrot.slane %v873, 4
      %v879 = vshrl.u32 %v626, 16
      %v881 = vrot.slane %v879, 7
      %v882 = vshll.u32 %v626, 16
      %v884 = vor.u32 %v881, %v882
      %v885 = vsel %vm631, %v877, %v884
      %v886 = vrot.slane %v881, 4
      %v888 = vshrl.u32 %v627, 16
      %v890 = vrot.slane %v888, 7
      %v891 = vshll.u32 %v627, 16
      %v893 = vor.u32 %v890, %v891
      %v894 = vrot.slane %v890, 4
      %v896 = vshrl.u32 %v628, 16
      %v898 = vrot.slane %v896, 7
      %v899 = vshll.u32 %v628, 16
      %v901 = vor.u32 %v898, %v899
      %v902 = vsel %vm631, %v894, %v901
      %v903 = vrot.slane %v898, 4
      %s952 = scalar_lea.vmem [#allocation3], 12
      %vm953 = vcmask 1043456
      %vm954 = vsmask.f32 7938
      %vm955 = vmand %vm953, %vm954
      %v956 = vld [vmem:[%s952] sm:$0xf]
      %v957 = vsel %vm955, %v638, %v956
      %958 = vst [vmem:[%s952] sm:$0xf] %v957
      %959 = vst [vmem:[%s952 + $0x4] sm:$0xf] %v647
      %vm960 = vcmask 1040384
      %vm961 = vmand %vm960, %vm629
      %v962 = vld [vmem:[%s952 + $0x8] sm:$0x1]
      %v963 = vsel %vm961, %v648, %v962
      %964 = vst [vmem:[%s952 + $0x8] sm:$0x1] %v963
      %v965 = vld [vmem:[%s952 + $0xc] sm:$0xf]
      %v966 = vsel %vm955, %v655, %v965
      %967 = vst [vmem:[%s952 + $0xc] sm:$0xf] %v966
      %968 = vst [vmem:[%s952 + $0x10] sm:$0xf] %v664
      %v969 = vld [vmem:[%s952 + $0x14] sm:$0x1]
      %v970 = vsel %vm961, %v665, %v969
      %971 = vst [vmem:[%s952 + $0x14] sm:$0x1] %v970
      %v972 = vld [vmem:[%s952 + $0x18] sm:$0xf]
      %v973 = vsel %vm955, %v672, %v972
      %974 = vst [vmem:[%s952 + $0x18] sm:$0xf] %v973
      %975 = vst [vmem:[%s952 + $0x1c] sm:$0xf] %v681
      %v976 = vld [vmem:[%s952 + $0x20] sm:$0x1]
      %v977 = vsel %vm961, %v682, %v976
      %978 = vst [vmem:[%s952 + $0x20] sm:$0x1] %v977
      %v979 = vld [vmem:[%s952 + $0x24] sm:$0xf]
      %v980 = vsel %vm955, %v689, %v979
      %981 = vst [vmem:[%s952 + $0x24] sm:$0xf] %v980
      %982 = vst [vmem:[%s952 + $0x28] sm:$0xf] %v698
      %v983 = vld [vmem:[%s952 + $0x2c] sm:$0x1]
      %v984 = vsel %vm961, %v699, %v983
      %985 = vst [vmem:[%s952 + $0x2c] sm:$0x1] %v984
      %v986 = vld [vmem:[%s952 + $0x30] sm:$0xf]
      %v987 = vsel %vm955, %v706, %v986
      %988 = vst [vmem:[%s952 + $0x30] sm:$0xf] %v987
      %989 = vst [vmem:[%s952 + $0x34] sm:$0xf] %v715
      %v990 = vld [vmem:[%s952 + $0x38] sm:$0x1]
      %v991 = vsel %vm961, %v716, %v990
      %992 = vst [vmem:[%s952 + $0x38] sm:$0x1] %v991
      %v993 = vld [vmem:[%s952 + $0x3c] sm:$0xf]
      %v994 = vsel %vm955, %v723, %v993
      %995 = vst [vmem:[%s952 + $0x3c] sm:$0xf] %v994
      %996 = vst [vmem:[%s952 + $0x40] sm:$0xf] %v732
      %v997 = vld [vmem:[%s952 + $0x44] sm:$0x1]
      %v998 = vsel %vm961, %v733, %v997
      %999 = vst [vmem:[%s952 + $0x44] sm:$0x1] %v998
      %v1000 = vld [vmem:[%s952 + $0x48] sm:$0xf]
      %v1001 = vsel %vm955, %v740, %v1000
      %1002 = vst [vmem:[%s952 + $0x48] sm:$0xf] %v1001
      %1003 = vst [vmem:[%s952 + $0x4c] sm:$0xf] %v749
      %v1004 = vld [vmem:[%s952 + $0x50] sm:$0x1]
      %v1005 = vsel %vm961, %v750, %v1004
      %1006 = vst [vmem:[%s952 + $0x50] sm:$0x1] %v1005
      %v1007 = vld [vmem:[%s952 + $0x54] sm:$0xf]
      %v1008 = vsel %vm955, %v757, %v1007
      %1009 = vst [vmem:[%s952 + $0x54] sm:$0xf] %v1008
      %1010 = vst [vmem:[%s952 + $0x58] sm:$0xf] %v766
      %v1011 = vld [vmem:[%s952 + $0x5c] sm:$0x1]
      %v1012 = vsel %vm961, %v767, %v1011
      %1013 = vst [vmem:[%s952 + $0x5c] sm:$0x1] %v1012
      %v1014 = vld [vmem:[%s952 + $0x60] sm:$0xf]
      %v1015 = vsel %vm955, %v774, %v1014
      %1016 = vst [vmem:[%s952 + $0x60] sm:$0xf] %v1015
      %1017 = vst [vmem:[%s952 + $0x64] sm:$0xf] %v783
      %v1018 = vld [vmem:[%s952 + $0x68] sm:$0x1]
      %v1019 = vsel %vm961, %v784, %v1018
      %1020 = vst [vmem:[%s952 + $0x68] sm:$0x1] %v1019
      %v1021 = vld [vmem:[%s952 + $0x6c] sm:$0xf]
      %v1022 = vsel %vm955, %v791, %v1021
      %1023 = vst [vmem:[%s952 + $0x6c] sm:$0xf] %v1022
      %1024 = vst [vmem:[%s952 + $0x70] sm:$0xf] %v800
      %v1025 = vld [vmem:[%s952 + $0x74] sm:$0x1]
      %v1026 = vsel %vm961, %v801, %v1025
      %1027 = vst [vmem:[%s952 + $0x74] sm:$0x1] %v1026
      %v1028 = vld [vmem:[%s952 + $0x78] sm:$0xf]
      %v1029 = vsel %vm955, %v808, %v1028
      %1030 = vst [vmem:[%s952 + $0x78] sm:$0xf] %v1029
      %1031 = vst [vmem:[%s952 + $0x7c] sm:$0xf] %v817
      %v1032 = vld [vmem:[%s952 + $0x80] sm:$0x1]
      %v1033 = vsel %vm961, %v818, %v1032
      %1034 = vst [vmem:[%s952 + $0x80] sm:$0x1] %v1033
      %v1035 = vld [vmem:[%s952 + $0x84] sm:$0xf]
      %v1036 = vsel %vm955, %v825, %v1035
      %1037 = vst [vmem:[%s952 + $0x84] sm:$0xf] %v1036
      %1038 = vst [vmem:[%s952 + $0x88] sm:$0xf] %v834
      %v1039 = vld [vmem:[%s952 + $0x8c] sm:$0x1]
      %v1040 = vsel %vm961, %v835, %v1039
      %1041 = vst [vmem:[%s952 + $0x8c] sm:$0x1] %v1040
      %v1042 = vld [vmem:[%s952 + $0x90] sm:$0xf]
      %v1043 = vsel %vm955, %v842, %v1042
      %1044 = vst [vmem:[%s952 + $0x90] sm:$0xf] %v1043
      %1045 = vst [vmem:[%s952 + $0x94] sm:$0xf] %v851
      %v1046 = vld [vmem:[%s952 + $0x98] sm:$0x1]
      %v1047 = vsel %vm961, %v852, %v1046
      %1048 = vst [vmem:[%s952 + $0x98] sm:$0x1] %v1047
      %v1049 = vld [vmem:[%s952 + $0x9c] sm:$0xf]
      %v1050 = vsel %vm955, %v859, %v1049
      %1051 = vst [vmem:[%s952 + $0x9c] sm:$0xf] %v1050
      %1052 = vst [vmem:[%s952 + $0xa0] sm:$0xf] %v868
      %v1053 = vld [vmem:[%s952 + $0xa4] sm:$0x1]
      %v1054 = vsel %vm961, %v869, %v1053
      %1055 = vst [vmem:[%s952 + $0xa4] sm:$0x1] %v1054
      %v1056 = vld [vmem:[%s952 + $0xa8] sm:$0xf]
      %v1057 = vsel %vm955, %v876, %v1056
      %1058 = vst [vmem:[%s952 + $0xa8] sm:$0xf] %v1057
      %1059 = vst [vmem:[%s952 + $0xac] sm:$0xf] %v885
      %v1060 = vld [vmem:[%s952 + $0xb0] sm:$0x1]
      %v1061 = vsel %vm961, %v886, %v1060
      %1062 = vst [vmem:[%s952 + $0xb0] sm:$0x1] %v1061
      %v1063 = vld [vmem:[%s952 + $0xb4] sm:$0xf]
      %v1064 = vsel %vm955, %v893, %v1063
      %1065 = vst [vmem:[%s952 + $0xb4] sm:$0xf] %v1064
      %1066 = vst [vmem:[%s952 + $0xb8] sm:$0xf] %v902
      %v1067 = vld [vmem:[%s952 + $0xbc] sm:$0x1]
      %v1068 = vsel %vm961, %v903, %v1067
      %1069 = vst [vmem:[%s952 + $0xbc] sm:$0x1] %v1068
      %v1070 = vld [vmem:[#allocation3] sm:$0xf]
      %v1071 = vld [vmem:[#allocation3 + $0x4] sm:$0xf]
      %v1072 = vld [vmem:[#allocation3 + $0xc] sm:$0xf]
      %v1073 = vld [vmem:[#allocation3 + $0x10] sm:$0xf]
      %v1074 = vld [vmem:[#allocation3 + $0x18] sm:$0xf]
      %v1075 = vld [vmem:[#allocation3 + $0x1c] sm:$0xf]
      %v1076 = vld [vmem:[#allocation3 + $0x24] sm:$0xf]
      %v1077 = vld [vmem:[#allocation3 + $0x28] sm:$0xf]
      %v1078 = vld [vmem:[#allocation3 + $0x30] sm:$0xf]
      %v1079 = vld [vmem:[#allocation3 + $0x34] sm:$0xf]
      %v1080 = vld [vmem:[#allocation3 + $0x3c] sm:$0xf]
      %v1081 = vld [vmem:[#allocation3 + $0x40] sm:$0xf]
      %v1082 = vld [vmem:[#allocation3 + $0x48] sm:$0xf]
      %v1083 = vld [vmem:[#allocation3 + $0x4c] sm:$0xf]
      %v1084 = vld [vmem:[#allocation3 + $0x54] sm:$0xf]
      %v1085 = vld [vmem:[#allocation3 + $0x58] sm:$0xf]
      %v1086 = vld [vmem:[#allocation3 + $0x60] sm:$0xf]
      %v1087 = vld [vmem:[#allocation3 + $0x64] sm:$0xf]
      %v1088 = vld [vmem:[#allocation3 + $0x6c] sm:$0xf]
      %v1089 = vld [vmem:[#allocation3 + $0x70] sm:$0xf]
      %v1090 = vld [vmem:[#allocation3 + $0x78] sm:$0xf]
      %v1091 = vld [vmem:[#allocation3 + $0x7c] sm:$0xf]
      %v1092 = vld [vmem:[#allocation3 + $0x84] sm:$0xf]
      %v1093 = vld [vmem:[#allocation3 + $0x88] sm:$0xf]
      %v1094 = vld [vmem:[#allocation3 + $0x90] sm:$0xf]
      %v1095 = vld [vmem:[#allocation3 + $0x94] sm:$0xf]
      %v1096 = vld [vmem:[#allocation3 + $0x9c] sm:$0xf]
      %v1097 = vld [vmem:[#allocation3 + $0xa0] sm:$0xf]
      %v1098 = vld [vmem:[#allocation3 + $0xa8] sm:$0xf]
      %v1099 = vld [vmem:[#allocation3 + $0xac] sm:$0xf]
      %v1100 = vld [vmem:[#allocation3 + $0xb4] sm:$0xf]
      %v1101 = vld [vmem:[#allocation3 + $0xb8] sm:$0xf]
      %v1102 = vld [vmem:[#allocation3 + $0xc0] sm:$0xf]
      %v1103 = vld [vmem:[#allocation3 + $0xc4] sm:$0xf]
      %v1104 = vld [vmem:[#allocation3 + $0xcc] sm:$0xf]
      %v1105 = vld [vmem:[#allocation3 + $0xd0] sm:$0xf]
      %v1106 = vld [vmem:[%s3] sm:$0xf]
      %v1107 = vld [vmem:[%s3 + $0x4] sm:$0xf]
      %v1108 = vld [vmem:[%s3 + $0x8] sm:$0xf]
      %v1109 = vld [vmem:[%s3 + $0xc] sm:$0xf]
      %v1110 = vld [vmem:[%s3 + $0x10] sm:$0xf]
      %v1111 = vld [vmem:[%s3 + $0x14] sm:$0xf]
      %v1112 = vld [vmem:[%s3 + $0x18] sm:$0xf]
      %v1113 = vld [vmem:[%s3 + $0x1c] sm:$0xf]
      %v1114 = vld [vmem:[%s3 + $0x20] sm:$0xf]
      %v1115 = vld [vmem:[%s3 + $0x24] sm:$0xf]
      %v1116 = vld [vmem:[%s3 + $0x28] sm:$0xf]
      %v1117 = vld [vmem:[%s3 + $0x2c] sm:$0xf]
      %v1118 = vld [vmem:[%s3 + $0x30] sm:$0xf]
      %v1119 = vld [vmem:[%s3 + $0x34] sm:$0xf]
      %v1120 = vld [vmem:[%s3 + $0x38] sm:$0xf]
      %v1121 = vld [vmem:[%s3 + $0x3c] sm:$0xf]
      %s1122 = scalar_lea.vmem %s3, 192
      %v1123 = vld [vmem:[%s1122] sm:$0xf]
      %v1124 = vld [vmem:[%s1122 + $0x4] sm:$0xf]
      %v1125 = vld [vmem:[%s1122 + $0x8] sm:$0xf]
      %v1126 = vld [vmem:[%s1122 + $0xc] sm:$0xf]
      %v1127 = vld [vmem:[%s1122 + $0x10] sm:$0xf]
      %v1128 = vld [vmem:[%s1122 + $0x14] sm:$0xf]
      %v1129 = vld [vmem:[%s1122 + $0x18] sm:$0xf]
      %v1130 = vld [vmem:[%s1122 + $0x1c] sm:$0xf]
      %v1131 = vld [vmem:[%s1122 + $0x20] sm:$0xf]
      %v1132 = vld [vmem:[%s1122 + $0x24] sm:$0xf]
      %v1133 = vld [vmem:[%s1122 + $0x28] sm:$0xf]
      %v1134 = vld [vmem:[%s1122 + $0x2c] sm:$0xf]
      %v1135 = vld [vmem:[%s1122 + $0x30] sm:$0xf]
      %v1136 = vld [vmem:[%s1122 + $0x34] sm:$0xf]
      %v1137 = vld [vmem:[%s1122 + $0x38] sm:$0xf]
      %v1138 = vld [vmem:[%s1122 + $0x3c] sm:$0xf]
      %v1171 = vunpack.c.l.b16 %v1072
      %v1172 = vunpack.c.l.b16 %v1073
      %v1173 = vunpack.c.l.b16 %v1074
      %v1174 = vunpack.c.l.b16 %v1075
      %v1175 = vunpack.c.l.b16 %v1076
      %v1176 = vunpack.c.l.b16 %v1077
      %v1177 = vunpack.c.l.b16 %v1078
      %v1178 = vunpack.c.l.b16 %v1079
      %v1179 = vunpack.c.l.b16 %v1080
      %v1180 = vunpack.c.l.b16 %v1081
      %v1181 = vunpack.c.l.b16 %v1082
      %v1182 = vunpack.c.l.b16 %v1083
      %v1183 = vunpack.c.l.b16 %v1084
      %v1184 = vunpack.c.l.b16 %v1085
      %v1185 = vunpack.c.l.b16 %v1086
      %v1186 = vunpack.c.l.b16 %v1087
      %v1187 = vunpack.c.l.b16 %v1088
      %v1188 = vunpack.c.l.b16 %v1089
      %v1189 = vunpack.c.l.b16 %v1090
      %v1190 = vunpack.c.l.b16 %v1091
      %v1191 = vunpack.c.l.b16 %v1092
      %v1192 = vunpack.c.l.b16 %v1093
      %v1193 = vunpack.c.l.b16 %v1094
      %v1194 = vunpack.c.l.b16 %v1095
      %v1195 = vunpack.c.l.b16 %v1096
      %v1196 = vunpack.c.l.b16 %v1097
      %v1197 = vunpack.c.l.b16 %v1098
      %v1198 = vunpack.c.l.b16 %v1099
      %v1199 = vunpack.c.l.b16 %v1100
      %v1200 = vunpack.c.l.b16 %v1101
      %v1201 = vunpack.c.l.b16 %v1102
      %v1202 = vunpack.c.l.b16 %v1103
      %v1203 = vpack.c.b16 %v1172, %v1171
      %v1204 = vpack.c.b16 %v1174, %v1173
      %v1205 = vpack.c.b16 %v1176, %v1175
      %v1206 = vpack.c.b16 %v1178, %v1177
      %v1207 = vpack.c.b16 %v1180, %v1179
      %v1208 = vpack.c.b16 %v1182, %v1181
      %v1209 = vpack.c.b16 %v1184, %v1183
      %v1210 = vpack.c.b16 %v1186, %v1185
      %v1211 = vpack.c.b16 %v1188, %v1187
      %v1212 = vpack.c.b16 %v1190, %v1189
      %v1213 = vpack.c.b16 %v1192, %v1191
      %v1214 = vpack.c.b16 %v1194, %v1193
      %v1215 = vpack.c.b16 %v1196, %v1195
      %v1216 = vpack.c.b16 %v1198, %v1197
      %v1217 = vpack.c.b16 %v1200, %v1199
      %v1218 = vpack.c.b16 %v1202, %v1201
      %v1251 = vunpack.c.l.b16 %v1123
      %v1252 = vunpack.c.l.b16 %v1124
      %v1253 = vunpack.c.l.b16 %v1125
      %v1254 = vunpack.c.l.b16 %v1126
      %v1255 = vunpack.c.l.b16 %v1127
      %v1256 = vunpack.c.l.b16 %v1128
      %v1257 = vunpack.c.l.b16 %v1129
      %v1258 = vunpack.c.l.b16 %v1130
      %v1259 = vunpack.c.l.b16 %v1131
      %v1260 = vunpack.c.l.b16 %v1132
      %v1261 = vunpack.c.l.b16 %v1133
      %v1262 = vunpack.c.l.b16 %v1134
      %v1263 = vunpack.c.l.b16 %v1135
      %v1264 = vunpack.c.l.b16 %v1136
      %v1265 = vunpack.c.l.b16 %v1137
      %v1266 = vunpack.c.l.b16 %v1138
      %v1267 = vpack.c.b16 %v1252, %v1251
      %v1268 = vpack.c.b16 %v1254, %v1253
      %v1269 = vpack.c.b16 %v1256, %v1255
      %v1270 = vpack.c.b16 %v1258, %v1257
      %v1271 = vpack.c.b16 %v1260, %v1259
      %v1272 = vpack.c.b16 %v1262, %v1261
      %v1273 = vpack.c.b16 %v1264, %v1263
      %v1274 = vpack.c.b16 %v1266, %v1265
      %1283 = vmatprep.subr.bf16.mxu0 0
      %1284 = vmatpush1.bf16.msra.mxu0 %v1274
      %1285 = vmatprep.subr.bf16.mxu0 0
      %1286 = vmatpush1.bf16.msra.mxu0 %v1273
      %1287 = vmatprep.subr.bf16.mxu0 0
      %1288 = vmatpush1.bf16.msra.mxu0 %v1272
      %1289 = vmatprep.subr.bf16.mxu0 0
      %1290 = vmatpush1.bf16.msra.mxu0 %v1271
      %1291 = vmatprep.subr.bf16.mxu0 0
      %1292 = vmatpush1.bf16.msra.mxu0 %v1270
      %1293 = vmatprep.subr.bf16.mxu0 0
      %1294 = vmatpush1.bf16.msra.mxu0 %v1269
      %1295 = vmatprep.subr.bf16.mxu0 0
      %1296 = vmatpush1.bf16.msra.mxu0 %v1268
      %1297 = vmatprep.subr.bf16.mxu0 0
      %1298 = vmatpush1.bf16.msra.mxu0 %v1267
      %1299 = vmatprep.subr.bf16.mxu0 0
      %1300 = vmatpush2.bf16.msra.mxu0 0
      %1301 = vmatprep.subr.bf16.mxu0 0
      %1302 = vmatpush2.bf16.msra.mxu0 0
      %1303 = vmatprep.subr.bf16.mxu0 0
      %1304 = vmatpush2.bf16.msra.mxu0 0
      %1305 = vmatprep.subr.bf16.mxu0 0
      %1306 = vmatpush2.bf16.msra.mxu0 0
      %1307 = vmatprep.subr.bf16.mxu0 0
      %1308 = vmatpush2.bf16.msra.mxu0 0
      %1309 = vmatprep.subr.bf16.mxu0 0
      %1310 = vmatpush2.bf16.msra.mxu0 0
      %1311 = vmatprep.subr.bf16.mxu0 0
      %1312 = vmatpush2.bf16.msra.mxu0 0
      %1313 = vmatprep.subr.bf16.mxu0 0
      %1314 = vmatpush2.bf16.msra.mxu0 0
      %1315 = vmatprep.mubr.bf16.mxu0 0
      %1316 = vmatmul.mubr.bf16.gmra.mxu0 %v1203
      %v1317 = vpop.f32.mrf.mxu0
      %v1318 = vadd.f32 0.0, %v1317
      %v1319 = vpop.f32.mrf.mxu0
      %v1320 = vpop.f32.mrf.mxu0
      %v1321 = vadd.f32 0.0, %v1320
      %v1322 = vpop.f32.mrf.mxu0
      %1323 = vmatprep.mubr.bf16.mxu0 0
      %1324 = vmatmul.mubr.bf16.gmra.mxu0 %v1204
      %v1325 = vpop.f32.mrf.mxu0
      %v1326 = vadd.f32 0.0, %v1325
      %v1327 = vpop.f32.mrf.mxu0
      %v1328 = vpop.f32.mrf.mxu0
      %v1329 = vadd.f32 0.0, %v1328
      %v1330 = vpop.f32.mrf.mxu0
      %1331 = vmatprep.mubr.bf16.mxu0 0
      %1332 = vmatmul.mubr.bf16.gmra.mxu0 %v1205
      %v1333 = vpop.f32.mrf.mxu0
      %v1334 = vadd.f32 0.0, %v1333
      %v1335 = vpop.f32.mrf.mxu0
      %v1336 = vpop.f32.mrf.mxu0
      %v1337 = vadd.f32 0.0, %v1336
      %v1338 = vpop.f32.mrf.mxu0
      %1339 = vmatprep.mubr.bf16.mxu0 0
      %1340 = vmatmul.mubr.bf16.gmra.mxu0 %v1206
      %v1341 = vpop.f32.mrf.mxu0
      %v1342 = vadd.f32 0.0, %v1341
      %v1343 = vpop.f32.mrf.mxu0
      %v1344 = vpop.f32.mrf.mxu0
      %v1345 = vadd.f32 0.0, %v1344
      %v1346 = vpop.f32.mrf.mxu0
      %1347 = vmatprep.mubr.bf16.mxu0 0
      %1348 = vmatmul.mubr.bf16.gmra.mxu0 %v1207
      %v1349 = vpop.f32.mrf.mxu0
      %v1350 = vadd.f32 0.0, %v1349
      %v1351 = vpop.f32.mrf.mxu0
      %v1352 = vpop.f32.mrf.mxu0
      %v1353 = vadd.f32 0.0, %v1352
      %v1354 = vpop.f32.mrf.mxu0
      %1355 = vmatprep.mubr.bf16.mxu0 0
      %1356 = vmatmul.mubr.bf16.gmra.mxu0 %v1208
      %v1357 = vpop.f32.mrf.mxu0
      %v1358 = vadd.f32 0.0, %v1357
      %v1359 = vpop.f32.mrf.mxu0
      %v1360 = vpop.f32.mrf.mxu0
      %v1361 = vadd.f32 0.0, %v1360
      %v1362 = vpop.f32.mrf.mxu0
      %1363 = vmatprep.mubr.bf16.mxu0 0
      %1364 = vmatmul.mubr.bf16.gmra.mxu0 %v1209
      %v1365 = vpop.f32.mrf.mxu0
      %v1366 = vadd.f32 0.0, %v1365
      %v1367 = vpop.f32.mrf.mxu0
      %v1368 = vpop.f32.mrf.mxu0
      %v1369 = vadd.f32 0.0, %v1368
      %v1370 = vpop.f32.mrf.mxu0
      %1371 = vmatprep.mubr.bf16.mxu0 0
      %1372 = vmatmul.mubr.bf16.gmra.mxu0 %v1210
      %v1373 = vpop.f32.mrf.mxu0
      %v1374 = vadd.f32 0.0, %v1373
      %v1375 = vpop.f32.mrf.mxu0
      %v1376 = vpop.f32.mrf.mxu0
      %v1377 = vadd.f32 0.0, %v1376
      %v1378 = vpop.f32.mrf.mxu0
      %1379 = vmatprep.mubr.bf16.mxu0 0
      %1380 = vmatmul.mubr.bf16.gmra.mxu0 %v1211
      %v1381 = vpop.f32.mrf.mxu0
      %v1382 = vadd.f32 0.0, %v1381
      %v1383 = vpop.f32.mrf.mxu0
      %v1384 = vpop.f32.mrf.mxu0
      %v1385 = vadd.f32 0.0, %v1384
      %v1386 = vpop.f32.mrf.mxu0
      %1387 = vmatprep.mubr.bf16.mxu0 0
      %1388 = vmatmul.mubr.bf16.gmra.mxu0 %v1212
      %v1389 = vpop.f32.mrf.mxu0
      %v1390 = vadd.f32 0.0, %v1389
      %v1391 = vpop.f32.mrf.mxu0
      %v1392 = vpop.f32.mrf.mxu0
      %v1393 = vadd.f32 0.0, %v1392
      %v1394 = vpop.f32.mrf.mxu0
      %1395 = vmatprep.mubr.bf16.mxu0 0
      %1396 = vmatmul.mubr.bf16.gmra.mxu0 %v1213
      %v1397 = vpop.f32.mrf.mxu0
      %v1398 = vadd.f32 0.0, %v1397
      %v1399 = vpop.f32.mrf.mxu0
      %v1400 = vpop.f32.mrf.mxu0
      %v1401 = vadd.f32 0.0, %v1400
      %v1402 = vpop.f32.mrf.mxu0
      %1403 = vmatprep.mubr.bf16.mxu0 0
      %1404 = vmatmul.mubr.bf16.gmra.mxu0 %v1214
      %v1405 = vpop.f32.mrf.mxu0
      %v1406 = vadd.f32 0.0, %v1405
      %v1407 = vpop.f32.mrf.mxu0
      %v1408 = vpop.f32.mrf.mxu0
      %v1409 = vadd.f32 0.0, %v1408
      %v1410 = vpop.f32.mrf.mxu0
      %1411 = vmatprep.mubr.bf16.mxu0 0
      %1412 = vmatmul.mubr.bf16.gmra.mxu0 %v1215
      %v1413 = vpop.f32.mrf.mxu0
      %v1414 = vadd.f32 0.0, %v1413
      %v1415 = vpop.f32.mrf.mxu0
      %v1416 = vpop.f32.mrf.mxu0
      %v1417 = vadd.f32 0.0, %v1416
      %v1418 = vpop.f32.mrf.mxu0
      %1419 = vmatprep.mubr.bf16.mxu0 0
      %1420 = vmatmul.mubr.bf16.gmra.mxu0 %v1216
      %v1421 = vpop.f32.mrf.mxu0
      %v1422 = vadd.f32 0.0, %v1421
      %v1423 = vpop.f32.mrf.mxu0
      %v1424 = vpop.f32.mrf.mxu0
      %v1425 = vadd.f32 0.0, %v1424
      %v1426 = vpop.f32.mrf.mxu0
      %1427 = vmatprep.mubr.bf16.mxu0 0
      %1428 = vmatmul.mubr.bf16.gmra.mxu0 %v1217
      %v1429 = vpop.f32.mrf.mxu0
      %v1430 = vadd.f32 0.0, %v1429
      %v1431 = vpop.f32.mrf.mxu0
      %v1432 = vpop.f32.mrf.mxu0
      %v1433 = vadd.f32 0.0, %v1432
      %v1434 = vpop.f32.mrf.mxu0
      %1435 = vmatprep.mubr.bf16.mxu0 0
      %1436 = vmatmul.mubr.bf16.gmra.mxu0 %v1218
      %v1437 = vpop.f32.mrf.mxu0
      %v1438 = vadd.f32 0.0, %v1437
      %v1439 = vpop.f32.mrf.mxu0
      %v1440 = vpop.f32.mrf.mxu0
      %v1441 = vadd.f32 0.0, %v1440
      %v1442 = vpop.f32.mrf.mxu0
      %1443 = vdwg.mxu0
      %v1446 = vunpack.c.l.b16 %v1070
      %v1447 = vunpack.c.l.b16 %v1071
      %v1448 = vpack.c.b16 %v1447, %v1446
      %v1466 = vunpack.c.l.b16 %v1106
      %v1467 = vunpack.c.l.b16 %v1107
      %v1468 = vunpack.c.l.b16 %v1108
      %v1469 = vunpack.c.l.b16 %v1109
      %v1470 = vunpack.c.l.b16 %v1110
      %v1471 = vunpack.c.l.b16 %v1111
      %v1472 = vunpack.c.l.b16 %v1112
      %v1473 = vunpack.c.l.b16 %v1113
      %v1474 = vunpack.c.l.b16 %v1114
      %v1475 = vunpack.c.l.b16 %v1115
      %v1476 = vunpack.c.l.b16 %v1116
      %v1477 = vunpack.c.l.b16 %v1117
      %v1478 = vunpack.c.l.b16 %v1118
      %v1479 = vunpack.c.l.b16 %v1119
      %v1480 = vunpack.c.l.b16 %v1120
      %v1481 = vunpack.c.l.b16 %v1121
      %v1482 = vpack.c.b16 %v1467, %v1466
      %v1483 = vpack.c.b16 %v1469, %v1468
      %v1484 = vpack.c.b16 %v1471, %v1470
      %v1485 = vpack.c.b16 %v1473, %v1472
      %v1486 = vpack.c.b16 %v1475, %v1474
      %v1487 = vpack.c.b16 %v1477, %v1476
      %v1488 = vpack.c.b16 %v1479, %v1478
      %v1489 = vpack.c.b16 %v1481, %v1480
      %1498 = vmatprep.subr.bf16.mxu0 0
      %1499 = vmatpush1.bf16.msra.mxu0 %v1489
      %1500 = vmatprep.subr.bf16.mxu0 0
      %1501 = vmatpush1.bf16.msra.mxu0 %v1488
      %1502 = vmatprep.subr.bf16.mxu0 0
      %1503 = vmatpush1.bf16.msra.mxu0 %v1487
      %1504 = vmatprep.subr.bf16.mxu0 0
      %1505 = vmatpush1.bf16.msra.mxu0 %v1486
      %1506 = vmatprep.subr.bf16.mxu0 0
      %1507 = vmatpush1.bf16.msra.mxu0 %v1485
      %1508 = vmatprep.subr.bf16.mxu0 0
      %1509 = vmatpush1.bf16.msra.mxu0 %v1484
      %1510 = vmatprep.subr.bf16.mxu0 0
      %1511 = vmatpush1.bf16.msra.mxu0 %v1483
      %1512 = vmatprep.subr.bf16.mxu0 0
      %1513 = vmatpush1.bf16.msra.mxu0 %v1482
      %1514 = vmatprep.subr.bf16.mxu0 0
      %1515 = vmatpush2.bf16.msra.mxu0 0
      %1516 = vmatprep.subr.bf16.mxu0 0
      %1517 = vmatpush2.bf16.msra.mxu0 0
      %1518 = vmatprep.subr.bf16.mxu0 0
      %1519 = vmatpush2.bf16.msra.mxu0 0
      %1520 = vmatprep.subr.bf16.mxu0 0
      %1521 = vmatpush2.bf16.msra.mxu0 0
      %1522 = vmatprep.subr.bf16.mxu0 0
      %1523 = vmatpush2.bf16.msra.mxu0 0
      %1524 = vmatprep.subr.bf16.mxu0 0
      %1525 = vmatpush2.bf16.msra.mxu0 0
      %1526 = vmatprep.subr.bf16.mxu0 0
      %1527 = vmatpush2.bf16.msra.mxu0 0
      %1528 = vmatprep.subr.bf16.mxu0 0
      %1529 = vmatpush2.bf16.msra.mxu0 0
      %1530 = vmatprep.mubr.bf16.mxu0 0
      %1531 = vmatmul.mubr.bf16.gmra.mxu0 %v1448
      %v1532 = vpop.f32.mrf.mxu0
      %v1533 = vadd.f32 %v1318, %v1532
      %v1534 = vpop.f32.mrf.mxu0
      %v1535 = vpop.f32.mrf.mxu0
      %v1536 = vadd.f32 %v1321, %v1535
      %v1537 = vpop.f32.mrf.mxu0
      %1538 = vmatprep.mubr.bf16.mxu0 0
      %1539 = vmatmul.mubr.bf16.gmra.mxu0 %v1203
      %v1540 = vpop.f32.mrf.mxu0
      %v1541 = vadd.f32 %v1326, %v1540
      %v1542 = vpop.f32.mrf.mxu0
      %v1543 = vpop.f32.mrf.mxu0
      %v1544 = vadd.f32 %v1329, %v1543
      %v1545 = vpop.f32.mrf.mxu0
      %1546 = vmatprep.mubr.bf16.mxu0 0
      %1547 = vmatmul.mubr.bf16.gmra.mxu0 %v1204
      %v1548 = vpop.f32.mrf.mxu0
      %v1549 = vadd.f32 %v1334, %v1548
      %v1550 = vpop.f32.mrf.mxu0
      %v1551 = vpop.f32.mrf.mxu0
      %v1552 = vadd.f32 %v1337, %v1551
      %v1553 = vpop.f32.mrf.mxu0
      %1554 = vmatprep.mubr.bf16.mxu0 0
      %1555 = vmatmul.mubr.bf16.gmra.mxu0 %v1205
      %v1556 = vpop.f32.mrf.mxu0
      %v1557 = vadd.f32 %v1342, %v1556
      %v1558 = vpop.f32.mrf.mxu0
      %v1559 = vpop.f32.mrf.mxu0
      %v1560 = vadd.f32 %v1345, %v1559
      %v1561 = vpop.f32.mrf.mxu0
      %1562 = vmatprep.mubr.bf16.mxu0 0
      %1563 = vmatmul.mubr.bf16.gmra.mxu0 %v1206
      %v1564 = vpop.f32.mrf.mxu0
      %v1565 = vadd.f32 %v1350, %v1564
      %v1566 = vpop.f32.mrf.mxu0
      %v1567 = vpop.f32.mrf.mxu0
      %v1568 = vadd.f32 %v1353, %v1567
      %v1569 = vpop.f32.mrf.mxu0
      %1570 = vmatprep.mubr.bf16.mxu0 0
      %1571 = vmatmul.mubr.bf16.gmra.mxu0 %v1207
      %v1572 = vpop.f32.mrf.mxu0
      %v1573 = vadd.f32 %v1358, %v1572
      %v1574 = vpop.f32.mrf.mxu0
      %v1575 = vpop.f32.mrf.mxu0
      %v1576 = vadd.f32 %v1361, %v1575
      %v1577 = vpop.f32.mrf.mxu0
      %1578 = vmatprep.mubr.bf16.mxu0 0
      %1579 = vmatmul.mubr.bf16.gmra.mxu0 %v1208
      %v1580 = vpop.f32.mrf.mxu0
      %v1581 = vadd.f32 %v1366, %v1580
      %v1582 = vpop.f32.mrf.mxu0
      %v1583 = vpop.f32.mrf.mxu0
      %v1584 = vadd.f32 %v1369, %v1583
      %v1585 = vpop.f32.mrf.mxu0
      %1586 = vmatprep.mubr.bf16.mxu0 0
      %1587 = vmatmul.mubr.bf16.gmra.mxu0 %v1209
      %v1588 = vpop.f32.mrf.mxu0
      %v1589 = vadd.f32 %v1374, %v1588
      %v1590 = vpop.f32.mrf.mxu0
      %v1591 = vpop.f32.mrf.mxu0
      %v1592 = vadd.f32 %v1377, %v1591
      %v1593 = vpop.f32.mrf.mxu0
      %1594 = vmatprep.mubr.bf16.mxu0 0
      %1595 = vmatmul.mubr.bf16.gmra.mxu0 %v1210
      %v1596 = vpop.f32.mrf.mxu0
      %v1597 = vadd.f32 %v1382, %v1596
      %v1598 = vpop.f32.mrf.mxu0
      %v1599 = vpop.f32.mrf.mxu0
      %v1600 = vadd.f32 %v1385, %v1599
      %v1601 = vpop.f32.mrf.mxu0
      %1602 = vmatprep.mubr.bf16.mxu0 0
      %1603 = vmatmul.mubr.bf16.gmra.mxu0 %v1211
      %v1604 = vpop.f32.mrf.mxu0
      %v1605 = vadd.f32 %v1390, %v1604
      %v1606 = vpop.f32.mrf.mxu0
      %v1607 = vpop.f32.mrf.mxu0
      %v1608 = vadd.f32 %v1393, %v1607
      %v1609 = vpop.f32.mrf.mxu0
      %1610 = vmatprep.mubr.bf16.mxu0 0
      %1611 = vmatmul.mubr.bf16.gmra.mxu0 %v1212
      %v1612 = vpop.f32.mrf.mxu0
      %v1613 = vadd.f32 %v1398, %v1612
      %v1614 = vpop.f32.mrf.mxu0
      %v1615 = vpop.f32.mrf.mxu0
      %v1616 = vadd.f32 %v1401, %v1615
      %v1617 = vpop.f32.mrf.mxu0
      %1618 = vmatprep.mubr.bf16.mxu0 0
      %1619 = vmatmul.mubr.bf16.gmra.mxu0 %v1213
      %v1620 = vpop.f32.mrf.mxu0
      %v1621 = vadd.f32 %v1406, %v1620
      %v1622 = vpop.f32.mrf.mxu0
      %v1623 = vpop.f32.mrf.mxu0
      %v1624 = vadd.f32 %v1409, %v1623
      %v1625 = vpop.f32.mrf.mxu0
      %1626 = vmatprep.mubr.bf16.mxu0 0
      %1627 = vmatmul.mubr.bf16.gmra.mxu0 %v1214
      %v1628 = vpop.f32.mrf.mxu0
      %v1629 = vadd.f32 %v1414, %v1628
      %v1630 = vpop.f32.mrf.mxu0
      %v1631 = vpop.f32.mrf.mxu0
      %v1632 = vadd.f32 %v1417, %v1631
      %v1633 = vpop.f32.mrf.mxu0
      %1634 = vmatprep.mubr.bf16.mxu0 0
      %1635 = vmatmul.mubr.bf16.gmra.mxu0 %v1215
      %v1636 = vpop.f32.mrf.mxu0
      %v1637 = vadd.f32 %v1422, %v1636
      %v1638 = vpop.f32.mrf.mxu0
      %v1639 = vpop.f32.mrf.mxu0
      %v1640 = vadd.f32 %v1425, %v1639
      %v1641 = vpop.f32.mrf.mxu0
      %1642 = vmatprep.mubr.bf16.mxu0 0
      %1643 = vmatmul.mubr.bf16.gmra.mxu0 %v1216
      %v1644 = vpop.f32.mrf.mxu0
      %v1645 = vadd.f32 %v1430, %v1644
      %v1646 = vpop.f32.mrf.mxu0
      %v1647 = vpop.f32.mrf.mxu0
      %v1648 = vadd.f32 %v1433, %v1647
      %v1649 = vpop.f32.mrf.mxu0
      %1650 = vmatprep.mubr.bf16.mxu0 0
      %1651 = vmatmul.mubr.bf16.gmra.mxu0 %v1217
      %v1652 = vpop.f32.mrf.mxu0
      %v1653 = vadd.f32 %v1438, %v1652
      %v1654 = vpop.f32.mrf.mxu0
      %v1655 = vpop.f32.mrf.mxu0
      %v1656 = vadd.f32 %v1441, %v1655
      %v1657 = vpop.f32.mrf.mxu0
      %1658 = vdwg.mxu0
      %s1659 = scalar_lea.vmem %s3, 384
      %v1660 = vld [vmem:[%s1659] sm:$0xf]
      %v1661 = vld [vmem:[%s1659 + $0x4] sm:$0xf]
      %v1662 = vld [vmem:[%s1659 + $0x8] sm:$0xf]
      %v1663 = vld [vmem:[%s1659 + $0xc] sm:$0xf]
      %v1664 = vld [vmem:[%s1659 + $0x10] sm:$0xf]
      %v1665 = vld [vmem:[%s1659 + $0x14] sm:$0xf]
      %v1666 = vld [vmem:[%s1659 + $0x18] sm:$0xf]
      %v1667 = vld [vmem:[%s1659 + $0x1c] sm:$0xf]
      %v1668 = vld [vmem:[%s1659 + $0x20] sm:$0xf]
      %v1669 = vld [vmem:[%s1659 + $0x24] sm:$0xf]
      %v1670 = vld [vmem:[%s1659 + $0x28] sm:$0xf]
      %v1671 = vld [vmem:[%s1659 + $0x2c] sm:$0xf]
      %v1672 = vld [vmem:[%s1659 + $0x30] sm:$0xf]
      %v1673 = vld [vmem:[%s1659 + $0x34] sm:$0xf]
      %v1674 = vld [vmem:[%s1659 + $0x38] sm:$0xf]
      %v1675 = vld [vmem:[%s1659 + $0x3c] sm:$0xf]
      %v1678 = vunpack.c.l.b16 %v1104
      %v1679 = vunpack.c.l.b16 %v1105
      %v1680 = vpack.c.b16 %v1679, %v1678
      %v1698 = vunpack.c.l.b16 %v1660
      %v1699 = vunpack.c.l.b16 %v1661
      %v1700 = vunpack.c.l.b16 %v1662
      %v1701 = vunpack.c.l.b16 %v1663
      %v1702 = vunpack.c.l.b16 %v1664
      %v1703 = vunpack.c.l.b16 %v1665
      %v1704 = vunpack.c.l.b16 %v1666
      %v1705 = vunpack.c.l.b16 %v1667
      %v1706 = vunpack.c.l.b16 %v1668
      %v1707 = vunpack.c.l.b16 %v1669
      %v1708 = vunpack.c.l.b16 %v1670
      %v1709 = vunpack.c.l.b16 %v1671
      %v1710 = vunpack.c.l.b16 %v1672
      %v1711 = vunpack.c.l.b16 %v1673
      %v1712 = vunpack.c.l.b16 %v1674
      %v1713 = vunpack.c.l.b16 %v1675
      %v1714 = vpack.c.b16 %v1699, %v1698
      %v1715 = vpack.c.b16 %v1701, %v1700
      %v1716 = vpack.c.b16 %v1703, %v1702
      %v1717 = vpack.c.b16 %v1705, %v1704
      %v1718 = vpack.c.b16 %v1707, %v1706
      %v1719 = vpack.c.b16 %v1709, %v1708
      %v1720 = vpack.c.b16 %v1711, %v1710
      %v1721 = vpack.c.b16 %v1713, %v1712
      %1730 = vmatprep.subr.bf16.mxu0 0
      %1731 = vmatpush1.bf16.msra.mxu0 %v1721
      %1732 = vmatprep.subr.bf16.mxu0 0
      %1733 = vmatpush1.bf16.msra.mxu0 %v1720
      %1734 = vmatprep.subr.bf16.mxu0 0
      %1735 = vmatpush1.bf16.msra.mxu0 %v1719
      %1736 = vmatprep.subr.bf16.mxu0 0
      %1737 = vmatpush1.bf16.msra.mxu0 %v1718
      %1738 = vmatprep.subr.bf16.mxu0 0
      %1739 = vmatpush1.bf16.msra.mxu0 %v1717
      %1740 = vmatprep.subr.bf16.mxu0 0
      %1741 = vmatpush1.bf16.msra.mxu0 %v1716
      %1742 = vmatprep.subr.bf16.mxu0 0
      %1743 = vmatpush1.bf16.msra.mxu0 %v1715
      %1744 = vmatprep.subr.bf16.mxu0 0
      %1745 = vmatpush1.bf16.msra.mxu0 %v1714
      %1746 = vmatprep.subr.bf16.mxu0 0
      %1747 = vmatpush2.bf16.msra.mxu0 0
      %1748 = vmatprep.subr.bf16.mxu0 0
      %1749 = vmatpush2.bf16.msra.mxu0 0
      %1750 = vmatprep.subr.bf16.mxu0 0
      %1751 = vmatpush2.bf16.msra.mxu0 0
      %1752 = vmatprep.subr.bf16.mxu0 0
      %1753 = vmatpush2.bf16.msra.mxu0 0
      %1754 = vmatprep.subr.bf16.mxu0 0
      %1755 = vmatpush2.bf16.msra.mxu0 0
      %1756 = vmatprep.subr.bf16.mxu0 0
      %1757 = vmatpush2.bf16.msra.mxu0 0
      %1758 = vmatprep.subr.bf16.mxu0 0
      %1759 = vmatpush2.bf16.msra.mxu0 0
      %1760 = vmatprep.subr.bf16.mxu0 0
      %1761 = vmatpush2.bf16.msra.mxu0 0
      %1762 = vmatprep.mubr.bf16.mxu0 0
      %1763 = vmatmul.mubr.bf16.gmra.mxu0 %v1204
      %v1764 = vpop.f32.mrf.mxu0
      %v1765 = vadd.f32 0.0, %v1764
      %v1766 = vpop.f32.mrf.mxu0
      %v1767 = vpop.f32.mrf.mxu0
      %v1768 = vadd.f32 0.0, %v1767
      %v1769 = vpop.f32.mrf.mxu0
      %1770 = vmatprep.mubr.bf16.mxu0 0
      %1771 = vmatmul.mubr.bf16.gmra.mxu0 %v1205
      %v1772 = vpop.f32.mrf.mxu0
      %v1773 = vadd.f32 0.0, %v1772
      %v1774 = vpop.f32.mrf.mxu0
      %v1775 = vpop.f32.mrf.mxu0
      %v1776 = vadd.f32 0.0, %v1775
      %v1777 = vpop.f32.mrf.mxu0
      %1778 = vmatprep.mubr.bf16.mxu0 0
      %1779 = vmatmul.mubr.bf16.gmra.mxu0 %v1206
      %v1780 = vpop.f32.mrf.mxu0
      %v1781 = vadd.f32 0.0, %v1780
      %v1782 = vpop.f32.mrf.mxu0
      %v1783 = vpop.f32.mrf.mxu0
      %v1784 = vadd.f32 0.0, %v1783
      %v1785 = vpop.f32.mrf.mxu0
      %1786 = vmatprep.mubr.bf16.mxu0 0
      %1787 = vmatmul.mubr.bf16.gmra.mxu0 %v1207
      %v1788 = vpop.f32.mrf.mxu0
      %v1789 = vadd.f32 0.0, %v1788
      %v1790 = vpop.f32.mrf.mxu0
      %v1791 = vpop.f32.mrf.mxu0
      %v1792 = vadd.f32 0.0, %v1791
      %v1793 = vpop.f32.mrf.mxu0
      %1794 = vmatprep.mubr.bf16.mxu0 0
      %1795 = vmatmul.mubr.bf16.gmra.mxu0 %v1208
      %v1796 = vpop.f32.mrf.mxu0
      %v1797 = vadd.f32 0.0, %v1796
      %v1798 = vpop.f32.mrf.mxu0
      %v1799 = vpop.f32.mrf.mxu0
      %v1800 = vadd.f32 0.0, %v1799
      %v1801 = vpop.f32.mrf.mxu0
      %1802 = vmatprep.mubr.bf16.mxu0 0
      %1803 = vmatmul.mubr.bf16.gmra.mxu0 %v1209
      %v1804 = vpop.f32.mrf.mxu0
      %v1805 = vadd.f32 0.0, %v1804
      %v1806 = vpop.f32.mrf.mxu0
      %v1807 = vpop.f32.mrf.mxu0
      %v1808 = vadd.f32 0.0, %v1807
      %v1809 = vpop.f32.mrf.mxu0
      %1810 = vmatprep.mubr.bf16.mxu0 0
      %1811 = vmatmul.mubr.bf16.gmra.mxu0 %v1210
      %v1812 = vpop.f32.mrf.mxu0
      %v1813 = vadd.f32 0.0, %v1812
      %v1814 = vpop.f32.mrf.mxu0
      %v1815 = vpop.f32.mrf.mxu0
      %v1816 = vadd.f32 0.0, %v1815
      %v1817 = vpop.f32.mrf.mxu0
      %1818 = vmatprep.mubr.bf16.mxu0 0
      %1819 = vmatmul.mubr.bf16.gmra.mxu0 %v1211
      %v1820 = vpop.f32.mrf.mxu0
      %v1821 = vadd.f32 0.0, %v1820
      %v1822 = vpop.f32.mrf.mxu0
      %v1823 = vpop.f32.mrf.mxu0
      %v1824 = vadd.f32 0.0, %v1823
      %v1825 = vpop.f32.mrf.mxu0
      %1826 = vmatprep.mubr.bf16.mxu0 0
      %1827 = vmatmul.mubr.bf16.gmra.mxu0 %v1212
      %v1828 = vpop.f32.mrf.mxu0
      %v1829 = vadd.f32 0.0, %v1828
      %v1830 = vpop.f32.mrf.mxu0
      %v1831 = vpop.f32.mrf.mxu0
      %v1832 = vadd.f32 0.0, %v1831
      %v1833 = vpop.f32.mrf.mxu0
      %1834 = vmatprep.mubr.bf16.mxu0 0
      %1835 = vmatmul.mubr.bf16.gmra.mxu0 %v1213
      %v1836 = vpop.f32.mrf.mxu0
      %v1837 = vadd.f32 0.0, %v1836
      %v1838 = vpop.f32.mrf.mxu0
      %v1839 = vpop.f32.mrf.mxu0
      %v1840 = vadd.f32 0.0, %v1839
      %v1841 = vpop.f32.mrf.mxu0
      %1842 = vmatprep.mubr.bf16.mxu0 0
      %1843 = vmatmul.mubr.bf16.gmra.mxu0 %v1214
      %v1844 = vpop.f32.mrf.mxu0
      %v1845 = vadd.f32 0.0, %v1844
      %v1846 = vpop.f32.mrf.mxu0
      %v1847 = vpop.f32.mrf.mxu0
      %v1848 = vadd.f32 0.0, %v1847
      %v1849 = vpop.f32.mrf.mxu0
      %1850 = vmatprep.mubr.bf16.mxu0 0
      %1851 = vmatmul.mubr.bf16.gmra.mxu0 %v1215
      %v1852 = vpop.f32.mrf.mxu0
      %v1853 = vadd.f32 0.0, %v1852
      %v1854 = vpop.f32.mrf.mxu0
      %v1855 = vpop.f32.mrf.mxu0
      %v1856 = vadd.f32 0.0, %v1855
      %v1857 = vpop.f32.mrf.mxu0
      %1858 = vmatprep.mubr.bf16.mxu0 0
      %1859 = vmatmul.mubr.bf16.gmra.mxu0 %v1216
      %v1860 = vpop.f32.mrf.mxu0
      %v1861 = vadd.f32 0.0, %v1860
      %v1862 = vpop.f32.mrf.mxu0
      %v1863 = vpop.f32.mrf.mxu0
      %v1864 = vadd.f32 0.0, %v1863
      %v1865 = vpop.f32.mrf.mxu0
      %1866 = vmatprep.mubr.bf16.mxu0 0
      %1867 = vmatmul.mubr.bf16.gmra.mxu0 %v1217
      %v1868 = vpop.f32.mrf.mxu0
      %v1869 = vadd.f32 0.0, %v1868
      %v1870 = vpop.f32.mrf.mxu0
      %v1871 = vpop.f32.mrf.mxu0
      %v1872 = vadd.f32 0.0, %v1871
      %v1873 = vpop.f32.mrf.mxu0
      %1874 = vmatprep.mubr.bf16.mxu0 0
      %1875 = vmatmul.mubr.bf16.gmra.mxu0 %v1218
      %v1876 = vpop.f32.mrf.mxu0
      %v1877 = vadd.f32 0.0, %v1876
      %v1878 = vpop.f32.mrf.mxu0
      %v1879 = vpop.f32.mrf.mxu0
      %v1880 = vadd.f32 0.0, %v1879
      %v1881 = vpop.f32.mrf.mxu0
      %1882 = vmatprep.mubr.bf16.mxu0 0
      %1883 = vmatmul.mubr.bf16.gmra.mxu0 %v1680
      %v1884 = vpop.f32.mrf.mxu0
      %v1885 = vadd.f32 0.0, %v1884
      %v1886 = vpop.f32.mrf.mxu0
      %v1887 = vpop.f32.mrf.mxu0
      %v1888 = vadd.f32 0.0, %v1887
      %v1889 = vpop.f32.mrf.mxu0
      %1890 = vdwg.mxu0
      %v1891 = vadd.f32 %v1533, %v1765
      %v1892 = vadd.f32 %v1536, %v1768
      %v1893 = vadd.f32 %v1541, %v1773
      %v1894 = vadd.f32 %v1544, %v1776
      %v1895 = vadd.f32 %v1549, %v1781
      %v1896 = vadd.f32 %v1552, %v1784
      %v1897 = vadd.f32 %v1557, %v1789
      %v1898 = vadd.f32 %v1560, %v1792
      %v1899 = vadd.f32 %v1565, %v1797
      %v1900 = vadd.f32 %v1568, %v1800
      %v1901 = vadd.f32 %v1573, %v1805
      %v1902 = vadd.f32 %v1576, %v1808
      %v1903 = vadd.f32 %v1581, %v1813
      %v1904 = vadd.f32 %v1584, %v1816
      %v1905 = vadd.f32 %v1589, %v1821
      %v1906 = vadd.f32 %v1592, %v1824
      %v1907 = vadd.f32 %v1597, %v1829
      %v1908 = vadd.f32 %v1600, %v1832
      %v1909 = vadd.f32 %v1605, %v1837
      %v1910 = vadd.f32 %v1608, %v1840
      %v1911 = vadd.f32 %v1613, %v1845
      %v1912 = vadd.f32 %v1616, %v1848
      %v1913 = vadd.f32 %v1621, %v1853
      %v1914 = vadd.f32 %v1624, %v1856
      %v1915 = vadd.f32 %v1629, %v1861
      %v1916 = vadd.f32 %v1632, %v1864
      %v1917 = vadd.f32 %v1637, %v1869
      %v1918 = vadd.f32 %v1640, %v1872
      %v1919 = vadd.f32 %v1645, %v1877
      %v1920 = vadd.f32 %v1648, %v1880
      %v1921 = vadd.f32 %v1653, %v1885
      %v1922 = vadd.f32 %v1656, %v1888
      %v1923 = vld [vmem:[#allocation3] sm:$0xf]
      %v1924 = vld [vmem:[#allocation3 + $0x4] sm:$0xf]
      %v1925 = vld [vmem:[#allocation3 + $0x8] sm:$0x1]
      %v1926 = vld [vmem:[#allocation3 + $0xc] sm:$0xf]
      %v1927 = vld [vmem:[#allocation3 + $0x10] sm:$0xf]
      %v1928 = vld [vmem:[#allocation3 + $0x14] sm:$0x1]
      %v1929 = vld [vmem:[#allocation3 + $0x18] sm:$0xf]
      %v1930 = vld [vmem:[#allocation3 + $0x1c] sm:$0xf]
      %v1931 = vld [vmem:[#allocation3 + $0x20] sm:$0x1]
      %v1932 = vld [vmem:[#allocation3 + $0x24] sm:$0xf]
      %v1933 = vld [vmem:[#allocation3 + $0x28] sm:$0xf]
      %v1934 = vld [vmem:[#allocation3 + $0x2c] sm:$0x1]
      %v1935 = vld [vmem:[#allocation3 + $0x30] sm:$0xf]
      %v1936 = vld [vmem:[#allocation3 + $0x34] sm:$0xf]
      %v1937 = vld [vmem:[#allocation3 + $0x38] sm:$0x1]
      %v1938 = vld [vmem:[#allocation3 + $0x3c] sm:$0xf]
      %v1939 = vld [vmem:[#allocation3 + $0x40] sm:$0xf]
      %v1940 = vld [vmem:[#allocation3 + $0x44] sm:$0x1]
      %v1941 = vld [vmem:[#allocation3 + $0x48] sm:$0xf]
      %v1942 = vld [vmem:[#allocation3 + $0x4c] sm:$0xf]
      %v1943 = vld [vmem:[#allocation3 + $0x50] sm:$0x1]
      %v1944 = vld [vmem:[#allocation3 + $0x54] sm:$0xf]
      %v1945 = vld [vmem:[#allocation3 + $0x58] sm:$0xf]
      %v1946 = vld [vmem:[#allocation3 + $0x5c] sm:$0x1]
      %v1947 = vld [vmem:[#allocation3 + $0x60] sm:$0xf]
      %v1948 = vld [vmem:[#allocation3 + $0x64] sm:$0xf]
      %v1949 = vld [vmem:[#allocation3 + $0x68] sm:$0x1]
      %v1950 = vld [vmem:[#allocation3 + $0x6c] sm:$0xf]
      %v1951 = vld [vmem:[#allocation3 + $0x70] sm:$0xf]
      %v1952 = vld [vmem:[#allocation3 + $0x74] sm:$0x1]
      %v1953 = vld [vmem:[#allocation3 + $0x78] sm:$0xf]
      %v1954 = vld [vmem:[#allocation3 + $0x7c] sm:$0xf]
      %v1955 = vld [vmem:[#allocation3 + $0x80] sm:$0x1]
      %v1956 = vld [vmem:[#allocation3 + $0x84] sm:$0xf]
      %v1957 = vld [vmem:[#allocation3 + $0x88] sm:$0xf]
      %v1958 = vld [vmem:[#allocation3 + $0x8c] sm:$0x1]
      %v1959 = vld [vmem:[#allocation3 + $0x90] sm:$0xf]
      %v1960 = vld [vmem:[#allocation3 + $0x94] sm:$0xf]
      %v1961 = vld [vmem:[#allocation3 + $0x98] sm:$0x1]
      %v1962 = vld [vmem:[#allocation3 + $0x9c] sm:$0xf]
      %v1963 = vld [vmem:[#allocation3 + $0xa0] sm:$0xf]
      %v1964 = vld [vmem:[#allocation3 + $0xa4] sm:$0x1]
      %v1965 = vld [vmem:[#allocation3 + $0xa8] sm:$0xf]
      %v1966 = vld [vmem:[#allocation3 + $0xac] sm:$0xf]
      %v1967 = vld [vmem:[#allocation3 + $0xb0] sm:$0x1]
      %v1968 = vld [vmem:[#allocation3 + $0xb4] sm:$0xf]
      %v1969 = vld [vmem:[#allocation3 + $0xb8] sm:$0xf]
      %v1970 = vld [vmem:[#allocation3 + $0xbc] sm:$0x1]
      %v1971 = vld [vmem:[#allocation3 + $0xc0] sm:$0xf]
      %v1972 = vld [vmem:[#allocation3 + $0xc4] sm:$0xf]
      %v1973 = vld [vmem:[#allocation3 + $0xc8] sm:$0x1]
      %v1974 = vld [vmem:[#allocation3 + $0xcc] sm:$0xf]
      %v1975 = vld [vmem:[#allocation3 + $0xd0] sm:$0xf]
      %v1976 = vld [vmem:[#allocation3 + $0xd4] sm:$0x1]
      %vm1977 = vsmask.f32 3328
      %vm1978 = vsmask.f32 7440
      %vm1979 = vmor %vm1977, %vm1978
      %v1981 = vshrl.u32 %v1923, 16
      %v1983 = vrot.slane %v1981, 4
      %v1984 = vshll.u32 %v1923, 16
      %v1986 = vrot.slane %v1984, 5
      %v1987 = vor.u32 %v1983, %v1986
      %v1988 = vrot.slane %v1987, 4
      %v1990 = vshll.u32 %v1924, 16
      %v1992 = vrot.slane %v1990, 5
      %v1993 = vsel %vm1979, %v1988, %v1992
      %v1994 = vshrl.u32 %v1924, 16
      %v1996 = vrot.slane %v1994, 4
      %v1997 = vor.u32 %v1996, %v1992
      %v1998 = vrot.slane %v1997, 4
      %v2000 = vshll.u32 %v1925, 16
      %v2002 = vrot.slane %v2000, 5
      %v2003 = vsel %vm1979, %v1998, %v2002
      %v2005 = vshrl.u32 %v1926, 16
      %v2007 = vrot.slane %v2005, 4
      %v2008 = vshll.u32 %v1926, 16
      %v2010 = vrot.slane %v2008, 5
      %v2011 = vor.u32 %v2007, %v2010
      %v2012 = vrot.slane %v2011, 4
      %v2014 = vshll.u32 %v1927, 16
      %v2016 = vrot.slane %v2014, 5
      %v2017 = vsel %vm1979, %v2012, %v2016
      %v2018 = vshrl.u32 %v1927, 16
      %v2020 = vrot.slane %v2018, 4
      %v2021 = vor.u32 %v2020, %v2016
      %v2022 = vrot.slane %v2021, 4
      %v2024 = vshll.u32 %v1928, 16
      %v2026 = vrot.slane %v2024, 5
      %v2027 = vsel %vm1979, %v2022, %v2026
      %v2029 = vshrl.u32 %v1929, 16
      %v2031 = vrot.slane %v2029, 4
      %v2032 = vshll.u32 %v1929, 16
      %v2034 = vrot.slane %v2032, 5
      %v2035 = vor.u32 %v2031, %v2034
      %v2036 = vrot.slane %v2035, 4
      %v2038 = vshll.u32 %v1930, 16
      %v2040 = vrot.slane %v2038, 5
      %v2041 = vsel %vm1979, %v2036, %v2040
      %v2042 = vshrl.u32 %v1930, 16
      %v2044 = vrot.slane %v2042, 4
      %v2045 = vor.u32 %v2044, %v2040
      %v2046 = vrot.slane %v2045, 4
      %v2048 = vshll.u32 %v1931, 16
      %v2050 = vrot.slane %v2048, 5
      %v2051 = vsel %vm1979, %v2046, %v2050
      %v2053 = vshrl.u32 %v1932, 16
      %v2055 = vrot.slane %v2053, 4
      %v2056 = vshll.u32 %v1932, 16
      %v2058 = vrot.slane %v2056, 5
      %v2059 = vor.u32 %v2055, %v2058
      %v2060 = vrot.slane %v2059, 4
      %v2062 = vshll.u32 %v1933, 16
      %v2064 = vrot.slane %v2062, 5
      %v2065 = vsel %vm1979, %v2060, %v2064
      %v2066 = vshrl.u32 %v1933, 16
      %v2068 = vrot.slane %v2066, 4
      %v2069 = vor.u32 %v2068, %v2064
      %v2070 = vrot.slane %v2069, 4
      %v2072 = vshll.u32 %v1934, 16
      %v2074 = vrot.slane %v2072, 5
      %v2075 = vsel %vm1979, %v2070, %v2074
      %v2077 = vshrl.u32 %v1935, 16
      %v2079 = vrot.slane %v2077, 4
      %v2080 = vshll.u32 %v1935, 16
      %v2082 = vrot.slane %v2080, 5
      %v2083 = vor.u32 %v2079, %v2082
      %v2084 = vrot.slane %v2083, 4
      %v2086 = vshll.u32 %v1936, 16
      %v2088 = vrot.slane %v2086, 5
      %v2089 = vsel %vm1979, %v2084, %v2088
      %v2090 = vshrl.u32 %v1936, 16
      %v2092 = vrot.slane %v2090, 4
      %v2093 = vor.u32 %v2092, %v2088
      %v2094 = vrot.slane %v2093, 4
      %v2096 = vshll.u32 %v1937, 16
      %v2098 = vrot.slane %v2096, 5
      %v2099 = vsel %vm1979, %v2094, %v2098
      %v2101 = vshrl.u32 %v1938, 16
      %v2103 = vrot.slane %v2101, 4
      %v2104 = vshll.u32 %v1938, 16
      %v2106 = vrot.slane %v2104, 5
      %v2107 = vor.u32 %v2103, %v2106
      %v2108 = vrot.slane %v2107, 4
      %v2110 = vshll.u32 %v1939, 16
      %v2112 = vrot.slane %v2110, 5
      %v2113 = vsel %vm1979, %v2108, %v2112
      %v2114 = vshrl.u32 %v1939, 16
      %v2116 = vrot.slane %v2114, 4
      %v2117 = vor.u32 %v2116, %v2112
      %v2118 = vrot.slane %v2117, 4
      %v2120 = vshll.u32 %v1940, 16
      %v2122 = vrot.slane %v2120, 5
      %v2123 = vsel %vm1979, %v2118, %v2122
      %v2125 = vshrl.u32 %v1941, 16
      %v2127 = vrot.slane %v2125, 4
      %v2128 = vshll.u32 %v1941, 16
      %v2130 = vrot.slane %v2128, 5
      %v2131 = vor.u32 %v2127, %v2130
      %v2132 = vrot.slane %v2131, 4
      %v2134 = vshll.u32 %v1942, 16
      %v2136 = vrot.slane %v2134, 5
      %v2137 = vsel %vm1979, %v2132, %v2136
      %v2138 = vshrl.u32 %v1942, 16
      %v2140 = vrot.slane %v2138, 4
      %v2141 = vor.u32 %v2140, %v2136
      %v2142 = vrot.slane %v2141, 4
      %v2144 = vshll.u32 %v1943, 16
      %v2146 = vrot.slane %v2144, 5
      %v2147 = vsel %vm1979, %v2142, %v2146
      %v2149 = vshrl.u32 %v1944, 16
      %v2151 = vrot.slane %v2149, 4
      %v2152 = vshll.u32 %v1944, 16
      %v2154 = vrot.slane %v2152, 5
      %v2155 = vor.u32 %v2151, %v2154
      %v2156 = vrot.slane %v2155, 4
      %v2158 = vshll.u32 %v1945, 16
      %v2160 = vrot.slane %v2158, 5
      %v2161 = vsel %vm1979, %v2156, %v2160
      %v2162 = vshrl.u32 %v1945, 16
      %v2164 = vrot.slane %v2162, 4
      %v2165 = vor.u32 %v2164, %v2160
      %v2166 = vrot.slane %v2165, 4
      %v2168 = vshll.u32 %v1946, 16
      %v2170 = vrot.slane %v2168, 5
      %v2171 = vsel %vm1979, %v2166, %v2170
      %v2173 = vshrl.u32 %v1947, 16
      %v2175 = vrot.slane %v2173, 4
      %v2176 = vshll.u32 %v1947, 16
      %v2178 = vrot.slane %v2176, 5
      %v2179 = vor.u32 %v2175, %v2178
      %v2180 = vrot.slane %v2179, 4
      %v2182 = vshll.u32 %v1948, 16
      %v2184 = vrot.slane %v2182, 5
      %v2185 = vsel %vm1979, %v2180, %v2184
      %v2186 = vshrl.u32 %v1948, 16
      %v2188 = vrot.slane %v2186, 4
      %v2189 = vor.u32 %v2188, %v2184
      %v2190 = vrot.slane %v2189, 4
      %v2192 = vshll.u32 %v1949, 16
      %v2194 = vrot.slane %v2192, 5
      %v2195 = vsel %vm1979, %v2190, %v2194
      %v2197 = vshrl.u32 %v1950, 16
      %v2199 = vrot.slane %v2197, 4
      %v2200 = vshll.u32 %v1950, 16
      %v2202 = vrot.slane %v2200, 5
      %v2203 = vor.u32 %v2199, %v2202
      %v2204 = vrot.slane %v2203, 4
      %v2206 = vshll.u32 %v1951, 16
      %v2208 = vrot.slane %v2206, 5
      %v2209 = vsel %vm1979, %v2204, %v2208
      %v2210 = vshrl.u32 %v1951, 16
      %v2212 = vrot.slane %v2210, 4
      %v2213 = vor.u32 %v2212, %v2208
      %v2214 = vrot.slane %v2213, 4
      %v2216 = vshll.u32 %v1952, 16
      %v2218 = vrot.slane %v2216, 5
      %v2219 = vsel %vm1979, %v2214, %v2218
      %v2221 = vshrl.u32 %v1953, 16
      %v2223 = vrot.slane %v2221, 4
      %v2224 = vshll.u32 %v1953, 16
      %v2226 = vrot.slane %v2224, 5
      %v2227 = vor.u32 %v2223, %v2226
      %v2228 = vrot.slane %v2227, 4
      %v2230 = vshll.u32 %v1954, 16
      %v2232 = vrot.slane %v2230, 5
      %v2233 = vsel %vm1979, %v2228, %v2232
      %v2234 = vshrl.u32 %v1954, 16
      %v2236 = vrot.slane %v2234, 4
      %v2237 = vor.u32 %v2236, %v2232
      %v2238 = vrot.slane %v2237, 4
      %v2240 = vshll.u32 %v1955, 16
      %v2242 = vrot.slane %v2240, 5
      %v2243 = vsel %vm1979, %v2238, %v2242
      %v2245 = vshrl.u32 %v1956, 16
      %v2247 = vrot.slane %v2245, 4
      %v2248 = vshll.u32 %v1956, 16
      %v2250 = vrot.slane %v2248, 5
      %v2251 = vor.u32 %v2247, %v2250
      %v2252 = vrot.slane %v2251, 4
      %v2254 = vshll.u32 %v1957, 16
      %v2256 = vrot.slane %v2254, 5
      %v2257 = vsel %vm1979, %v2252, %v2256
      %v2258 = vshrl.u32 %v1957, 16
      %v2260 = vrot.slane %v2258, 4
      %v2261 = vor.u32 %v2260, %v2256
      %v2262 = vrot.slane %v2261, 4
      %v2264 = vshll.u32 %v1958, 16
      %v2266 = vrot.slane %v2264, 5
      %v2267 = vsel %vm1979, %v2262, %v2266
      %v2269 = vshrl.u32 %v1959, 16
      %v2271 = vrot.slane %v2269, 4
      %v2272 = vshll.u32 %v1959, 16
      %v2274 = vrot.slane %v2272, 5
      %v2275 = vor.u32 %v2271, %v2274
      %v2276 = vrot.slane %v2275, 4
      %v2278 = vshll.u32 %v1960, 16
      %v2280 = vrot.slane %v2278, 5
      %v2281 = vsel %vm1979, %v2276, %v2280
      %v2282 = vshrl.u32 %v1960, 16
      %v2284 = vrot.slane %v2282, 4
      %v2285 = vor.u32 %v2284, %v2280
      %v2286 = vrot.slane %v2285, 4
      %v2288 = vshll.u32 %v1961, 16
      %v2290 = vrot.slane %v2288, 5
      %v2291 = vsel %vm1979, %v2286, %v2290
      %v2293 = vshrl.u32 %v1962, 16
      %v2295 = vrot.slane %v2293, 4
      %v2296 = vshll.u32 %v1962, 16
      %v2298 = vrot.slane %v2296, 5
      %v2299 = vor.u32 %v2295, %v2298
      %v2300 = vrot.slane %v2299, 4
      %v2302 = vshll.u32 %v1963, 16
      %v2304 = vrot.slane %v2302, 5
      %v2305 = vsel %vm1979, %v2300, %v2304
      %v2306 = vshrl.u32 %v1963, 16
      %v2308 = vrot.slane %v2306, 4
      %v2309 = vor.u32 %v2308, %v2304
      %v2310 = vrot.slane %v2309, 4
      %v2312 = vshll.u32 %v1964, 16
      %v2314 = vrot.slane %v2312, 5
      %v2315 = vsel %vm1979, %v2310, %v2314
      %v2317 = vshrl.u32 %v1965, 16
      %v2319 = vrot.slane %v2317, 4
      %v2320 = vshll.u32 %v1965, 16
      %v2322 = vrot.slane %v2320, 5
      %v2323 = vor.u32 %v2319, %v2322
      %v2324 = vrot.slane %v2323, 4
      %v2326 = vshll.u32 %v1966, 16
      %v2328 = vrot.slane %v2326, 5
      %v2329 = vsel %vm1979, %v2324, %v2328
      %v2330 = vshrl.u32 %v1966, 16
      %v2332 = vrot.slane %v2330, 4
      %v2333 = vor.u32 %v2332, %v2328
      %v2334 = vrot.slane %v2333, 4
      %v2336 = vshll.u32 %v1967, 16
      %v2338 = vrot.slane %v2336, 5
      %v2339 = vsel %vm1979, %v2334, %v2338
      %v2341 = vshrl.u32 %v1968, 16
      %v2343 = vrot.slane %v2341, 4
      %v2344 = vshll.u32 %v1968, 16
      %v2346 = vrot.slane %v2344, 5
      %v2347 = vor.u32 %v2343, %v2346
      %v2348 = vrot.slane %v2347, 4
      %v2350 = vshll.u32 %v1969, 16
      %v2352 = vrot.slane %v2350, 5
      %v2353 = vsel %vm1979, %v2348, %v2352
      %v2354 = vshrl.u32 %v1969, 16
      %v2356 = vrot.slane %v2354, 4
      %v2357 = vor.u32 %v2356, %v2352
      %v2358 = vrot.slane %v2357, 4
      %v2360 = vshll.u32 %v1970, 16
      %v2362 = vrot.slane %v2360, 5
      %v2363 = vsel %vm1979, %v2358, %v2362
      %s2364 = scalar_lea.vmem %s3, 64
      %v2365 = vld [vmem:[%s2364] sm:$0xf]
      %v2366 = vld [vmem:[%s2364 + $0x4] sm:$0xf]
      %v2367 = vld [vmem:[%s2364 + $0x8] sm:$0xf]
      %v2368 = vld [vmem:[%s2364 + $0xc] sm:$0xf]
      %v2369 = vld [vmem:[%s2364 + $0x10] sm:$0xf]
      %v2370 = vld [vmem:[%s2364 + $0x14] sm:$0xf]
      %v2371 = vld [vmem:[%s2364 + $0x18] sm:$0xf]
      %v2372 = vld [vmem:[%s2364 + $0x1c] sm:$0xf]
      %v2373 = vld [vmem:[%s2364 + $0x20] sm:$0xf]
      %v2374 = vld [vmem:[%s2364 + $0x24] sm:$0xf]
      %v2375 = vld [vmem:[%s2364 + $0x28] sm:$0xf]
      %v2376 = vld [vmem:[%s2364 + $0x2c] sm:$0xf]
      %v2377 = vld [vmem:[%s2364 + $0x30] sm:$0xf]
      %v2378 = vld [vmem:[%s2364 + $0x34] sm:$0xf]
      %v2379 = vld [vmem:[%s2364 + $0x38] sm:$0xf]
      %v2380 = vld [vmem:[%s2364 + $0x3c] sm:$0xf]
      %v2381 = vunpack.c.l.b16 %v1993
      %v2382 = vunpack.c.l.b16 %v2003
      %v2383 = vunpack.c.l.b16 %v2017
      %v2384 = vunpack.c.l.b16 %v2027
      %v2385 = vunpack.c.l.b16 %v2041
      %v2386 = vunpack.c.l.b16 %v2051
      %v2387 = vunpack.c.l.b16 %v2065
      %v2388 = vunpack.c.l.b16 %v2075
      %v2389 = vunpack.c.l.b16 %v2089
      %v2390 = vunpack.c.l.b16 %v2099
      %v2391 = vunpack.c.l.b16 %v2113
      %v2392 = vunpack.c.l.b16 %v2123
      %v2393 = vunpack.c.l.b16 %v2137
      %v2394 = vunpack.c.l.b16 %v2147
      %v2395 = vunpack.c.l.b16 %v2161
      %v2396 = vunpack.c.l.b16 %v2171
      %v2397 = vunpack.c.l.b16 %v2185
      %v2398 = vunpack.c.l.b16 %v2195
      %v2399 = vunpack.c.l.b16 %v2209
      %v2400 = vunpack.c.l.b16 %v2219
      %v2401 = vunpack.c.l.b16 %v2233
      %v2402 = vunpack.c.l.b16 %v2243
      %v2403 = vunpack.c.l.b16 %v2257
      %v2404 = vunpack.c.l.b16 %v2267
      %v2405 = vunpack.c.l.b16 %v2281
      %v2406 = vunpack.c.l.b16 %v2291
      %v2407 = vunpack.c.l.b16 %v2305
      %v2408 = vunpack.c.l.b16 %v2315
      %v2409 = vunpack.c.l.b16 %v2329
      %v2410 = vunpack.c.l.b16 %v2339
      %v2411 = vunpack.c.l.b16 %v2353
      %v2412 = vunpack.c.l.b16 %v2363
      %v2413 = vpack.c.b16 %v2382, %v2381
      %v2414 = vpack.c.b16 %v2384, %v2383
      %v2415 = vpack.c.b16 %v2386, %v2385
      %v2416 = vpack.c.b16 %v2388, %v2387
      %v2417 = vpack.c.b16 %v2390, %v2389
      %v2418 = vpack.c.b16 %v2392, %v2391
      %v2419 = vpack.c.b16 %v2394, %v2393
      %v2420 = vpack.c.b16 %v2396, %v2395
      %v2421 = vpack.c.b16 %v2398, %v2397
      %v2422 = vpack.c.b16 %v2400, %v2399
      %v2423 = vpack.c.b16 %v2402, %v2401
      %v2424 = vpack.c.b16 %v2404, %v2403
      %v2425 = vpack.c.b16 %v2406, %v2405
      %v2426 = vpack.c.b16 %v2408, %v2407
      %v2427 = vpack.c.b16 %v2410, %v2409
      %v2428 = vpack.c.b16 %v2412, %v2411
      %v2461 = vunpack.c.l.b16 %v2365
      %v2462 = vunpack.c.l.b16 %v2366
      %v2463 = vunpack.c.l.b16 %v2367
      %v2464 = vunpack.c.l.b16 %v2368
      %v2465 = vunpack.c.l.b16 %v2369
      %v2466 = vunpack.c.l.b16 %v2370
      %v2467 = vunpack.c.l.b16 %v2371
      %v2468 = vunpack.c.l.b16 %v2372
      %v2469 = vunpack.c.l.b16 %v2373
      %v2470 = vunpack.c.l.b16 %v2374
      %v2471 = vunpack.c.l.b16 %v2375
      %v2472 = vunpack.c.l.b16 %v2376
      %v2473 = vunpack.c.l.b16 %v2377
      %v2474 = vunpack.c.l.b16 %v2378
      %v2475 = vunpack.c.l.b16 %v2379
      %v2476 = vunpack.c.l.b16 %v2380
      %v2477 = vpack.c.b16 %v2462, %v2461
      %v2478 = vpack.c.b16 %v2464, %v2463
      %v2479 = vpack.c.b16 %v2466, %v2465
      %v2480 = vpack.c.b16 %v2468, %v2467
      %v2481 = vpack.c.b16 %v2470, %v2469
      %v2482 = vpack.c.b16 %v2472, %v2471
      %v2483 = vpack.c.b16 %v2474, %v2473
      %v2484 = vpack.c.b16 %v2476, %v2475
      %2493 = vmatprep.subr.bf16.mxu0 0
      %2494 = vmatpush1.bf16.msra.mxu0 %v2484
      %2495 = vmatprep.subr.bf16.mxu0 0
      %2496 = vmatpush1.bf16.msra.mxu0 %v2483
      %2497 = vmatprep.subr.bf16.mxu0 0
      %2498 = vmatpush1.bf16.msra.mxu0 %v2482
      %2499 = vmatprep.subr.bf16.mxu0 0
      %2500 = vmatpush1.bf16.msra.mxu0 %v2481
      %2501 = vmatprep.subr.bf16.mxu0 0
      %2502 = vmatpush1.bf16.msra.mxu0 %v2480
      %2503 = vmatprep.subr.bf16.mxu0 0
      %2504 = vmatpush1.bf16.msra.mxu0 %v2479
      %2505 = vmatprep.subr.bf16.mxu0 0
      %2506 = vmatpush1.bf16.msra.mxu0 %v2478
      %2507 = vmatprep.subr.bf16.mxu0 0
      %2508 = vmatpush1.bf16.msra.mxu0 %v2477
      %2509 = vmatprep.subr.bf16.mxu0 0
      %2510 = vmatpush2.bf16.msra.mxu0 0
      %2511 = vmatprep.subr.bf16.mxu0 0
      %2512 = vmatpush2.bf16.msra.mxu0 0
      %2513 = vmatprep.subr.bf16.mxu0 0
      %2514 = vmatpush2.bf16.msra.mxu0 0
      %2515 = vmatprep.subr.bf16.mxu0 0
      %2516 = vmatpush2.bf16.msra.mxu0 0
      %2517 = vmatprep.subr.bf16.mxu0 0
      %2518 = vmatpush2.bf16.msra.mxu0 0
      %2519 = vmatprep.subr.bf16.mxu0 0
      %2520 = vmatpush2.bf16.msra.mxu0 0
      %2521 = vmatprep.subr.bf16.mxu0 0
      %2522 = vmatpush2.bf16.msra.mxu0 0
      %2523 = vmatprep.subr.bf16.mxu0 0
      %2524 = vmatpush2.bf16.msra.mxu0 0
      %2525 = vmatprep.mubr.bf16.mxu0 0
      %2526 = vmatmul.mubr.bf16.gmra.mxu0 %v2413
      %v2527 = vpop.f32.mrf.mxu0
      %v2528 = vadd.f32 0.0, %v2527
      %v2529 = vpop.f32.mrf.mxu0
      %v2530 = vpop.f32.mrf.mxu0
      %v2531 = vadd.f32 0.0, %v2530
      %v2532 = vpop.f32.mrf.mxu0
      %2533 = vmatprep.mubr.bf16.mxu0 0
      %2534 = vmatmul.mubr.bf16.gmra.mxu0 %v2414
      %v2535 = vpop.f32.mrf.mxu0
      %v2536 = vadd.f32 0.0, %v2535
      %v2537 = vpop.f32.mrf.mxu0
      %v2538 = vpop.f32.mrf.mxu0
      %v2539 = vadd.f32 0.0, %v2538
      %v2540 = vpop.f32.mrf.mxu0
      %2541 = vmatprep.mubr.bf16.mxu0 0
      %2542 = vmatmul.mubr.bf16.gmra.mxu0 %v2415
      %v2543 = vpop.f32.mrf.mxu0
      %v2544 = vadd.f32 0.0, %v2543
      %v2545 = vpop.f32.mrf.mxu0
      %v2546 = vpop.f32.mrf.mxu0
      %v2547 = vadd.f32 0.0, %v2546
      %v2548 = vpop.f32.mrf.mxu0
      %2549 = vmatprep.mubr.bf16.mxu0 0
      %2550 = vmatmul.mubr.bf16.gmra.mxu0 %v2416
      %v2551 = vpop.f32.mrf.mxu0
      %v2552 = vadd.f32 0.0, %v2551
      %v2553 = vpop.f32.mrf.mxu0
      %v2554 = vpop.f32.mrf.mxu0
      %v2555 = vadd.f32 0.0, %v2554
      %v2556 = vpop.f32.mrf.mxu0
      %2557 = vmatprep.mubr.bf16.mxu0 0
      %2558 = vmatmul.mubr.bf16.gmra.mxu0 %v2417
      %v2559 = vpop.f32.mrf.mxu0
      %v2560 = vadd.f32 0.0, %v2559
      %v2561 = vpop.f32.mrf.mxu0
      %v2562 = vpop.f32.mrf.mxu0
      %v2563 = vadd.f32 0.0, %v2562
      %v2564 = vpop.f32.mrf.mxu0
      %2565 = vmatprep.mubr.bf16.mxu0 0
      %2566 = vmatmul.mubr.bf16.gmra.mxu0 %v2418
      %v2567 = vpop.f32.mrf.mxu0
      %v2568 = vadd.f32 0.0, %v2567
      %v2569 = vpop.f32.mrf.mxu0
      %v2570 = vpop.f32.mrf.mxu0
      %v2571 = vadd.f32 0.0, %v2570
      %v2572 = vpop.f32.mrf.mxu0
      %2573 = vmatprep.mubr.bf16.mxu0 0
      %2574 = vmatmul.mubr.bf16.gmra.mxu0 %v2419
      %v2575 = vpop.f32.mrf.mxu0
      %v2576 = vadd.f32 0.0, %v2575
      %v2577 = vpop.f32.mrf.mxu0
      %v2578 = vpop.f32.mrf.mxu0
      %v2579 = vadd.f32 0.0, %v2578
      %v2580 = vpop.f32.mrf.mxu0
      %2581 = vmatprep.mubr.bf16.mxu0 0
      %2582 = vmatmul.mubr.bf16.gmra.mxu0 %v2420
      %v2583 = vpop.f32.mrf.mxu0
      %v2584 = vadd.f32 0.0, %v2583
      %v2585 = vpop.f32.mrf.mxu0
      %v2586 = vpop.f32.mrf.mxu0
      %v2587 = vadd.f32 0.0, %v2586
      %v2588 = vpop.f32.mrf.mxu0
      %2589 = vmatprep.mubr.bf16.mxu0 0
      %2590 = vmatmul.mubr.bf16.gmra.mxu0 %v2421
      %v2591 = vpop.f32.mrf.mxu0
      %v2592 = vadd.f32 0.0, %v2591
      %v2593 = vpop.f32.mrf.mxu0
      %v2594 = vpop.f32.mrf.mxu0
      %v2595 = vadd.f32 0.0, %v2594
      %v2596 = vpop.f32.mrf.mxu0
      %2597 = vmatprep.mubr.bf16.mxu0 0
      %2598 = vmatmul.mubr.bf16.gmra.mxu0 %v2422
      %v2599 = vpop.f32.mrf.mxu0
      %v2600 = vadd.f32 0.0, %v2599
      %v2601 = vpop.f32.mrf.mxu0
      %v2602 = vpop.f32.mrf.mxu0
      %v2603 = vadd.f32 0.0, %v2602
      %v2604 = vpop.f32.mrf.mxu0
      %2605 = vmatprep.mubr.bf16.mxu0 0
      %2606 = vmatmul.mubr.bf16.gmra.mxu0 %v2423
      %v2607 = vpop.f32.mrf.mxu0
      %v2608 = vadd.f32 0.0, %v2607
      %v2609 = vpop.f32.mrf.mxu0
      %v2610 = vpop.f32.mrf.mxu0
      %v2611 = vadd.f32 0.0, %v2610
      %v2612 = vpop.f32.mrf.mxu0
      %2613 = vmatprep.mubr.bf16.mxu0 0
      %2614 = vmatmul.mubr.bf16.gmra.mxu0 %v2424
      %v2615 = vpop.f32.mrf.mxu0
      %v2616 = vadd.f32 0.0, %v2615
      %v2617 = vpop.f32.mrf.mxu0
      %v2618 = vpop.f32.mrf.mxu0
      %v2619 = vadd.f32 0.0, %v2618
      %v2620 = vpop.f32.mrf.mxu0
      %2621 = vmatprep.mubr.bf16.mxu0 0
      %2622 = vmatmul.mubr.bf16.gmra.mxu0 %v2425
      %v2623 = vpop.f32.mrf.mxu0
      %v2624 = vadd.f32 0.0, %v2623
      %v2625 = vpop.f32.mrf.mxu0
      %v2626 = vpop.f32.mrf.mxu0
      %v2627 = vadd.f32 0.0, %v2626
      %v2628 = vpop.f32.mrf.mxu0
      %2629 = vmatprep.mubr.bf16.mxu0 0
      %2630 = vmatmul.mubr.bf16.gmra.mxu0 %v2426
      %v2631 = vpop.f32.mrf.mxu0
      %v2632 = vadd.f32 0.0, %v2631
      %v2633 = vpop.f32.mrf.mxu0
      %v2634 = vpop.f32.mrf.mxu0
      %v2635 = vadd.f32 0.0, %v2634
      %v2636 = vpop.f32.mrf.mxu0
      %2637 = vmatprep.mubr.bf16.mxu0 0
      %2638 = vmatmul.mubr.bf16.gmra.mxu0 %v2427
      %v2639 = vpop.f32.mrf.mxu0
      %v2640 = vadd.f32 0.0, %v2639
      %v2641 = vpop.f32.mrf.mxu0
      %v2642 = vpop.f32.mrf.mxu0
      %v2643 = vadd.f32 0.0, %v2642
      %v2644 = vpop.f32.mrf.mxu0
      %2645 = vmatprep.mubr.bf16.mxu0 0
      %2646 = vmatmul.mubr.bf16.gmra.mxu0 %v2428
      %v2647 = vpop.f32.mrf.mxu0
      %v2648 = vadd.f32 0.0, %v2647
      %v2649 = vpop.f32.mrf.mxu0
      %v2650 = vpop.f32.mrf.mxu0
      %v2651 = vadd.f32 0.0, %v2650
      %v2652 = vpop.f32.mrf.mxu0
      %2653 = vdwg.mxu0
      %v2654 = vadd.f32 %v1891, %v2528
      %v2655 = vadd.f32 %v1892, %v2531
      %v2656 = vadd.f32 %v1893, %v2536
      %v2657 = vadd.f32 %v1894, %v2539
      %v2658 = vadd.f32 %v1895, %v2544
      %v2659 = vadd.f32 %v1896, %v2547
      %v2660 = vadd.f32 %v1897, %v2552
      %v2661 = vadd.f32 %v1898, %v2555
      %v2662 = vadd.f32 %v1899, %v2560
      %v2663 = vadd.f32 %v1900, %v2563
      %v2664 = vadd.f32 %v1901, %v2568
      %v2665 = vadd.f32 %v1902, %v2571
      %v2666 = vadd.f32 %v1903, %v2576
      %v2667 = vadd.f32 %v1904, %v2579
      %v2668 = vadd.f32 %v1905, %v2584
      %v2669 = vadd.f32 %v1906, %v2587
      %v2670 = vadd.f32 %v1907, %v2592
      %v2671 = vadd.f32 %v1908, %v2595
      %v2672 = vadd.f32 %v1909, %v2600
      %v2673 = vadd.f32 %v1910, %v2603
      %v2674 = vadd.f32 %v1911, %v2608
      %v2675 = vadd.f32 %v1912, %v2611
      %v2676 = vadd.f32 %v1913, %v2616
      %v2677 = vadd.f32 %v1914, %v2619
      %v2678 = vadd.f32 %v1915, %v2624
      %v2679 = vadd.f32 %v1916, %v2627
      %v2680 = vadd.f32 %v1917, %v2632
      %v2681 = vadd.f32 %v1918, %v2635
      %v2682 = vadd.f32 %v1919, %v2640
      %v2683 = vadd.f32 %v1920, %v2643
      %v2684 = vadd.f32 %v1921, %v2648
      %v2685 = vadd.f32 %v1922, %v2651
      %v2687 = vshrl.u32 %v1971, 16
      %v2689 = vrot.slane %v2687, 4
      %v2690 = vshll.u32 %v1971, 16
      %v2692 = vrot.slane %v2690, 5
      %v2693 = vor.u32 %v2689, %v2692
      %v2694 = vrot.slane %v2693, 4
      %v2696 = vshll.u32 %v1972, 16
      %v2698 = vrot.slane %v2696, 5
      %v2699 = vsel %vm1979, %v2694, %v2698
      %v2700 = vshrl.u32 %v1972, 16
      %v2702 = vrot.slane %v2700, 4
      %v2703 = vor.u32 %v2702, %v2698
      %v2704 = vrot.slane %v2703, 4
      %v2706 = vshll.u32 %v1973, 16
      %v2708 = vrot.slane %v2706, 5
      %v2709 = vsel %vm1979, %v2704, %v2708
      %s2710 = scalar_lea.vmem %s3, 256
      %v2711 = vld [vmem:[%s2710] sm:$0xf]
      %v2712 = vld [vmem:[%s2710 + $0x4] sm:$0xf]
      %v2713 = vld [vmem:[%s2710 + $0x8] sm:$0xf]
      %v2714 = vld [vmem:[%s2710 + $0xc] sm:$0xf]
      %v2715 = vld [vmem:[%s2710 + $0x10] sm:$0xf]
      %v2716 = vld [vmem:[%s2710 + $0x14] sm:$0xf]
      %v2717 = vld [vmem:[%s2710 + $0x18] sm:$0xf]
      %v2718 = vld [vmem:[%s2710 + $0x1c] sm:$0xf]
      %v2719 = vld [vmem:[%s2710 + $0x20] sm:$0xf]
      %v2720 = vld [vmem:[%s2710 + $0x24] sm:$0xf]
      %v2721 = vld [vmem:[%s2710 + $0x28] sm:$0xf]
      %v2722 = vld [vmem:[%s2710 + $0x2c] sm:$0xf]
      %v2723 = vld [vmem:[%s2710 + $0x30] sm:$0xf]
      %v2724 = vld [vmem:[%s2710 + $0x34] sm:$0xf]
      %v2725 = vld [vmem:[%s2710 + $0x38] sm:$0xf]
      %v2726 = vld [vmem:[%s2710 + $0x3c] sm:$0xf]
      %v2727 = vunpack.c.l.b16 %v2699
      %v2728 = vunpack.c.l.b16 %v2709
      %v2729 = vpack.c.b16 %v2728, %v2727
      %v2747 = vunpack.c.l.b16 %v2711
      %v2748 = vunpack.c.l.b16 %v2712
      %v2749 = vunpack.c.l.b16 %v2713
      %v2750 = vunpack.c.l.b16 %v2714
      %v2751 = vunpack.c.l.b16 %v2715
      %v2752 = vunpack.c.l.b16 %v2716
      %v2753 = vunpack.c.l.b16 %v2717
      %v2754 = vunpack.c.l.b16 %v2718
      %v2755 = vunpack.c.l.b16 %v2719
      %v2756 = vunpack.c.l.b16 %v2720
      %v2757 = vunpack.c.l.b16 %v2721
      %v2758 = vunpack.c.l.b16 %v2722
      %v2759 = vunpack.c.l.b16 %v2723
      %v2760 = vunpack.c.l.b16 %v2724
      %v2761 = vunpack.c.l.b16 %v2725
      %v2762 = vunpack.c.l.b16 %v2726
      %v2763 = vpack.c.b16 %v2748, %v2747
      %v2764 = vpack.c.b16 %v2750, %v2749
      %v2765 = vpack.c.b16 %v2752, %v2751
      %v2766 = vpack.c.b16 %v2754, %v2753
      %v2767 = vpack.c.b16 %v2756, %v2755
      %v2768 = vpack.c.b16 %v2758, %v2757
      %v2769 = vpack.c.b16 %v2760, %v2759
      %v2770 = vpack.c.b16 %v2762, %v2761
      %2779 = vmatprep.subr.bf16.mxu0 0
      %2780 = vmatpush1.bf16.msra.mxu0 %v2770
      %2781 = vmatprep.subr.bf16.mxu0 0
      %2782 = vmatpush1.bf16.msra.mxu0 %v2769
      %2783 = vmatprep.subr.bf16.mxu0 0
      %2784 = vmatpush1.bf16.msra.mxu0 %v2768
      %2785 = vmatprep.subr.bf16.mxu0 0
      %2786 = vmatpush1.bf16.msra.mxu0 %v2767
      %2787 = vmatprep.subr.bf16.mxu0 0
      %2788 = vmatpush1.bf16.msra.mxu0 %v2766
      %2789 = vmatprep.subr.bf16.mxu0 0
      %2790 = vmatpush1.bf16.msra.mxu0 %v2765
      %2791 = vmatprep.subr.bf16.mxu0 0
      %2792 = vmatpush1.bf16.msra.mxu0 %v2764
      %2793 = vmatprep.subr.bf16.mxu0 0
      %2794 = vmatpush1.bf16.msra.mxu0 %v2763
      %2795 = vmatprep.subr.bf16.mxu0 0
      %2796 = vmatpush2.bf16.msra.mxu0 0
      %2797 = vmatprep.subr.bf16.mxu0 0
      %2798 = vmatpush2.bf16.msra.mxu0 0
      %2799 = vmatprep.subr.bf16.mxu0 0
      %2800 = vmatpush2.bf16.msra.mxu0 0
      %2801 = vmatprep.subr.bf16.mxu0 0
      %2802 = vmatpush2.bf16.msra.mxu0 0
      %2803 = vmatprep.subr.bf16.mxu0 0
      %2804 = vmatpush2.bf16.msra.mxu0 0
      %2805 = vmatprep.subr.bf16.mxu0 0
      %2806 = vmatpush2.bf16.msra.mxu0 0
      %2807 = vmatprep.subr.bf16.mxu0 0
      %2808 = vmatpush2.bf16.msra.mxu0 0
      %2809 = vmatprep.subr.bf16.mxu0 0
      %2810 = vmatpush2.bf16.msra.mxu0 0
      %2811 = vmatprep.mubr.bf16.mxu0 0
      %2812 = vmatmul.mubr.bf16.gmra.mxu0 %v2414
      %v2813 = vpop.f32.mrf.mxu0
      %v2814 = vadd.f32 0.0, %v2813
      %v2815 = vpop.f32.mrf.mxu0
      %v2816 = vpop.f32.mrf.mxu0
      %v2817 = vadd.f32 0.0, %v2816
      %v2818 = vpop.f32.mrf.mxu0
      %2819 = vmatprep.mubr.bf16.mxu0 0
      %2820 = vmatmul.mubr.bf16.gmra.mxu0 %v2415
      %v2821 = vpop.f32.mrf.mxu0
      %v2822 = vadd.f32 0.0, %v2821
      %v2823 = vpop.f32.mrf.mxu0
      %v2824 = vpop.f32.mrf.mxu0
      %v2825 = vadd.f32 0.0, %v2824
      %v2826 = vpop.f32.mrf.mxu0
      %2827 = vmatprep.mubr.bf16.mxu0 0
      %2828 = vmatmul.mubr.bf16.gmra.mxu0 %v2416
      %v2829 = vpop.f32.mrf.mxu0
      %v2830 = vadd.f32 0.0, %v2829
      %v2831 = vpop.f32.mrf.mxu0
      %v2832 = vpop.f32.mrf.mxu0
      %v2833 = vadd.f32 0.0, %v2832
      %v2834 = vpop.f32.mrf.mxu0
      %2835 = vmatprep.mubr.bf16.mxu0 0
      %2836 = vmatmul.mubr.bf16.gmra.mxu0 %v2417
      %v2837 = vpop.f32.mrf.mxu0
      %v2838 = vadd.f32 0.0, %v2837
      %v2839 = vpop.f32.mrf.mxu0
      %v2840 = vpop.f32.mrf.mxu0
      %v2841 = vadd.f32 0.0, %v2840
      %v2842 = vpop.f32.mrf.mxu0
      %2843 = vmatprep.mubr.bf16.mxu0 0
      %2844 = vmatmul.mubr.bf16.gmra.mxu0 %v2418
      %v2845 = vpop.f32.mrf.mxu0
      %v2846 = vadd.f32 0.0, %v2845
      %v2847 = vpop.f32.mrf.mxu0
      %v2848 = vpop.f32.mrf.mxu0
      %v2849 = vadd.f32 0.0, %v2848
      %v2850 = vpop.f32.mrf.mxu0
      %2851 = vmatprep.mubr.bf16.mxu0 0
      %2852 = vmatmul.mubr.bf16.gmra.mxu0 %v2419
      %v2853 = vpop.f32.mrf.mxu0
      %v2854 = vadd.f32 0.0, %v2853
      %v2855 = vpop.f32.mrf.mxu0
      %v2856 = vpop.f32.mrf.mxu0
      %v2857 = vadd.f32 0.0, %v2856
      %v2858 = vpop.f32.mrf.mxu0
      %2859 = vmatprep.mubr.bf16.mxu0 0
      %2860 = vmatmul.mubr.bf16.gmra.mxu0 %v2420
      %v2861 = vpop.f32.mrf.mxu0
      %v2862 = vadd.f32 0.0, %v2861
      %v2863 = vpop.f32.mrf.mxu0
      %v2864 = vpop.f32.mrf.mxu0
      %v2865 = vadd.f32 0.0, %v2864
      %v2866 = vpop.f32.mrf.mxu0
      %2867 = vmatprep.mubr.bf16.mxu0 0
      %2868 = vmatmul.mubr.bf16.gmra.mxu0 %v2421
      %v2869 = vpop.f32.mrf.mxu0
      %v2870 = vadd.f32 0.0, %v2869
      %v2871 = vpop.f32.mrf.mxu0
      %v2872 = vpop.f32.mrf.mxu0
      %v2873 = vadd.f32 0.0, %v2872
      %v2874 = vpop.f32.mrf.mxu0
      %2875 = vmatprep.mubr.bf16.mxu0 0
      %2876 = vmatmul.mubr.bf16.gmra.mxu0 %v2422
      %v2877 = vpop.f32.mrf.mxu0
      %v2878 = vadd.f32 0.0, %v2877
      %v2879 = vpop.f32.mrf.mxu0
      %v2880 = vpop.f32.mrf.mxu0
      %v2881 = vadd.f32 0.0, %v2880
      %v2882 = vpop.f32.mrf.mxu0
      %2883 = vmatprep.mubr.bf16.mxu0 0
      %2884 = vmatmul.mubr.bf16.gmra.mxu0 %v2423
      %v2885 = vpop.f32.mrf.mxu0
      %v2886 = vadd.f32 0.0, %v2885
      %v2887 = vpop.f32.mrf.mxu0
      %v2888 = vpop.f32.mrf.mxu0
      %v2889 = vadd.f32 0.0, %v2888
      %v2890 = vpop.f32.mrf.mxu0
      %2891 = vmatprep.mubr.bf16.mxu0 0
      %2892 = vmatmul.mubr.bf16.gmra.mxu0 %v2424
      %v2893 = vpop.f32.mrf.mxu0
      %v2894 = vadd.f32 0.0, %v2893
      %v2895 = vpop.f32.mrf.mxu0
      %v2896 = vpop.f32.mrf.mxu0
      %v2897 = vadd.f32 0.0, %v2896
      %v2898 = vpop.f32.mrf.mxu0
      %2899 = vmatprep.mubr.bf16.mxu0 0
      %2900 = vmatmul.mubr.bf16.gmra.mxu0 %v2425
      %v2901 = vpop.f32.mrf.mxu0
      %v2902 = vadd.f32 0.0, %v2901
      %v2903 = vpop.f32.mrf.mxu0
      %v2904 = vpop.f32.mrf.mxu0
      %v2905 = vadd.f32 0.0, %v2904
      %v2906 = vpop.f32.mrf.mxu0
      %2907 = vmatprep.mubr.bf16.mxu0 0
      %2908 = vmatmul.mubr.bf16.gmra.mxu0 %v2426
      %v2909 = vpop.f32.mrf.mxu0
      %v2910 = vadd.f32 0.0, %v2909
      %v2911 = vpop.f32.mrf.mxu0
      %v2912 = vpop.f32.mrf.mxu0
      %v2913 = vadd.f32 0.0, %v2912
      %v2914 = vpop.f32.mrf.mxu0
      %2915 = vmatprep.mubr.bf16.mxu0 0
      %2916 = vmatmul.mubr.bf16.gmra.mxu0 %v2427
      %v2917 = vpop.f32.mrf.mxu0
      %v2918 = vadd.f32 0.0, %v2917
      %v2919 = vpop.f32.mrf.mxu0
      %v2920 = vpop.f32.mrf.mxu0
      %v2921 = vadd.f32 0.0, %v2920
      %v2922 = vpop.f32.mrf.mxu0
      %2923 = vmatprep.mubr.bf16.mxu0 0
      %2924 = vmatmul.mubr.bf16.gmra.mxu0 %v2428
      %v2925 = vpop.f32.mrf.mxu0
      %v2926 = vadd.f32 0.0, %v2925
      %v2927 = vpop.f32.mrf.mxu0
      %v2928 = vpop.f32.mrf.mxu0
      %v2929 = vadd.f32 0.0, %v2928
      %v2930 = vpop.f32.mrf.mxu0
      %2931 = vmatprep.mubr.bf16.mxu0 0
      %2932 = vmatmul.mubr.bf16.gmra.mxu0 %v2729
      %v2933 = vpop.f32.mrf.mxu0
      %v2934 = vadd.f32 0.0, %v2933
      %v2935 = vpop.f32.mrf.mxu0
      %v2936 = vpop.f32.mrf.mxu0
      %v2937 = vadd.f32 0.0, %v2936
      %v2938 = vpop.f32.mrf.mxu0
      %2939 = vdwg.mxu0
      %v2940 = vadd.f32 %v2654, %v2814
      %v2941 = vadd.f32 %v2655, %v2817
      %v2942 = vadd.f32 %v2656, %v2822
      %v2943 = vadd.f32 %v2657, %v2825
      %v2944 = vadd.f32 %v2658, %v2830
      %v2945 = vadd.f32 %v2659, %v2833
      %v2946 = vadd.f32 %v2660, %v2838
      %v2947 = vadd.f32 %v2661, %v2841
      %v2948 = vadd.f32 %v2662, %v2846
      %v2949 = vadd.f32 %v2663, %v2849
      %v2950 = vadd.f32 %v2664, %v2854
      %v2951 = vadd.f32 %v2665, %v2857
      %v2952 = vadd.f32 %v2666, %v2862
      %v2953 = vadd.f32 %v2667, %v2865
      %v2954 = vadd.f32 %v2668, %v2870
      %v2955 = vadd.f32 %v2669, %v2873
      %v2956 = vadd.f32 %v2670, %v2878
      %v2957 = vadd.f32 %v2671, %v2881
      %v2958 = vadd.f32 %v2672, %v2886
      %v2959 = vadd.f32 %v2673, %v2889
      %v2960 = vadd.f32 %v2674, %v2894
      %v2961 = vadd.f32 %v2675, %v2897
      %v2962 = vadd.f32 %v2676, %v2902
      %v2963 = vadd.f32 %v2677, %v2905
      %v2964 = vadd.f32 %v2678, %v2910
      %v2965 = vadd.f32 %v2679, %v2913
      %v2966 = vadd.f32 %v2680, %v2918
      %v2967 = vadd.f32 %v2681, %v2921
      %v2968 = vadd.f32 %v2682, %v2926
      %v2969 = vadd.f32 %v2683, %v2929
      %v2970 = vadd.f32 %v2684, %v2934
      %v2971 = vadd.f32 %v2685, %v2937
      %v2973 = vshrl.u32 %v1974, 16
      %v2975 = vrot.slane %v2973, 4
      %v2976 = vshll.u32 %v1974, 16
      %v2978 = vrot.slane %v2976, 5
      %v2979 = vor.u32 %v2975, %v2978
      %v2980 = vrot.slane %v2979, 4
      %v2982 = vshll.u32 %v1975, 16
      %v2984 = vrot.slane %v2982, 5
      %v2985 = vsel %vm1979, %v2980, %v2984
      %v2986 = vshrl.u32 %v1975, 16
      %v2988 = vrot.slane %v2986, 4
      %v2989 = vor.u32 %v2988, %v2984
      %v2990 = vrot.slane %v2989, 4
      %v2992 = vshll.u32 %v1976, 16
      %v2994 = vrot.slane %v2992, 5
      %v2995 = vsel %vm1979, %v2990, %v2994
      %s2996 = scalar_lea.vmem %s3, 448
      %v2997 = vld [vmem:[%s2996] sm:$0xf]
      %v2998 = vld [vmem:[%s2996 + $0x4] sm:$0xf]
      %v2999 = vld [vmem:[%s2996 + $0x8] sm:$0xf]
      %v3000 = vld [vmem:[%s2996 + $0xc] sm:$0xf]
      %v3001 = vld [vmem:[%s2996 + $0x10] sm:$0xf]
      %v3002 = vld [vmem:[%s2996 + $0x14] sm:$0xf]
      %v3003 = vld [vmem:[%s2996 + $0x18] sm:$0xf]
      %v3004 = vld [vmem:[%s2996 + $0x1c] sm:$0xf]
      %v3005 = vld [vmem:[%s2996 + $0x20] sm:$0xf]
      %v3006 = vld [vmem:[%s2996 + $0x24] sm:$0xf]
      %v3007 = vld [vmem:[%s2996 + $0x28] sm:$0xf]
      %v3008 = vld [vmem:[%s2996 + $0x2c] sm:$0xf]
      %v3009 = vld [vmem:[%s2996 + $0x30] sm:$0xf]
      %v3010 = vld [vmem:[%s2996 + $0x34] sm:$0xf]
      %v3011 = vld [vmem:[%s2996 + $0x38] sm:$0xf]
      %v3012 = vld [vmem:[%s2996 + $0x3c] sm:$0xf]
      %v3013 = vunpack.c.l.b16 %v2985
      %v3014 = vunpack.c.l.b16 %v2995
      %v3015 = vpack.c.b16 %v3014, %v3013
      %v3033 = vunpack.c.l.b16 %v2997
      %v3034 = vunpack.c.l.b16 %v2998
      %v3035 = vunpack.c.l.b16 %v2999
      %v3036 = vunpack.c.l.b16 %v3000
      %v3037 = vunpack.c.l.b16 %v3001
      %v3038 = vunpack.c.l.b16 %v3002
      %v3039 = vunpack.c.l.b16 %v3003
      %v3040 = vunpack.c.l.b16 %v3004
      %v3041 = vunpack.c.l.b16 %v3005
      %v3042 = vunpack.c.l.b16 %v3006
      %v3043 = vunpack.c.l.b16 %v3007
      %v3044 = vunpack.c.l.b16 %v3008
      %v3045 = vunpack.c.l.b16 %v3009
      %v3046 = vunpack.c.l.b16 %v3010
      %v3047 = vunpack.c.l.b16 %v3011
      %v3048 = vunpack.c.l.b16 %v3012
      %v3049 = vpack.c.b16 %v3034, %v3033
      %v3050 = vpack.c.b16 %v3036, %v3035
      %v3051 = vpack.c.b16 %v3038, %v3037
      %v3052 = vpack.c.b16 %v3040, %v3039
      %v3053 = vpack.c.b16 %v3042, %v3041
      %v3054 = vpack.c.b16 %v3044, %v3043
      %v3055 = vpack.c.b16 %v3046, %v3045
      %v3056 = vpack.c.b16 %v3048, %v3047
      %3065 = vmatprep.subr.bf16.mxu0 0
      %3066 = vmatpush1.bf16.msra.mxu0 %v3056
      %3067 = vmatprep.subr.bf16.mxu0 0
      %3068 = vmatpush1.bf16.msra.mxu0 %v3055
      %3069 = vmatprep.subr.bf16.mxu0 0
      %3070 = vmatpush1.bf16.msra.mxu0 %v3054
      %3071 = vmatprep.subr.bf16.mxu0 0
      %3072 = vmatpush1.bf16.msra.mxu0 %v3053
      %3073 = vmatprep.subr.bf16.mxu0 0
      %3074 = vmatpush1.bf16.msra.mxu0 %v3052
      %3075 = vmatprep.subr.bf16.mxu0 0
      %3076 = vmatpush1.bf16.msra.mxu0 %v3051
      %3077 = vmatprep.subr.bf16.mxu0 0
      %3078 = vmatpush1.bf16.msra.mxu0 %v3050
      %3079 = vmatprep.subr.bf16.mxu0 0
      %3080 = vmatpush1.bf16.msra.mxu0 %v3049
      %3081 = vmatprep.subr.bf16.mxu0 0
      %3082 = vmatpush2.bf16.msra.mxu0 0
      %3083 = vmatprep.subr.bf16.mxu0 0
      %3084 = vmatpush2.bf16.msra.mxu0 0
      %3085 = vmatprep.subr.bf16.mxu0 0
      %3086 = vmatpush2.bf16.msra.mxu0 0
      %3087 = vmatprep.subr.bf16.mxu0 0
      %3088 = vmatpush2.bf16.msra.mxu0 0
      %3089 = vmatprep.subr.bf16.mxu0 0
      %3090 = vmatpush2.bf16.msra.mxu0 0
      %3091 = vmatprep.subr.bf16.mxu0 0
      %3092 = vmatpush2.bf16.msra.mxu0 0
      %3093 = vmatprep.subr.bf16.mxu0 0
      %3094 = vmatpush2.bf16.msra.mxu0 0
      %3095 = vmatprep.subr.bf16.mxu0 0
      %3096 = vmatpush2.bf16.msra.mxu0 0
      %3097 = vmatprep.mubr.bf16.mxu0 0
      %3098 = vmatmul.mubr.bf16.gmra.mxu0 %v2415
      %v3099 = vpop.f32.mrf.mxu0
      %v3100 = vadd.f32 0.0, %v3099
      %v3101 = vpop.f32.mrf.mxu0
      %v3102 = vpop.f32.mrf.mxu0
      %v3103 = vadd.f32 0.0, %v3102
      %v3104 = vpop.f32.mrf.mxu0
      %3105 = vmatprep.mubr.bf16.mxu0 0
      %3106 = vmatmul.mubr.bf16.gmra.mxu0 %v2416
      %v3107 = vpop.f32.mrf.mxu0
      %v3108 = vadd.f32 0.0, %v3107
      %v3109 = vpop.f32.mrf.mxu0
      %v3110 = vpop.f32.mrf.mxu0
      %v3111 = vadd.f32 0.0, %v3110
      %v3112 = vpop.f32.mrf.mxu0
      %3113 = vmatprep.mubr.bf16.mxu0 0
      %3114 = vmatmul.mubr.bf16.gmra.mxu0 %v2417
      %v3115 = vpop.f32.mrf.mxu0
      %v3116 = vadd.f32 0.0, %v3115
      %v3117 = vpop.f32.mrf.mxu0
      %v3118 = vpop.f32.mrf.mxu0
      %v3119 = vadd.f32 0.0, %v3118
      %v3120 = vpop.f32.mrf.mxu0
      %3121 = vmatprep.mubr.bf16.mxu0 0
      %3122 = vmatmul.mubr.bf16.gmra.mxu0 %v2418
      %v3123 = vpop.f32.mrf.mxu0
      %v3124 = vadd.f32 0.0, %v3123
      %v3125 = vpop.f32.mrf.mxu0
      %v3126 = vpop.f32.mrf.mxu0
      %v3127 = vadd.f32 0.0, %v3126
      %v3128 = vpop.f32.mrf.mxu0
      %3129 = vmatprep.mubr.bf16.mxu0 0
      %3130 = vmatmul.mubr.bf16.gmra.mxu0 %v2419
      %v3131 = vpop.f32.mrf.mxu0
      %v3132 = vadd.f32 0.0, %v3131
      %v3133 = vpop.f32.mrf.mxu0
      %v3134 = vpop.f32.mrf.mxu0
      %v3135 = vadd.f32 0.0, %v3134
      %v3136 = vpop.f32.mrf.mxu0
      %3137 = vmatprep.mubr.bf16.mxu0 0
      %3138 = vmatmul.mubr.bf16.gmra.mxu0 %v2420
      %v3139 = vpop.f32.mrf.mxu0
      %v3140 = vadd.f32 0.0, %v3139
      %v3141 = vpop.f32.mrf.mxu0
      %v3142 = vpop.f32.mrf.mxu0
      %v3143 = vadd.f32 0.0, %v3142
      %v3144 = vpop.f32.mrf.mxu0
      %3145 = vmatprep.mubr.bf16.mxu0 0
      %3146 = vmatmul.mubr.bf16.gmra.mxu0 %v2421
      %v3147 = vpop.f32.mrf.mxu0
      %v3148 = vadd.f32 0.0, %v3147
      %v3149 = vpop.f32.mrf.mxu0
      %v3150 = vpop.f32.mrf.mxu0
      %v3151 = vadd.f32 0.0, %v3150
      %v3152 = vpop.f32.mrf.mxu0
      %3153 = vmatprep.mubr.bf16.mxu0 0
      %3154 = vmatmul.mubr.bf16.gmra.mxu0 %v2422
      %v3155 = vpop.f32.mrf.mxu0
      %v3156 = vadd.f32 0.0, %v3155
      %v3157 = vpop.f32.mrf.mxu0
      %v3158 = vpop.f32.mrf.mxu0
      %v3159 = vadd.f32 0.0, %v3158
      %v3160 = vpop.f32.mrf.mxu0
      %3161 = vmatprep.mubr.bf16.mxu0 0
      %3162 = vmatmul.mubr.bf16.gmra.mxu0 %v2423
      %v3163 = vpop.f32.mrf.mxu0
      %v3164 = vadd.f32 0.0, %v3163
      %v3165 = vpop.f32.mrf.mxu0
      %v3166 = vpop.f32.mrf.mxu0
      %v3167 = vadd.f32 0.0, %v3166
      %v3168 = vpop.f32.mrf.mxu0
      %3169 = vmatprep.mubr.bf16.mxu0 0
      %3170 = vmatmul.mubr.bf16.gmra.mxu0 %v2424
      %v3171 = vpop.f32.mrf.mxu0
      %v3172 = vadd.f32 0.0, %v3171
      %v3173 = vpop.f32.mrf.mxu0
      %v3174 = vpop.f32.mrf.mxu0
      %v3175 = vadd.f32 0.0, %v3174
      %v3176 = vpop.f32.mrf.mxu0
      %3177 = vmatprep.mubr.bf16.mxu0 0
      %3178 = vmatmul.mubr.bf16.gmra.mxu0 %v2425
      %v3179 = vpop.f32.mrf.mxu0
      %v3180 = vadd.f32 0.0, %v3179
      %v3181 = vpop.f32.mrf.mxu0
      %v3182 = vpop.f32.mrf.mxu0
      %v3183 = vadd.f32 0.0, %v3182
      %v3184 = vpop.f32.mrf.mxu0
      %3185 = vmatprep.mubr.bf16.mxu0 0
      %3186 = vmatmul.mubr.bf16.gmra.mxu0 %v2426
      %v3187 = vpop.f32.mrf.mxu0
      %v3188 = vadd.f32 0.0, %v3187
      %v3189 = vpop.f32.mrf.mxu0
      %v3190 = vpop.f32.mrf.mxu0
      %v3191 = vadd.f32 0.0, %v3190
      %v3192 = vpop.f32.mrf.mxu0
      %3193 = vmatprep.mubr.bf16.mxu0 0
      %3194 = vmatmul.mubr.bf16.gmra.mxu0 %v2427
      %v3195 = vpop.f32.mrf.mxu0
      %v3196 = vadd.f32 0.0, %v3195
      %v3197 = vpop.f32.mrf.mxu0
      %v3198 = vpop.f32.mrf.mxu0
      %v3199 = vadd.f32 0.0, %v3198
      %v3200 = vpop.f32.mrf.mxu0
      %3201 = vmatprep.mubr.bf16.mxu0 0
      %3202 = vmatmul.mubr.bf16.gmra.mxu0 %v2428
      %v3203 = vpop.f32.mrf.mxu0
      %v3204 = vadd.f32 0.0, %v3203
      %v3205 = vpop.f32.mrf.mxu0
      %v3206 = vpop.f32.mrf.mxu0
      %v3207 = vadd.f32 0.0, %v3206
      %v3208 = vpop.f32.mrf.mxu0
      %3209 = vmatprep.mubr.bf16.mxu0 0
      %3210 = vmatmul.mubr.bf16.gmra.mxu0 %v2729
      %v3211 = vpop.f32.mrf.mxu0
      %v3212 = vadd.f32 0.0, %v3211
      %v3213 = vpop.f32.mrf.mxu0
      %v3214 = vpop.f32.mrf.mxu0
      %v3215 = vadd.f32 0.0, %v3214
      %v3216 = vpop.f32.mrf.mxu0
      %3217 = vmatprep.mubr.bf16.mxu0 0
      %3218 = vmatmul.mubr.bf16.gmra.mxu0 %v3015
      %v3219 = vpop.f32.mrf.mxu0
      %v3220 = vadd.f32 0.0, %v3219
      %v3221 = vpop.f32.mrf.mxu0
      %v3222 = vpop.f32.mrf.mxu0
      %v3223 = vadd.f32 0.0, %v3222
      %v3224 = vpop.f32.mrf.mxu0
      %3225 = vdwg.mxu0
      %v3226 = vadd.f32 %v2940, %v3100
      %v3227 = vadd.f32 %v2941, %v3103
      %v3228 = vadd.f32 %v2942, %v3108
      %v3229 = vadd.f32 %v2943, %v3111
      %v3230 = vadd.f32 %v2944, %v3116
      %v3231 = vadd.f32 %v2945, %v3119
      %v3232 = vadd.f32 %v2946, %v3124
      %v3233 = vadd.f32 %v2947, %v3127
      %v3234 = vadd.f32 %v2948, %v3132
      %v3235 = vadd.f32 %v2949, %v3135
      %v3236 = vadd.f32 %v2950, %v3140
      %v3237 = vadd.f32 %v2951, %v3143
      %v3238 = vadd.f32 %v2952, %v3148
      %v3239 = vadd.f32 %v2953, %v3151
      %v3240 = vadd.f32 %v2954, %v3156
      %v3241 = vadd.f32 %v2955, %v3159
      %v3242 = vadd.f32 %v2956, %v3164
      %v3243 = vadd.f32 %v2957, %v3167
      %v3244 = vadd.f32 %v2958, %v3172
      %v3245 = vadd.f32 %v2959, %v3175
      %v3246 = vadd.f32 %v2960, %v3180
      %v3247 = vadd.f32 %v2961, %v3183
      %v3248 = vadd.f32 %v2962, %v3188
      %v3249 = vadd.f32 %v2963, %v3191
      %v3250 = vadd.f32 %v2964, %v3196
      %v3251 = vadd.f32 %v2965, %v3199
      %v3252 = vadd.f32 %v2966, %v3204
      %v3253 = vadd.f32 %v2967, %v3207
      %v3254 = vadd.f32 %v2968, %v3212
      %v3255 = vadd.f32 %v2969, %v3215
      %v3256 = vadd.f32 %v2970, %v3220
      %v3257 = vadd.f32 %v2971, %v3223
      %v3258 = vld [vmem:[#allocation3] sm:$0xe]
      %v3259 = vld [vmem:[#allocation3 + $0xc] sm:$0xe]
      %v3260 = vld [vmem:[#allocation3 + $0x18] sm:$0xe]
      %v3261 = vld [vmem:[#allocation3 + $0x24] sm:$0xe]
      %v3262 = vld [vmem:[#allocation3 + $0x30] sm:$0xe]
      %v3263 = vld [vmem:[#allocation3 + $0x3c] sm:$0xe]
      %v3264 = vld [vmem:[#allocation3 + $0x48] sm:$0xe]
      %v3265 = vld [vmem:[#allocation3 + $0x54] sm:$0xe]
      %v3266 = vld [vmem:[#allocation3 + $0x60] sm:$0xe]
      %v3267 = vld [vmem:[#allocation3 + $0x6c] sm:$0xe]
      %v3268 = vld [vmem:[#allocation3 + $0x78] sm:$0xe]
      %v3269 = vld [vmem:[#allocation3 + $0x84] sm:$0xe]
      %v3270 = vld [vmem:[#allocation3 + $0x90] sm:$0xe]
      %v3271 = vld [vmem:[#allocation3 + $0x9c] sm:$0xe]
      %v3272 = vld [vmem:[#allocation3 + $0xa8] sm:$0xe]
      %v3273 = vld [vmem:[#allocation3 + $0xb4] sm:$0xe]
      %v3274 = vld [vmem:[#allocation3 + $0xc0] sm:$0xe]
      %v3275 = vld [vmem:[#allocation3 + $0xcc] sm:$0xe]
      %vm3324 = vcmask 1042432
      %vm3325 = vcmask 1046532
      %vm3326 = vmor %vm3324, %vm3325
      %v3327 = vrot.slane %v3258, 5
      %v3328 = vrot.slane %v3327, 4
      %v3329 = vrot.slane %v1924, 5
      %v3330 = vsel %vm3326, %v3328, %v3329
      %v3331 = vrot.slane %v3329, 4
      %v3332 = vrot.slane %v1925, 5
      %v3333 = vsel %vm3326, %v3331, %v3332
      %v3334 = vrot.slane %v3259, 5
      %v3335 = vrot.slane %v3334, 4
      %v3336 = vrot.slane %v1927, 5
      %v3337 = vsel %vm3326, %v3335, %v3336
      %v3338 = vrot.slane %v3336, 4
      %v3339 = vrot.slane %v1928, 5
      %v3340 = vsel %vm3326, %v3338, %v3339
      %v3341 = vrot.slane %v3260, 5
      %v3342 = vrot.slane %v3341, 4
      %v3343 = vrot.slane %v1930, 5
      %v3344 = vsel %vm3326, %v3342, %v3343
      %v3345 = vrot.slane %v3343, 4
      %v3346 = vrot.slane %v1931, 5
      %v3347 = vsel %vm3326, %v3345, %v3346
      %v3348 = vrot.slane %v3261, 5
      %v3349 = vrot.slane %v3348, 4
      %v3350 = vrot.slane %v1933, 5
      %v3351 = vsel %vm3326, %v3349, %v3350
      %v3352 = vrot.slane %v3350, 4
      %v3353 = vrot.slane %v1934, 5
      %v3354 = vsel %vm3326, %v3352, %v3353
      %v3355 = vrot.slane %v3262, 5
      %v3356 = vrot.slane %v3355, 4
      %v3357 = vrot.slane %v1936, 5
      %v3358 = vsel %vm3326, %v3356, %v3357
      %v3359 = vrot.slane %v3357, 4
      %v3360 = vrot.slane %v1937, 5
      %v3361 = vsel %vm3326, %v3359, %v3360
      %v3362 = vrot.slane %v3263, 5
      %v3363 = vrot.slane %v3362, 4
      %v3364 = vrot.slane %v1939, 5
      %v3365 = vsel %vm3326, %v3363, %v3364
      %v3366 = vrot.slane %v3364, 4
      %v3367 = vrot.slane %v1940, 5
      %v3368 = vsel %vm3326, %v3366, %v3367
      %v3369 = vrot.slane %v3264, 5
      %v3370 = vrot.slane %v3369, 4
      %v3371 = vrot.slane %v1942, 5
      %v3372 = vsel %vm3326, %v3370, %v3371
      %v3373 = vrot.slane %v3371, 4
      %v3374 = vrot.slane %v1943, 5
      %v3375 = vsel %vm3326, %v3373, %v3374
      %v3376 = vrot.slane %v3265, 5
      %v3377 = vrot.slane %v3376, 4
      %v3378 = vrot.slane %v1945, 5
      %v3379 = vsel %vm3326, %v3377, %v3378
      %v3380 = vrot.slane %v3378, 4
      %v3381 = vrot.slane %v1946, 5
      %v3382 = vsel %vm3326, %v3380, %v3381
      %v3383 = vrot.slane %v3266, 5
      %v3384 = vrot.slane %v3383, 4
      %v3385 = vrot.slane %v1948, 5
      %v3386 = vsel %vm3326, %v3384, %v3385
      %v3387 = vrot.slane %v3385, 4
      %v3388 = vrot.slane %v1949, 5
      %v3389 = vsel %vm3326, %v3387, %v3388
      %v3390 = vrot.slane %v3267, 5
      %v3391 = vrot.slane %v3390, 4
      %v3392 = vrot.slane %v1951, 5
      %v3393 = vsel %vm3326, %v3391, %v3392
      %v3394 = vrot.slane %v3392, 4
      %v3395 = vrot.slane %v1952, 5
      %v3396 = vsel %vm3326, %v3394, %v3395
      %v3397 = vrot.slane %v3268, 5
      %v3398 = vrot.slane %v3397, 4
      %v3399 = vrot.slane %v1954, 5
      %v3400 = vsel %vm3326, %v3398, %v3399
      %v3401 = vrot.slane %v3399, 4
      %v3402 = vrot.slane %v1955, 5
      %v3403 = vsel %vm3326, %v3401, %v3402
      %v3404 = vrot.slane %v3269, 5
      %v3405 = vrot.slane %v3404, 4
      %v3406 = vrot.slane %v1957, 5
      %v3407 = vsel %vm3326, %v3405, %v3406
      %v3408 = vrot.slane %v3406, 4
      %v3409 = vrot.slane %v1958, 5
      %v3410 = vsel %vm3326, %v3408, %v3409
      %v3411 = vrot.slane %v3270, 5
      %v3412 = vrot.slane %v3411, 4
      %v3413 = vrot.slane %v1960, 5
      %v3414 = vsel %vm3326, %v3412, %v3413
      %v3415 = vrot.slane %v3413, 4
      %v3416 = vrot.slane %v1961, 5
      %v3417 = vsel %vm3326, %v3415, %v3416
      %v3418 = vrot.slane %v3271, 5
      %v3419 = vrot.slane %v3418, 4
      %v3420 = vrot.slane %v1963, 5
      %v3421 = vsel %vm3326, %v3419, %v3420
      %v3422 = vrot.slane %v3420, 4
      %v3423 = vrot.slane %v1964, 5
      %v3424 = vsel %vm3326, %v3422, %v3423
      %v3425 = vrot.slane %v3272, 5
      %v3426 = vrot.slane %v3425, 4
      %v3427 = vrot.slane %v1966, 5
      %v3428 = vsel %vm3326, %v3426, %v3427
      %v3429 = vrot.slane %v3427, 4
      %v3430 = vrot.slane %v1967, 5
      %v3431 = vsel %vm3326, %v3429, %v3430
      %v3432 = vrot.slane %v3273, 5
      %v3433 = vrot.slane %v3432, 4
      %v3434 = vrot.slane %v1969, 5
      %v3435 = vsel %vm3326, %v3433, %v3434
      %v3436 = vrot.slane %v3434, 4
      %v3437 = vrot.slane %v1970, 5
      %v3438 = vsel %vm3326, %v3436, %v3437
      %s3439 = scalar_lea.vmem %s3, 128
      %v3440 = vld [vmem:[%s3439] sm:$0xf]
      %v3441 = vld [vmem:[%s3439 + $0x4] sm:$0xf]
      %v3442 = vld [vmem:[%s3439 + $0x8] sm:$0xf]
      %v3443 = vld [vmem:[%s3439 + $0xc] sm:$0xf]
      %v3444 = vld [vmem:[%s3439 + $0x10] sm:$0xf]
      %v3445 = vld [vmem:[%s3439 + $0x14] sm:$0xf]
      %v3446 = vld [vmem:[%s3439 + $0x18] sm:$0xf]
      %v3447 = vld [vmem:[%s3439 + $0x1c] sm:$0xf]
      %v3448 = vld [vmem:[%s3439 + $0x20] sm:$0xf]
      %v3449 = vld [vmem:[%s3439 + $0x24] sm:$0xf]
      %v3450 = vld [vmem:[%s3439 + $0x28] sm:$0xf]
      %v3451 = vld [vmem:[%s3439 + $0x2c] sm:$0xf]
      %v3452 = vld [vmem:[%s3439 + $0x30] sm:$0xf]
      %v3453 = vld [vmem:[%s3439 + $0x34] sm:$0xf]
      %v3454 = vld [vmem:[%s3439 + $0x38] sm:$0xf]
      %v3455 = vld [vmem:[%s3439 + $0x3c] sm:$0xf]
      %v3456 = vunpack.c.l.b16 %v3330
      %v3457 = vunpack.c.l.b16 %v3333
      %v3458 = vunpack.c.l.b16 %v3337
      %v3459 = vunpack.c.l.b16 %v3340
      %v3460 = vunpack.c.l.b16 %v3344
      %v3461 = vunpack.c.l.b16 %v3347
      %v3462 = vunpack.c.l.b16 %v3351
      %v3463 = vunpack.c.l.b16 %v3354
      %v3464 = vunpack.c.l.b16 %v3358
      %v3465 = vunpack.c.l.b16 %v3361
      %v3466 = vunpack.c.l.b16 %v3365
      %v3467 = vunpack.c.l.b16 %v3368
      %v3468 = vunpack.c.l.b16 %v3372
      %v3469 = vunpack.c.l.b16 %v3375
      %v3470 = vunpack.c.l.b16 %v3379
      %v3471 = vunpack.c.l.b16 %v3382
      %v3472 = vunpack.c.l.b16 %v3386
      %v3473 = vunpack.c.l.b16 %v3389
      %v3474 = vunpack.c.l.b16 %v3393
      %v3475 = vunpack.c.l.b16 %v3396
      %v3476 = vunpack.c.l.b16 %v3400
      %v3477 = vunpack.c.l.b16 %v3403
      %v3478 = vunpack.c.l.b16 %v3407
      %v3479 = vunpack.c.l.b16 %v3410
      %v3480 = vunpack.c.l.b16 %v3414
      %v3481 = vunpack.c.l.b16 %v3417
      %v3482 = vunpack.c.l.b16 %v3421
      %v3483 = vunpack.c.l.b16 %v3424
      %v3484 = vunpack.c.l.b16 %v3428
      %v3485 = vunpack.c.l.b16 %v3431
      %v3486 = vunpack.c.l.b16 %v3435
      %v3487 = vunpack.c.l.b16 %v3438
      %v3488 = vpack.c.b16 %v3457, %v3456
      %v3489 = vpack.c.b16 %v3459, %v3458
      %v3490 = vpack.c.b16 %v3461, %v3460
      %v3491 = vpack.c.b16 %v3463, %v3462
      %v3492 = vpack.c.b16 %v3465, %v3464
      %v3493 = vpack.c.b16 %v3467, %v3466
      %v3494 = vpack.c.b16 %v3469, %v3468
      %v3495 = vpack.c.b16 %v3471, %v3470
      %v3496 = vpack.c.b16 %v3473, %v3472
      %v3497 = vpack.c.b16 %v3475, %v3474
      %v3498 = vpack.c.b16 %v3477, %v3476
      %v3499 = vpack.c.b16 %v3479, %v3478
      %v3500 = vpack.c.b16 %v3481, %v3480
      %v3501 = vpack.c.b16 %v3483, %v3482
      %v3502 = vpack.c.b16 %v3485, %v3484
      %v3503 = vpack.c.b16 %v3487, %v3486
      %v3536 = vunpack.c.l.b16 %v3440
      %v3537 = vunpack.c.l.b16 %v3441
      %v3538 = vunpack.c.l.b16 %v3442
      %v3539 = vunpack.c.l.b16 %v3443
      %v3540 = vunpack.c.l.b16 %v3444
      %v3541 = vunpack.c.l.b16 %v3445
      %v3542 = vunpack.c.l.b16 %v3446
      %v3543 = vunpack.c.l.b16 %v3447
      %v3544 = vunpack.c.l.b16 %v3448
      %v3545 = vunpack.c.l.b16 %v3449
      %v3546 = vunpack.c.l.b16 %v3450
      %v3547 = vunpack.c.l.b16 %v3451
      %v3548 = vunpack.c.l.b16 %v3452
      %v3549 = vunpack.c.l.b16 %v3453
      %v3550 = vunpack.c.l.b16 %v3454
      %v3551 = vunpack.c.l.b16 %v3455
      %v3552 = vpack.c.b16 %v3537, %v3536
      %v3553 = vpack.c.b16 %v3539, %v3538
      %v3554 = vpack.c.b16 %v3541, %v3540
      %v3555 = vpack.c.b16 %v3543, %v3542
      %v3556 = vpack.c.b16 %v3545, %v3544
      %v3557 = vpack.c.b16 %v3547, %v3546
      %v3558 = vpack.c.b16 %v3549, %v3548
      %v3559 = vpack.c.b16 %v3551, %v3550
      %3568 = vmatprep.subr.bf16.mxu0 0
      %3569 = vmatpush1.bf16.msra.mxu0 %v3559
      %3570 = vmatprep.subr.bf16.mxu0 0
      %3571 = vmatpush1.bf16.msra.mxu0 %v3558
      %3572 = vmatprep.subr.bf16.mxu0 0
      %3573 = vmatpush1.bf16.msra.mxu0 %v3557
      %3574 = vmatprep.subr.bf16.mxu0 0
      %3575 = vmatpush1.bf16.msra.mxu0 %v3556
      %3576 = vmatprep.subr.bf16.mxu0 0
      %3577 = vmatpush1.bf16.msra.mxu0 %v3555
      %3578 = vmatprep.subr.bf16.mxu0 0
      %3579 = vmatpush1.bf16.msra.mxu0 %v3554
      %3580 = vmatprep.subr.bf16.mxu0 0
      %3581 = vmatpush1.bf16.msra.mxu0 %v3553
      %3582 = vmatprep.subr.bf16.mxu0 0
      %3583 = vmatpush1.bf16.msra.mxu0 %v3552
      %3584 = vmatprep.subr.bf16.mxu0 0
      %3585 = vmatpush2.bf16.msra.mxu0 0
      %3586 = vmatprep.subr.bf16.mxu0 0
      %3587 = vmatpush2.bf16.msra.mxu0 0
      %3588 = vmatprep.subr.bf16.mxu0 0
      %3589 = vmatpush2.bf16.msra.mxu0 0
      %3590 = vmatprep.subr.bf16.mxu0 0
      %3591 = vmatpush2.bf16.msra.mxu0 0
      %3592 = vmatprep.subr.bf16.mxu0 0
      %3593 = vmatpush2.bf16.msra.mxu0 0
      %3594 = vmatprep.subr.bf16.mxu0 0
      %3595 = vmatpush2.bf16.msra.mxu0 0
      %3596 = vmatprep.subr.bf16.mxu0 0
      %3597 = vmatpush2.bf16.msra.mxu0 0
      %3598 = vmatprep.subr.bf16.mxu0 0
      %3599 = vmatpush2.bf16.msra.mxu0 0
      %3600 = vmatprep.mubr.bf16.mxu0 0
      %3601 = vmatmul.mubr.bf16.gmra.mxu0 %v3488
      %v3602 = vpop.f32.mrf.mxu0
      %v3603 = vadd.f32 0.0, %v3602
      %v3604 = vpop.f32.mrf.mxu0
      %v3605 = vpop.f32.mrf.mxu0
      %v3606 = vadd.f32 0.0, %v3605
      %v3607 = vpop.f32.mrf.mxu0
      %3608 = vmatprep.mubr.bf16.mxu0 0
      %3609 = vmatmul.mubr.bf16.gmra.mxu0 %v3489
      %v3610 = vpop.f32.mrf.mxu0
      %v3611 = vadd.f32 0.0, %v3610
      %v3612 = vpop.f32.mrf.mxu0
      %v3613 = vpop.f32.mrf.mxu0
      %v3614 = vadd.f32 0.0, %v3613
      %v3615 = vpop.f32.mrf.mxu0
      %3616 = vmatprep.mubr.bf16.mxu0 0
      %3617 = vmatmul.mubr.bf16.gmra.mxu0 %v3490
      %v3618 = vpop.f32.mrf.mxu0
      %v3619 = vadd.f32 0.0, %v3618
      %v3620 = vpop.f32.mrf.mxu0
      %v3621 = vpop.f32.mrf.mxu0
      %v3622 = vadd.f32 0.0, %v3621
      %v3623 = vpop.f32.mrf.mxu0
      %3624 = vmatprep.mubr.bf16.mxu0 0
      %3625 = vmatmul.mubr.bf16.gmra.mxu0 %v3491
      %v3626 = vpop.f32.mrf.mxu0
      %v3627 = vadd.f32 0.0, %v3626
      %v3628 = vpop.f32.mrf.mxu0
      %v3629 = vpop.f32.mrf.mxu0
      %v3630 = vadd.f32 0.0, %v3629
      %v3631 = vpop.f32.mrf.mxu0
      %3632 = vmatprep.mubr.bf16.mxu0 0
      %3633 = vmatmul.mubr.bf16.gmra.mxu0 %v3492
      %v3634 = vpop.f32.mrf.mxu0
      %v3635 = vadd.f32 0.0, %v3634
      %v3636 = vpop.f32.mrf.mxu0
      %v3637 = vpop.f32.mrf.mxu0
      %v3638 = vadd.f32 0.0, %v3637
      %v3639 = vpop.f32.mrf.mxu0
      %3640 = vmatprep.mubr.bf16.mxu0 0
      %3641 = vmatmul.mubr.bf16.gmra.mxu0 %v3493
      %v3642 = vpop.f32.mrf.mxu0
      %v3643 = vadd.f32 0.0, %v3642
      %v3644 = vpop.f32.mrf.mxu0
      %v3645 = vpop.f32.mrf.mxu0
      %v3646 = vadd.f32 0.0, %v3645
      %v3647 = vpop.f32.mrf.mxu0
      %3648 = vmatprep.mubr.bf16.mxu0 0
      %3649 = vmatmul.mubr.bf16.gmra.mxu0 %v3494
      %v3650 = vpop.f32.mrf.mxu0
      %v3651 = vadd.f32 0.0, %v3650
      %v3652 = vpop.f32.mrf.mxu0
      %v3653 = vpop.f32.mrf.mxu0
      %v3654 = vadd.f32 0.0, %v3653
      %v3655 = vpop.f32.mrf.mxu0
      %3656 = vmatprep.mubr.bf16.mxu0 0
      %3657 = vmatmul.mubr.bf16.gmra.mxu0 %v3495
      %v3658 = vpop.f32.mrf.mxu0
      %v3659 = vadd.f32 0.0, %v3658
      %v3660 = vpop.f32.mrf.mxu0
      %v3661 = vpop.f32.mrf.mxu0
      %v3662 = vadd.f32 0.0, %v3661
      %v3663 = vpop.f32.mrf.mxu0
      %3664 = vmatprep.mubr.bf16.mxu0 0
      %3665 = vmatmul.mubr.bf16.gmra.mxu0 %v3496
      %v3666 = vpop.f32.mrf.mxu0
      %v3667 = vadd.f32 0.0, %v3666
      %v3668 = vpop.f32.mrf.mxu0
      %v3669 = vpop.f32.mrf.mxu0
      %v3670 = vadd.f32 0.0, %v3669
      %v3671 = vpop.f32.mrf.mxu0
      %3672 = vmatprep.mubr.bf16.mxu0 0
      %3673 = vmatmul.mubr.bf16.gmra.mxu0 %v3497
      %v3674 = vpop.f32.mrf.mxu0
      %v3675 = vadd.f32 0.0, %v3674
      %v3676 = vpop.f32.mrf.mxu0
      %v3677 = vpop.f32.mrf.mxu0
      %v3678 = vadd.f32 0.0, %v3677
      %v3679 = vpop.f32.mrf.mxu0
      %3680 = vmatprep.mubr.bf16.mxu0 0
      %3681 = vmatmul.mubr.bf16.gmra.mxu0 %v3498
      %v3682 = vpop.f32.mrf.mxu0
      %v3683 = vadd.f32 0.0, %v3682
      %v3684 = vpop.f32.mrf.mxu0
      %v3685 = vpop.f32.mrf.mxu0
      %v3686 = vadd.f32 0.0, %v3685
      %v3687 = vpop.f32.mrf.mxu0
      %3688 = vmatprep.mubr.bf16.mxu0 0
      %3689 = vmatmul.mubr.bf16.gmra.mxu0 %v3499
      %v3690 = vpop.f32.mrf.mxu0
      %v3691 = vadd.f32 0.0, %v3690
      %v3692 = vpop.f32.mrf.mxu0
      %v3693 = vpop.f32.mrf.mxu0
      %v3694 = vadd.f32 0.0, %v3693
      %v3695 = vpop.f32.mrf.mxu0
      %3696 = vmatprep.mubr.bf16.mxu0 0
      %3697 = vmatmul.mubr.bf16.gmra.mxu0 %v3500
      %v3698 = vpop.f32.mrf.mxu0
      %v3699 = vadd.f32 0.0, %v3698
      %v3700 = vpop.f32.mrf.mxu0
      %v3701 = vpop.f32.mrf.mxu0
      %v3702 = vadd.f32 0.0, %v3701
      %v3703 = vpop.f32.mrf.mxu0
      %3704 = vmatprep.mubr.bf16.mxu0 0
      %3705 = vmatmul.mubr.bf16.gmra.mxu0 %v3501
      %v3706 = vpop.f32.mrf.mxu0
      %v3707 = vadd.f32 0.0, %v3706
      %v3708 = vpop.f32.mrf.mxu0
      %v3709 = vpop.f32.mrf.mxu0
      %v3710 = vadd.f32 0.0, %v3709
      %v3711 = vpop.f32.mrf.mxu0
      %3712 = vmatprep.mubr.bf16.mxu0 0
      %3713 = vmatmul.mubr.bf16.gmra.mxu0 %v3502
      %v3714 = vpop.f32.mrf.mxu0
      %v3715 = vadd.f32 0.0, %v3714
      %v3716 = vpop.f32.mrf.mxu0
      %v3717 = vpop.f32.mrf.mxu0
      %v3718 = vadd.f32 0.0, %v3717
      %v3719 = vpop.f32.mrf.mxu0
      %3720 = vmatprep.mubr.bf16.mxu0 0
      %3721 = vmatmul.mubr.bf16.gmra.mxu0 %v3503
      %v3722 = vpop.f32.mrf.mxu0
      %v3723 = vadd.f32 0.0, %v3722
      %v3724 = vpop.f32.mrf.mxu0
      %v3725 = vpop.f32.mrf.mxu0
      %v3726 = vadd.f32 0.0, %v3725
      %v3727 = vpop.f32.mrf.mxu0
      %3728 = vdwg.mxu0
      %v3729 = vadd.f32 %v3226, %v3603
      %v3730 = vadd.f32 %v3227, %v3606
      %v3731 = vadd.f32 %v3228, %v3611
      %v3732 = vadd.f32 %v3229, %v3614
      %v3733 = vadd.f32 %v3230, %v3619
      %v3734 = vadd.f32 %v3231, %v3622
      %v3735 = vadd.f32 %v3232, %v3627
      %v3736 = vadd.f32 %v3233, %v3630
      %v3737 = vadd.f32 %v3234, %v3635
      %v3738 = vadd.f32 %v3235, %v3638
      %v3739 = vadd.f32 %v3236, %v3643
      %v3740 = vadd.f32 %v3237, %v3646
      %v3741 = vadd.f32 %v3238, %v3651
      %v3742 = vadd.f32 %v3239, %v3654
      %v3743 = vadd.f32 %v3240, %v3659
      %v3744 = vadd.f32 %v3241, %v3662
      %v3745 = vadd.f32 %v3242, %v3667
      %v3746 = vadd.f32 %v3243, %v3670
      %v3747 = vadd.f32 %v3244, %v3675
      %v3748 = vadd.f32 %v3245, %v3678
      %v3749 = vadd.f32 %v3246, %v3683
      %v3750 = vadd.f32 %v3247, %v3686
      %v3751 = vadd.f32 %v3248, %v3691
      %v3752 = vadd.f32 %v3249, %v3694
      %v3753 = vadd.f32 %v3250, %v3699
      %v3754 = vadd.f32 %v3251, %v3702
      %v3755 = vadd.f32 %v3252, %v3707
      %v3756 = vadd.f32 %v3253, %v3710
      %v3757 = vadd.f32 %v3254, %v3715
      %v3758 = vadd.f32 %v3255, %v3718
      %v3759 = vadd.f32 %v3256, %v3723
      %v3760 = vadd.f32 %v3257, %v3726
      %v3764 = vrot.slane %v3274, 5
      %v3765 = vrot.slane %v3764, 4
      %v3766 = vrot.slane %v1972, 5
      %v3767 = vsel %vm3326, %v3765, %v3766
      %v3768 = vrot.slane %v3766, 4
      %v3769 = vrot.slane %v1973, 5
      %v3770 = vsel %vm3326, %v3768, %v3769
      %s3771 = scalar_lea.vmem %s3, 320
      %v3772 = vld [vmem:[%s3771] sm:$0xf]
      %v3773 = vld [vmem:[%s3771 + $0x4] sm:$0xf]
      %v3774 = vld [vmem:[%s3771 + $0x8] sm:$0xf]
      %v3775 = vld [vmem:[%s3771 + $0xc] sm:$0xf]
      %v3776 = vld [vmem:[%s3771 + $0x10] sm:$0xf]
      %v3777 = vld [vmem:[%s3771 + $0x14] sm:$0xf]
      %v3778 = vld [vmem:[%s3771 + $0x18] sm:$0xf]
      %v3779 = vld [vmem:[%s3771 + $0x1c] sm:$0xf]
      %v3780 = vld [vmem:[%s3771 + $0x20] sm:$0xf]
      %v3781 = vld [vmem:[%s3771 + $0x24] sm:$0xf]
      %v3782 = vld [vmem:[%s3771 + $0x28] sm:$0xf]
      %v3783 = vld [vmem:[%s3771 + $0x2c] sm:$0xf]
      %v3784 = vld [vmem:[%s3771 + $0x30] sm:$0xf]
      %v3785 = vld [vmem:[%s3771 + $0x34] sm:$0xf]
      %v3786 = vld [vmem:[%s3771 + $0x38] sm:$0xf]
      %v3787 = vld [vmem:[%s3771 + $0x3c] sm:$0xf]
      %v3788 = vunpack.c.l.b16 %v3767
      %v3789 = vunpack.c.l.b16 %v3770
      %v3790 = vpack.c.b16 %v3789, %v3788
      %v3808 = vunpack.c.l.b16 %v3772
      %v3809 = vunpack.c.l.b16 %v3773
      %v3810 = vunpack.c.l.b16 %v3774
      %v3811 = vunpack.c.l.b16 %v3775
      %v3812 = vunpack.c.l.b16 %v3776
      %v3813 = vunpack.c.l.b16 %v3777
      %v3814 = vunpack.c.l.b16 %v3778
      %v3815 = vunpack.c.l.b16 %v3779
      %v3816 = vunpack.c.l.b16 %v3780
      %v3817 = vunpack.c.l.b16 %v3781
      %v3818 = vunpack.c.l.b16 %v3782
      %v3819 = vunpack.c.l.b16 %v3783
      %v3820 = vunpack.c.l.b16 %v3784
      %v3821 = vunpack.c.l.b16 %v3785
      %v3822 = vunpack.c.l.b16 %v3786
      %v3823 = vunpack.c.l.b16 %v3787
      %v3824 = vpack.c.b16 %v3809, %v3808
      %v3825 = vpack.c.b16 %v3811, %v3810
      %v3826 = vpack.c.b16 %v3813, %v3812
      %v3827 = vpack.c.b16 %v3815, %v3814
      %v3828 = vpack.c.b16 %v3817, %v3816
      %v3829 = vpack.c.b16 %v3819, %v3818
      %v3830 = vpack.c.b16 %v3821, %v3820
      %v3831 = vpack.c.b16 %v3823, %v3822
      %3840 = vmatprep.subr.bf16.mxu0 0
      %3841 = vmatpush1.bf16.msra.mxu0 %v3831
      %3842 = vmatprep.subr.bf16.mxu0 0
      %3843 = vmatpush1.bf16.msra.mxu0 %v3830
      %3844 = vmatprep.subr.bf16.mxu0 0
      %3845 = vmatpush1.bf16.msra.mxu0 %v3829
      %3846 = vmatprep.subr.bf16.mxu0 0
      %3847 = vmatpush1.bf16.msra.mxu0 %v3828
      %3848 = vmatprep.subr.bf16.mxu0 0
      %3849 = vmatpush1.bf16.msra.mxu0 %v3827
      %3850 = vmatprep.subr.bf16.mxu0 0
      %3851 = vmatpush1.bf16.msra.mxu0 %v3826
      %3852 = vmatprep.subr.bf16.mxu0 0
      %3853 = vmatpush1.bf16.msra.mxu0 %v3825
      %3854 = vmatprep.subr.bf16.mxu0 0
      %3855 = vmatpush1.bf16.msra.mxu0 %v3824
      %3856 = vmatprep.subr.bf16.mxu0 0
      %3857 = vmatpush2.bf16.msra.mxu0 0
      %3858 = vmatprep.subr.bf16.mxu0 0
      %3859 = vmatpush2.bf16.msra.mxu0 0
      %3860 = vmatprep.subr.bf16.mxu0 0
      %3861 = vmatpush2.bf16.msra.mxu0 0
      %3862 = vmatprep.subr.bf16.mxu0 0
      %3863 = vmatpush2.bf16.msra.mxu0 0
      %3864 = vmatprep.subr.bf16.mxu0 0
      %3865 = vmatpush2.bf16.msra.mxu0 0
      %3866 = vmatprep.subr.bf16.mxu0 0
      %3867 = vmatpush2.bf16.msra.mxu0 0
      %3868 = vmatprep.subr.bf16.mxu0 0
      %3869 = vmatpush2.bf16.msra.mxu0 0
      %3870 = vmatprep.subr.bf16.mxu0 0
      %3871 = vmatpush2.bf16.msra.mxu0 0
      %3872 = vmatprep.mubr.bf16.mxu0 0
      %3873 = vmatmul.mubr.bf16.gmra.mxu0 %v3489
      %v3874 = vpop.f32.mrf.mxu0
      %v3875 = vadd.f32 0.0, %v3874
      %v3876 = vpop.f32.mrf.mxu0
      %v3877 = vpop.f32.mrf.mxu0
      %v3878 = vadd.f32 0.0, %v3877
      %v3879 = vpop.f32.mrf.mxu0
      %3880 = vmatprep.mubr.bf16.mxu0 0
      %3881 = vmatmul.mubr.bf16.gmra.mxu0 %v3490
      %v3882 = vpop.f32.mrf.mxu0
      %v3883 = vadd.f32 0.0, %v3882
      %v3884 = vpop.f32.mrf.mxu0
      %v3885 = vpop.f32.mrf.mxu0
      %v3886 = vadd.f32 0.0, %v3885
      %v3887 = vpop.f32.mrf.mxu0
      %3888 = vmatprep.mubr.bf16.mxu0 0
      %3889 = vmatmul.mubr.bf16.gmra.mxu0 %v3491
      %v3890 = vpop.f32.mrf.mxu0
      %v3891 = vadd.f32 0.0, %v3890
      %v3892 = vpop.f32.mrf.mxu0
      %v3893 = vpop.f32.mrf.mxu0
      %v3894 = vadd.f32 0.0, %v3893
      %v3895 = vpop.f32.mrf.mxu0
      %3896 = vmatprep.mubr.bf16.mxu0 0
      %3897 = vmatmul.mubr.bf16.gmra.mxu0 %v3492
      %v3898 = vpop.f32.mrf.mxu0
      %v3899 = vadd.f32 0.0, %v3898
      %v3900 = vpop.f32.mrf.mxu0
      %v3901 = vpop.f32.mrf.mxu0
      %v3902 = vadd.f32 0.0, %v3901
      %v3903 = vpop.f32.mrf.mxu0
      %3904 = vmatprep.mubr.bf16.mxu0 0
      %3905 = vmatmul.mubr.bf16.gmra.mxu0 %v3493
      %v3906 = vpop.f32.mrf.mxu0
      %v3907 = vadd.f32 0.0, %v3906
      %v3908 = vpop.f32.mrf.mxu0
      %v3909 = vpop.f32.mrf.mxu0
      %v3910 = vadd.f32 0.0, %v3909
      %v3911 = vpop.f32.mrf.mxu0
      %3912 = vmatprep.mubr.bf16.mxu0 0
      %3913 = vmatmul.mubr.bf16.gmra.mxu0 %v3494
      %v3914 = vpop.f32.mrf.mxu0
      %v3915 = vadd.f32 0.0, %v3914
      %v3916 = vpop.f32.mrf.mxu0
      %v3917 = vpop.f32.mrf.mxu0
      %v3918 = vadd.f32 0.0, %v3917
      %v3919 = vpop.f32.mrf.mxu0
      %3920 = vmatprep.mubr.bf16.mxu0 0
      %3921 = vmatmul.mubr.bf16.gmra.mxu0 %v3495
      %v3922 = vpop.f32.mrf.mxu0
      %v3923 = vadd.f32 0.0, %v3922
      %v3924 = vpop.f32.mrf.mxu0
      %v3925 = vpop.f32.mrf.mxu0
      %v3926 = vadd.f32 0.0, %v3925
      %v3927 = vpop.f32.mrf.mxu0
      %3928 = vmatprep.mubr.bf16.mxu0 0
      %3929 = vmatmul.mubr.bf16.gmra.mxu0 %v3496
      %v3930 = vpop.f32.mrf.mxu0
      %v3931 = vadd.f32 0.0, %v3930
      %v3932 = vpop.f32.mrf.mxu0
      %v3933 = vpop.f32.mrf.mxu0
      %v3934 = vadd.f32 0.0, %v3933
      %v3935 = vpop.f32.mrf.mxu0
      %3936 = vmatprep.mubr.bf16.mxu0 0
      %3937 = vmatmul.mubr.bf16.gmra.mxu0 %v3497
      %v3938 = vpop.f32.mrf.mxu0
      %v3939 = vadd.f32 0.0, %v3938
      %v3940 = vpop.f32.mrf.mxu0
      %v3941 = vpop.f32.mrf.mxu0
      %v3942 = vadd.f32 0.0, %v3941
      %v3943 = vpop.f32.mrf.mxu0
      %3944 = vmatprep.mubr.bf16.mxu0 0
      %3945 = vmatmul.mubr.bf16.gmra.mxu0 %v3498
      %v3946 = vpop.f32.mrf.mxu0
      %v3947 = vadd.f32 0.0, %v3946
      %v3948 = vpop.f32.mrf.mxu0
      %v3949 = vpop.f32.mrf.mxu0
      %v3950 = vadd.f32 0.0, %v3949
      %v3951 = vpop.f32.mrf.mxu0
      %3952 = vmatprep.mubr.bf16.mxu0 0
      %3953 = vmatmul.mubr.bf16.gmra.mxu0 %v3499
      %v3954 = vpop.f32.mrf.mxu0
      %v3955 = vadd.f32 0.0, %v3954
      %v3956 = vpop.f32.mrf.mxu0
      %v3957 = vpop.f32.mrf.mxu0
      %v3958 = vadd.f32 0.0, %v3957
      %v3959 = vpop.f32.mrf.mxu0
      %3960 = vmatprep.mubr.bf16.mxu0 0
      %3961 = vmatmul.mubr.bf16.gmra.mxu0 %v3500
      %v3962 = vpop.f32.mrf.mxu0
      %v3963 = vadd.f32 0.0, %v3962
      %v3964 = vpop.f32.mrf.mxu0
      %v3965 = vpop.f32.mrf.mxu0
      %v3966 = vadd.f32 0.0, %v3965
      %v3967 = vpop.f32.mrf.mxu0
      %3968 = vmatprep.mubr.bf16.mxu0 0
      %3969 = vmatmul.mubr.bf16.gmra.mxu0 %v3501
      %v3970 = vpop.f32.mrf.mxu0
      %v3971 = vadd.f32 0.0, %v3970
      %v3972 = vpop.f32.mrf.mxu0
      %v3973 = vpop.f32.mrf.mxu0
      %v3974 = vadd.f32 0.0, %v3973
      %v3975 = vpop.f32.mrf.mxu0
      %3976 = vmatprep.mubr.bf16.mxu0 0
      %3977 = vmatmul.mubr.bf16.gmra.mxu0 %v3502
      %v3978 = vpop.f32.mrf.mxu0
      %v3979 = vadd.f32 0.0, %v3978
      %v3980 = vpop.f32.mrf.mxu0
      %v3981 = vpop.f32.mrf.mxu0
      %v3982 = vadd.f32 0.0, %v3981
      %v3983 = vpop.f32.mrf.mxu0
      %3984 = vmatprep.mubr.bf16.mxu0 0
      %3985 = vmatmul.mubr.bf16.gmra.mxu0 %v3503
      %v3986 = vpop.f32.mrf.mxu0
      %v3987 = vadd.f32 0.0, %v3986
      %v3988 = vpop.f32.mrf.mxu0
      %v3989 = vpop.f32.mrf.mxu0
      %v3990 = vadd.f32 0.0, %v3989
      %v3991 = vpop.f32.mrf.mxu0
      %3992 = vmatprep.mubr.bf16.mxu0 0
      %3993 = vmatmul.mubr.bf16.gmra.mxu0 %v3790
      %v3994 = vpop.f32.mrf.mxu0
      %v3995 = vadd.f32 0.0, %v3994
      %v3996 = vpop.f32.mrf.mxu0
      %v3997 = vpop.f32.mrf.mxu0
      %v3998 = vadd.f32 0.0, %v3997
      %v3999 = vpop.f32.mrf.mxu0
      %4000 = vdwg.mxu0
      %v4001 = vadd.f32 %v3729, %v3875
      %v4002 = vadd.f32 %v3730, %v3878
      %v4003 = vadd.f32 %v3731, %v3883
      %v4004 = vadd.f32 %v3732, %v3886
      %v4005 = vadd.f32 %v3733, %v3891
      %v4006 = vadd.f32 %v3734, %v3894
      %v4007 = vadd.f32 %v3735, %v3899
      %v4008 = vadd.f32 %v3736, %v3902
      %v4009 = vadd.f32 %v3737, %v3907
      %v4010 = vadd.f32 %v3738, %v3910
      %v4011 = vadd.f32 %v3739, %v3915
      %v4012 = vadd.f32 %v3740, %v3918
      %v4013 = vadd.f32 %v3741, %v3923
      %v4014 = vadd.f32 %v3742, %v3926
      %v4015 = vadd.f32 %v3743, %v3931
      %v4016 = vadd.f32 %v3744, %v3934
      %v4017 = vadd.f32 %v3745, %v3939
      %v4018 = vadd.f32 %v3746, %v3942
      %v4019 = vadd.f32 %v3747, %v3947
      %v4020 = vadd.f32 %v3748, %v3950
      %v4021 = vadd.f32 %v3749, %v3955
      %v4022 = vadd.f32 %v3750, %v3958
      %v4023 = vadd.f32 %v3751, %v3963
      %v4024 = vadd.f32 %v3752, %v3966
      %v4025 = vadd.f32 %v3753, %v3971
      %v4026 = vadd.f32 %v3754, %v3974
      %v4027 = vadd.f32 %v3755, %v3979
      %v4028 = vadd.f32 %v3756, %v3982
      %v4029 = vadd.f32 %v3757, %v3987
      %v4030 = vadd.f32 %v3758, %v3990
      %v4031 = vadd.f32 %v3759, %v3995
      %v4032 = vadd.f32 %v3760, %v3998
      %v4036 = vrot.slane %v3275, 5
      %v4037 = vrot.slane %v4036, 4
      %v4038 = vrot.slane %v1975, 5
      %v4039 = vsel %vm3326, %v4037, %v4038
      %v4040 = vrot.slane %v4038, 4
      %v4041 = vrot.slane %v1976, 5
      %v4042 = vsel %vm3326, %v4040, %v4041
      %s4043 = scalar_lea.vmem %s3, 512
      %v4044 = vld [vmem:[%s4043] sm:$0xf]
      %v4045 = vld [vmem:[%s4043 + $0x4] sm:$0xf]
      %v4046 = vld [vmem:[%s4043 + $0x8] sm:$0xf]
      %v4047 = vld [vmem:[%s4043 + $0xc] sm:$0xf]
      %v4048 = vld [vmem:[%s4043 + $0x10] sm:$0xf]
      %v4049 = vld [vmem:[%s4043 + $0x14] sm:$0xf]
      %v4050 = vld [vmem:[%s4043 + $0x18] sm:$0xf]
      %v4051 = vld [vmem:[%s4043 + $0x1c] sm:$0xf]
      %v4052 = vld [vmem:[%s4043 + $0x20] sm:$0xf]
      %v4053 = vld [vmem:[%s4043 + $0x24] sm:$0xf]
      %v4054 = vld [vmem:[%s4043 + $0x28] sm:$0xf]
      %v4055 = vld [vmem:[%s4043 + $0x2c] sm:$0xf]
      %v4056 = vld [vmem:[%s4043 + $0x30] sm:$0xf]
      %v4057 = vld [vmem:[%s4043 + $0x34] sm:$0xf]
      %v4058 = vld [vmem:[%s4043 + $0x38] sm:$0xf]
      %v4059 = vld [vmem:[%s4043 + $0x3c] sm:$0xf]
      %v4060 = vunpack.c.l.b16 %v4039
      %v4061 = vunpack.c.l.b16 %v4042
      %v4062 = vpack.c.b16 %v4061, %v4060
      %v4080 = vunpack.c.l.b16 %v4044
      %v4081 = vunpack.c.l.b16 %v4045
      %v4082 = vunpack.c.l.b16 %v4046
      %v4083 = vunpack.c.l.b16 %v4047
      %v4084 = vunpack.c.l.b16 %v4048
      %v4085 = vunpack.c.l.b16 %v4049
      %v4086 = vunpack.c.l.b16 %v4050
      %v4087 = vunpack.c.l.b16 %v4051
      %v4088 = vunpack.c.l.b16 %v4052
      %v4089 = vunpack.c.l.b16 %v4053
      %v4090 = vunpack.c.l.b16 %v4054
      %v4091 = vunpack.c.l.b16 %v4055
      %v4092 = vunpack.c.l.b16 %v4056
      %v4093 = vunpack.c.l.b16 %v4057
      %v4094 = vunpack.c.l.b16 %v4058
      %v4095 = vunpack.c.l.b16 %v4059
      %v4096 = vpack.c.b16 %v4081, %v4080
      %v4097 = vpack.c.b16 %v4083, %v4082
      %v4098 = vpack.c.b16 %v4085, %v4084
      %v4099 = vpack.c.b16 %v4087, %v4086
      %v4100 = vpack.c.b16 %v4089, %v4088
      %v4101 = vpack.c.b16 %v4091, %v4090
      %v4102 = vpack.c.b16 %v4093, %v4092
      %v4103 = vpack.c.b16 %v4095, %v4094
      %4112 = vmatprep.subr.bf16.mxu0 0
      %4113 = vmatpush1.bf16.msra.mxu0 %v4103
      %4114 = vmatprep.subr.bf16.mxu0 0
      %4115 = vmatpush1.bf16.msra.mxu0 %v4102
      %4116 = vmatprep.subr.bf16.mxu0 0
      %4117 = vmatpush1.bf16.msra.mxu0 %v4101
      %4118 = vmatprep.subr.bf16.mxu0 0
      %4119 = vmatpush1.bf16.msra.mxu0 %v4100
      %4120 = vmatprep.subr.bf16.mxu0 0
      %4121 = vmatpush1.bf16.msra.mxu0 %v4099
      %4122 = vmatprep.subr.bf16.mxu0 0
      %4123 = vmatpush1.bf16.msra.mxu0 %v4098
      %4124 = vmatprep.subr.bf16.mxu0 0
      %4125 = vmatpush1.bf16.msra.mxu0 %v4097
      %4126 = vmatprep.subr.bf16.mxu0 0
      %4127 = vmatpush1.bf16.msra.mxu0 %v4096
      %4128 = vmatprep.subr.bf16.mxu0 0
      %4129 = vmatpush2.bf16.msra.mxu0 0
      %4130 = vmatprep.subr.bf16.mxu0 0
      %4131 = vmatpush2.bf16.msra.mxu0 0
      %4132 = vmatprep.subr.bf16.mxu0 0
      %4133 = vmatpush2.bf16.msra.mxu0 0
      %4134 = vmatprep.subr.bf16.mxu0 0
      %4135 = vmatpush2.bf16.msra.mxu0 0
      %4136 = vmatprep.subr.bf16.mxu0 0
      %4137 = vmatpush2.bf16.msra.mxu0 0
      %4138 = vmatprep.subr.bf16.mxu0 0
      %4139 = vmatpush2.bf16.msra.mxu0 0
      %4140 = vmatprep.subr.bf16.mxu0 0
      %4141 = vmatpush2.bf16.msra.mxu0 0
      %4142 = vmatprep.subr.bf16.mxu0 0
      %4143 = vmatpush2.bf16.msra.mxu0 0
      %4144 = vmatprep.mubr.bf16.mxu0 0
      %4145 = vmatmul.mubr.bf16.gmra.mxu0 %v3490
      %v4146 = vpop.f32.mrf.mxu0
      %v4147 = vadd.f32 0.0, %v4146
      %v4148 = vpop.f32.mrf.mxu0
      %v4149 = vpop.f32.mrf.mxu0
      %v4150 = vadd.f32 0.0, %v4149
      %v4151 = vpop.f32.mrf.mxu0
      %4152 = vmatprep.mubr.bf16.mxu0 0
      %4153 = vmatmul.mubr.bf16.gmra.mxu0 %v3491
      %v4154 = vpop.f32.mrf.mxu0
      %v4155 = vadd.f32 0.0, %v4154
      %v4156 = vpop.f32.mrf.mxu0
      %v4157 = vpop.f32.mrf.mxu0
      %v4158 = vadd.f32 0.0, %v4157
      %v4159 = vpop.f32.mrf.mxu0
      %4160 = vmatprep.mubr.bf16.mxu0 0
      %4161 = vmatmul.mubr.bf16.gmra.mxu0 %v3492
      %v4162 = vpop.f32.mrf.mxu0
      %v4163 = vadd.f32 0.0, %v4162
      %v4164 = vpop.f32.mrf.mxu0
      %v4165 = vpop.f32.mrf.mxu0
      %v4166 = vadd.f32 0.0, %v4165
      %v4167 = vpop.f32.mrf.mxu0
      %4168 = vmatprep.mubr.bf16.mxu0 0
      %4169 = vmatmul.mubr.bf16.gmra.mxu0 %v3493
      %v4170 = vpop.f32.mrf.mxu0
      %v4171 = vadd.f32 0.0, %v4170
      %v4172 = vpop.f32.mrf.mxu0
      %v4173 = vpop.f32.mrf.mxu0
      %v4174 = vadd.f32 0.0, %v4173
      %v4175 = vpop.f32.mrf.mxu0
      %4176 = vmatprep.mubr.bf16.mxu0 0
      %4177 = vmatmul.mubr.bf16.gmra.mxu0 %v3494
      %v4178 = vpop.f32.mrf.mxu0
      %v4179 = vadd.f32 0.0, %v4178
      %v4180 = vpop.f32.mrf.mxu0
      %v4181 = vpop.f32.mrf.mxu0
      %v4182 = vadd.f32 0.0, %v4181
      %v4183 = vpop.f32.mrf.mxu0
      %4184 = vmatprep.mubr.bf16.mxu0 0
      %4185 = vmatmul.mubr.bf16.gmra.mxu0 %v3495
      %v4186 = vpop.f32.mrf.mxu0
      %v4187 = vadd.f32 0.0, %v4186
      %v4188 = vpop.f32.mrf.mxu0
      %v4189 = vpop.f32.mrf.mxu0
      %v4190 = vadd.f32 0.0, %v4189
      %v4191 = vpop.f32.mrf.mxu0
      %4192 = vmatprep.mubr.bf16.mxu0 0
      %4193 = vmatmul.mubr.bf16.gmra.mxu0 %v3496
      %v4194 = vpop.f32.mrf.mxu0
      %v4195 = vadd.f32 0.0, %v4194
      %v4196 = vpop.f32.mrf.mxu0
      %v4197 = vpop.f32.mrf.mxu0
      %v4198 = vadd.f32 0.0, %v4197
      %v4199 = vpop.f32.mrf.mxu0
      %4200 = vmatprep.mubr.bf16.mxu0 0
      %4201 = vmatmul.mubr.bf16.gmra.mxu0 %v3497
      %v4202 = vpop.f32.mrf.mxu0
      %v4203 = vadd.f32 0.0, %v4202
      %v4204 = vpop.f32.mrf.mxu0
      %v4205 = vpop.f32.mrf.mxu0
      %v4206 = vadd.f32 0.0, %v4205
      %v4207 = vpop.f32.mrf.mxu0
      %4208 = vmatprep.mubr.bf16.mxu0 0
      %4209 = vmatmul.mubr.bf16.gmra.mxu0 %v3498
      %v4210 = vpop.f32.mrf.mxu0
      %v4211 = vadd.f32 0.0, %v4210
      %v4212 = vpop.f32.mrf.mxu0
      %v4213 = vpop.f32.mrf.mxu0
      %v4214 = vadd.f32 0.0, %v4213
      %v4215 = vpop.f32.mrf.mxu0
      %4216 = vmatprep.mubr.bf16.mxu0 0
      %4217 = vmatmul.mubr.bf16.gmra.mxu0 %v3499
      %v4218 = vpop.f32.mrf.mxu0
      %v4219 = vadd.f32 0.0, %v4218
      %v4220 = vpop.f32.mrf.mxu0
      %v4221 = vpop.f32.mrf.mxu0
      %v4222 = vadd.f32 0.0, %v4221
      %v4223 = vpop.f32.mrf.mxu0
      %4224 = vmatprep.mubr.bf16.mxu0 0
      %4225 = vmatmul.mubr.bf16.gmra.mxu0 %v3500
      %v4226 = vpop.f32.mrf.mxu0
      %v4227 = vadd.f32 0.0, %v4226
      %v4228 = vpop.f32.mrf.mxu0
      %v4229 = vpop.f32.mrf.mxu0
      %v4230 = vadd.f32 0.0, %v4229
      %v4231 = vpop.f32.mrf.mxu0
      %4232 = vmatprep.mubr.bf16.mxu0 0
      %4233 = vmatmul.mubr.bf16.gmra.mxu0 %v3501
      %v4234 = vpop.f32.mrf.mxu0
      %v4235 = vadd.f32 0.0, %v4234
      %v4236 = vpop.f32.mrf.mxu0
      %v4237 = vpop.f32.mrf.mxu0
      %v4238 = vadd.f32 0.0, %v4237
      %v4239 = vpop.f32.mrf.mxu0
      %4240 = vmatprep.mubr.bf16.mxu0 0
      %4241 = vmatmul.mubr.bf16.gmra.mxu0 %v3502
      %v4242 = vpop.f32.mrf.mxu0
      %v4243 = vadd.f32 0.0, %v4242
      %v4244 = vpop.f32.mrf.mxu0
      %v4245 = vpop.f32.mrf.mxu0
      %v4246 = vadd.f32 0.0, %v4245
      %v4247 = vpop.f32.mrf.mxu0
      %4248 = vmatprep.mubr.bf16.mxu0 0
      %4249 = vmatmul.mubr.bf16.gmra.mxu0 %v3503
      %v4250 = vpop.f32.mrf.mxu0
      %v4251 = vadd.f32 0.0, %v4250
      %v4252 = vpop.f32.mrf.mxu0
      %v4253 = vpop.f32.mrf.mxu0
      %v4254 = vadd.f32 0.0, %v4253
      %v4255 = vpop.f32.mrf.mxu0
      %4256 = vmatprep.mubr.bf16.mxu0 0
      %4257 = vmatmul.mubr.bf16.gmra.mxu0 %v3790
      %v4258 = vpop.f32.mrf.mxu0
      %v4259 = vadd.f32 0.0, %v4258
      %v4260 = vpop.f32.mrf.mxu0
      %v4261 = vpop.f32.mrf.mxu0
      %v4262 = vadd.f32 0.0, %v4261
      %v4263 = vpop.f32.mrf.mxu0
      %4264 = vmatprep.mubr.bf16.mxu0 0
      %4265 = vmatmul.mubr.bf16.gmra.mxu0 %v4062
      %v4266 = vpop.f32.mrf.mxu0
      %v4267 = vadd.f32 0.0, %v4266
      %v4268 = vpop.f32.mrf.mxu0
      %v4269 = vpop.f32.mrf.mxu0
      %v4270 = vadd.f32 0.0, %v4269
      %v4271 = vpop.f32.mrf.mxu0
      %4272 = vdwg.mxu0
      %v4273 = vadd.f32 %v4001, %v4147
      %v4274 = vadd.f32 %v4002, %v4150
      %v4275 = vadd.f32 %v4003, %v4155
      %v4276 = vadd.f32 %v4004, %v4158
      %v4277 = vadd.f32 %v4005, %v4163
      %v4278 = vadd.f32 %v4006, %v4166
      %v4279 = vadd.f32 %v4007, %v4171
      %v4280 = vadd.f32 %v4008, %v4174
      %v4281 = vadd.f32 %v4009, %v4179
      %v4282 = vadd.f32 %v4010, %v4182
      %v4283 = vadd.f32 %v4011, %v4187
      %v4284 = vadd.f32 %v4012, %v4190
      %v4285 = vadd.f32 %v4013, %v4195
      %v4286 = vadd.f32 %v4014, %v4198
      %v4287 = vadd.f32 %v4015, %v4203
      %v4288 = vadd.f32 %v4016, %v4206
      %v4289 = vadd.f32 %v4017, %v4211
      %v4290 = vadd.f32 %v4018, %v4214
      %v4291 = vadd.f32 %v4019, %v4219
      %v4292 = vadd.f32 %v4020, %v4222
      %v4293 = vadd.f32 %v4021, %v4227
      %v4294 = vadd.f32 %v4022, %v4230
      %v4295 = vadd.f32 %v4023, %v4235
      %v4296 = vadd.f32 %v4024, %v4238
      %v4297 = vadd.f32 %v4025, %v4243
      %v4298 = vadd.f32 %v4026, %v4246
      %v4299 = vadd.f32 %v4027, %v4251
      %v4300 = vadd.f32 %v4028, %v4254
      %v4301 = vadd.f32 %v4029, %v4259
      %v4302 = vadd.f32 %v4030, %v4262
      %v4303 = vadd.f32 %v4031, %v4267
      %v4304 = vadd.f32 %v4032, %v4270
      %v4305 = vpack.c.bf16 %v4274, %v4273
      %v4306 = vpack.c.bf16 %v4276, %v4275
      %v4307 = vpack.c.bf16 %v4278, %v4277
      %v4308 = vpack.c.bf16 %v4280, %v4279
      %v4309 = vpack.c.bf16 %v4282, %v4281
      %v4310 = vpack.c.bf16 %v4284, %v4283
      %v4311 = vpack.c.bf16 %v4286, %v4285
      %v4312 = vpack.c.bf16 %v4288, %v4287
      %v4313 = vpack.c.bf16 %v4290, %v4289
      %v4314 = vpack.c.bf16 %v4292, %v4291
      %v4315 = vpack.c.bf16 %v4294, %v4293
      %v4316 = vpack.c.bf16 %v4296, %v4295
      %v4317 = vpack.c.bf16 %v4298, %v4297
      %v4318 = vpack.c.bf16 %v4300, %v4299
      %v4319 = vpack.c.bf16 %v4302, %v4301
      %v4320 = vpack.c.bf16 %v4304, %v4303
      %v4337 = vunpack.c.l.b16 %v4305
      %v4338 = vunpack.c.h.b16 %v4305
      %v4339 = vunpack.c.l.b16 %v4306
      %v4340 = vunpack.c.h.b16 %v4306
      %v4341 = vunpack.c.l.b16 %v4307
      %v4342 = vunpack.c.h.b16 %v4307
      %v4343 = vunpack.c.l.b16 %v4308
      %v4344 = vunpack.c.h.b16 %v4308
      %v4345 = vunpack.c.l.b16 %v4309
      %v4346 = vunpack.c.h.b16 %v4309
      %v4347 = vunpack.c.l.b16 %v4310
      %v4348 = vunpack.c.h.b16 %v4310
      %v4349 = vunpack.c.l.b16 %v4311
      %v4350 = vunpack.c.h.b16 %v4311
      %v4351 = vunpack.c.l.b16 %v4312
      %v4352 = vunpack.c.h.b16 %v4312
      %v4353 = vunpack.c.l.b16 %v4313
      %v4354 = vunpack.c.h.b16 %v4313
      %v4355 = vunpack.c.l.b16 %v4314
      %v4356 = vunpack.c.h.b16 %v4314
      %v4357 = vunpack.c.l.b16 %v4315
      %v4358 = vunpack.c.h.b16 %v4315
      %v4359 = vunpack.c.l.b16 %v4316
      %v4360 = vunpack.c.h.b16 %v4316
      %v4361 = vunpack.c.l.b16 %v4317
      %v4362 = vunpack.c.h.b16 %v4317
      %v4363 = vunpack.c.l.b16 %v4318
      %v4364 = vunpack.c.h.b16 %v4318
      %v4365 = vunpack.c.l.b16 %v4319
      %v4366 = vunpack.c.h.b16 %v4319
      %v4367 = vunpack.c.l.b16 %v4320
      %v4368 = vunpack.c.h.b16 %v4320
      %v4369 = vpack.c.b16 %v4337, %v4337
      %v4370 = vpack.c.b16 %v4338, %v4338
      %v4371 = vpack.c.b16 %v4339, %v4339
      %v4372 = vpack.c.b16 %v4340, %v4340
      %v4373 = vpack.c.b16 %v4341, %v4341
      %v4374 = vpack.c.b16 %v4342, %v4342
      %v4375 = vpack.c.b16 %v4343, %v4343
      %v4376 = vpack.c.b16 %v4344, %v4344
      %v4377 = vpack.c.b16 %v4345, %v4345
      %v4378 = vpack.c.b16 %v4346, %v4346
      %v4379 = vpack.c.b16 %v4347, %v4347
      %v4380 = vpack.c.b16 %v4348, %v4348
      %v4381 = vpack.c.b16 %v4349, %v4349
      %v4382 = vpack.c.b16 %v4350, %v4350
      %v4383 = vpack.c.b16 %v4351, %v4351
      %v4384 = vpack.c.b16 %v4352, %v4352
      %v4385 = vpack.c.b16 %v4353, %v4353
      %v4386 = vpack.c.b16 %v4354, %v4354
      %v4387 = vpack.c.b16 %v4355, %v4355
      %v4388 = vpack.c.b16 %v4356, %v4356
      %v4389 = vpack.c.b16 %v4357, %v4357
      %v4390 = vpack.c.b16 %v4358, %v4358
      %v4391 = vpack.c.b16 %v4359, %v4359
      %v4392 = vpack.c.b16 %v4360, %v4360
      %v4393 = vpack.c.b16 %v4361, %v4361
      %v4394 = vpack.c.b16 %v4362, %v4362
      %v4395 = vpack.c.b16 %v4363, %v4363
      %v4396 = vpack.c.b16 %v4364, %v4364
      %v4397 = vpack.c.b16 %v4365, %v4365
      %v4398 = vpack.c.b16 %v4366, %v4366
      %v4399 = vpack.c.b16 %v4367, %v4367
      %v4400 = vpack.c.b16 %v4368, %v4368
      %4433 = vst [vmem:[%s214] sm:$0xf] %v4369
      %4434 = vst [vmem:[%s214 + $0x4] sm:$0xf] %v4370
      %4435 = vst [vmem:[%s214 + $0x8] sm:$0xf] %v4371
      %4436 = vst [vmem:[%s214 + $0xc] sm:$0xf] %v4372
      %4437 = vst [vmem:[%s214 + $0x10] sm:$0xf] %v4373
      %4438 = vst [vmem:[%s214 + $0x14] sm:$0xf] %v4374
      %4439 = vst [vmem:[%s214 + $0x18] sm:$0xf] %v4375
      %4440 = vst [vmem:[%s214 + $0x1c] sm:$0xf] %v4376
      %4441 = vst [vmem:[%s214 + $0x20] sm:$0xf] %v4377
      %4442 = vst [vmem:[%s214 + $0x24] sm:$0xf] %v4378
      %4443 = vst [vmem:[%s214 + $0x28] sm:$0xf] %v4379
      %4444 = vst [vmem:[%s214 + $0x2c] sm:$0xf] %v4380
      %4445 = vst [vmem:[%s214 + $0x30] sm:$0xf] %v4381
      %4446 = vst [vmem:[%s214 + $0x34] sm:$0xf] %v4382
      %4447 = vst [vmem:[%s214 + $0x38] sm:$0xf] %v4383
      %4448 = vst [vmem:[%s214 + $0x3c] sm:$0xf] %v4384
      %4449 = vst [vmem:[%s214 + $0x40] sm:$0xf] %v4385
      %4450 = vst [vmem:[%s214 + $0x44] sm:$0xf] %v4386
      %4451 = vst [vmem:[%s214 + $0x48] sm:$0xf] %v4387
      %4452 = vst [vmem:[%s214 + $0x4c] sm:$0xf] %v4388
      %4453 = vst [vmem:[%s214 + $0x50] sm:$0xf] %v4389
      %4454 = vst [vmem:[%s214 + $0x54] sm:$0xf] %v4390
      %4455 = vst [vmem:[%s214 + $0x58] sm:$0xf] %v4391
      %4456 = vst [vmem:[%s214 + $0x5c] sm:$0xf] %v4392
      %4457 = vst [vmem:[%s214 + $0x60] sm:$0xf] %v4393
      %4458 = vst [vmem:[%s214 + $0x64] sm:$0xf] %v4394
      %4459 = vst [vmem:[%s214 + $0x68] sm:$0xf] %v4395
      %4460 = vst [vmem:[%s214 + $0x6c] sm:$0xf] %v4396
      %4461 = vst [vmem:[%s214 + $0x70] sm:$0xf] %v4397
      %4462 = vst [vmem:[%s214 + $0x74] sm:$0xf] %v4398
      %4463 = vst [vmem:[%s214 + $0x78] sm:$0xf] %v4399
      %4464 = vst [vmem:[%s214 + $0x7c] sm:$0xf] %v4400
      %v4465 = vadd.f32 %v4273, %v4274
      %v4466 = vadd.f32 %v4465, %v4275
      %v4467 = vadd.f32 %v4466, %v4276
      %v4468 = vadd.f32 %v4467, %v4277
      %v4469 = vadd.f32 %v4468, %v4278
      %v4470 = vadd.f32 %v4469, %v4279
      %v4471 = vadd.f32 %v4470, %v4280
      %v4472 = vadd.f32 %v4471, %v4281
      %v4473 = vadd.f32 %v4472, %v4282
      %v4474 = vadd.f32 %v4473, %v4283
      %v4475 = vadd.f32 %v4474, %v4284
      %v4476 = vadd.f32 %v4475, %v4285
      %v4477 = vadd.f32 %v4476, %v4286
      %v4478 = vadd.f32 %v4477, %v4287
      %v4479 = vadd.f32 %v4478, %v4288
      %v4480 = vadd.f32 %v4479, %v4289
      %v4481 = vadd.f32 %v4480, %v4290
      %v4482 = vadd.f32 %v4481, %v4291
      %v4483 = vadd.f32 %v4482, %v4292
      %v4484 = vadd.f32 %v4483, %v4293
      %v4485 = vadd.f32 %v4484, %v4294
      %v4486 = vadd.f32 %v4485, %v4295
      %v4487 = vadd.f32 %v4486, %v4296
      %v4488 = vadd.f32 %v4487, %v4297
      %v4489 = vadd.f32 %v4488, %v4298
      %v4490 = vadd.f32 %v4489, %v4299
      %v4491 = vadd.f32 %v4490, %v4300
      %v4492 = vadd.f32 %v4491, %v4301
      %v4493 = vadd.f32 %v4492, %v4302
      %v4494 = vadd.f32 %v4493, %v4303
      %v4495 = vadd.f32 %v4494, %v4304
      %v4496 = vrot.slane %v4495, 4
      %v4497 = vadd.f32 %v4495, %v4496
      %v4498 = vrot.slane %v4497, 2
      %v4499 = vadd.f32 %v4497, %v4498
      %v4500 = vrot.slane %v4499, 1
      %v4501 = vadd.f32 %v4499, %v4500
      %v4502 = vmul.f32 %v4273, %v4273
      %v4503 = vmul.f32 %v4274, %v4274
      %v4504 = vmul.f32 %v4275, %v4275
      %v4505 = vmul.f32 %v4276, %v4276
      %v4506 = vmul.f32 %v4277, %v4277
      %v4507 = vmul.f32 %v4278, %v4278
      %v4508 = vmul.f32 %v4279, %v4279
      %v4509 = vmul.f32 %v4280, %v4280
      %v4510 = vmul.f32 %v4281, %v4281
      %v4511 = vmul.f32 %v4282, %v4282
      %v4512 = vmul.f32 %v4283, %v4283
      %v4513 = vmul.f32 %v4284, %v4284
      %v4514 = vmul.f32 %v4285, %v4285
      %v4515 = vmul.f32 %v4286, %v4286
      %v4516 = vmul.f32 %v4287, %v4287
      %v4517 = vmul.f32 %v4288, %v4288
      %v4518 = vmul.f32 %v4289, %v4289
      %v4519 = vmul.f32 %v4290, %v4290
      %v4520 = vmul.f32 %v4291, %v4291
      %v4521 = vmul.f32 %v4292, %v4292
      %v4522 = vmul.f32 %v4293, %v4293
      %v4523 = vmul.f32 %v4294, %v4294
      %v4524 = vmul.f32 %v4295, %v4295
      %v4525 = vmul.f32 %v4296, %v4296
      %v4526 = vmul.f32 %v4297, %v4297
      %v4527 = vmul.f32 %v4298, %v4298
      %v4528 = vmul.f32 %v4299, %v4299
      %v4529 = vmul.f32 %v4300, %v4300
      %v4530 = vmul.f32 %v4301, %v4301
      %v4531 = vmul.f32 %v4302, %v4302
      %v4532 = vmul.f32 %v4303, %v4303
      %v4533 = vmul.f32 %v4304, %v4304
      %v4534 = vadd.f32 %v4502, %v4503
      %v4535 = vadd.f32 %v4534, %v4504
      %v4536 = vadd.f32 %v4535, %v4505
      %v4537 = vadd.f32 %v4536, %v4506
      %v4538 = vadd.f32 %v4537, %v4507
      %v4539 = vadd.f32 %v4538, %v4508
      %v4540 = vadd.f32 %v4539, %v4509
      %v4541 = vadd.f32 %v4540, %v4510
      %v4542 = vadd.f32 %v4541, %v4511
      %v4543 = vadd.f32 %v4542, %v4512
      %v4544 = vadd.f32 %v4543, %v4513
      %v4545 = vadd.f32 %v4544, %v4514
      %v4546 = vadd.f32 %v4545, %v4515
      %v4547 = vadd.f32 %v4546, %v4516
      %v4548 = vadd.f32 %v4547, %v4517
      %v4549 = vadd.f32 %v4548, %v4518
      %v4550 = vadd.f32 %v4549, %v4519
      %v4551 = vadd.f32 %v4550, %v4520
      %v4552 = vadd.f32 %v4551, %v4521
      %v4553 = vadd.f32 %v4552, %v4522
      %v4554 = vadd.f32 %v4553, %v4523
      %v4555 = vadd.f32 %v4554, %v4524
      %v4556 = vadd.f32 %v4555, %v4525
      %v4557 = vadd.f32 %v4556, %v4526
      %v4558 = vadd.f32 %v4557, %v4527
      %v4559 = vadd.f32 %v4558, %v4528
      %v4560 = vadd.f32 %v4559, %v4529
      %v4561 = vadd.f32 %v4560, %v4530
      %v4562 = vadd.f32 %v4561, %v4531
      %v4563 = vadd.f32 %v4562, %v4532
      %v4564 = vadd.f32 %v4563, %v4533
      %v4565 = vrot.slane %v4564, 4
      %v4566 = vadd.f32 %v4564, %v4565
      %v4567 = vrot.slane %v4566, 2
      %v4568 = vadd.f32 %v4566, %v4567
      %v4569 = vrot.slane %v4568, 1
      %v4570 = vadd.f32 %v4568, %v4569
      %vm4571 = vcmask 1040384
      %v4572 = vsel %vm4571, %v4501, %v4570
      %4573 = vst [vmem:[%s222] sm:$0x3] %v4572
      %s4574 = smul.u32 16, %s22
      %p4575 = scmp.lt.s32.totalorder %s21, 1
      %s4576 = scalar_select %p4575, %s21, 1
      %p4577 = scmp.lt.s32.totalorder %s4574, 15
      %s4578 = scalar_select %p4577, %s4574, 15
      %s4579 = smul.addr %s4578, 2
      %s4580 = smul.addr %s4576, 32
      %s4581 = sadd.s32 %s4579, %s4580
      %s4582 = smul.addr %s4581, 4
      %s4583 = scalar_lea.vmem %s4, %s4582
      %p4584 = scmp.lt.s32.totalorder %s21, 1
      %s4585 = scalar_select %p4584, %s21, 1
      %p4586 = scmp.lt.s32.totalorder %s22, 0
      %s4587 = scalar_select %p4586, %s22, 0
      %s4588 = sadd.s32 %s4587, %s4585
      %s4589 = smul.addr %s4588, 2
      %s4590 = scalar_lea.vmem %s5, %s4589
      // Predicated region
      $region67: #{encoder_forward.4} parent=31 // pred_check
        %p4591 = pneg %p112
      $region68: #{encoder_forward.4} parent=31 // pred_check_branch
        %4593 = sbr.rel (%p4591) target = $region70
      $region69: #{encoder_forward.4} parent=31 // pred_region
        %s4594 = smul.u32 16, %s22
      $region70: #{encoder_forward.4} parent=31 // pred_fallthru
        _
      // Predicated region
      $region71: #{encoder_forward.4} parent=31 // pred_check
        %p4595 = pneg %p140
      $region72: #{encoder_forward.4} parent=31 // pred_check_branch
        %4597 = sbr.rel (%p4595) target = $region74
      $region73: #{encoder_forward.4} parent=31 // pred_region
        _
      $region74: #{encoder_forward.4} parent=31 // pred_fallthru
        _
    $region32: #{encoder_forward.4} parent=5 // pred_fallthru
      _
    %p4598 = scmp.le.s32.totalorder 2, %s12
    // Predicated region
    $region75: #{encoder_forward.4} parent=5 // pred_check
      %p4599 = pneg %p4598
    $region76: #{encoder_forward.4} parent=5 // pred_check_branch
      %4601 = sbr.rel (%p4599) target = $region78
    $region77: #{encoder_forward.4} parent=5 // pred_region
      %s4602 = ssub.s32 %s12, 2
      // Predicated region
      $region79: #{encoder_forward.4} parent=77 // pred_check
        %p4603 = pneg %p118
      $region80: #{encoder_forward.4} parent=77 // pred_check_branch
        %4605 = sbr.rel (%p4603) target = $region82
      $region81: #{encoder_forward.4} parent=77 // pred_region
        %s4606 = smul.u32 16, %s24
        %p4607 = scmp.lt.s32.totalorder %s23, 1
        %s4608 = scalar_select %p4607, %s23, 1
        %p4609 = scmp.lt.s32.totalorder %s4606, 15
        %s4610 = scalar_select %p4609, %s4606, 15
        %s4611 = smul.addr %s4610, 2
        %s4612 = smul.addr %s4608, 32
        %s4613 = sadd.s32 %s4611, %s4612
        %s4614 = smul.addr %s4613, 4
        %s4615 = scalar_lea.vmem %s4, %s4614
      $region82: #{encoder_forward.4} parent=77 // pred_fallthru
        _
      // Predicated region
      $region83: #{encoder_forward.4} parent=77 // pred_check
        %p4616 = pneg %p146
      $region84: #{encoder_forward.4} parent=77 // pred_check_branch
        %4618 = sbr.rel (%p4616) target = $region86
      $region85: #{encoder_forward.4} parent=77 // pred_region
        %p4619 = scmp.lt.s32.totalorder %s23, 1
        %s4620 = scalar_select %p4619, %s23, 1
        %p4621 = scmp.lt.s32.totalorder %s24, 0
        %s4622 = scalar_select %p4621, %s24, 0
        %s4623 = sadd.s32 %s4622, %s4620
        %s4624 = smul.addr %s4623, 2
        %s4625 = scalar_lea.vmem %s5, %s4624
      $region86: #{encoder_forward.4} parent=77 // pred_fallthru
        _
    $region78: #{encoder_forward.4} parent=5 // pred_fallthru
      _
  $region6: #{encoder_forward.4} parent=0 // loop_footer
    %s16 = sadd.s32 1, %s12
  $region7: #{encoder_forward.4} parent=0 // loop_footer_branch
    %11 = sbr.rel target = $region3
  $region8: #{encoder_forward.4} parent=0 // loop_exit
    _
  %4626 = vsyncmov [#allocation4]
  %s4627 = vpop.sfrf %4626
  %p4628 = scmp.eq.s32.totalorder %s4627, 0
  %p4629 = pneg %p4628
  %4631 = shalt.err (%p4629)

</llo_original>
